<compile_context>
chip_gen: v7x
topology: tpu7x:2x2x1
jax: 0.10.0
libtpu: 0.0.40
codegen_flags: <defaults>
</compile_context>

<pallas_src>
import jax
import jax.numpy as jnp
from jax.experimental import pallas as pl
from jax.experimental.pallas import tpu as pltpu


def _log_sigmoid(x):
    # Numerically stable log(sigmoid(x)) = -softplus(-x); exp/log1p/max/abs only.
    return -(jnp.maximum(-x, 0.0) + jnp.log1p(jnp.exp(-jnp.abs(x))))


def line_loss_kernel(emb_ref, w_ref, pos_ref, neg_ref, Waug_ref, out_ref):
    two_d = pos_ref.shape[-1]

    W_aug = Waug_ref[...]                 # [D, 2D+1]  resident (constant index_map)
    emb = emb_ref[...]                    # [TB, D]
    pos = pos_ref[...]                    # [TB, 2D]
    neg = neg_ref[...]                    # [TB, NS, 2D]
    w = w_ref[...]                        # [1, TB]    lane-major weights

    # One MXU matmul: u[:, :2D] = emb @ W (service projection), u[:, 2D] = emb . bias.
    u = jnp.dot(emb, W_aug, preferred_element_type=jnp.float32)   # [TB, 2D+1]
    u_svc = u[:, :two_d]                                          # [TB, 2D]
    c = u[:, two_d:two_d + 1]                                     # [TB, 1]

    # Raw scores <emb, svc_map(sample)> for positive and negative samples.
    pos_raw = jnp.sum(pos * u_svc, axis=-1, keepdims=True) + c               # [TB, 1]
    neg_raw = jnp.sum(neg * u_svc[:, None, :], axis=-1) + c                  # [TB, NS]

    # Fold pos into the sample axis with its +1 sign (negatives get -1), then
    # transpose so samples sit on sublanes and batch rows on lanes: the exp/log
    # (EUP) work below runs on dense vregs instead of lane-sparse [TB, NS] tiles.
    scores = jnp.concatenate([pos_raw, -neg_raw], axis=1)                    # [TB, S]
    scores_t = scores.T                                                      # [S, TB]
    logsig = _log_sigmoid(scores_t)                                          # [S, TB]

    row_total = jnp.sum(logsig, axis=0, keepdims=True)                       # [1, TB]
    out_ref[...] = -(w * row_total)                                          # lane-dense store


def _round_up(x, m):
    return -(-x // m) * m


def _vmem_footprint_bytes(tb, ns, two_d, d, itemsize=4):
    """Double-buffered VMEM footprint of one grid step, incl. (8,128) layout padding."""
    neg_b = tb * _round_up(ns, 8) * _round_up(two_d, 128)
    pos_b = tb * _round_up(two_d, 128)
    emb_b = tb * _round_up(d, 128)
    w_b = 8 * _round_up(tb, 128)
    out_b = 8 * _round_up(tb, 128)
    step = (neg_b + pos_b + emb_b + w_b + out_b) * itemsize
    resident = _round_up(d, 8) * _round_up(two_d + 1, 128) * itemsize        # W_aug
    return 2 * (step + resident)


def _choose_block_rows(B, ns, two_d, d, itemsize=4, budget_bytes=40 << 20):
    """Largest 128-multiple batch tile within the double-buffered VMEM budget."""
    if B <= 128:
        return B                       # single tile; block shape == full array is legal
    cap = _round_up(B, 128)
    for tb in (1024, 512, 256, 128):
        if tb <= cap and _vmem_footprint_bytes(tb, ns, two_d, d, itemsize) <= budget_bytes:
            return tb
    return 128


def init_params(key, num_pat, embed_dim):
    k_emb, k_w, k_b = jax.random.split(key, 3)
    # nn.Embedding weight then .uniform_(-1, 1)
    emb_table = jax.random.uniform(k_emb, (num_pat, embed_dim),
                                   minval=-1.0, maxval=1.0, dtype=jnp.float32)
    # nn.Linear(2D, D): weight [D, 2D], bias [D], uniform(-1/sqrt(2D), 1/sqrt(2D))
    bound = 1.0 / jnp.sqrt(2.0 * embed_dim)
    W = jax.random.uniform(k_w, (embed_dim, 2 * embed_dim),
                           minval=-bound, maxval=bound, dtype=jnp.float32)
    b = jax.random.uniform(k_b, (embed_dim,),
                           minval=-bound, maxval=bound, dtype=jnp.float32)
    return emb_table, W, b


def line_loss_forward(params, input_labels, input_weights, pos_svcs, neg_svcs,
                      *, block_rows=None):
    emb_table, W, b = params
    B = input_labels.shape[0]
    D = emb_table.shape[1]
    two_d = pos_svcs.shape[1]
    NS = neg_svcs.shape[0] // B
    assert NS * B == neg_svcs.shape[0]
    # NOTE: neg_svcs rows must be b-major / sample-minor, matching the PyTorch
    # .view(B, NS, D) of the mapped negatives.

    # Glue outside the kernel: embedding gather, free reshapes, bias fold.
    # TODO(synk): keep pos/neg (and emb) in bf16 HBM traffic when precision allows.
    emb = emb_table[input_labels].astype(jnp.float32)              # [B, D]
    w2 = input_weights.reshape(1, B).astype(jnp.float32)           # [1, B] lane-major
    pos = pos_svcs.astype(jnp.float32)                             # [B, 2D]
    neg3 = neg_svcs.astype(jnp.float32).reshape(B, NS, two_d)      # [B, NS, 2D] (view)
    W_aug = jnp.concatenate([W, b.reshape(D, 1)], axis=1).astype(jnp.float32)  # [D, 2D+1]

    TB = block_rows if block_rows is not None else _choose_block_rows(B, NS, two_d, D)
    B_pad = _round_up(B, TB)
    assert (B_pad == TB) or (TB % 128 == 0), (B, TB)
    pad = B_pad - B
    if pad:
        emb = jnp.pad(emb, ((0, pad), (0, 0)))
        w2 = jnp.pad(w2, ((0, 0), (0, pad)))        # zero weight -> zero contribution
        pos = jnp.pad(pos, ((0, pad), (0, 0)))
        neg3 = jnp.pad(neg3, ((0, pad), (0, 0), (0, 0)))
    grid = (B_pad // TB,)

    footprint = _vmem_footprint_bytes(TB, NS, two_d, D)
    vmem_limit = int(min(48 * 1024 * 1024, max(footprint + (4 << 20), 16 * 1024 * 1024)))

    # TODO(synk): for very small TB, sweep pl.Buffered(3) on the neg/pos specs.
    out = pl.pallas_call(
        line_loss_kernel,
        out_shape=jax.ShapeDtypeStruct((1, B_pad), jnp.float32),
        grid=grid,
        in_specs=[
            pl.BlockSpec((TB, D), lambda i: (i, 0)),              # emb
            pl.BlockSpec((1, TB), lambda i: (0, i)),              # weights (lane-major)
            pl.BlockSpec((TB, two_d), lambda i: (i, 0)),          # pos_svcs
            pl.BlockSpec((TB, NS, two_d), lambda i: (i, 0, 0)),   # neg_svcs
            pl.BlockSpec((D, two_d + 1), lambda i: (0, 0)),       # W_aug (resident)
        ],
        out_specs=pl.BlockSpec((1, TB), lambda i: (0, i)),        # per-tile partials
        compiler_params=pltpu.CompilerParams(
            dimension_semantics=("parallel",),                    # megacore-friendly
            vmem_limit_bytes=vmem_limit,
        ),
    )(emb, w2, pos, neg3, W_aug)

    return jnp.sum(out)                                           # padded rows are 0


def line_loss_reference(params, input_labels, input_weights, pos_svcs, neg_svcs):
    # Pure-JAX mirror of the PyTorch forward (stable log-sigmoid), for checking.
    emb_table, W, b = params
    B = input_labels.shape[0]
    D = emb_table.shape[1]
    inp = emb_table[input_labels]                              # [B, D]
    out = pos_svcs @ W.T + b                                   # [B, D]
    neg = neg_svcs @ W.T + b                                   # [B*NS, D]
    log_target = _log_sigmoid(jnp.sum(inp * out, axis=1))
    neg3 = neg.reshape(B, -1, D)
    scores = jnp.einsum('bnd,bd->bn', -neg3, inp)
    sum_log_sampled = jnp.sum(_log_sigmoid(scores), axis=1)
    loss = (log_target + sum_log_sampled) * input_weights
    return -jnp.sum(loss)


if __name__ == "__main__":
    num_pat = 50
    embed_dim = 32
    B = 200           # batch_size * window_size (not a tile multiple: exercises padding)
    num_sampled = 4

    key = jax.random.PRNGKey(0)
    k_params, k_lbl, k_w, k_pos, k_neg = jax.random.split(key, 5)

    params = init_params(k_params, num_pat, embed_dim)

    input_labels = jax.random.randint(k_lbl, (B,), 0, num_pat, dtype=jnp.int32)
    input_weights = jax.random.uniform(k_w, (B,), dtype=jnp.float32)
    pos_svcs = jax.random.normal(k_pos, (B, 2 * embed_dim), dtype=jnp.float32)
    neg_svcs = jax.random.normal(k_neg, (B * num_sampled, 2 * embed_dim),
                                 dtype=jnp.float32)

    ref = jax.block_until_ready(
        line_loss_reference(params, input_labels, input_weights, pos_svcs, neg_svcs))

    # Auto tile choice (single tile, no padding of the grid axis beyond TB).
    loss_auto = jax.block_until_ready(
        line_loss_forward(params, input_labels, input_weights, pos_svcs, neg_svcs))
    assert jnp.allclose(loss_auto, ref, rtol=1e-4, atol=1e-3), (loss_auto, ref)

    # Explicit 128-row tiles: grid of 2 parallel tiles + zero-weight batch padding.
    loss_tiled = jax.block_until_ready(
        line_loss_forward(params, input_labels, input_weights, pos_svcs, neg_svcs,
                          block_rows=128))
    assert jnp.allclose(loss_tiled, ref, rtol=1e-4, atol=1e-3), (loss_tiled, ref)

    print("KERNEL_OK")
</pallas_src>

<mosaic_0001>
module attributes {stable_mosaic.version = 11 : i64} {
  func.func @line_loss_kernel(%arg0: i32, %arg1: memref<256x32xf32, #tpu.memory_space<vmem>>, %arg2: memref<1x256xf32, #tpu.memory_space<vmem>>, %arg3: memref<256x64xf32, #tpu.memory_space<vmem>>, %arg4: memref<256x4x64xf32, #tpu.memory_space<vmem>>, %arg5: memref<32x65xf32, #tpu.memory_space<vmem>>, %arg6: memref<1x256xf32, #tpu.memory_space<vmem>>) attributes {dimension_semantics = [#tpu.dimension_semantics<parallel>], iteration_bounds = array<i64: 1>, scalar_prefetch = 0 : i64, scratch_operands = 0 : i64, tpu.core_type = #tpu.core_type<tc>, window_params = [{transform_indices = @transform_0, window_bounds = array<i64: 256, 32>}, {transform_indices = @transform_1, window_bounds = array<i64: 1, 256>}, {transform_indices = @transform_2, window_bounds = array<i64: 256, 64>}, {transform_indices = @transform_3, window_bounds = array<i64: 256, 4, 64>}, {pipeline_mode = #tpu.pipeline_mode<synchronous>, transform_indices = @transform_4, window_bounds = array<i64: 32, 65>}, {transform_indices = @transform_5, window_bounds = array<i64: 1, 256>}]} {
    %c0 = arith.constant 0 : index
    %c0_0 = arith.constant 0 : index
    %0 = vector.load %arg5[%c0, %c0_0] : memref<32x65xf32, #tpu.memory_space<vmem>>, vector<32x65xf32>
    %c0_1 = arith.constant 0 : index
    %c0_2 = arith.constant 0 : index
    %1 = vector.load %arg1[%c0_1, %c0_2] : memref<256x32xf32, #tpu.memory_space<vmem>>, vector<256x32xf32>
    %c0_3 = arith.constant 0 : index
    %c0_4 = arith.constant 0 : index
    %2 = vector.load %arg3[%c0_3, %c0_4] : memref<256x64xf32, #tpu.memory_space<vmem>>, vector<256x64xf32>
    %c0_5 = arith.constant 0 : index
    %c0_6 = arith.constant 0 : index
    %c0_7 = arith.constant 0 : index
    %3 = vector.load %arg4[%c0_5, %c0_6, %c0_7] : memref<256x4x64xf32, #tpu.memory_space<vmem>>, vector<256x4x64xf32>
    %c0_8 = arith.constant 0 : index
    %c0_9 = arith.constant 0 : index
    %4 = vector.load %arg2[%c0_8, %c0_9] : memref<1x256xf32, #tpu.memory_space<vmem>>, vector<1x256xf32>
    %cst = arith.constant dense<0.000000e+00> : vector<256x65xf32>
    %5 = tpu.matmul %1, %0, %cst {dimension_numbers = #tpu.dot_dimension_numbers<[1], [0], [0], [1], [0, 0, 1, 1], [], []>} : vector<256x32xf32>, vector<32x65xf32>, vector<256x65xf32> -> vector<256x65xf32>
    %6 = vector.extract_strided_slice %5 {offsets = [0, 0], sizes = [256, 64], strides = [1, 1]} : vector<256x65xf32> to vector<256x64xf32>
    %7 = vector.extract_strided_slice %5 {offsets = [0, 64], sizes = [256, 1], strides = [1, 1]} : vector<256x65xf32> to vector<256x1xf32>
    %8 = arith.mulf %2, %6 : vector<256x64xf32>
    %cst_10 = arith.constant dense<0.000000e+00> : vector<256xf32>
    %9 = vector.multi_reduction <add>, %8, %cst_10 [1] : vector<256x64xf32> to vector<256xf32>
    %10 = vector.shape_cast %9 : vector<256xf32> to vector<256x1xf32>
    %11 = arith.addf %10, %7 : vector<256x1xf32>
    %12 = vector.shape_cast %6 : vector<256x64xf32> to vector<256x1x64xf32>
    %13 = vector.broadcast %12 : vector<256x1x64xf32> to vector<256x4x64xf32>
    %14 = arith.mulf %3, %13 : vector<256x4x64xf32>
    %cst_11 = arith.constant dense<0.000000e+00> : vector<256x4xf32>
    %15 = vector.multi_reduction <add>, %14, %cst_11 [2] : vector<256x4x64xf32> to vector<256x4xf32>
    %16 = vector.broadcast %7 : vector<256x1xf32> to vector<256x4xf32>
    %17 = arith.addf %15, %16 : vector<256x4xf32>
    %cst_12 = arith.constant 0.000000e+00 : f32
    %18 = vector.broadcast %cst_12 : f32 to vector<256x4xf32>
    %19 = arith.subf %18, %17 : vector<256x4xf32>
    %20 = tpu.concatenate %11, %19 in 1 : vector<256x1xf32>, vector<256x4xf32> -> vector<256x5xf32>
    %21 = tpu.transpose %20, [1, 0] : vector<256x5xf32> -> vector<5x256xf32>
    %cst_13 = arith.constant 0.000000e+00 : f32
    %22 = vector.broadcast %cst_13 : f32 to vector<5x256xf32>
    %23 = arith.subf %22, %21 : vector<5x256xf32>
    %cst_14 = arith.constant 0.000000e+00 : f32
    %24 = vector.broadcast %cst_14 : f32 to vector<5x256xf32>
    %25 = arith.maximumf %23, %24 : vector<5x256xf32>
    %26 = math.absf %21 : vector<5x256xf32>
    %cst_15 = arith.constant 0.000000e+00 : f32
    %27 = vector.broadcast %cst_15 : f32 to vector<5x256xf32>
    %28 = arith.subf %27, %26 : vector<5x256xf32>
    %29 = math.exp %28 : vector<5x256xf32>
    %30 = math.log1p %29 : vector<5x256xf32>
    %31 = arith.addf %25, %30 : vector<5x256xf32>
    %cst_16 = arith.constant 0.000000e+00 : f32
    %32 = vector.broadcast %cst_16 : f32 to vector<5x256xf32>
    %33 = arith.subf %32, %31 : vector<5x256xf32>
    %cst_17 = arith.constant dense<0.000000e+00> : vector<256xf32>
    %34 = vector.multi_reduction <add>, %33, %cst_17 [0] : vector<5x256xf32> to vector<256xf32>
    %35 = vector.shape_cast %34 : vector<256xf32> to vector<1x256xf32>
    %36 = arith.mulf %4, %35 : vector<1x256xf32>
    %cst_18 = arith.constant 0.000000e+00 : f32
    %37 = vector.broadcast %cst_18 : f32 to vector<1x256xf32>
    %38 = arith.subf %37, %36 : vector<1x256xf32>
    %c0_19 = arith.constant 0 : index
    %c0_20 = arith.constant 0 : index
    %39 = vector.load %arg6[%c0_19, %c0_20] : memref<1x256xf32, #tpu.memory_space<vmem>>, vector<1x256xf32>
    tpu.vector_store %arg6[%c0_19, %c0_20], %38 {strides = array<i32>} : memref<1x256xf32, #tpu.memory_space<vmem>>, vector<1x256xf32>,
    return
  }
  func.func @transform_0(%arg0: i32) -> (i32, i32) {
    %c0_i32 = arith.constant 0 : i32
    %c0_i32_0 = arith.constant 0 : i32
    return %arg0, %c0_i32 : i32, i32
  }
  func.func @transform_1(%arg0: i32) -> (i32, i32) {
    %c0_i32 = arith.constant 0 : i32
    %c0_i32_0 = arith.constant 0 : i32
    return %c0_i32, %arg0 : i32, i32
  }
  func.func @transform_2(%arg0: i32) -> (i32, i32) {
    %c0_i32 = arith.constant 0 : i32
    %c0_i32_0 = arith.constant 0 : i32
    return %arg0, %c0_i32 : i32, i32
  }
  func.func @transform_3(%arg0: i32) -> (i32, i32, i32) {
    %c0_i32 = arith.constant 0 : i32
    %c0_i32_0 = arith.constant 0 : i32
    %c0_i32_1 = arith.constant 0 : i32
    return %arg0, %c0_i32, %c0_i32_0 : i32, i32, i32
  }
  func.func @transform_4(%arg0: i32) -> (i32, i32) {
    %c0_i32 = arith.constant 0 : i32
    %c0_i32_0 = arith.constant 0 : i32
    %c0_i32_1 = arith.constant 0 : i32
    return %c0_i32, %c0_i32_0 : i32, i32
  }
  func.func @transform_5(%arg0: i32) -> (i32, i32) {
    %c0_i32 = arith.constant 0 : i32
    %c0_i32_0 = arith.constant 0 : i32
    return %c0_i32, %arg0 : i32, i32
  }
}

</mosaic_0001>

<llo_original>
// kernel: tpu_custom_call.1
$region0: #{tpu_custom_call.1}
  #allocation0 [shape = 'u32[]', space=smem, size = 0x4, offset = 0x4, fixed_abs, tag = 'smem constant byte address 0x4 - core index']
  #allocation1 [shape = 'u32[144,128]{1,0:T(1,128)}', space=vmem, size = 0x12000, scoped, tag = 'internal scratch']
  %s0 = inlined_call_operand.vmem [shape: f32[256,32], index: 0, kind: input, shape index: {}]
  %s1 = inlined_call_operand.vmem [shape: f32[1,256], index: 1, kind: input, shape index: {}]
  %s2 = inlined_call_operand.vmem [shape: f32[256,64], index: 2, kind: input, shape index: {}]
  %s3 = inlined_call_operand.vmem [shape: f32[256,4,64], index: 3, kind: input, shape index: {}]
  %s4 = inlined_call_operand.vmem [shape: f32[32,65], index: 4, kind: input, shape index: {}]
  %s5 = inlined_call_operand.hbm [shape: f32[1,256], index: 5, kind: output, shape index: {}]
  %s6 = sld [smem:[#allocation0]]
  $region30: #{tpu_custom_call.1} parent=0
    _
  %s8 = ssub.s32 1, %s6
  %s9 = scalar_select 0, %s8, %s6
  $region1: #{tpu_custom_call.1} parent=0
    #allocation2 [shape = 'u8[1024]{0}', space=vmem, size = 0x400, scoped, tag = 'output window, operand 0, single buffered']
    #allocation3 [shape = 's32[1]{0}', space=sflag, size = 0x4, scoped, tag = 'scoped memory for tpu_custom_call.1']
    %10 = vsyncpa [#allocation3], 0
    // Predicated region
    $region2: #{tpu_custom_call.1} parent=1 // pred_check
      _
    $region3: #{tpu_custom_call.1} parent=1 // pred_check_branch
      %12 = sbr.rel (0) target = $region5
    $region4: #{tpu_custom_call.1} parent=1 // pred_region
      _
    $region5: #{tpu_custom_call.1} parent=1 // pred_fallthru
      _
    // Predicated region
    $region6: #{tpu_custom_call.1} parent=1 // pred_check
      _
    $region7: #{tpu_custom_call.1} parent=1 // pred_check_branch
      %14 = sbr.rel (0) target = $region9
    $region8: #{tpu_custom_call.1} parent=1 // pred_region
      _
    $region9: #{tpu_custom_call.1} parent=1 // pred_fallthru
      _
    // Predicated region
    $region10: #{tpu_custom_call.1} parent=1 // pred_check
      _
    $region11: #{tpu_custom_call.1} parent=1 // pred_check_branch
      %16 = sbr.rel (0) target = $region13
    $region12: #{tpu_custom_call.1} parent=1 // pred_region
      _
    $region13: #{tpu_custom_call.1} parent=1 // pred_fallthru
      _
    // Predicated region
    $region14: #{tpu_custom_call.1} parent=1 // pred_check
      _
    $region15: #{tpu_custom_call.1} parent=1 // pred_check_branch
      %18 = sbr.rel (0) target = $region17
    $region16: #{tpu_custom_call.1} parent=1 // pred_region
      _
    $region17: #{tpu_custom_call.1} parent=1 // pred_fallthru
      _
    // Predicated region
    $region18: #{tpu_custom_call.1} parent=1 // pred_check
      _
    $region19: #{tpu_custom_call.1} parent=1 // pred_check_branch
      %20 = sbr.rel (0) target = $region21
    $region20: #{tpu_custom_call.1} parent=1 // pred_region
      _
    $region21: #{tpu_custom_call.1} parent=1 // pred_fallthru
      _
    %v21 = vld [vmem:[%s4] sm:$0xff]
    %v22 = vld [vmem:[%s4 + $0x8] sm:$0xff]
    %v23 = vld [vmem:[%s4 + $0x10] sm:$0xff]
    %v24 = vld [vmem:[%s4 + $0x18] sm:$0xff]
    %v25 = vld [vmem:[%s0] sm:$0xff]
    %v26 = vld [vmem:[%s0 + $0x8] sm:$0xff]
    %v27 = vld [vmem:[%s0 + $0x10] sm:$0xff]
    %v28 = vld [vmem:[%s0 + $0x18] sm:$0xff]
    %v29 = vld [vmem:[%s0 + $0x20] sm:$0xff]
    %v30 = vld [vmem:[%s0 + $0x28] sm:$0xff]
    %v31 = vld [vmem:[%s0 + $0x30] sm:$0xff]
    %v32 = vld [vmem:[%s0 + $0x38] sm:$0xff]
    %v33 = vld [vmem:[%s0 + $0x40] sm:$0xff]
    %v34 = vld [vmem:[%s0 + $0x48] sm:$0xff]
    %v35 = vld [vmem:[%s0 + $0x50] sm:$0xff]
    %v36 = vld [vmem:[%s0 + $0x58] sm:$0xff]
    %v37 = vld [vmem:[%s0 + $0x60] sm:$0xff]
    %v38 = vld [vmem:[%s0 + $0x68] sm:$0xff]
    %v39 = vld [vmem:[%s0 + $0x70] sm:$0xff]
    %v40 = vld [vmem:[%s0 + $0x78] sm:$0xff]
    %v41 = vld [vmem:[%s0 + $0x80] sm:$0xff]
    %v42 = vld [vmem:[%s0 + $0x88] sm:$0xff]
    %v43 = vld [vmem:[%s0 + $0x90] sm:$0xff]
    %v44 = vld [vmem:[%s0 + $0x98] sm:$0xff]
    %v45 = vld [vmem:[%s0 + $0xa0] sm:$0xff]
    %v46 = vld [vmem:[%s0 + $0xa8] sm:$0xff]
    %v47 = vld [vmem:[%s0 + $0xb0] sm:$0xff]
    %v48 = vld [vmem:[%s0 + $0xb8] sm:$0xff]
    %v49 = vld [vmem:[%s0 + $0xc0] sm:$0xff]
    %v50 = vld [vmem:[%s0 + $0xc8] sm:$0xff]
    %v51 = vld [vmem:[%s0 + $0xd0] sm:$0xff]
    %v52 = vld [vmem:[%s0 + $0xd8] sm:$0xff]
    %v53 = vld [vmem:[%s0 + $0xe0] sm:$0xff]
    %v54 = vld [vmem:[%s0 + $0xe8] sm:$0xff]
    %v55 = vld [vmem:[%s0 + $0xf0] sm:$0xff]
    %v56 = vld [vmem:[%s0 + $0xf8] sm:$0xff]
    %v57 = vld [vmem:[%s2] sm:$0xff]
    %v58 = vld [vmem:[%s2 + $0x8] sm:$0xff]
    %v59 = vld [vmem:[%s2 + $0x10] sm:$0xff]
    %v60 = vld [vmem:[%s2 + $0x18] sm:$0xff]
    %v61 = vld [vmem:[%s2 + $0x20] sm:$0xff]
    %v62 = vld [vmem:[%s2 + $0x28] sm:$0xff]
    %v63 = vld [vmem:[%s2 + $0x30] sm:$0xff]
    %v64 = vld [vmem:[%s2 + $0x38] sm:$0xff]
    %v65 = vld [vmem:[%s2 + $0x40] sm:$0xff]
    %v66 = vld [vmem:[%s2 + $0x48] sm:$0xff]
    %v67 = vld [vmem:[%s2 + $0x50] sm:$0xff]
    %v68 = vld [vmem:[%s2 + $0x58] sm:$0xff]
    %v69 = vld [vmem:[%s2 + $0x60] sm:$0xff]
    %v70 = vld [vmem:[%s2 + $0x68] sm:$0xff]
    %v71 = vld [vmem:[%s2 + $0x70] sm:$0xff]
    %v72 = vld [vmem:[%s2 + $0x78] sm:$0xff]
    %v73 = vld [vmem:[%s2 + $0x80] sm:$0xff]
    %v74 = vld [vmem:[%s2 + $0x88] sm:$0xff]
    %v75 = vld [vmem:[%s2 + $0x90] sm:$0xff]
    %v76 = vld [vmem:[%s2 + $0x98] sm:$0xff]
    %v77 = vld [vmem:[%s2 + $0xa0] sm:$0xff]
    %v78 = vld [vmem:[%s2 + $0xa8] sm:$0xff]
    %v79 = vld [vmem:[%s2 + $0xb0] sm:$0xff]
    %v80 = vld [vmem:[%s2 + $0xb8] sm:$0xff]
    %v81 = vld [vmem:[%s2 + $0xc0] sm:$0xff]
    %v82 = vld [vmem:[%s2 + $0xc8] sm:$0xff]
    %v83 = vld [vmem:[%s2 + $0xd0] sm:$0xff]
    %v84 = vld [vmem:[%s2 + $0xd8] sm:$0xff]
    %v85 = vld [vmem:[%s2 + $0xe0] sm:$0xff]
    %v86 = vld [vmem:[%s2 + $0xe8] sm:$0xff]
    %v87 = vld [vmem:[%s2 + $0xf0] sm:$0xff]
    %v88 = vld [vmem:[%s2 + $0xf8] sm:$0xff]
    %v89 = vld [vmem:[%s3] sm:$0xf]
    %v90 = vld [vmem:[%s3 + $0x4] sm:$0xf]
    %v91 = vld [vmem:[%s3 + $0x8] sm:$0xf]
    %v92 = vld [vmem:[%s3 + $0xc] sm:$0xf]
    %v93 = vld [vmem:[%s3 + $0x10] sm:$0xf]
    %v94 = vld [vmem:[%s3 + $0x14] sm:$0xf]
    %v95 = vld [vmem:[%s3 + $0x18] sm:$0xf]
    %v96 = vld [vmem:[%s3 + $0x1c] sm:$0xf]
    %v97 = vld [vmem:[%s3 + $0x20] sm:$0xf]
    %v98 = vld [vmem:[%s3 + $0x24] sm:$0xf]
    %v99 = vld [vmem:[%s3 + $0x28] sm:$0xf]
    %v100 = vld [vmem:[%s3 + $0x2c] sm:$0xf]
    %v101 = vld [vmem:[%s3 + $0x30] sm:$0xf]
    %v102 = vld [vmem:[%s3 + $0x34] sm:$0xf]
    %v103 = vld [vmem:[%s3 + $0x38] sm:$0xf]
    %v104 = vld [vmem:[%s3 + $0x3c] sm:$0xf]
    %v105 = vld [vmem:[%s3 + $0x40] sm:$0xf]
    %v106 = vld [vmem:[%s3 + $0x44] sm:$0xf]
    %v107 = vld [vmem:[%s3 + $0x48] sm:$0xf]
    %v108 = vld [vmem:[%s3 + $0x4c] sm:$0xf]
    %v109 = vld [vmem:[%s3 + $0x50] sm:$0xf]
    %v110 = vld [vmem:[%s3 + $0x54] sm:$0xf]
    %v111 = vld [vmem:[%s3 + $0x58] sm:$0xf]
    %v112 = vld [vmem:[%s3 + $0x5c] sm:$0xf]
    %v113 = vld [vmem:[%s3 + $0x60] sm:$0xf]
    %v114 = vld [vmem:[%s3 + $0x64] sm:$0xf]
    %v115 = vld [vmem:[%s3 + $0x68] sm:$0xf]
    %v116 = vld [vmem:[%s3 + $0x6c] sm:$0xf]
    %v117 = vld [vmem:[%s3 + $0x70] sm:$0xf]
    %v118 = vld [vmem:[%s3 + $0x74] sm:$0xf]
    %v119 = vld [vmem:[%s3 + $0x78] sm:$0xf]
    %v120 = vld [vmem:[%s3 + $0x7c] sm:$0xf]
    %v121 = vld [vmem:[%s3 + $0x80] sm:$0xf]
    %v122 = vld [vmem:[%s3 + $0x84] sm:$0xf]
    %v123 = vld [vmem:[%s3 + $0x88] sm:$0xf]
    %v124 = vld [vmem:[%s3 + $0x8c] sm:$0xf]
    %v125 = vld [vmem:[%s3 + $0x90] sm:$0xf]
    %v126 = vld [vmem:[%s3 + $0x94] sm:$0xf]
    %v127 = vld [vmem:[%s3 + $0x98] sm:$0xf]
    %v128 = vld [vmem:[%s3 + $0x9c] sm:$0xf]
    %v129 = vld [vmem:[%s3 + $0xa0] sm:$0xf]
    %v130 = vld [vmem:[%s3 + $0xa4] sm:$0xf]
    %v131 = vld [vmem:[%s3 + $0xa8] sm:$0xf]
    %v132 = vld [vmem:[%s3 + $0xac] sm:$0xf]
    %v133 = vld [vmem:[%s3 + $0xb0] sm:$0xf]
    %v134 = vld [vmem:[%s3 + $0xb4] sm:$0xf]
    %v135 = vld [vmem:[%s3 + $0xb8] sm:$0xf]
    %v136 = vld [vmem:[%s3 + $0xbc] sm:$0xf]
    %v137 = vld [vmem:[%s3 + $0xc0] sm:$0xf]
    %v138 = vld [vmem:[%s3 + $0xc4] sm:$0xf]
    %v139 = vld [vmem:[%s3 + $0xc8] sm:$0xf]
    %v140 = vld [vmem:[%s3 + $0xcc] sm:$0xf]
    %v141 = vld [vmem:[%s3 + $0xd0] sm:$0xf]
    %v142 = vld [vmem:[%s3 + $0xd4] sm:$0xf]
    %v143 = vld [vmem:[%s3 + $0xd8] sm:$0xf]
    %v144 = vld [vmem:[%s3 + $0xdc] sm:$0xf]
    %v145 = vld [vmem:[%s3 + $0xe0] sm:$0xf]
    %v146 = vld [vmem:[%s3 + $0xe4] sm:$0xf]
    %v147 = vld [vmem:[%s3 + $0xe8] sm:$0xf]
    %v148 = vld [vmem:[%s3 + $0xec] sm:$0xf]
    %v149 = vld [vmem:[%s3 + $0xf0] sm:$0xf]
    %v150 = vld [vmem:[%s3 + $0xf4] sm:$0xf]
    %v151 = vld [vmem:[%s3 + $0xf8] sm:$0xf]
    %v152 = vld [vmem:[%s3 + $0xfc] sm:$0xf]
    %v153 = vld [vmem:[%s3 + $0x100] sm:$0xf]
    %v154 = vld [vmem:[%s3 + $0x104] sm:$0xf]
    %v155 = vld [vmem:[%s3 + $0x108] sm:$0xf]
    %v156 = vld [vmem:[%s3 + $0x10c] sm:$0xf]
    %v157 = vld [vmem:[%s3 + $0x110] sm:$0xf]
    %v158 = vld [vmem:[%s3 + $0x114] sm:$0xf]
    %v159 = vld [vmem:[%s3 + $0x118] sm:$0xf]
    %v160 = vld [vmem:[%s3 + $0x11c] sm:$0xf]
    %v161 = vld [vmem:[%s3 + $0x120] sm:$0xf]
    %v162 = vld [vmem:[%s3 + $0x124] sm:$0xf]
    %v163 = vld [vmem:[%s3 + $0x128] sm:$0xf]
    %v164 = vld [vmem:[%s3 + $0x12c] sm:$0xf]
    %v165 = vld [vmem:[%s3 + $0x130] sm:$0xf]
    %v166 = vld [vmem:[%s3 + $0x134] sm:$0xf]
    %v167 = vld [vmem:[%s3 + $0x138] sm:$0xf]
    %v168 = vld [vmem:[%s3 + $0x13c] sm:$0xf]
    %v169 = vld [vmem:[%s3 + $0x140] sm:$0xf]
    %v170 = vld [vmem:[%s3 + $0x144] sm:$0xf]
    %v171 = vld [vmem:[%s3 + $0x148] sm:$0xf]
    %v172 = vld [vmem:[%s3 + $0x14c] sm:$0xf]
    %v173 = vld [vmem:[%s3 + $0x150] sm:$0xf]
    %v174 = vld [vmem:[%s3 + $0x154] sm:$0xf]
    %v175 = vld [vmem:[%s3 + $0x158] sm:$0xf]
    %v176 = vld [vmem:[%s3 + $0x15c] sm:$0xf]
    %v177 = vld [vmem:[%s3 + $0x160] sm:$0xf]
    %v178 = vld [vmem:[%s3 + $0x164] sm:$0xf]
    %v179 = vld [vmem:[%s3 + $0x168] sm:$0xf]
    %v180 = vld [vmem:[%s3 + $0x16c] sm:$0xf]
    %v181 = vld [vmem:[%s3 + $0x170] sm:$0xf]
    %v182 = vld [vmem:[%s3 + $0x174] sm:$0xf]
    %v183 = vld [vmem:[%s3 + $0x178] sm:$0xf]
    %v184 = vld [vmem:[%s3 + $0x17c] sm:$0xf]
    %v185 = vld [vmem:[%s3 + $0x180] sm:$0xf]
    %v186 = vld [vmem:[%s3 + $0x184] sm:$0xf]
    %v187 = vld [vmem:[%s3 + $0x188] sm:$0xf]
    %v188 = vld [vmem:[%s3 + $0x18c] sm:$0xf]
    %v189 = vld [vmem:[%s3 + $0x190] sm:$0xf]
    %v190 = vld [vmem:[%s3 + $0x194] sm:$0xf]
    %v191 = vld [vmem:[%s3 + $0x198] sm:$0xf]
    %v192 = vld [vmem:[%s3 + $0x19c] sm:$0xf]
    %v193 = vld [vmem:[%s3 + $0x1a0] sm:$0xf]
    %v194 = vld [vmem:[%s3 + $0x1a4] sm:$0xf]
    %v195 = vld [vmem:[%s3 + $0x1a8] sm:$0xf]
    %v196 = vld [vmem:[%s3 + $0x1ac] sm:$0xf]
    %v197 = vld [vmem:[%s3 + $0x1b0] sm:$0xf]
    %v198 = vld [vmem:[%s3 + $0x1b4] sm:$0xf]
    %v199 = vld [vmem:[%s3 + $0x1b8] sm:$0xf]
    %v200 = vld [vmem:[%s3 + $0x1bc] sm:$0xf]
    %v201 = vld [vmem:[%s3 + $0x1c0] sm:$0xf]
    %v202 = vld [vmem:[%s3 + $0x1c4] sm:$0xf]
    %v203 = vld [vmem:[%s3 + $0x1c8] sm:$0xf]
    %v204 = vld [vmem:[%s3 + $0x1cc] sm:$0xf]
    %v205 = vld [vmem:[%s3 + $0x1d0] sm:$0xf]
    %v206 = vld [vmem:[%s3 + $0x1d4] sm:$0xf]
    %v207 = vld [vmem:[%s3 + $0x1d8] sm:$0xf]
    %v208 = vld [vmem:[%s3 + $0x1dc] sm:$0xf]
    %v209 = vld [vmem:[%s3 + $0x1e0] sm:$0xf]
    %v210 = vld [vmem:[%s3 + $0x1e4] sm:$0xf]
    %v211 = vld [vmem:[%s3 + $0x1e8] sm:$0xf]
    %v212 = vld [vmem:[%s3 + $0x1ec] sm:$0xf]
    %v213 = vld [vmem:[%s3 + $0x1f0] sm:$0xf]
    %v214 = vld [vmem:[%s3 + $0x1f4] sm:$0xf]
    %v215 = vld [vmem:[%s3 + $0x1f8] sm:$0xf]
    %v216 = vld [vmem:[%s3 + $0x1fc] sm:$0xf]
    %v217 = vld [vmem:[%s3 + $0x200] sm:$0xf]
    %v218 = vld [vmem:[%s3 + $0x204] sm:$0xf]
    %v219 = vld [vmem:[%s3 + $0x208] sm:$0xf]
    %v220 = vld [vmem:[%s3 + $0x20c] sm:$0xf]
    %v221 = vld [vmem:[%s3 + $0x210] sm:$0xf]
    %v222 = vld [vmem:[%s3 + $0x214] sm:$0xf]
    %v223 = vld [vmem:[%s3 + $0x218] sm:$0xf]
    %v224 = vld [vmem:[%s3 + $0x21c] sm:$0xf]
    %v225 = vld [vmem:[%s3 + $0x220] sm:$0xf]
    %v226 = vld [vmem:[%s3 + $0x224] sm:$0xf]
    %v227 = vld [vmem:[%s3 + $0x228] sm:$0xf]
    %v228 = vld [vmem:[%s3 + $0x22c] sm:$0xf]
    %v229 = vld [vmem:[%s3 + $0x230] sm:$0xf]
    %v230 = vld [vmem:[%s3 + $0x234] sm:$0xf]
    %v231 = vld [vmem:[%s3 + $0x238] sm:$0xf]
    %v232 = vld [vmem:[%s3 + $0x23c] sm:$0xf]
    %v233 = vld [vmem:[%s3 + $0x240] sm:$0xf]
    %v234 = vld [vmem:[%s3 + $0x244] sm:$0xf]
    %v235 = vld [vmem:[%s3 + $0x248] sm:$0xf]
    %v236 = vld [vmem:[%s3 + $0x24c] sm:$0xf]
    %v237 = vld [vmem:[%s3 + $0x250] sm:$0xf]
    %v238 = vld [vmem:[%s3 + $0x254] sm:$0xf]
    %v239 = vld [vmem:[%s3 + $0x258] sm:$0xf]
    %v240 = vld [vmem:[%s3 + $0x25c] sm:$0xf]
    %v241 = vld [vmem:[%s3 + $0x260] sm:$0xf]
    %v242 = vld [vmem:[%s3 + $0x264] sm:$0xf]
    %v243 = vld [vmem:[%s3 + $0x268] sm:$0xf]
    %v244 = vld [vmem:[%s3 + $0x26c] sm:$0xf]
    %v245 = vld [vmem:[%s3 + $0x270] sm:$0xf]
    %v246 = vld [vmem:[%s3 + $0x274] sm:$0xf]
    %v247 = vld [vmem:[%s3 + $0x278] sm:$0xf]
    %v248 = vld [vmem:[%s3 + $0x27c] sm:$0xf]
    %v249 = vld [vmem:[%s3 + $0x280] sm:$0xf]
    %v250 = vld [vmem:[%s3 + $0x284] sm:$0xf]
    %v251 = vld [vmem:[%s3 + $0x288] sm:$0xf]
    %v252 = vld [vmem:[%s3 + $0x28c] sm:$0xf]
    %v253 = vld [vmem:[%s3 + $0x290] sm:$0xf]
    %v254 = vld [vmem:[%s3 + $0x294] sm:$0xf]
    %v255 = vld [vmem:[%s3 + $0x298] sm:$0xf]
    %v256 = vld [vmem:[%s3 + $0x29c] sm:$0xf]
    %v257 = vld [vmem:[%s3 + $0x2a0] sm:$0xf]
    %v258 = vld [vmem:[%s3 + $0x2a4] sm:$0xf]
    %v259 = vld [vmem:[%s3 + $0x2a8] sm:$0xf]
    %v260 = vld [vmem:[%s3 + $0x2ac] sm:$0xf]
    %v261 = vld [vmem:[%s3 + $0x2b0] sm:$0xf]
    %v262 = vld [vmem:[%s3 + $0x2b4] sm:$0xf]
    %v263 = vld [vmem:[%s3 + $0x2b8] sm:$0xf]
    %v264 = vld [vmem:[%s3 + $0x2bc] sm:$0xf]
    %v265 = vld [vmem:[%s3 + $0x2c0] sm:$0xf]
    %v266 = vld [vmem:[%s3 + $0x2c4] sm:$0xf]
    %v267 = vld [vmem:[%s3 + $0x2c8] sm:$0xf]
    %v268 = vld [vmem:[%s3 + $0x2cc] sm:$0xf]
    %v269 = vld [vmem:[%s3 + $0x2d0] sm:$0xf]
    %v270 = vld [vmem:[%s3 + $0x2d4] sm:$0xf]
    %v271 = vld [vmem:[%s3 + $0x2d8] sm:$0xf]
    %v272 = vld [vmem:[%s3 + $0x2dc] sm:$0xf]
    %v273 = vld [vmem:[%s3 + $0x2e0] sm:$0xf]
    %v274 = vld [vmem:[%s3 + $0x2e4] sm:$0xf]
    %v275 = vld [vmem:[%s3 + $0x2e8] sm:$0xf]
    %v276 = vld [vmem:[%s3 + $0x2ec] sm:$0xf]
    %v277 = vld [vmem:[%s3 + $0x2f0] sm:$0xf]
    %v278 = vld [vmem:[%s3 + $0x2f4] sm:$0xf]
    %v279 = vld [vmem:[%s3 + $0x2f8] sm:$0xf]
    %v280 = vld [vmem:[%s3 + $0x2fc] sm:$0xf]
    %v281 = vld [vmem:[%s3 + $0x300] sm:$0xf]
    %v282 = vld [vmem:[%s3 + $0x304] sm:$0xf]
    %v283 = vld [vmem:[%s3 + $0x308] sm:$0xf]
    %v284 = vld [vmem:[%s3 + $0x30c] sm:$0xf]
    %v285 = vld [vmem:[%s3 + $0x310] sm:$0xf]
    %v286 = vld [vmem:[%s3 + $0x314] sm:$0xf]
    %v287 = vld [vmem:[%s3 + $0x318] sm:$0xf]
    %v288 = vld [vmem:[%s3 + $0x31c] sm:$0xf]
    %v289 = vld [vmem:[%s3 + $0x320] sm:$0xf]
    %v290 = vld [vmem:[%s3 + $0x324] sm:$0xf]
    %v291 = vld [vmem:[%s3 + $0x328] sm:$0xf]
    %v292 = vld [vmem:[%s3 + $0x32c] sm:$0xf]
    %v293 = vld [vmem:[%s3 + $0x330] sm:$0xf]
    %v294 = vld [vmem:[%s3 + $0x334] sm:$0xf]
    %v295 = vld [vmem:[%s3 + $0x338] sm:$0xf]
    %v296 = vld [vmem:[%s3 + $0x33c] sm:$0xf]
    %v297 = vld [vmem:[%s3 + $0x340] sm:$0xf]
    %v298 = vld [vmem:[%s3 + $0x344] sm:$0xf]
    %v299 = vld [vmem:[%s3 + $0x348] sm:$0xf]
    %v300 = vld [vmem:[%s3 + $0x34c] sm:$0xf]
    %v301 = vld [vmem:[%s3 + $0x350] sm:$0xf]
    %v302 = vld [vmem:[%s3 + $0x354] sm:$0xf]
    %v303 = vld [vmem:[%s3 + $0x358] sm:$0xf]
    %v304 = vld [vmem:[%s3 + $0x35c] sm:$0xf]
    %v305 = vld [vmem:[%s3 + $0x360] sm:$0xf]
    %v306 = vld [vmem:[%s3 + $0x364] sm:$0xf]
    %v307 = vld [vmem:[%s3 + $0x368] sm:$0xf]
    %v308 = vld [vmem:[%s3 + $0x36c] sm:$0xf]
    %v309 = vld [vmem:[%s3 + $0x370] sm:$0xf]
    %v310 = vld [vmem:[%s3 + $0x374] sm:$0xf]
    %v311 = vld [vmem:[%s3 + $0x378] sm:$0xf]
    %v312 = vld [vmem:[%s3 + $0x37c] sm:$0xf]
    %v313 = vld [vmem:[%s3 + $0x380] sm:$0xf]
    %v314 = vld [vmem:[%s3 + $0x384] sm:$0xf]
    %v315 = vld [vmem:[%s3 + $0x388] sm:$0xf]
    %v316 = vld [vmem:[%s3 + $0x38c] sm:$0xf]
    %v317 = vld [vmem:[%s3 + $0x390] sm:$0xf]
    %v318 = vld [vmem:[%s3 + $0x394] sm:$0xf]
    %v319 = vld [vmem:[%s3 + $0x398] sm:$0xf]
    %v320 = vld [vmem:[%s3 + $0x39c] sm:$0xf]
    %v321 = vld [vmem:[%s3 + $0x3a0] sm:$0xf]
    %v322 = vld [vmem:[%s3 + $0x3a4] sm:$0xf]
    %v323 = vld [vmem:[%s3 + $0x3a8] sm:$0xf]
    %v324 = vld [vmem:[%s3 + $0x3ac] sm:$0xf]
    %v325 = vld [vmem:[%s3 + $0x3b0] sm:$0xf]
    %v326 = vld [vmem:[%s3 + $0x3b4] sm:$0xf]
    %v327 = vld [vmem:[%s3 + $0x3b8] sm:$0xf]
    %v328 = vld [vmem:[%s3 + $0x3bc] sm:$0xf]
    %v329 = vld [vmem:[%s3 + $0x3c0] sm:$0xf]
    %v330 = vld [vmem:[%s3 + $0x3c4] sm:$0xf]
    %v331 = vld [vmem:[%s3 + $0x3c8] sm:$0xf]
    %v332 = vld [vmem:[%s3 + $0x3cc] sm:$0xf]
    %v333 = vld [vmem:[%s3 + $0x3d0] sm:$0xf]
    %v334 = vld [vmem:[%s3 + $0x3d4] sm:$0xf]
    %v335 = vld [vmem:[%s3 + $0x3d8] sm:$0xf]
    %v336 = vld [vmem:[%s3 + $0x3dc] sm:$0xf]
    %v337 = vld [vmem:[%s3 + $0x3e0] sm:$0xf]
    %v338 = vld [vmem:[%s3 + $0x3e4] sm:$0xf]
    %v339 = vld [vmem:[%s3 + $0x3e8] sm:$0xf]
    %v340 = vld [vmem:[%s3 + $0x3ec] sm:$0xf]
    %v341 = vld [vmem:[%s3 + $0x3f0] sm:$0xf]
    %v342 = vld [vmem:[%s3 + $0x3f4] sm:$0xf]
    %v343 = vld [vmem:[%s3 + $0x3f8] sm:$0xf]
    %v344 = vld [vmem:[%s3 + $0x3fc] sm:$0xf]
    %v345 = vld [vmem:[%s1] sm:$0x3]
    %vm346 = vcmask 261120
    %v348 = vsel %vm346, %v25, 0
    %v351 = vsel %vm346, %v26, 0
    %v354 = vsel %vm346, %v27, 0
    %v357 = vsel %vm346, %v28, 0
    %v360 = vsel %vm346, %v29, 0
    %v363 = vsel %vm346, %v30, 0
    %v366 = vsel %vm346, %v31, 0
    %v369 = vsel %vm346, %v32, 0
    %v372 = vsel %vm346, %v33, 0
    %v375 = vsel %vm346, %v34, 0
    %v378 = vsel %vm346, %v35, 0
    %v381 = vsel %vm346, %v36, 0
    %v384 = vsel %vm346, %v37, 0
    %v387 = vsel %vm346, %v38, 0
    %v390 = vsel %vm346, %v39, 0
    %v393 = vsel %vm346, %v40, 0
    %v396 = vsel %vm346, %v41, 0
    %v399 = vsel %vm346, %v42, 0
    %v402 = vsel %vm346, %v43, 0
    %v405 = vsel %vm346, %v44, 0
    %v408 = vsel %vm346, %v45, 0
    %v411 = vsel %vm346, %v46, 0
    %v414 = vsel %vm346, %v47, 0
    %v417 = vsel %vm346, %v48, 0
    %v420 = vsel %vm346, %v49, 0
    %v423 = vsel %vm346, %v50, 0
    %v426 = vsel %vm346, %v51, 0
    %v429 = vsel %vm346, %v52, 0
    %v432 = vsel %vm346, %v53, 0
    %v435 = vsel %vm346, %v54, 0
    %v438 = vsel %vm346, %v55, 0
    %v441 = vsel %vm346, %v56, 0
    %443 = vmatprep.subr.mxu0 0.0
    %444 = vmatpush1.msra.mxu0 %v21
    %445 = vmatprep.subr.mxu0 0.0
    %446 = vmatpush1.msra.mxu0 %v22
    %447 = vmatprep.subr.mxu0 0.0
    %448 = vmatpush1.msra.mxu0 %v23
    %449 = vmatprep.subr.mxu0 0.0
    %450 = vmatpush1.msra.mxu0 %v24
    %451 = vmatprep.subr.mxu0 0.0
    %452 = vmatpush1.msra.mxu0 0.0
    %453 = vmatprep.subr.mxu0 0.0
    %454 = vmatpush1.msra.mxu0 0.0
    %455 = vmatprep.subr.mxu0 0.0
    %456 = vmatpush1.msra.mxu0 0.0
    %457 = vmatprep.subr.mxu0 0.0
    %458 = vmatpush1.msra.mxu0 0.0
    %459 = vmatprep.subr.mxu0 0.0
    %460 = vmatpush1.msra.mxu0 0.0
    %461 = vmatprep.subr.mxu0 0.0
    %462 = vmatpush1.msra.mxu0 0.0
    %463 = vmatprep.subr.mxu0 0.0
    %464 = vmatpush1.msra.mxu0 0.0
    %465 = vmatprep.subr.mxu0 0.0
    %466 = vmatpush1.msra.mxu0 0.0
    %467 = vmatprep.subr.mxu0 0.0
    %468 = vmatpush1.msra.mxu0 0.0
    %469 = vmatprep.subr.mxu0 0.0
    %470 = vmatpush1.msra.mxu0 0.0
    %471 = vmatprep.subr.mxu0 0.0
    %472 = vmatpush1.msra.mxu0 0.0
    %473 = vmatprep.subr.mxu0 0.0
    %474 = vmatpush1.msra.mxu0 0.0
    %475 = vmatprep.subr.mxu0 0.0
    %476 = vmatpush1.msra.mxu0 0.0
    %477 = vmatprep.subr.mxu0 0.0
    %478 = vmatpush1.msra.mxu0 0.0
    %479 = vmatprep.subr.mxu0 0.0
    %480 = vmatpush1.msra.mxu0 0.0
    %481 = vmatprep.subr.mxu0 0.0
    %482 = vmatpush1.msra.mxu0 0.0
    %483 = vmatprep.subr.mxu0 0.0
    %484 = vmatpush1.msra.mxu0 0.0
    %485 = vmatprep.subr.mxu0 0.0
    %486 = vmatpush1.msra.mxu0 0.0
    %487 = vmatprep.subr.mxu0 0.0
    %488 = vmatpush1.msra.mxu0 0.0
    %489 = vmatprep.subr.mxu0 0.0
    %490 = vmatpush1.msra.mxu0 0.0
    %491 = vmatprep.subr.mxu0 0.0
    %492 = vmatpush1.msra.mxu0 0.0
    %493 = vmatprep.subr.mxu0 0.0
    %494 = vmatpush1.msra.mxu0 0.0
    %495 = vmatprep.subr.mxu0 0.0
    %496 = vmatpush1.msra.mxu0 0.0
    %497 = vmatprep.subr.mxu0 0.0
    %498 = vmatpush1.msra.mxu0 0.0
    %499 = vmatprep.subr.mxu0 0.0
    %500 = vmatpush1.msra.mxu0 0.0
    %501 = vmatprep.subr.mxu0 0.0
    %502 = vmatpush1.msra.mxu0 0.0
    %503 = vmatprep.subr.mxu0 0.0
    %504 = vmatpush1.msra.mxu0 0.0
    %505 = vmatprep.subr.mxu0 0.0
    %506 = vmatpush1.msra.mxu0 0.0
    %507 = vmatprep.mubr.f32.mxu0 0.0
    %508 = vmatmul.mubr.f32.gmra.mrb[0].mxu0 %v348
    %v509 = vpop.f32.mrb[0].mxu0
    %v510 = vadd.f32 0.0, %v509
    %v511 = vpop.f32.mrb[0].mxu0
    %512 = vmatprep.mubr.f32.mxu0 0.0
    %513 = vmatmul.mubr.f32.gmra.mrb[0].mxu0 %v351
    %v514 = vpop.f32.mrb[0].mxu0
    %v515 = vadd.f32 0.0, %v514
    %v516 = vpop.f32.mrb[0].mxu0
    %517 = vmatprep.mubr.f32.mxu0 0.0
    %518 = vmatmul.mubr.f32.gmra.mrb[0].mxu0 %v354
    %v519 = vpop.f32.mrb[0].mxu0
    %v520 = vadd.f32 0.0, %v519
    %v521 = vpop.f32.mrb[0].mxu0
    %522 = vmatprep.mubr.f32.mxu0 0.0
    %523 = vmatmul.mubr.f32.gmra.mrb[0].mxu0 %v357
    %v524 = vpop.f32.mrb[0].mxu0
    %v525 = vadd.f32 0.0, %v524
    %v526 = vpop.f32.mrb[0].mxu0
    %527 = vmatprep.mubr.f32.mxu0 0.0
    %528 = vmatmul.mubr.f32.gmra.mrb[0].mxu0 %v360
    %v529 = vpop.f32.mrb[0].mxu0
    %v530 = vadd.f32 0.0, %v529
    %v531 = vpop.f32.mrb[0].mxu0
    %532 = vmatprep.mubr.f32.mxu0 0.0
    %533 = vmatmul.mubr.f32.gmra.mrb[0].mxu0 %v363
    %v534 = vpop.f32.mrb[0].mxu0
    %v535 = vadd.f32 0.0, %v534
    %v536 = vpop.f32.mrb[0].mxu0
    %537 = vmatprep.mubr.f32.mxu0 0.0
    %538 = vmatmul.mubr.f32.gmra.mrb[0].mxu0 %v366
    %v539 = vpop.f32.mrb[0].mxu0
    %v540 = vadd.f32 0.0, %v539
    %v541 = vpop.f32.mrb[0].mxu0
    %542 = vmatprep.mubr.f32.mxu0 0.0
    %543 = vmatmul.mubr.f32.gmra.mrb[0].mxu0 %v369
    %v544 = vpop.f32.mrb[0].mxu0
    %v545 = vadd.f32 0.0, %v544
    %v546 = vpop.f32.mrb[0].mxu0
    %547 = vmatprep.mubr.f32.mxu0 0.0
    %548 = vmatmul.mubr.f32.gmra.mrb[0].mxu0 %v372
    %v549 = vpop.f32.mrb[0].mxu0
    %v550 = vadd.f32 0.0, %v549
    %v551 = vpop.f32.mrb[0].mxu0
    %552 = vmatprep.mubr.f32.mxu0 0.0
    %553 = vmatmul.mubr.f32.gmra.mrb[0].mxu0 %v375
    %v554 = vpop.f32.mrb[0].mxu0
    %v555 = vadd.f32 0.0, %v554
    %v556 = vpop.f32.mrb[0].mxu0
    %557 = vmatprep.mubr.f32.mxu0 0.0
    %558 = vmatmul.mubr.f32.gmra.mrb[0].mxu0 %v378
    %v559 = vpop.f32.mrb[0].mxu0
    %v560 = vadd.f32 0.0, %v559
    %v561 = vpop.f32.mrb[0].mxu0
    %562 = vmatprep.mubr.f32.mxu0 0.0
    %563 = vmatmul.mubr.f32.gmra.mrb[0].mxu0 %v381
    %v564 = vpop.f32.mrb[0].mxu0
    %v565 = vadd.f32 0.0, %v564
    %v566 = vpop.f32.mrb[0].mxu0
    %567 = vmatprep.mubr.f32.mxu0 0.0
    %568 = vmatmul.mubr.f32.gmra.mrb[0].mxu0 %v384
    %v569 = vpop.f32.mrb[0].mxu0
    %v570 = vadd.f32 0.0, %v569
    %v571 = vpop.f32.mrb[0].mxu0
    %572 = vmatprep.mubr.f32.mxu0 0.0
    %573 = vmatmul.mubr.f32.gmra.mrb[0].mxu0 %v387
    %v574 = vpop.f32.mrb[0].mxu0
    %v575 = vadd.f32 0.0, %v574
    %v576 = vpop.f32.mrb[0].mxu0
    %577 = vmatprep.mubr.f32.mxu0 0.0
    %578 = vmatmul.mubr.f32.gmra.mrb[0].mxu0 %v390
    %v579 = vpop.f32.mrb[0].mxu0
    %v580 = vadd.f32 0.0, %v579
    %v581 = vpop.f32.mrb[0].mxu0
    %582 = vmatprep.mubr.f32.mxu0 0.0
    %583 = vmatmul.mubr.f32.gmra.mrb[0].mxu0 %v393
    %v584 = vpop.f32.mrb[0].mxu0
    %v585 = vadd.f32 0.0, %v584
    %v586 = vpop.f32.mrb[0].mxu0
    %587 = vmatprep.mubr.f32.mxu0 0.0
    %588 = vmatmul.mubr.f32.gmra.mrb[0].mxu0 %v396
    %v589 = vpop.f32.mrb[0].mxu0
    %v590 = vadd.f32 0.0, %v589
    %v591 = vpop.f32.mrb[0].mxu0
    %592 = vmatprep.mubr.f32.mxu0 0.0
    %593 = vmatmul.mubr.f32.gmra.mrb[0].mxu0 %v399
    %v594 = vpop.f32.mrb[0].mxu0
    %v595 = vadd.f32 0.0, %v594
    %v596 = vpop.f32.mrb[0].mxu0
    %597 = vmatprep.mubr.f32.mxu0 0.0
    %598 = vmatmul.mubr.f32.gmra.mrb[0].mxu0 %v402
    %v599 = vpop.f32.mrb[0].mxu0
    %v600 = vadd.f32 0.0, %v599
    %v601 = vpop.f32.mrb[0].mxu0
    %602 = vmatprep.mubr.f32.mxu0 0.0
    %603 = vmatmul.mubr.f32.gmra.mrb[0].mxu0 %v405
    %v604 = vpop.f32.mrb[0].mxu0
    %v605 = vadd.f32 0.0, %v604
    %v606 = vpop.f32.mrb[0].mxu0
    %607 = vmatprep.mubr.f32.mxu0 0.0
    %608 = vmatmul.mubr.f32.gmra.mrb[0].mxu0 %v408
    %v609 = vpop.f32.mrb[0].mxu0
    %v610 = vadd.f32 0.0, %v609
    %v611 = vpop.f32.mrb[0].mxu0
    %612 = vmatprep.mubr.f32.mxu0 0.0
    %613 = vmatmul.mubr.f32.gmra.mrb[0].mxu0 %v411
    %v614 = vpop.f32.mrb[0].mxu0
    %v615 = vadd.f32 0.0, %v614
    %v616 = vpop.f32.mrb[0].mxu0
    %617 = vmatprep.mubr.f32.mxu0 0.0
    %618 = vmatmul.mubr.f32.gmra.mrb[0].mxu0 %v414
    %v619 = vpop.f32.mrb[0].mxu0
    %v620 = vadd.f32 0.0, %v619
    %v621 = vpop.f32.mrb[0].mxu0
    %622 = vmatprep.mubr.f32.mxu0 0.0
    %623 = vmatmul.mubr.f32.gmra.mrb[0].mxu0 %v417
    %v624 = vpop.f32.mrb[0].mxu0
    %v625 = vadd.f32 0.0, %v624
    %v626 = vpop.f32.mrb[0].mxu0
    %627 = vmatprep.mubr.f32.mxu0 0.0
    %628 = vmatmul.mubr.f32.gmra.mrb[0].mxu0 %v420
    %v629 = vpop.f32.mrb[0].mxu0
    %v630 = vadd.f32 0.0, %v629
    %v631 = vpop.f32.mrb[0].mxu0
    %632 = vmatprep.mubr.f32.mxu0 0.0
    %633 = vmatmul.mubr.f32.gmra.mrb[0].mxu0 %v423
    %v634 = vpop.f32.mrb[0].mxu0
    %v635 = vadd.f32 0.0, %v634
    %v636 = vpop.f32.mrb[0].mxu0
    %637 = vmatprep.mubr.f32.mxu0 0.0
    %638 = vmatmul.mubr.f32.gmra.mrb[0].mxu0 %v426
    %v639 = vpop.f32.mrb[0].mxu0
    %v640 = vadd.f32 0.0, %v639
    %v641 = vpop.f32.mrb[0].mxu0
    %642 = vmatprep.mubr.f32.mxu0 0.0
    %643 = vmatmul.mubr.f32.gmra.mrb[0].mxu0 %v429
    %v644 = vpop.f32.mrb[0].mxu0
    %v645 = vadd.f32 0.0, %v644
    %v646 = vpop.f32.mrb[0].mxu0
    %647 = vmatprep.mubr.f32.mxu0 0.0
    %648 = vmatmul.mubr.f32.gmra.mrb[0].mxu0 %v432
    %v649 = vpop.f32.mrb[0].mxu0
    %v650 = vadd.f32 0.0, %v649
    %v651 = vpop.f32.mrb[0].mxu0
    %652 = vmatprep.mubr.f32.mxu0 0.0
    %653 = vmatmul.mubr.f32.gmra.mrb[0].mxu0 %v435
    %v654 = vpop.f32.mrb[0].mxu0
    %v655 = vadd.f32 0.0, %v654
    %v656 = vpop.f32.mrb[0].mxu0
    %657 = vmatprep.mubr.f32.mxu0 0.0
    %658 = vmatmul.mubr.f32.gmra.mrb[0].mxu0 %v438
    %v659 = vpop.f32.mrb[0].mxu0
    %v660 = vadd.f32 0.0, %v659
    %v661 = vpop.f32.mrb[0].mxu0
    %662 = vmatprep.mubr.f32.mxu0 0.0
    %663 = vmatmul.mubr.f32.gmra.mrb[0].mxu0 %v441
    %v664 = vpop.f32.mrb[0].mxu0
    %v665 = vadd.f32 0.0, %v664
    %v666 = vpop.f32.mrb[0].mxu0
    %667 = vdwg.mxu0
    %v668 = vmul.f32 %v57, %v510
    %v669 = vmul.f32 %v58, %v515
    %v670 = vmul.f32 %v59, %v520
    %v671 = vmul.f32 %v60, %v525
    %v672 = vmul.f32 %v61, %v530
    %v673 = vmul.f32 %v62, %v535
    %v674 = vmul.f32 %v63, %v540
    %v675 = vmul.f32 %v64, %v545
    %v676 = vmul.f32 %v65, %v550
    %v677 = vmul.f32 %v66, %v555
    %v678 = vmul.f32 %v67, %v560
    %v679 = vmul.f32 %v68, %v565
    %v680 = vmul.f32 %v69, %v570
    %v681 = vmul.f32 %v70, %v575
    %v682 = vmul.f32 %v71, %v580
    %v683 = vmul.f32 %v72, %v585
    %v684 = vmul.f32 %v73, %v590
    %v685 = vmul.f32 %v74, %v595
    %v686 = vmul.f32 %v75, %v600
    %v687 = vmul.f32 %v76, %v605
    %v688 = vmul.f32 %v77, %v610
    %v689 = vmul.f32 %v78, %v615
    %v690 = vmul.f32 %v79, %v620
    %v691 = vmul.f32 %v80, %v625
    %v692 = vmul.f32 %v81, %v630
    %v693 = vmul.f32 %v82, %v635
    %v694 = vmul.f32 %v83, %v640
    %v695 = vmul.f32 %v84, %v645
    %v696 = vmul.f32 %v85, %v650
    %v697 = vmul.f32 %v86, %v655
    %v698 = vmul.f32 %v87, %v660
    %v699 = vmul.f32 %v88, %v665
    %vm700 = vcmask 523264
    %v701 = vsel %vm700, %v668, 0.0
    %702 = vadd.xlane.f32.xlu0 %v701
    %v703 = vpop.xlane.xlu0 %702
    %v704 = vsel %vm700, %v669, 0.0
    %705 = vadd.xlane.f32.xlu0 %v704
    %v706 = vpop.xlane.xlu0 %705
    %v707 = vsel %vm700, %v670, 0.0
    %708 = vadd.xlane.f32.xlu0 %v707
    %v709 = vpop.xlane.xlu0 %708
    %v710 = vsel %vm700, %v671, 0.0
    %711 = vadd.xlane.f32.xlu0 %v710
    %v712 = vpop.xlane.xlu0 %711
    %v713 = vsel %vm700, %v672, 0.0
    %714 = vadd.xlane.f32.xlu0 %v713
    %v715 = vpop.xlane.xlu0 %714
    %v716 = vsel %vm700, %v673, 0.0
    %717 = vadd.xlane.f32.xlu0 %v716
    %v718 = vpop.xlane.xlu0 %717
    %v719 = vsel %vm700, %v674, 0.0
    %720 = vadd.xlane.f32.xlu0 %v719
    %v721 = vpop.xlane.xlu0 %720
    %v722 = vsel %vm700, %v675, 0.0
    %723 = vadd.xlane.f32.xlu0 %v722
    %v724 = vpop.xlane.xlu0 %723
    %v725 = vsel %vm700, %v676, 0.0
    %726 = vadd.xlane.f32.xlu0 %v725
    %v727 = vpop.xlane.xlu0 %726
    %v728 = vsel %vm700, %v677, 0.0
    %729 = vadd.xlane.f32.xlu0 %v728
    %v730 = vpop.xlane.xlu0 %729
    %v731 = vsel %vm700, %v678, 0.0
    %732 = vadd.xlane.f32.xlu0 %v731
    %v733 = vpop.xlane.xlu0 %732
    %v734 = vsel %vm700, %v679, 0.0
    %735 = vadd.xlane.f32.xlu0 %v734
    %v736 = vpop.xlane.xlu0 %735
    %v737 = vsel %vm700, %v680, 0.0
    %738 = vadd.xlane.f32.xlu0 %v737
    %v739 = vpop.xlane.xlu0 %738
    %v740 = vsel %vm700, %v681, 0.0
    %741 = vadd.xlane.f32.xlu0 %v740
    %v742 = vpop.xlane.xlu0 %741
    %v743 = vsel %vm700, %v682, 0.0
    %744 = vadd.xlane.f32.xlu0 %v743
    %v745 = vpop.xlane.xlu0 %744
    %v746 = vsel %vm700, %v683, 0.0
    %747 = vadd.xlane.f32.xlu0 %v746
    %v748 = vpop.xlane.xlu0 %747
    %v749 = vsel %vm700, %v684, 0.0
    %750 = vadd.xlane.f32.xlu0 %v749
    %v751 = vpop.xlane.xlu0 %750
    %v752 = vsel %vm700, %v685, 0.0
    %753 = vadd.xlane.f32.xlu0 %v752
    %v754 = vpop.xlane.xlu0 %753
    %v755 = vsel %vm700, %v686, 0.0
    %756 = vadd.xlane.f32.xlu0 %v755
    %v757 = vpop.xlane.xlu0 %756
    %v758 = vsel %vm700, %v687, 0.0
    %759 = vadd.xlane.f32.xlu0 %v758
    %v760 = vpop.xlane.xlu0 %759
    %v761 = vsel %vm700, %v688, 0.0
    %762 = vadd.xlane.f32.xlu0 %v761
    %v763 = vpop.xlane.xlu0 %762
    %v764 = vsel %vm700, %v689, 0.0
    %765 = vadd.xlane.f32.xlu0 %v764
    %v766 = vpop.xlane.xlu0 %765
    %v767 = vsel %vm700, %v690, 0.0
    %768 = vadd.xlane.f32.xlu0 %v767
    %v769 = vpop.xlane.xlu0 %768
    %v770 = vsel %vm700, %v691, 0.0
    %771 = vadd.xlane.f32.xlu0 %v770
    %v772 = vpop.xlane.xlu0 %771
    %v773 = vsel %vm700, %v692, 0.0
    %774 = vadd.xlane.f32.xlu0 %v773
    %v775 = vpop.xlane.xlu0 %774
    %v776 = vsel %vm700, %v693, 0.0
    %777 = vadd.xlane.f32.xlu0 %v776
    %v778 = vpop.xlane.xlu0 %777
    %v779 = vsel %vm700, %v694, 0.0
    %780 = vadd.xlane.f32.xlu0 %v779
    %v781 = vpop.xlane.xlu0 %780
    %v782 = vsel %vm700, %v695, 0.0
    %783 = vadd.xlane.f32.xlu0 %v782
    %v784 = vpop.xlane.xlu0 %783
    %v785 = vsel %vm700, %v696, 0.0
    %786 = vadd.xlane.f32.xlu0 %v785
    %v787 = vpop.xlane.xlu0 %786
    %v788 = vsel %vm700, %v697, 0.0
    %789 = vadd.xlane.f32.xlu0 %v788
    %v790 = vpop.xlane.xlu0 %789
    %v791 = vsel %vm700, %v698, 0.0
    %792 = vadd.xlane.f32.xlu0 %v791
    %v793 = vpop.xlane.xlu0 %792
    %v794 = vsel %vm700, %v699, 0.0
    %795 = vadd.xlane.f32.xlu0 %v794
    %v796 = vpop.xlane.xlu0 %795
    %v797 = vadd.f32 %v703, %v510
    %v798 = vadd.f32 %v706, %v515
    %v799 = vadd.f32 %v709, %v520
    %v800 = vadd.f32 %v712, %v525
    %v801 = vadd.f32 %v715, %v530
    %v802 = vadd.f32 %v718, %v535
    %v803 = vadd.f32 %v721, %v540
    %v804 = vadd.f32 %v724, %v545
    %v805 = vadd.f32 %v727, %v550
    %v806 = vadd.f32 %v730, %v555
    %v807 = vadd.f32 %v733, %v560
    %v808 = vadd.f32 %v736, %v565
    %v809 = vadd.f32 %v739, %v570
    %v810 = vadd.f32 %v742, %v575
    %v811 = vadd.f32 %v745, %v580
    %v812 = vadd.f32 %v748, %v585
    %v813 = vadd.f32 %v751, %v590
    %v814 = vadd.f32 %v754, %v595
    %v815 = vadd.f32 %v757, %v600
    %v816 = vadd.f32 %v760, %v605
    %v817 = vadd.f32 %v763, %v610
    %v818 = vadd.f32 %v766, %v615
    %v819 = vadd.f32 %v769, %v620
    %v820 = vadd.f32 %v772, %v625
    %v821 = vadd.f32 %v775, %v630
    %v822 = vadd.f32 %v778, %v635
    %v823 = vadd.f32 %v781, %v640
    %v824 = vadd.f32 %v784, %v645
    %v825 = vadd.f32 %v787, %v650
    %v826 = vadd.f32 %v790, %v655
    %v827 = vadd.f32 %v793, %v660
    %v828 = vadd.f32 %v796, %v665
    %v861 = vcombine.high %v510, %v510
    %v863 = vunpack.c.l.s4 1966171168
    %v864 = vunpack.c.0.s8 %v863
    %v865 = vlaneseq
    %v866 = vshrl.u32 %v865, 7
    %v867 = vsub.s32 %v864, %v866
    %v868 = vrot.slane %v510, %v867
    %v870 = vunpack.c.l.s4 1966171168
    %v871 = vunpack.c.0.s8 %v870
    %v872 = vlaneseq
    %v873 = vshrl.u32 %v872, 7
    %v874 = vsub.s32 %v871, %v873
    %v875 = vrot.slane %v861, %v874
    %v876 = vcombine.high %v868, %v868
    %v877 = vcombine.high %v875, %v875
    %v879 = vunpack.c.l.s4 1966171168
    %v880 = vunpack.c.0.s8 %v879
    %v881 = vlaneseq
    %v882 = vshrl.u32 %v881, 7
    %v883 = vsub.s32 %v880, %v882
    %v884 = vrot.slane %v868, %v883
    %v886 = vunpack.c.l.s4 1966171168
    %v887 = vunpack.c.0.s8 %v886
    %v888 = vlaneseq
    %v889 = vshrl.u32 %v888, 7
    %v890 = vsub.s32 %v887, %v889
    %v891 = vrot.slane %v875, %v890
    %v893 = vunpack.c.l.s4 1966171168
    %v894 = vunpack.c.0.s8 %v893
    %v895 = vlaneseq
    %v896 = vshrl.u32 %v895, 7
    %v897 = vsub.s32 %v894, %v896
    %v898 = vrot.slane %v876, %v897
    %v900 = vunpack.c.l.s4 1966171168
    %v901 = vunpack.c.0.s8 %v900
    %v902 = vlaneseq
    %v903 = vshrl.u32 %v902, 7
    %v904 = vsub.s32 %v901, %v903
    %v905 = vrot.slane %v877, %v904
    %v906 = vcombine.high %v884, %v884
    %v907 = vcombine.high %v891, %v891
    %v908 = vcombine.high %v898, %v898
    %v909 = vcombine.high %v905, %v905
    %v910 = vcombine.high %v515, %v515
    %v912 = vunpack.c.l.s4 1966171168
    %v913 = vunpack.c.0.s8 %v912
    %v914 = vlaneseq
    %v915 = vshrl.u32 %v914, 7
    %v916 = vsub.s32 %v913, %v915
    %v917 = vrot.slane %v515, %v916
    %v919 = vunpack.c.l.s4 1966171168
    %v920 = vunpack.c.0.s8 %v919
    %v921 = vlaneseq
    %v922 = vshrl.u32 %v921, 7
    %v923 = vsub.s32 %v920, %v922
    %v924 = vrot.slane %v910, %v923
    %v925 = vcombine.high %v917, %v917
    %v926 = vcombine.high %v924, %v924
    %v928 = vunpack.c.l.s4 1966171168
    %v929 = vunpack.c.0.s8 %v928
    %v930 = vlaneseq
    %v931 = vshrl.u32 %v930, 7
    %v932 = vsub.s32 %v929, %v931
    %v933 = vrot.slane %v917, %v932
    %v935 = vunpack.c.l.s4 1966171168
    %v936 = vunpack.c.0.s8 %v935
    %v937 = vlaneseq
    %v938 = vshrl.u32 %v937, 7
    %v939 = vsub.s32 %v936, %v938
    %v940 = vrot.slane %v924, %v939
    %v942 = vunpack.c.l.s4 1966171168
    %v943 = vunpack.c.0.s8 %v942
    %v944 = vlaneseq
    %v945 = vshrl.u32 %v944, 7
    %v946 = vsub.s32 %v943, %v945
    %v947 = vrot.slane %v925, %v946
    %v949 = vunpack.c.l.s4 1966171168
    %v950 = vunpack.c.0.s8 %v949
    %v951 = vlaneseq
    %v952 = vshrl.u32 %v951, 7
    %v953 = vsub.s32 %v950, %v952
    %v954 = vrot.slane %v926, %v953
    %v955 = vcombine.high %v933, %v933
    %v956 = vcombine.high %v940, %v940
    %v957 = vcombine.high %v947, %v947
    %v958 = vcombine.high %v954, %v954
    %v959 = vcombine.high %v520, %v520
    %v961 = vunpack.c.l.s4 1966171168
    %v962 = vunpack.c.0.s8 %v961
    %v963 = vlaneseq
    %v964 = vshrl.u32 %v963, 7
    %v965 = vsub.s32 %v962, %v964
    %v966 = vrot.slane %v520, %v965
    %v968 = vunpack.c.l.s4 1966171168
    %v969 = vunpack.c.0.s8 %v968
    %v970 = vlaneseq
    %v971 = vshrl.u32 %v970, 7
    %v972 = vsub.s32 %v969, %v971
    %v973 = vrot.slane %v959, %v972
    %v974 = vcombine.high %v966, %v966
    %v975 = vcombine.high %v973, %v973
    %v977 = vunpack.c.l.s4 1966171168
    %v978 = vunpack.c.0.s8 %v977
    %v979 = vlaneseq
    %v980 = vshrl.u32 %v979, 7
    %v981 = vsub.s32 %v978, %v980
    %v982 = vrot.slane %v966, %v981
    %v984 = vunpack.c.l.s4 1966171168
    %v985 = vunpack.c.0.s8 %v984
    %v986 = vlaneseq
    %v987 = vshrl.u32 %v986, 7
    %v988 = vsub.s32 %v985, %v987
    %v989 = vrot.slane %v973, %v988
    %v991 = vunpack.c.l.s4 1966171168
    %v992 = vunpack.c.0.s8 %v991
    %v993 = vlaneseq
    %v994 = vshrl.u32 %v993, 7
    %v995 = vsub.s32 %v992, %v994
    %v996 = vrot.slane %v974, %v995
    %v998 = vunpack.c.l.s4 1966171168
    %v999 = vunpack.c.0.s8 %v998
    %v1000 = vlaneseq
    %v1001 = vshrl.u32 %v1000, 7
    %v1002 = vsub.s32 %v999, %v1001
    %v1003 = vrot.slane %v975, %v1002
    %v1004 = vcombine.high %v982, %v982
    %v1005 = vcombine.high %v989, %v989
    %v1006 = vcombine.high %v996, %v996
    %v1007 = vcombine.high %v1003, %v1003
    %v1008 = vcombine.high %v525, %v525
    %v1010 = vunpack.c.l.s4 1966171168
    %v1011 = vunpack.c.0.s8 %v1010
    %v1012 = vlaneseq
    %v1013 = vshrl.u32 %v1012, 7
    %v1014 = vsub.s32 %v1011, %v1013
    %v1015 = vrot.slane %v525, %v1014
    %v1017 = vunpack.c.l.s4 1966171168
    %v1018 = vunpack.c.0.s8 %v1017
    %v1019 = vlaneseq
    %v1020 = vshrl.u32 %v1019, 7
    %v1021 = vsub.s32 %v1018, %v1020
    %v1022 = vrot.slane %v1008, %v1021
    %v1023 = vcombine.high %v1015, %v1015
    %v1024 = vcombine.high %v1022, %v1022
    %v1026 = vunpack.c.l.s4 1966171168
    %v1027 = vunpack.c.0.s8 %v1026
    %v1028 = vlaneseq
    %v1029 = vshrl.u32 %v1028, 7
    %v1030 = vsub.s32 %v1027, %v1029
    %v1031 = vrot.slane %v1015, %v1030
    %v1033 = vunpack.c.l.s4 1966171168
    %v1034 = vunpack.c.0.s8 %v1033
    %v1035 = vlaneseq
    %v1036 = vshrl.u32 %v1035, 7
    %v1037 = vsub.s32 %v1034, %v1036
    %v1038 = vrot.slane %v1022, %v1037
    %v1040 = vunpack.c.l.s4 1966171168
    %v1041 = vunpack.c.0.s8 %v1040
    %v1042 = vlaneseq
    %v1043 = vshrl.u32 %v1042, 7
    %v1044 = vsub.s32 %v1041, %v1043
    %v1045 = vrot.slane %v1023, %v1044
    %v1047 = vunpack.c.l.s4 1966171168
    %v1048 = vunpack.c.0.s8 %v1047
    %v1049 = vlaneseq
    %v1050 = vshrl.u32 %v1049, 7
    %v1051 = vsub.s32 %v1048, %v1050
    %v1052 = vrot.slane %v1024, %v1051
    %v1053 = vcombine.high %v1031, %v1031
    %v1054 = vcombine.high %v1038, %v1038
    %v1055 = vcombine.high %v1045, %v1045
    %v1056 = vcombine.high %v1052, %v1052
    %v1057 = vcombine.high %v530, %v530
    %v1059 = vunpack.c.l.s4 1966171168
    %v1060 = vunpack.c.0.s8 %v1059
    %v1061 = vlaneseq
    %v1062 = vshrl.u32 %v1061, 7
    %v1063 = vsub.s32 %v1060, %v1062
    %v1064 = vrot.slane %v530, %v1063
    %v1066 = vunpack.c.l.s4 1966171168
    %v1067 = vunpack.c.0.s8 %v1066
    %v1068 = vlaneseq
    %v1069 = vshrl.u32 %v1068, 7
    %v1070 = vsub.s32 %v1067, %v1069
    %v1071 = vrot.slane %v1057, %v1070
    %v1072 = vcombine.high %v1064, %v1064
    %v1073 = vcombine.high %v1071, %v1071
    %v1075 = vunpack.c.l.s4 1966171168
    %v1076 = vunpack.c.0.s8 %v1075
    %v1077 = vlaneseq
    %v1078 = vshrl.u32 %v1077, 7
    %v1079 = vsub.s32 %v1076, %v1078
    %v1080 = vrot.slane %v1064, %v1079
    %v1082 = vunpack.c.l.s4 1966171168
    %v1083 = vunpack.c.0.s8 %v1082
    %v1084 = vlaneseq
    %v1085 = vshrl.u32 %v1084, 7
    %v1086 = vsub.s32 %v1083, %v1085
    %v1087 = vrot.slane %v1071, %v1086
    %v1089 = vunpack.c.l.s4 1966171168
    %v1090 = vunpack.c.0.s8 %v1089
    %v1091 = vlaneseq
    %v1092 = vshrl.u32 %v1091, 7
    %v1093 = vsub.s32 %v1090, %v1092
    %v1094 = vrot.slane %v1072, %v1093
    %v1096 = vunpack.c.l.s4 1966171168
    %v1097 = vunpack.c.0.s8 %v1096
    %v1098 = vlaneseq
    %v1099 = vshrl.u32 %v1098, 7
    %v1100 = vsub.s32 %v1097, %v1099
    %v1101 = vrot.slane %v1073, %v1100
    %v1102 = vcombine.high %v1080, %v1080
    %v1103 = vcombine.high %v1087, %v1087
    %v1104 = vcombine.high %v1094, %v1094
    %v1105 = vcombine.high %v1101, %v1101
    %v1106 = vcombine.high %v535, %v535
    %v1108 = vunpack.c.l.s4 1966171168
    %v1109 = vunpack.c.0.s8 %v1108
    %v1110 = vlaneseq
    %v1111 = vshrl.u32 %v1110, 7
    %v1112 = vsub.s32 %v1109, %v1111
    %v1113 = vrot.slane %v535, %v1112
    %v1115 = vunpack.c.l.s4 1966171168
    %v1116 = vunpack.c.0.s8 %v1115
    %v1117 = vlaneseq
    %v1118 = vshrl.u32 %v1117, 7
    %v1119 = vsub.s32 %v1116, %v1118
    %v1120 = vrot.slane %v1106, %v1119
    %v1121 = vcombine.high %v1113, %v1113
    %v1122 = vcombine.high %v1120, %v1120
    %v1124 = vunpack.c.l.s4 1966171168
    %v1125 = vunpack.c.0.s8 %v1124
    %v1126 = vlaneseq
    %v1127 = vshrl.u32 %v1126, 7
    %v1128 = vsub.s32 %v1125, %v1127
    %v1129 = vrot.slane %v1113, %v1128
    %v1131 = vunpack.c.l.s4 1966171168
    %v1132 = vunpack.c.0.s8 %v1131
    %v1133 = vlaneseq
    %v1134 = vshrl.u32 %v1133, 7
    %v1135 = vsub.s32 %v1132, %v1134
    %v1136 = vrot.slane %v1120, %v1135
    %v1138 = vunpack.c.l.s4 1966171168
    %v1139 = vunpack.c.0.s8 %v1138
    %v1140 = vlaneseq
    %v1141 = vshrl.u32 %v1140, 7
    %v1142 = vsub.s32 %v1139, %v1141
    %v1143 = vrot.slane %v1121, %v1142
    %v1145 = vunpack.c.l.s4 1966171168
    %v1146 = vunpack.c.0.s8 %v1145
    %v1147 = vlaneseq
    %v1148 = vshrl.u32 %v1147, 7
    %v1149 = vsub.s32 %v1146, %v1148
    %v1150 = vrot.slane %v1122, %v1149
    %v1151 = vcombine.high %v1129, %v1129
    %v1152 = vcombine.high %v1136, %v1136
    %v1153 = vcombine.high %v1143, %v1143
    %v1154 = vcombine.high %v1150, %v1150
    %v1155 = vcombine.high %v540, %v540
    %v1157 = vunpack.c.l.s4 1966171168
    %v1158 = vunpack.c.0.s8 %v1157
    %v1159 = vlaneseq
    %v1160 = vshrl.u32 %v1159, 7
    %v1161 = vsub.s32 %v1158, %v1160
    %v1162 = vrot.slane %v540, %v1161
    %v1164 = vunpack.c.l.s4 1966171168
    %v1165 = vunpack.c.0.s8 %v1164
    %v1166 = vlaneseq
    %v1167 = vshrl.u32 %v1166, 7
    %v1168 = vsub.s32 %v1165, %v1167
    %v1169 = vrot.slane %v1155, %v1168
    %v1170 = vcombine.high %v1162, %v1162
    %v1171 = vcombine.high %v1169, %v1169
    %v1173 = vunpack.c.l.s4 1966171168
    %v1174 = vunpack.c.0.s8 %v1173
    %v1175 = vlaneseq
    %v1176 = vshrl.u32 %v1175, 7
    %v1177 = vsub.s32 %v1174, %v1176
    %v1178 = vrot.slane %v1162, %v1177
    %v1180 = vunpack.c.l.s4 1966171168
    %v1181 = vunpack.c.0.s8 %v1180
    %v1182 = vlaneseq
    %v1183 = vshrl.u32 %v1182, 7
    %v1184 = vsub.s32 %v1181, %v1183
    %v1185 = vrot.slane %v1169, %v1184
    %v1187 = vunpack.c.l.s4 1966171168
    %v1188 = vunpack.c.0.s8 %v1187
    %v1189 = vlaneseq
    %v1190 = vshrl.u32 %v1189, 7
    %v1191 = vsub.s32 %v1188, %v1190
    %v1192 = vrot.slane %v1170, %v1191
    %v1194 = vunpack.c.l.s4 1966171168
    %v1195 = vunpack.c.0.s8 %v1194
    %v1196 = vlaneseq
    %v1197 = vshrl.u32 %v1196, 7
    %v1198 = vsub.s32 %v1195, %v1197
    %v1199 = vrot.slane %v1171, %v1198
    %v1200 = vcombine.high %v1178, %v1178
    %v1201 = vcombine.high %v1185, %v1185
    %v1202 = vcombine.high %v1192, %v1192
    %v1203 = vcombine.high %v1199, %v1199
    %v1204 = vcombine.high %v545, %v545
    %v1206 = vunpack.c.l.s4 1966171168
    %v1207 = vunpack.c.0.s8 %v1206
    %v1208 = vlaneseq
    %v1209 = vshrl.u32 %v1208, 7
    %v1210 = vsub.s32 %v1207, %v1209
    %v1211 = vrot.slane %v545, %v1210
    %v1213 = vunpack.c.l.s4 1966171168
    %v1214 = vunpack.c.0.s8 %v1213
    %v1215 = vlaneseq
    %v1216 = vshrl.u32 %v1215, 7
    %v1217 = vsub.s32 %v1214, %v1216
    %v1218 = vrot.slane %v1204, %v1217
    %v1219 = vcombine.high %v1211, %v1211
    %v1220 = vcombine.high %v1218, %v1218
    %v1222 = vunpack.c.l.s4 1966171168
    %v1223 = vunpack.c.0.s8 %v1222
    %v1224 = vlaneseq
    %v1225 = vshrl.u32 %v1224, 7
    %v1226 = vsub.s32 %v1223, %v1225
    %v1227 = vrot.slane %v1211, %v1226
    %v1229 = vunpack.c.l.s4 1966171168
    %v1230 = vunpack.c.0.s8 %v1229
    %v1231 = vlaneseq
    %v1232 = vshrl.u32 %v1231, 7
    %v1233 = vsub.s32 %v1230, %v1232
    %v1234 = vrot.slane %v1218, %v1233
    %v1236 = vunpack.c.l.s4 1966171168
    %v1237 = vunpack.c.0.s8 %v1236
    %v1238 = vlaneseq
    %v1239 = vshrl.u32 %v1238, 7
    %v1240 = vsub.s32 %v1237, %v1239
    %v1241 = vrot.slane %v1219, %v1240
    %v1243 = vunpack.c.l.s4 1966171168
    %v1244 = vunpack.c.0.s8 %v1243
    %v1245 = vlaneseq
    %v1246 = vshrl.u32 %v1245, 7
    %v1247 = vsub.s32 %v1244, %v1246
    %v1248 = vrot.slane %v1220, %v1247
    %v1249 = vcombine.high %v1227, %v1227
    %v1250 = vcombine.high %v1234, %v1234
    %v1251 = vcombine.high %v1241, %v1241
    %v1252 = vcombine.high %v1248, %v1248
    %v1253 = vcombine.high %v550, %v550
    %v1255 = vunpack.c.l.s4 1966171168
    %v1256 = vunpack.c.0.s8 %v1255
    %v1257 = vlaneseq
    %v1258 = vshrl.u32 %v1257, 7
    %v1259 = vsub.s32 %v1256, %v1258
    %v1260 = vrot.slane %v550, %v1259
    %v1262 = vunpack.c.l.s4 1966171168
    %v1263 = vunpack.c.0.s8 %v1262
    %v1264 = vlaneseq
    %v1265 = vshrl.u32 %v1264, 7
    %v1266 = vsub.s32 %v1263, %v1265
    %v1267 = vrot.slane %v1253, %v1266
    %v1268 = vcombine.high %v1260, %v1260
    %v1269 = vcombine.high %v1267, %v1267
    %v1271 = vunpack.c.l.s4 1966171168
    %v1272 = vunpack.c.0.s8 %v1271
    %v1273 = vlaneseq
    %v1274 = vshrl.u32 %v1273, 7
    %v1275 = vsub.s32 %v1272, %v1274
    %v1276 = vrot.slane %v1260, %v1275
    %v1278 = vunpack.c.l.s4 1966171168
    %v1279 = vunpack.c.0.s8 %v1278
    %v1280 = vlaneseq
    %v1281 = vshrl.u32 %v1280, 7
    %v1282 = vsub.s32 %v1279, %v1281
    %v1283 = vrot.slane %v1267, %v1282
    %v1285 = vunpack.c.l.s4 1966171168
    %v1286 = vunpack.c.0.s8 %v1285
    %v1287 = vlaneseq
    %v1288 = vshrl.u32 %v1287, 7
    %v1289 = vsub.s32 %v1286, %v1288
    %v1290 = vrot.slane %v1268, %v1289
    %v1292 = vunpack.c.l.s4 1966171168
    %v1293 = vunpack.c.0.s8 %v1292
    %v1294 = vlaneseq
    %v1295 = vshrl.u32 %v1294, 7
    %v1296 = vsub.s32 %v1293, %v1295
    %v1297 = vrot.slane %v1269, %v1296
    %v1298 = vcombine.high %v1276, %v1276
    %v1299 = vcombine.high %v1283, %v1283
    %v1300 = vcombine.high %v1290, %v1290
    %v1301 = vcombine.high %v1297, %v1297
    %v1302 = vcombine.high %v555, %v555
    %v1304 = vunpack.c.l.s4 1966171168
    %v1305 = vunpack.c.0.s8 %v1304
    %v1306 = vlaneseq
    %v1307 = vshrl.u32 %v1306, 7
    %v1308 = vsub.s32 %v1305, %v1307
    %v1309 = vrot.slane %v555, %v1308
    %v1311 = vunpack.c.l.s4 1966171168
    %v1312 = vunpack.c.0.s8 %v1311
    %v1313 = vlaneseq
    %v1314 = vshrl.u32 %v1313, 7
    %v1315 = vsub.s32 %v1312, %v1314
    %v1316 = vrot.slane %v1302, %v1315
    %v1317 = vcombine.high %v1309, %v1309
    %v1318 = vcombine.high %v1316, %v1316
    %v1320 = vunpack.c.l.s4 1966171168
    %v1321 = vunpack.c.0.s8 %v1320
    %v1322 = vlaneseq
    %v1323 = vshrl.u32 %v1322, 7
    %v1324 = vsub.s32 %v1321, %v1323
    %v1325 = vrot.slane %v1309, %v1324
    %v1327 = vunpack.c.l.s4 1966171168
    %v1328 = vunpack.c.0.s8 %v1327
    %v1329 = vlaneseq
    %v1330 = vshrl.u32 %v1329, 7
    %v1331 = vsub.s32 %v1328, %v1330
    %v1332 = vrot.slane %v1316, %v1331
    %v1334 = vunpack.c.l.s4 1966171168
    %v1335 = vunpack.c.0.s8 %v1334
    %v1336 = vlaneseq
    %v1337 = vshrl.u32 %v1336, 7
    %v1338 = vsub.s32 %v1335, %v1337
    %v1339 = vrot.slane %v1317, %v1338
    %v1341 = vunpack.c.l.s4 1966171168
    %v1342 = vunpack.c.0.s8 %v1341
    %v1343 = vlaneseq
    %v1344 = vshrl.u32 %v1343, 7
    %v1345 = vsub.s32 %v1342, %v1344
    %v1346 = vrot.slane %v1318, %v1345
    %v1347 = vcombine.high %v1325, %v1325
    %v1348 = vcombine.high %v1332, %v1332
    %v1349 = vcombine.high %v1339, %v1339
    %v1350 = vcombine.high %v1346, %v1346
    %v1351 = vcombine.high %v560, %v560
    %v1353 = vunpack.c.l.s4 1966171168
    %v1354 = vunpack.c.0.s8 %v1353
    %v1355 = vlaneseq
    %v1356 = vshrl.u32 %v1355, 7
    %v1357 = vsub.s32 %v1354, %v1356
    %v1358 = vrot.slane %v560, %v1357
    %v1360 = vunpack.c.l.s4 1966171168
    %v1361 = vunpack.c.0.s8 %v1360
    %v1362 = vlaneseq
    %v1363 = vshrl.u32 %v1362, 7
    %v1364 = vsub.s32 %v1361, %v1363
    %v1365 = vrot.slane %v1351, %v1364
    %v1366 = vcombine.high %v1358, %v1358
    %v1367 = vcombine.high %v1365, %v1365
    %v1369 = vunpack.c.l.s4 1966171168
    %v1370 = vunpack.c.0.s8 %v1369
    %v1371 = vlaneseq
    %v1372 = vshrl.u32 %v1371, 7
    %v1373 = vsub.s32 %v1370, %v1372
    %v1374 = vrot.slane %v1358, %v1373
    %v1376 = vunpack.c.l.s4 1966171168
    %v1377 = vunpack.c.0.s8 %v1376
    %v1378 = vlaneseq
    %v1379 = vshrl.u32 %v1378, 7
    %v1380 = vsub.s32 %v1377, %v1379
    %v1381 = vrot.slane %v1365, %v1380
    %v1383 = vunpack.c.l.s4 1966171168
    %v1384 = vunpack.c.0.s8 %v1383
    %v1385 = vlaneseq
    %v1386 = vshrl.u32 %v1385, 7
    %v1387 = vsub.s32 %v1384, %v1386
    %v1388 = vrot.slane %v1366, %v1387
    %v1390 = vunpack.c.l.s4 1966171168
    %v1391 = vunpack.c.0.s8 %v1390
    %v1392 = vlaneseq
    %v1393 = vshrl.u32 %v1392, 7
    %v1394 = vsub.s32 %v1391, %v1393
    %v1395 = vrot.slane %v1367, %v1394
    %v1396 = vcombine.high %v1374, %v1374
    %v1397 = vcombine.high %v1381, %v1381
    %v1398 = vcombine.high %v1388, %v1388
    %v1399 = vcombine.high %v1395, %v1395
    %v1400 = vcombine.high %v565, %v565
    %v1402 = vunpack.c.l.s4 1966171168
    %v1403 = vunpack.c.0.s8 %v1402
    %v1404 = vlaneseq
    %v1405 = vshrl.u32 %v1404, 7
    %v1406 = vsub.s32 %v1403, %v1405
    %v1407 = vrot.slane %v565, %v1406
    %v1409 = vunpack.c.l.s4 1966171168
    %v1410 = vunpack.c.0.s8 %v1409
    %v1411 = vlaneseq
    %v1412 = vshrl.u32 %v1411, 7
    %v1413 = vsub.s32 %v1410, %v1412
    %v1414 = vrot.slane %v1400, %v1413
    %v1415 = vcombine.high %v1407, %v1407
    %v1416 = vcombine.high %v1414, %v1414
    %v1418 = vunpack.c.l.s4 1966171168
    %v1419 = vunpack.c.0.s8 %v1418
    %v1420 = vlaneseq
    %v1421 = vshrl.u32 %v1420, 7
    %v1422 = vsub.s32 %v1419, %v1421
    %v1423 = vrot.slane %v1407, %v1422
    %v1425 = vunpack.c.l.s4 1966171168
    %v1426 = vunpack.c.0.s8 %v1425
    %v1427 = vlaneseq
    %v1428 = vshrl.u32 %v1427, 7
    %v1429 = vsub.s32 %v1426, %v1428
    %v1430 = vrot.slane %v1414, %v1429
    %v1432 = vunpack.c.l.s4 1966171168
    %v1433 = vunpack.c.0.s8 %v1432
    %v1434 = vlaneseq
    %v1435 = vshrl.u32 %v1434, 7
    %v1436 = vsub.s32 %v1433, %v1435
    %v1437 = vrot.slane %v1415, %v1436
    %v1439 = vunpack.c.l.s4 1966171168
    %v1440 = vunpack.c.0.s8 %v1439
    %v1441 = vlaneseq
    %v1442 = vshrl.u32 %v1441, 7
    %v1443 = vsub.s32 %v1440, %v1442
    %v1444 = vrot.slane %v1416, %v1443
    %v1445 = vcombine.high %v1423, %v1423
    %v1446 = vcombine.high %v1430, %v1430
    %v1447 = vcombine.high %v1437, %v1437
    %v1448 = vcombine.high %v1444, %v1444
    %v1449 = vcombine.high %v570, %v570
    %v1451 = vunpack.c.l.s4 1966171168
    %v1452 = vunpack.c.0.s8 %v1451
    %v1453 = vlaneseq
    %v1454 = vshrl.u32 %v1453, 7
    %v1455 = vsub.s32 %v1452, %v1454
    %v1456 = vrot.slane %v570, %v1455
    %v1458 = vunpack.c.l.s4 1966171168
    %v1459 = vunpack.c.0.s8 %v1458
    %v1460 = vlaneseq
    %v1461 = vshrl.u32 %v1460, 7
    %v1462 = vsub.s32 %v1459, %v1461
    %v1463 = vrot.slane %v1449, %v1462
    %v1464 = vcombine.high %v1456, %v1456
    %v1465 = vcombine.high %v1463, %v1463
    %v1467 = vunpack.c.l.s4 1966171168
    %v1468 = vunpack.c.0.s8 %v1467
    %v1469 = vlaneseq
    %v1470 = vshrl.u32 %v1469, 7
    %v1471 = vsub.s32 %v1468, %v1470
    %v1472 = vrot.slane %v1456, %v1471
    %v1474 = vunpack.c.l.s4 1966171168
    %v1475 = vunpack.c.0.s8 %v1474
    %v1476 = vlaneseq
    %v1477 = vshrl.u32 %v1476, 7
    %v1478 = vsub.s32 %v1475, %v1477
    %v1479 = vrot.slane %v1463, %v1478
    %v1481 = vunpack.c.l.s4 1966171168
    %v1482 = vunpack.c.0.s8 %v1481
    %v1483 = vlaneseq
    %v1484 = vshrl.u32 %v1483, 7
    %v1485 = vsub.s32 %v1482, %v1484
    %v1486 = vrot.slane %v1464, %v1485
    %v1488 = vunpack.c.l.s4 1966171168
    %v1489 = vunpack.c.0.s8 %v1488
    %v1490 = vlaneseq
    %v1491 = vshrl.u32 %v1490, 7
    %v1492 = vsub.s32 %v1489, %v1491
    %v1493 = vrot.slane %v1465, %v1492
    %v1494 = vcombine.high %v1472, %v1472
    %v1495 = vcombine.high %v1479, %v1479
    %v1496 = vcombine.high %v1486, %v1486
    %v1497 = vcombine.high %v1493, %v1493
    %v1498 = vcombine.high %v575, %v575
    %v1500 = vunpack.c.l.s4 1966171168
    %v1501 = vunpack.c.0.s8 %v1500
    %v1502 = vlaneseq
    %v1503 = vshrl.u32 %v1502, 7
    %v1504 = vsub.s32 %v1501, %v1503
    %v1505 = vrot.slane %v575, %v1504
    %v1507 = vunpack.c.l.s4 1966171168
    %v1508 = vunpack.c.0.s8 %v1507
    %v1509 = vlaneseq
    %v1510 = vshrl.u32 %v1509, 7
    %v1511 = vsub.s32 %v1508, %v1510
    %v1512 = vrot.slane %v1498, %v1511
    %v1513 = vcombine.high %v1505, %v1505
    %v1514 = vcombine.high %v1512, %v1512
    %v1516 = vunpack.c.l.s4 1966171168
    %v1517 = vunpack.c.0.s8 %v1516
    %v1518 = vlaneseq
    %v1519 = vshrl.u32 %v1518, 7
    %v1520 = vsub.s32 %v1517, %v1519
    %v1521 = vrot.slane %v1505, %v1520
    %v1523 = vunpack.c.l.s4 1966171168
    %v1524 = vunpack.c.0.s8 %v1523
    %v1525 = vlaneseq
    %v1526 = vshrl.u32 %v1525, 7
    %v1527 = vsub.s32 %v1524, %v1526
    %v1528 = vrot.slane %v1512, %v1527
    %v1530 = vunpack.c.l.s4 1966171168
    %v1531 = vunpack.c.0.s8 %v1530
    %v1532 = vlaneseq
    %v1533 = vshrl.u32 %v1532, 7
    %v1534 = vsub.s32 %v1531, %v1533
    %v1535 = vrot.slane %v1513, %v1534
    %v1537 = vunpack.c.l.s4 1966171168
    %v1538 = vunpack.c.0.s8 %v1537
    %v1539 = vlaneseq
    %v1540 = vshrl.u32 %v1539, 7
    %v1541 = vsub.s32 %v1538, %v1540
    %v1542 = vrot.slane %v1514, %v1541
    %v1543 = vcombine.high %v1521, %v1521
    %v1544 = vcombine.high %v1528, %v1528
    %v1545 = vcombine.high %v1535, %v1535
    %v1546 = vcombine.high %v1542, %v1542
    %v1547 = vcombine.high %v580, %v580
    %v1549 = vunpack.c.l.s4 1966171168
    %v1550 = vunpack.c.0.s8 %v1549
    %v1551 = vlaneseq
    %v1552 = vshrl.u32 %v1551, 7
    %v1553 = vsub.s32 %v1550, %v1552
    %v1554 = vrot.slane %v580, %v1553
    %v1556 = vunpack.c.l.s4 1966171168
    %v1557 = vunpack.c.0.s8 %v1556
    %v1558 = vlaneseq
    %v1559 = vshrl.u32 %v1558, 7
    %v1560 = vsub.s32 %v1557, %v1559
    %v1561 = vrot.slane %v1547, %v1560
    %v1562 = vcombine.high %v1554, %v1554
    %v1563 = vcombine.high %v1561, %v1561
    %v1565 = vunpack.c.l.s4 1966171168
    %v1566 = vunpack.c.0.s8 %v1565
    %v1567 = vlaneseq
    %v1568 = vshrl.u32 %v1567, 7
    %v1569 = vsub.s32 %v1566, %v1568
    %v1570 = vrot.slane %v1554, %v1569
    %v1572 = vunpack.c.l.s4 1966171168
    %v1573 = vunpack.c.0.s8 %v1572
    %v1574 = vlaneseq
    %v1575 = vshrl.u32 %v1574, 7
    %v1576 = vsub.s32 %v1573, %v1575
    %v1577 = vrot.slane %v1561, %v1576
    %v1579 = vunpack.c.l.s4 1966171168
    %v1580 = vunpack.c.0.s8 %v1579
    %v1581 = vlaneseq
    %v1582 = vshrl.u32 %v1581, 7
    %v1583 = vsub.s32 %v1580, %v1582
    %v1584 = vrot.slane %v1562, %v1583
    %v1586 = vunpack.c.l.s4 1966171168
    %v1587 = vunpack.c.0.s8 %v1586
    %v1588 = vlaneseq
    %v1589 = vshrl.u32 %v1588, 7
    %v1590 = vsub.s32 %v1587, %v1589
    %v1591 = vrot.slane %v1563, %v1590
    %v1592 = vcombine.high %v1570, %v1570
    %v1593 = vcombine.high %v1577, %v1577
    %v1594 = vcombine.high %v1584, %v1584
    %v1595 = vcombine.high %v1591, %v1591
    %v1596 = vcombine.high %v585, %v585
    %v1598 = vunpack.c.l.s4 1966171168
    %v1599 = vunpack.c.0.s8 %v1598
    %v1600 = vlaneseq
    %v1601 = vshrl.u32 %v1600, 7
    %v1602 = vsub.s32 %v1599, %v1601
    %v1603 = vrot.slane %v585, %v1602
    %v1605 = vunpack.c.l.s4 1966171168
    %v1606 = vunpack.c.0.s8 %v1605
    %v1607 = vlaneseq
    %v1608 = vshrl.u32 %v1607, 7
    %v1609 = vsub.s32 %v1606, %v1608
    %v1610 = vrot.slane %v1596, %v1609
    %v1611 = vcombine.high %v1603, %v1603
    %v1612 = vcombine.high %v1610, %v1610
    %v1614 = vunpack.c.l.s4 1966171168
    %v1615 = vunpack.c.0.s8 %v1614
    %v1616 = vlaneseq
    %v1617 = vshrl.u32 %v1616, 7
    %v1618 = vsub.s32 %v1615, %v1617
    %v1619 = vrot.slane %v1603, %v1618
    %v1621 = vunpack.c.l.s4 1966171168
    %v1622 = vunpack.c.0.s8 %v1621
    %v1623 = vlaneseq
    %v1624 = vshrl.u32 %v1623, 7
    %v1625 = vsub.s32 %v1622, %v1624
    %v1626 = vrot.slane %v1610, %v1625
    %v1628 = vunpack.c.l.s4 1966171168
    %v1629 = vunpack.c.0.s8 %v1628
    %v1630 = vlaneseq
    %v1631 = vshrl.u32 %v1630, 7
    %v1632 = vsub.s32 %v1629, %v1631
    %v1633 = vrot.slane %v1611, %v1632
    %v1635 = vunpack.c.l.s4 1966171168
    %v1636 = vunpack.c.0.s8 %v1635
    %v1637 = vlaneseq
    %v1638 = vshrl.u32 %v1637, 7
    %v1639 = vsub.s32 %v1636, %v1638
    %v1640 = vrot.slane %v1612, %v1639
    %v1641 = vcombine.high %v1619, %v1619
    %v1642 = vcombine.high %v1626, %v1626
    %v1643 = vcombine.high %v1633, %v1633
    %v1644 = vcombine.high %v1640, %v1640
    %v1645 = vcombine.high %v590, %v590
    %v1647 = vunpack.c.l.s4 1966171168
    %v1648 = vunpack.c.0.s8 %v1647
    %v1649 = vlaneseq
    %v1650 = vshrl.u32 %v1649, 7
    %v1651 = vsub.s32 %v1648, %v1650
    %v1652 = vrot.slane %v590, %v1651
    %v1654 = vunpack.c.l.s4 1966171168
    %v1655 = vunpack.c.0.s8 %v1654
    %v1656 = vlaneseq
    %v1657 = vshrl.u32 %v1656, 7
    %v1658 = vsub.s32 %v1655, %v1657
    %v1659 = vrot.slane %v1645, %v1658
    %v1660 = vcombine.high %v1652, %v1652
    %v1661 = vcombine.high %v1659, %v1659
    %v1663 = vunpack.c.l.s4 1966171168
    %v1664 = vunpack.c.0.s8 %v1663
    %v1665 = vlaneseq
    %v1666 = vshrl.u32 %v1665, 7
    %v1667 = vsub.s32 %v1664, %v1666
    %v1668 = vrot.slane %v1652, %v1667
    %v1670 = vunpack.c.l.s4 1966171168
    %v1671 = vunpack.c.0.s8 %v1670
    %v1672 = vlaneseq
    %v1673 = vshrl.u32 %v1672, 7
    %v1674 = vsub.s32 %v1671, %v1673
    %v1675 = vrot.slane %v1659, %v1674
    %v1677 = vunpack.c.l.s4 1966171168
    %v1678 = vunpack.c.0.s8 %v1677
    %v1679 = vlaneseq
    %v1680 = vshrl.u32 %v1679, 7
    %v1681 = vsub.s32 %v1678, %v1680
    %v1682 = vrot.slane %v1660, %v1681
    %v1684 = vunpack.c.l.s4 1966171168
    %v1685 = vunpack.c.0.s8 %v1684
    %v1686 = vlaneseq
    %v1687 = vshrl.u32 %v1686, 7
    %v1688 = vsub.s32 %v1685, %v1687
    %v1689 = vrot.slane %v1661, %v1688
    %v1690 = vcombine.high %v1668, %v1668
    %v1691 = vcombine.high %v1675, %v1675
    %v1692 = vcombine.high %v1682, %v1682
    %v1693 = vcombine.high %v1689, %v1689
    %v1694 = vcombine.high %v595, %v595
    %v1696 = vunpack.c.l.s4 1966171168
    %v1697 = vunpack.c.0.s8 %v1696
    %v1698 = vlaneseq
    %v1699 = vshrl.u32 %v1698, 7
    %v1700 = vsub.s32 %v1697, %v1699
    %v1701 = vrot.slane %v595, %v1700
    %v1703 = vunpack.c.l.s4 1966171168
    %v1704 = vunpack.c.0.s8 %v1703
    %v1705 = vlaneseq
    %v1706 = vshrl.u32 %v1705, 7
    %v1707 = vsub.s32 %v1704, %v1706
    %v1708 = vrot.slane %v1694, %v1707
    %v1709 = vcombine.high %v1701, %v1701
    %v1710 = vcombine.high %v1708, %v1708
    %v1712 = vunpack.c.l.s4 1966171168
    %v1713 = vunpack.c.0.s8 %v1712
    %v1714 = vlaneseq
    %v1715 = vshrl.u32 %v1714, 7
    %v1716 = vsub.s32 %v1713, %v1715
    %v1717 = vrot.slane %v1701, %v1716
    %v1719 = vunpack.c.l.s4 1966171168
    %v1720 = vunpack.c.0.s8 %v1719
    %v1721 = vlaneseq
    %v1722 = vshrl.u32 %v1721, 7
    %v1723 = vsub.s32 %v1720, %v1722
    %v1724 = vrot.slane %v1708, %v1723
    %v1726 = vunpack.c.l.s4 1966171168
    %v1727 = vunpack.c.0.s8 %v1726
    %v1728 = vlaneseq
    %v1729 = vshrl.u32 %v1728, 7
    %v1730 = vsub.s32 %v1727, %v1729
    %v1731 = vrot.slane %v1709, %v1730
    %v1733 = vunpack.c.l.s4 1966171168
    %v1734 = vunpack.c.0.s8 %v1733
    %v1735 = vlaneseq
    %v1736 = vshrl.u32 %v1735, 7
    %v1737 = vsub.s32 %v1734, %v1736
    %v1738 = vrot.slane %v1710, %v1737
    %v1739 = vcombine.high %v1717, %v1717
    %v1740 = vcombine.high %v1724, %v1724
    %v1741 = vcombine.high %v1731, %v1731
    %v1742 = vcombine.high %v1738, %v1738
    %v1743 = vcombine.high %v600, %v600
    %v1745 = vunpack.c.l.s4 1966171168
    %v1746 = vunpack.c.0.s8 %v1745
    %v1747 = vlaneseq
    %v1748 = vshrl.u32 %v1747, 7
    %v1749 = vsub.s32 %v1746, %v1748
    %v1750 = vrot.slane %v600, %v1749
    %v1752 = vunpack.c.l.s4 1966171168
    %v1753 = vunpack.c.0.s8 %v1752
    %v1754 = vlaneseq
    %v1755 = vshrl.u32 %v1754, 7
    %v1756 = vsub.s32 %v1753, %v1755
    %v1757 = vrot.slane %v1743, %v1756
    %v1758 = vcombine.high %v1750, %v1750
    %v1759 = vcombine.high %v1757, %v1757
    %v1761 = vunpack.c.l.s4 1966171168
    %v1762 = vunpack.c.0.s8 %v1761
    %v1763 = vlaneseq
    %v1764 = vshrl.u32 %v1763, 7
    %v1765 = vsub.s32 %v1762, %v1764
    %v1766 = vrot.slane %v1750, %v1765
    %v1768 = vunpack.c.l.s4 1966171168
    %v1769 = vunpack.c.0.s8 %v1768
    %v1770 = vlaneseq
    %v1771 = vshrl.u32 %v1770, 7
    %v1772 = vsub.s32 %v1769, %v1771
    %v1773 = vrot.slane %v1757, %v1772
    %v1775 = vunpack.c.l.s4 1966171168
    %v1776 = vunpack.c.0.s8 %v1775
    %v1777 = vlaneseq
    %v1778 = vshrl.u32 %v1777, 7
    %v1779 = vsub.s32 %v1776, %v1778
    %v1780 = vrot.slane %v1758, %v1779
    %v1782 = vunpack.c.l.s4 1966171168
    %v1783 = vunpack.c.0.s8 %v1782
    %v1784 = vlaneseq
    %v1785 = vshrl.u32 %v1784, 7
    %v1786 = vsub.s32 %v1783, %v1785
    %v1787 = vrot.slane %v1759, %v1786
    %v1788 = vcombine.high %v1766, %v1766
    %v1789 = vcombine.high %v1773, %v1773
    %v1790 = vcombine.high %v1780, %v1780
    %v1791 = vcombine.high %v1787, %v1787
    %v1792 = vcombine.high %v605, %v605
    %v1794 = vunpack.c.l.s4 1966171168
    %v1795 = vunpack.c.0.s8 %v1794
    %v1796 = vlaneseq
    %v1797 = vshrl.u32 %v1796, 7
    %v1798 = vsub.s32 %v1795, %v1797
    %v1799 = vrot.slane %v605, %v1798
    %v1801 = vunpack.c.l.s4 1966171168
    %v1802 = vunpack.c.0.s8 %v1801
    %v1803 = vlaneseq
    %v1804 = vshrl.u32 %v1803, 7
    %v1805 = vsub.s32 %v1802, %v1804
    %v1806 = vrot.slane %v1792, %v1805
    %v1807 = vcombine.high %v1799, %v1799
    %v1808 = vcombine.high %v1806, %v1806
    %v1810 = vunpack.c.l.s4 1966171168
    %v1811 = vunpack.c.0.s8 %v1810
    %v1812 = vlaneseq
    %v1813 = vshrl.u32 %v1812, 7
    %v1814 = vsub.s32 %v1811, %v1813
    %v1815 = vrot.slane %v1799, %v1814
    %v1817 = vunpack.c.l.s4 1966171168
    %v1818 = vunpack.c.0.s8 %v1817
    %v1819 = vlaneseq
    %v1820 = vshrl.u32 %v1819, 7
    %v1821 = vsub.s32 %v1818, %v1820
    %v1822 = vrot.slane %v1806, %v1821
    %v1824 = vunpack.c.l.s4 1966171168
    %v1825 = vunpack.c.0.s8 %v1824
    %v1826 = vlaneseq
    %v1827 = vshrl.u32 %v1826, 7
    %v1828 = vsub.s32 %v1825, %v1827
    %v1829 = vrot.slane %v1807, %v1828
    %v1831 = vunpack.c.l.s4 1966171168
    %v1832 = vunpack.c.0.s8 %v1831
    %v1833 = vlaneseq
    %v1834 = vshrl.u32 %v1833, 7
    %v1835 = vsub.s32 %v1832, %v1834
    %v1836 = vrot.slane %v1808, %v1835
    %v1837 = vcombine.high %v1815, %v1815
    %v1838 = vcombine.high %v1822, %v1822
    %v1839 = vcombine.high %v1829, %v1829
    %v1840 = vcombine.high %v1836, %v1836
    %v1841 = vcombine.high %v610, %v610
    %v1843 = vunpack.c.l.s4 1966171168
    %v1844 = vunpack.c.0.s8 %v1843
    %v1845 = vlaneseq
    %v1846 = vshrl.u32 %v1845, 7
    %v1847 = vsub.s32 %v1844, %v1846
    %v1848 = vrot.slane %v610, %v1847
    %v1850 = vunpack.c.l.s4 1966171168
    %v1851 = vunpack.c.0.s8 %v1850
    %v1852 = vlaneseq
    %v1853 = vshrl.u32 %v1852, 7
    %v1854 = vsub.s32 %v1851, %v1853
    %v1855 = vrot.slane %v1841, %v1854
    %v1856 = vcombine.high %v1848, %v1848
    %v1857 = vcombine.high %v1855, %v1855
    %v1859 = vunpack.c.l.s4 1966171168
    %v1860 = vunpack.c.0.s8 %v1859
    %v1861 = vlaneseq
    %v1862 = vshrl.u32 %v1861, 7
    %v1863 = vsub.s32 %v1860, %v1862
    %v1864 = vrot.slane %v1848, %v1863
    %v1866 = vunpack.c.l.s4 1966171168
    %v1867 = vunpack.c.0.s8 %v1866
    %v1868 = vlaneseq
    %v1869 = vshrl.u32 %v1868, 7
    %v1870 = vsub.s32 %v1867, %v1869
    %v1871 = vrot.slane %v1855, %v1870
    %v1873 = vunpack.c.l.s4 1966171168
    %v1874 = vunpack.c.0.s8 %v1873
    %v1875 = vlaneseq
    %v1876 = vshrl.u32 %v1875, 7
    %v1877 = vsub.s32 %v1874, %v1876
    %v1878 = vrot.slane %v1856, %v1877
    %v1880 = vunpack.c.l.s4 1966171168
    %v1881 = vunpack.c.0.s8 %v1880
    %v1882 = vlaneseq
    %v1883 = vshrl.u32 %v1882, 7
    %v1884 = vsub.s32 %v1881, %v1883
    %v1885 = vrot.slane %v1857, %v1884
    %v1886 = vcombine.high %v1864, %v1864
    %v1887 = vcombine.high %v1871, %v1871
    %v1888 = vcombine.high %v1878, %v1878
    %v1889 = vcombine.high %v1885, %v1885
    %v1890 = vcombine.high %v615, %v615
    %v1892 = vunpack.c.l.s4 1966171168
    %v1893 = vunpack.c.0.s8 %v1892
    %v1894 = vlaneseq
    %v1895 = vshrl.u32 %v1894, 7
    %v1896 = vsub.s32 %v1893, %v1895
    %v1897 = vrot.slane %v615, %v1896
    %v1899 = vunpack.c.l.s4 1966171168
    %v1900 = vunpack.c.0.s8 %v1899
    %v1901 = vlaneseq
    %v1902 = vshrl.u32 %v1901, 7
    %v1903 = vsub.s32 %v1900, %v1902
    %v1904 = vrot.slane %v1890, %v1903
    %v1905 = vcombine.high %v1897, %v1897
    %v1906 = vcombine.high %v1904, %v1904
    %v1908 = vunpack.c.l.s4 1966171168
    %v1909 = vunpack.c.0.s8 %v1908
    %v1910 = vlaneseq
    %v1911 = vshrl.u32 %v1910, 7
    %v1912 = vsub.s32 %v1909, %v1911
    %v1913 = vrot.slane %v1897, %v1912
    %v1915 = vunpack.c.l.s4 1966171168
    %v1916 = vunpack.c.0.s8 %v1915
    %v1917 = vlaneseq
    %v1918 = vshrl.u32 %v1917, 7
    %v1919 = vsub.s32 %v1916, %v1918
    %v1920 = vrot.slane %v1904, %v1919
    %v1922 = vunpack.c.l.s4 1966171168
    %v1923 = vunpack.c.0.s8 %v1922
    %v1924 = vlaneseq
    %v1925 = vshrl.u32 %v1924, 7
    %v1926 = vsub.s32 %v1923, %v1925
    %v1927 = vrot.slane %v1905, %v1926
    %v1929 = vunpack.c.l.s4 1966171168
    %v1930 = vunpack.c.0.s8 %v1929
    %v1931 = vlaneseq
    %v1932 = vshrl.u32 %v1931, 7
    %v1933 = vsub.s32 %v1930, %v1932
    %v1934 = vrot.slane %v1906, %v1933
    %v1935 = vcombine.high %v1913, %v1913
    %v1936 = vcombine.high %v1920, %v1920
    %v1937 = vcombine.high %v1927, %v1927
    %v1938 = vcombine.high %v1934, %v1934
    %v1939 = vcombine.high %v620, %v620
    %v1941 = vunpack.c.l.s4 1966171168
    %v1942 = vunpack.c.0.s8 %v1941
    %v1943 = vlaneseq
    %v1944 = vshrl.u32 %v1943, 7
    %v1945 = vsub.s32 %v1942, %v1944
    %v1946 = vrot.slane %v620, %v1945
    %v1948 = vunpack.c.l.s4 1966171168
    %v1949 = vunpack.c.0.s8 %v1948
    %v1950 = vlaneseq
    %v1951 = vshrl.u32 %v1950, 7
    %v1952 = vsub.s32 %v1949, %v1951
    %v1953 = vrot.slane %v1939, %v1952
    %v1954 = vcombine.high %v1946, %v1946
    %v1955 = vcombine.high %v1953, %v1953
    %v1957 = vunpack.c.l.s4 1966171168
    %v1958 = vunpack.c.0.s8 %v1957
    %v1959 = vlaneseq
    %v1960 = vshrl.u32 %v1959, 7
    %v1961 = vsub.s32 %v1958, %v1960
    %v1962 = vrot.slane %v1946, %v1961
    %v1964 = vunpack.c.l.s4 1966171168
    %v1965 = vunpack.c.0.s8 %v1964
    %v1966 = vlaneseq
    %v1967 = vshrl.u32 %v1966, 7
    %v1968 = vsub.s32 %v1965, %v1967
    %v1969 = vrot.slane %v1953, %v1968
    %v1971 = vunpack.c.l.s4 1966171168
    %v1972 = vunpack.c.0.s8 %v1971
    %v1973 = vlaneseq
    %v1974 = vshrl.u32 %v1973, 7
    %v1975 = vsub.s32 %v1972, %v1974
    %v1976 = vrot.slane %v1954, %v1975
    %v1978 = vunpack.c.l.s4 1966171168
    %v1979 = vunpack.c.0.s8 %v1978
    %v1980 = vlaneseq
    %v1981 = vshrl.u32 %v1980, 7
    %v1982 = vsub.s32 %v1979, %v1981
    %v1983 = vrot.slane %v1955, %v1982
    %v1984 = vcombine.high %v1962, %v1962
    %v1985 = vcombine.high %v1969, %v1969
    %v1986 = vcombine.high %v1976, %v1976
    %v1987 = vcombine.high %v1983, %v1983
    %v1988 = vcombine.high %v625, %v625
    %v1990 = vunpack.c.l.s4 1966171168
    %v1991 = vunpack.c.0.s8 %v1990
    %v1992 = vlaneseq
    %v1993 = vshrl.u32 %v1992, 7
    %v1994 = vsub.s32 %v1991, %v1993
    %v1995 = vrot.slane %v625, %v1994
    %v1997 = vunpack.c.l.s4 1966171168
    %v1998 = vunpack.c.0.s8 %v1997
    %v1999 = vlaneseq
    %v2000 = vshrl.u32 %v1999, 7
    %v2001 = vsub.s32 %v1998, %v2000
    %v2002 = vrot.slane %v1988, %v2001
    %v2003 = vcombine.high %v1995, %v1995
    %v2004 = vcombine.high %v2002, %v2002
    %v2006 = vunpack.c.l.s4 1966171168
    %v2007 = vunpack.c.0.s8 %v2006
    %v2008 = vlaneseq
    %v2009 = vshrl.u32 %v2008, 7
    %v2010 = vsub.s32 %v2007, %v2009
    %v2011 = vrot.slane %v1995, %v2010
    %v2013 = vunpack.c.l.s4 1966171168
    %v2014 = vunpack.c.0.s8 %v2013
    %v2015 = vlaneseq
    %v2016 = vshrl.u32 %v2015, 7
    %v2017 = vsub.s32 %v2014, %v2016
    %v2018 = vrot.slane %v2002, %v2017
    %v2020 = vunpack.c.l.s4 1966171168
    %v2021 = vunpack.c.0.s8 %v2020
    %v2022 = vlaneseq
    %v2023 = vshrl.u32 %v2022, 7
    %v2024 = vsub.s32 %v2021, %v2023
    %v2025 = vrot.slane %v2003, %v2024
    %v2027 = vunpack.c.l.s4 1966171168
    %v2028 = vunpack.c.0.s8 %v2027
    %v2029 = vlaneseq
    %v2030 = vshrl.u32 %v2029, 7
    %v2031 = vsub.s32 %v2028, %v2030
    %v2032 = vrot.slane %v2004, %v2031
    %v2033 = vcombine.high %v2011, %v2011
    %v2034 = vcombine.high %v2018, %v2018
    %v2035 = vcombine.high %v2025, %v2025
    %v2036 = vcombine.high %v2032, %v2032
    %v2037 = vcombine.high %v630, %v630
    %v2039 = vunpack.c.l.s4 1966171168
    %v2040 = vunpack.c.0.s8 %v2039
    %v2041 = vlaneseq
    %v2042 = vshrl.u32 %v2041, 7
    %v2043 = vsub.s32 %v2040, %v2042
    %v2044 = vrot.slane %v630, %v2043
    %v2046 = vunpack.c.l.s4 1966171168
    %v2047 = vunpack.c.0.s8 %v2046
    %v2048 = vlaneseq
    %v2049 = vshrl.u32 %v2048, 7
    %v2050 = vsub.s32 %v2047, %v2049
    %v2051 = vrot.slane %v2037, %v2050
    %v2052 = vcombine.high %v2044, %v2044
    %v2053 = vcombine.high %v2051, %v2051
    %v2055 = vunpack.c.l.s4 1966171168
    %v2056 = vunpack.c.0.s8 %v2055
    %v2057 = vlaneseq
    %v2058 = vshrl.u32 %v2057, 7
    %v2059 = vsub.s32 %v2056, %v2058
    %v2060 = vrot.slane %v2044, %v2059
    %v2062 = vunpack.c.l.s4 1966171168
    %v2063 = vunpack.c.0.s8 %v2062
    %v2064 = vlaneseq
    %v2065 = vshrl.u32 %v2064, 7
    %v2066 = vsub.s32 %v2063, %v2065
    %v2067 = vrot.slane %v2051, %v2066
    %v2069 = vunpack.c.l.s4 1966171168
    %v2070 = vunpack.c.0.s8 %v2069
    %v2071 = vlaneseq
    %v2072 = vshrl.u32 %v2071, 7
    %v2073 = vsub.s32 %v2070, %v2072
    %v2074 = vrot.slane %v2052, %v2073
    %v2076 = vunpack.c.l.s4 1966171168
    %v2077 = vunpack.c.0.s8 %v2076
    %v2078 = vlaneseq
    %v2079 = vshrl.u32 %v2078, 7
    %v2080 = vsub.s32 %v2077, %v2079
    %v2081 = vrot.slane %v2053, %v2080
    %v2082 = vcombine.high %v2060, %v2060
    %v2083 = vcombine.high %v2067, %v2067
    %v2084 = vcombine.high %v2074, %v2074
    %v2085 = vcombine.high %v2081, %v2081
    %v2086 = vcombine.high %v635, %v635
    %v2088 = vunpack.c.l.s4 1966171168
    %v2089 = vunpack.c.0.s8 %v2088
    %v2090 = vlaneseq
    %v2091 = vshrl.u32 %v2090, 7
    %v2092 = vsub.s32 %v2089, %v2091
    %v2093 = vrot.slane %v635, %v2092
    %v2095 = vunpack.c.l.s4 1966171168
    %v2096 = vunpack.c.0.s8 %v2095
    %v2097 = vlaneseq
    %v2098 = vshrl.u32 %v2097, 7
    %v2099 = vsub.s32 %v2096, %v2098
    %v2100 = vrot.slane %v2086, %v2099
    %v2101 = vcombine.high %v2093, %v2093
    %v2102 = vcombine.high %v2100, %v2100
    %v2104 = vunpack.c.l.s4 1966171168
    %v2105 = vunpack.c.0.s8 %v2104
    %v2106 = vlaneseq
    %v2107 = vshrl.u32 %v2106, 7
    %v2108 = vsub.s32 %v2105, %v2107
    %v2109 = vrot.slane %v2093, %v2108
    %v2111 = vunpack.c.l.s4 1966171168
    %v2112 = vunpack.c.0.s8 %v2111
    %v2113 = vlaneseq
    %v2114 = vshrl.u32 %v2113, 7
    %v2115 = vsub.s32 %v2112, %v2114
    %v2116 = vrot.slane %v2100, %v2115
    %v2118 = vunpack.c.l.s4 1966171168
    %v2119 = vunpack.c.0.s8 %v2118
    %v2120 = vlaneseq
    %v2121 = vshrl.u32 %v2120, 7
    %v2122 = vsub.s32 %v2119, %v2121
    %v2123 = vrot.slane %v2101, %v2122
    %v2125 = vunpack.c.l.s4 1966171168
    %v2126 = vunpack.c.0.s8 %v2125
    %v2127 = vlaneseq
    %v2128 = vshrl.u32 %v2127, 7
    %v2129 = vsub.s32 %v2126, %v2128
    %v2130 = vrot.slane %v2102, %v2129
    %v2131 = vcombine.high %v2109, %v2109
    %v2132 = vcombine.high %v2116, %v2116
    %v2133 = vcombine.high %v2123, %v2123
    %v2134 = vcombine.high %v2130, %v2130
    %v2135 = vcombine.high %v640, %v640
    %v2137 = vunpack.c.l.s4 1966171168
    %v2138 = vunpack.c.0.s8 %v2137
    %v2139 = vlaneseq
    %v2140 = vshrl.u32 %v2139, 7
    %v2141 = vsub.s32 %v2138, %v2140
    %v2142 = vrot.slane %v640, %v2141
    %v2144 = vunpack.c.l.s4 1966171168
    %v2145 = vunpack.c.0.s8 %v2144
    %v2146 = vlaneseq
    %v2147 = vshrl.u32 %v2146, 7
    %v2148 = vsub.s32 %v2145, %v2147
    %v2149 = vrot.slane %v2135, %v2148
    %v2150 = vcombine.high %v2142, %v2142
    %v2151 = vcombine.high %v2149, %v2149
    %v2153 = vunpack.c.l.s4 1966171168
    %v2154 = vunpack.c.0.s8 %v2153
    %v2155 = vlaneseq
    %v2156 = vshrl.u32 %v2155, 7
    %v2157 = vsub.s32 %v2154, %v2156
    %v2158 = vrot.slane %v2142, %v2157
    %v2160 = vunpack.c.l.s4 1966171168
    %v2161 = vunpack.c.0.s8 %v2160
    %v2162 = vlaneseq
    %v2163 = vshrl.u32 %v2162, 7
    %v2164 = vsub.s32 %v2161, %v2163
    %v2165 = vrot.slane %v2149, %v2164
    %v2167 = vunpack.c.l.s4 1966171168
    %v2168 = vunpack.c.0.s8 %v2167
    %v2169 = vlaneseq
    %v2170 = vshrl.u32 %v2169, 7
    %v2171 = vsub.s32 %v2168, %v2170
    %v2172 = vrot.slane %v2150, %v2171
    %v2174 = vunpack.c.l.s4 1966171168
    %v2175 = vunpack.c.0.s8 %v2174
    %v2176 = vlaneseq
    %v2177 = vshrl.u32 %v2176, 7
    %v2178 = vsub.s32 %v2175, %v2177
    %v2179 = vrot.slane %v2151, %v2178
    %v2180 = vcombine.high %v2158, %v2158
    %v2181 = vcombine.high %v2165, %v2165
    %v2182 = vcombine.high %v2172, %v2172
    %v2183 = vcombine.high %v2179, %v2179
    %v2184 = vcombine.high %v645, %v645
    %v2186 = vunpack.c.l.s4 1966171168
    %v2187 = vunpack.c.0.s8 %v2186
    %v2188 = vlaneseq
    %v2189 = vshrl.u32 %v2188, 7
    %v2190 = vsub.s32 %v2187, %v2189
    %v2191 = vrot.slane %v645, %v2190
    %v2193 = vunpack.c.l.s4 1966171168
    %v2194 = vunpack.c.0.s8 %v2193
    %v2195 = vlaneseq
    %v2196 = vshrl.u32 %v2195, 7
    %v2197 = vsub.s32 %v2194, %v2196
    %v2198 = vrot.slane %v2184, %v2197
    %v2199 = vcombine.high %v2191, %v2191
    %v2200 = vcombine.high %v2198, %v2198
    %v2202 = vunpack.c.l.s4 1966171168
    %v2203 = vunpack.c.0.s8 %v2202
    %v2204 = vlaneseq
    %v2205 = vshrl.u32 %v2204, 7
    %v2206 = vsub.s32 %v2203, %v2205
    %v2207 = vrot.slane %v2191, %v2206
    %v2209 = vunpack.c.l.s4 1966171168
    %v2210 = vunpack.c.0.s8 %v2209
    %v2211 = vlaneseq
    %v2212 = vshrl.u32 %v2211, 7
    %v2213 = vsub.s32 %v2210, %v2212
    %v2214 = vrot.slane %v2198, %v2213
    %v2216 = vunpack.c.l.s4 1966171168
    %v2217 = vunpack.c.0.s8 %v2216
    %v2218 = vlaneseq
    %v2219 = vshrl.u32 %v2218, 7
    %v2220 = vsub.s32 %v2217, %v2219
    %v2221 = vrot.slane %v2199, %v2220
    %v2223 = vunpack.c.l.s4 1966171168
    %v2224 = vunpack.c.0.s8 %v2223
    %v2225 = vlaneseq
    %v2226 = vshrl.u32 %v2225, 7
    %v2227 = vsub.s32 %v2224, %v2226
    %v2228 = vrot.slane %v2200, %v2227
    %v2229 = vcombine.high %v2207, %v2207
    %v2230 = vcombine.high %v2214, %v2214
    %v2231 = vcombine.high %v2221, %v2221
    %v2232 = vcombine.high %v2228, %v2228
    %v2233 = vcombine.high %v650, %v650
    %v2235 = vunpack.c.l.s4 1966171168
    %v2236 = vunpack.c.0.s8 %v2235
    %v2237 = vlaneseq
    %v2238 = vshrl.u32 %v2237, 7
    %v2239 = vsub.s32 %v2236, %v2238
    %v2240 = vrot.slane %v650, %v2239
    %v2242 = vunpack.c.l.s4 1966171168
    %v2243 = vunpack.c.0.s8 %v2242
    %v2244 = vlaneseq
    %v2245 = vshrl.u32 %v2244, 7
    %v2246 = vsub.s32 %v2243, %v2245
    %v2247 = vrot.slane %v2233, %v2246
    %v2248 = vcombine.high %v2240, %v2240
    %v2249 = vcombine.high %v2247, %v2247
    %v2251 = vunpack.c.l.s4 1966171168
    %v2252 = vunpack.c.0.s8 %v2251
    %v2253 = vlaneseq
    %v2254 = vshrl.u32 %v2253, 7
    %v2255 = vsub.s32 %v2252, %v2254
    %v2256 = vrot.slane %v2240, %v2255
    %v2258 = vunpack.c.l.s4 1966171168
    %v2259 = vunpack.c.0.s8 %v2258
    %v2260 = vlaneseq
    %v2261 = vshrl.u32 %v2260, 7
    %v2262 = vsub.s32 %v2259, %v2261
    %v2263 = vrot.slane %v2247, %v2262
    %v2265 = vunpack.c.l.s4 1966171168
    %v2266 = vunpack.c.0.s8 %v2265
    %v2267 = vlaneseq
    %v2268 = vshrl.u32 %v2267, 7
    %v2269 = vsub.s32 %v2266, %v2268
    %v2270 = vrot.slane %v2248, %v2269
    %v2272 = vunpack.c.l.s4 1966171168
    %v2273 = vunpack.c.0.s8 %v2272
    %v2274 = vlaneseq
    %v2275 = vshrl.u32 %v2274, 7
    %v2276 = vsub.s32 %v2273, %v2275
    %v2277 = vrot.slane %v2249, %v2276
    %v2278 = vcombine.high %v2256, %v2256
    %v2279 = vcombine.high %v2263, %v2263
    %v2280 = vcombine.high %v2270, %v2270
    %v2281 = vcombine.high %v2277, %v2277
    %v2282 = vcombine.high %v655, %v655
    %v2284 = vunpack.c.l.s4 1966171168
    %v2285 = vunpack.c.0.s8 %v2284
    %v2286 = vlaneseq
    %v2287 = vshrl.u32 %v2286, 7
    %v2288 = vsub.s32 %v2285, %v2287
    %v2289 = vrot.slane %v655, %v2288
    %v2291 = vunpack.c.l.s4 1966171168
    %v2292 = vunpack.c.0.s8 %v2291
    %v2293 = vlaneseq
    %v2294 = vshrl.u32 %v2293, 7
    %v2295 = vsub.s32 %v2292, %v2294
    %v2296 = vrot.slane %v2282, %v2295
    %v2297 = vcombine.high %v2289, %v2289
    %v2298 = vcombine.high %v2296, %v2296
    %v2300 = vunpack.c.l.s4 1966171168
    %v2301 = vunpack.c.0.s8 %v2300
    %v2302 = vlaneseq
    %v2303 = vshrl.u32 %v2302, 7
    %v2304 = vsub.s32 %v2301, %v2303
    %v2305 = vrot.slane %v2289, %v2304
    %v2307 = vunpack.c.l.s4 1966171168
    %v2308 = vunpack.c.0.s8 %v2307
    %v2309 = vlaneseq
    %v2310 = vshrl.u32 %v2309, 7
    %v2311 = vsub.s32 %v2308, %v2310
    %v2312 = vrot.slane %v2296, %v2311
    %v2314 = vunpack.c.l.s4 1966171168
    %v2315 = vunpack.c.0.s8 %v2314
    %v2316 = vlaneseq
    %v2317 = vshrl.u32 %v2316, 7
    %v2318 = vsub.s32 %v2315, %v2317
    %v2319 = vrot.slane %v2297, %v2318
    %v2321 = vunpack.c.l.s4 1966171168
    %v2322 = vunpack.c.0.s8 %v2321
    %v2323 = vlaneseq
    %v2324 = vshrl.u32 %v2323, 7
    %v2325 = vsub.s32 %v2322, %v2324
    %v2326 = vrot.slane %v2298, %v2325
    %v2327 = vcombine.high %v2305, %v2305
    %v2328 = vcombine.high %v2312, %v2312
    %v2329 = vcombine.high %v2319, %v2319
    %v2330 = vcombine.high %v2326, %v2326
    %v2331 = vcombine.high %v660, %v660
    %v2333 = vunpack.c.l.s4 1966171168
    %v2334 = vunpack.c.0.s8 %v2333
    %v2335 = vlaneseq
    %v2336 = vshrl.u32 %v2335, 7
    %v2337 = vsub.s32 %v2334, %v2336
    %v2338 = vrot.slane %v660, %v2337
    %v2340 = vunpack.c.l.s4 1966171168
    %v2341 = vunpack.c.0.s8 %v2340
    %v2342 = vlaneseq
    %v2343 = vshrl.u32 %v2342, 7
    %v2344 = vsub.s32 %v2341, %v2343
    %v2345 = vrot.slane %v2331, %v2344
    %v2346 = vcombine.high %v2338, %v2338
    %v2347 = vcombine.high %v2345, %v2345
    %v2349 = vunpack.c.l.s4 1966171168
    %v2350 = vunpack.c.0.s8 %v2349
    %v2351 = vlaneseq
    %v2352 = vshrl.u32 %v2351, 7
    %v2353 = vsub.s32 %v2350, %v2352
    %v2354 = vrot.slane %v2338, %v2353
    %v2356 = vunpack.c.l.s4 1966171168
    %v2357 = vunpack.c.0.s8 %v2356
    %v2358 = vlaneseq
    %v2359 = vshrl.u32 %v2358, 7
    %v2360 = vsub.s32 %v2357, %v2359
    %v2361 = vrot.slane %v2345, %v2360
    %v2363 = vunpack.c.l.s4 1966171168
    %v2364 = vunpack.c.0.s8 %v2363
    %v2365 = vlaneseq
    %v2366 = vshrl.u32 %v2365, 7
    %v2367 = vsub.s32 %v2364, %v2366
    %v2368 = vrot.slane %v2346, %v2367
    %v2370 = vunpack.c.l.s4 1966171168
    %v2371 = vunpack.c.0.s8 %v2370
    %v2372 = vlaneseq
    %v2373 = vshrl.u32 %v2372, 7
    %v2374 = vsub.s32 %v2371, %v2373
    %v2375 = vrot.slane %v2347, %v2374
    %v2376 = vcombine.high %v2354, %v2354
    %v2377 = vcombine.high %v2361, %v2361
    %v2378 = vcombine.high %v2368, %v2368
    %v2379 = vcombine.high %v2375, %v2375
    %v2380 = vcombine.high %v665, %v665
    %v2382 = vunpack.c.l.s4 1966171168
    %v2383 = vunpack.c.0.s8 %v2382
    %v2384 = vlaneseq
    %v2385 = vshrl.u32 %v2384, 7
    %v2386 = vsub.s32 %v2383, %v2385
    %v2387 = vrot.slane %v665, %v2386
    %v2389 = vunpack.c.l.s4 1966171168
    %v2390 = vunpack.c.0.s8 %v2389
    %v2391 = vlaneseq
    %v2392 = vshrl.u32 %v2391, 7
    %v2393 = vsub.s32 %v2390, %v2392
    %v2394 = vrot.slane %v2380, %v2393
    %v2395 = vcombine.high %v2387, %v2387
    %v2396 = vcombine.high %v2394, %v2394
    %v2398 = vunpack.c.l.s4 1966171168
    %v2399 = vunpack.c.0.s8 %v2398
    %v2400 = vlaneseq
    %v2401 = vshrl.u32 %v2400, 7
    %v2402 = vsub.s32 %v2399, %v2401
    %v2403 = vrot.slane %v2387, %v2402
    %v2405 = vunpack.c.l.s4 1966171168
    %v2406 = vunpack.c.0.s8 %v2405
    %v2407 = vlaneseq
    %v2408 = vshrl.u32 %v2407, 7
    %v2409 = vsub.s32 %v2406, %v2408
    %v2410 = vrot.slane %v2394, %v2409
    %v2412 = vunpack.c.l.s4 1966171168
    %v2413 = vunpack.c.0.s8 %v2412
    %v2414 = vlaneseq
    %v2415 = vshrl.u32 %v2414, 7
    %v2416 = vsub.s32 %v2413, %v2415
    %v2417 = vrot.slane %v2395, %v2416
    %v2419 = vunpack.c.l.s4 1966171168
    %v2420 = vunpack.c.0.s8 %v2419
    %v2421 = vlaneseq
    %v2422 = vshrl.u32 %v2421, 7
    %v2423 = vsub.s32 %v2420, %v2422
    %v2424 = vrot.slane %v2396, %v2423
    %v2425 = vcombine.high %v2403, %v2403
    %v2426 = vcombine.high %v2410, %v2410
    %v2427 = vcombine.high %v2417, %v2417
    %v2428 = vcombine.high %v2424, %v2424
    %v2429 = vlaneseq
    %v2430 = vshrl.u32 %v2429, 7
    %v2431 = vsub.s32 0, %v2430
    %v2432 = vrot.slane %v884, %v2431
    %v2433 = vlaneseq
    %v2434 = vshrl.u32 %v2433, 7
    %v2435 = vsub.s32 0, %v2434
    %v2436 = vrot.slane %v898, %v2435
    %v2437 = vlaneseq
    %v2438 = vshrl.u32 %v2437, 7
    %v2439 = vsub.s32 0, %v2438
    %v2440 = vrot.slane %v906, %v2439
    %v2441 = vlaneseq
    %v2442 = vshrl.u32 %v2441, 7
    %v2443 = vsub.s32 0, %v2442
    %v2444 = vrot.slane %v908, %v2443
    %v2445 = vlaneseq
    %v2446 = vshrl.u32 %v2445, 7
    %v2447 = vsub.s32 0, %v2446
    %v2448 = vrot.slane %v891, %v2447
    %v2449 = vlaneseq
    %v2450 = vshrl.u32 %v2449, 7
    %v2451 = vsub.s32 0, %v2450
    %v2452 = vrot.slane %v905, %v2451
    %v2453 = vlaneseq
    %v2454 = vshrl.u32 %v2453, 7
    %v2455 = vsub.s32 0, %v2454
    %v2456 = vrot.slane %v907, %v2455
    %v2457 = vlaneseq
    %v2458 = vshrl.u32 %v2457, 7
    %v2459 = vsub.s32 0, %v2458
    %v2460 = vrot.slane %v909, %v2459
    %v2461 = vlaneseq
    %v2462 = vshrl.u32 %v2461, 7
    %v2463 = vsub.s32 0, %v2462
    %v2464 = vrot.slane %v933, %v2463
    %v2465 = vlaneseq
    %v2466 = vshrl.u32 %v2465, 7
    %v2467 = vsub.s32 0, %v2466
    %v2468 = vrot.slane %v947, %v2467
    %v2469 = vlaneseq
    %v2470 = vshrl.u32 %v2469, 7
    %v2471 = vsub.s32 0, %v2470
    %v2472 = vrot.slane %v955, %v2471
    %v2473 = vlaneseq
    %v2474 = vshrl.u32 %v2473, 7
    %v2475 = vsub.s32 0, %v2474
    %v2476 = vrot.slane %v957, %v2475
    %v2477 = vlaneseq
    %v2478 = vshrl.u32 %v2477, 7
    %v2479 = vsub.s32 0, %v2478
    %v2480 = vrot.slane %v940, %v2479
    %v2481 = vlaneseq
    %v2482 = vshrl.u32 %v2481, 7
    %v2483 = vsub.s32 0, %v2482
    %v2484 = vrot.slane %v954, %v2483
    %v2485 = vlaneseq
    %v2486 = vshrl.u32 %v2485, 7
    %v2487 = vsub.s32 0, %v2486
    %v2488 = vrot.slane %v956, %v2487
    %v2489 = vlaneseq
    %v2490 = vshrl.u32 %v2489, 7
    %v2491 = vsub.s32 0, %v2490
    %v2492 = vrot.slane %v958, %v2491
    %v2493 = vlaneseq
    %v2494 = vshrl.u32 %v2493, 7
    %v2495 = vsub.s32 0, %v2494
    %v2496 = vrot.slane %v982, %v2495
    %v2497 = vlaneseq
    %v2498 = vshrl.u32 %v2497, 7
    %v2499 = vsub.s32 0, %v2498
    %v2500 = vrot.slane %v996, %v2499
    %v2501 = vlaneseq
    %v2502 = vshrl.u32 %v2501, 7
    %v2503 = vsub.s32 0, %v2502
    %v2504 = vrot.slane %v1004, %v2503
    %v2505 = vlaneseq
    %v2506 = vshrl.u32 %v2505, 7
    %v2507 = vsub.s32 0, %v2506
    %v2508 = vrot.slane %v1006, %v2507
    %v2509 = vlaneseq
    %v2510 = vshrl.u32 %v2509, 7
    %v2511 = vsub.s32 0, %v2510
    %v2512 = vrot.slane %v989, %v2511
    %v2513 = vlaneseq
    %v2514 = vshrl.u32 %v2513, 7
    %v2515 = vsub.s32 0, %v2514
    %v2516 = vrot.slane %v1003, %v2515
    %v2517 = vlaneseq
    %v2518 = vshrl.u32 %v2517, 7
    %v2519 = vsub.s32 0, %v2518
    %v2520 = vrot.slane %v1005, %v2519
    %v2521 = vlaneseq
    %v2522 = vshrl.u32 %v2521, 7
    %v2523 = vsub.s32 0, %v2522
    %v2524 = vrot.slane %v1007, %v2523
    %v2525 = vlaneseq
    %v2526 = vshrl.u32 %v2525, 7
    %v2527 = vsub.s32 0, %v2526
    %v2528 = vrot.slane %v1031, %v2527
    %v2529 = vlaneseq
    %v2530 = vshrl.u32 %v2529, 7
    %v2531 = vsub.s32 0, %v2530
    %v2532 = vrot.slane %v1045, %v2531
    %v2533 = vlaneseq
    %v2534 = vshrl.u32 %v2533, 7
    %v2535 = vsub.s32 0, %v2534
    %v2536 = vrot.slane %v1053, %v2535
    %v2537 = vlaneseq
    %v2538 = vshrl.u32 %v2537, 7
    %v2539 = vsub.s32 0, %v2538
    %v2540 = vrot.slane %v1055, %v2539
    %v2541 = vlaneseq
    %v2542 = vshrl.u32 %v2541, 7
    %v2543 = vsub.s32 0, %v2542
    %v2544 = vrot.slane %v1038, %v2543
    %v2545 = vlaneseq
    %v2546 = vshrl.u32 %v2545, 7
    %v2547 = vsub.s32 0, %v2546
    %v2548 = vrot.slane %v1052, %v2547
    %v2549 = vlaneseq
    %v2550 = vshrl.u32 %v2549, 7
    %v2551 = vsub.s32 0, %v2550
    %v2552 = vrot.slane %v1054, %v2551
    %v2553 = vlaneseq
    %v2554 = vshrl.u32 %v2553, 7
    %v2555 = vsub.s32 0, %v2554
    %v2556 = vrot.slane %v1056, %v2555
    %v2557 = vlaneseq
    %v2558 = vshrl.u32 %v2557, 7
    %v2559 = vsub.s32 0, %v2558
    %v2560 = vrot.slane %v1080, %v2559
    %v2561 = vlaneseq
    %v2562 = vshrl.u32 %v2561, 7
    %v2563 = vsub.s32 0, %v2562
    %v2564 = vrot.slane %v1094, %v2563
    %v2565 = vlaneseq
    %v2566 = vshrl.u32 %v2565, 7
    %v2567 = vsub.s32 0, %v2566
    %v2568 = vrot.slane %v1102, %v2567
    %v2569 = vlaneseq
    %v2570 = vshrl.u32 %v2569, 7
    %v2571 = vsub.s32 0, %v2570
    %v2572 = vrot.slane %v1104, %v2571
    %v2573 = vlaneseq
    %v2574 = vshrl.u32 %v2573, 7
    %v2575 = vsub.s32 0, %v2574
    %v2576 = vrot.slane %v1087, %v2575
    %v2577 = vlaneseq
    %v2578 = vshrl.u32 %v2577, 7
    %v2579 = vsub.s32 0, %v2578
    %v2580 = vrot.slane %v1101, %v2579
    %v2581 = vlaneseq
    %v2582 = vshrl.u32 %v2581, 7
    %v2583 = vsub.s32 0, %v2582
    %v2584 = vrot.slane %v1103, %v2583
    %v2585 = vlaneseq
    %v2586 = vshrl.u32 %v2585, 7
    %v2587 = vsub.s32 0, %v2586
    %v2588 = vrot.slane %v1105, %v2587
    %v2589 = vlaneseq
    %v2590 = vshrl.u32 %v2589, 7
    %v2591 = vsub.s32 0, %v2590
    %v2592 = vrot.slane %v1129, %v2591
    %v2593 = vlaneseq
    %v2594 = vshrl.u32 %v2593, 7
    %v2595 = vsub.s32 0, %v2594
    %v2596 = vrot.slane %v1143, %v2595
    %v2597 = vlaneseq
    %v2598 = vshrl.u32 %v2597, 7
    %v2599 = vsub.s32 0, %v2598
    %v2600 = vrot.slane %v1151, %v2599
    %v2601 = vlaneseq
    %v2602 = vshrl.u32 %v2601, 7
    %v2603 = vsub.s32 0, %v2602
    %v2604 = vrot.slane %v1153, %v2603
    %v2605 = vlaneseq
    %v2606 = vshrl.u32 %v2605, 7
    %v2607 = vsub.s32 0, %v2606
    %v2608 = vrot.slane %v1136, %v2607
    %v2609 = vlaneseq
    %v2610 = vshrl.u32 %v2609, 7
    %v2611 = vsub.s32 0, %v2610
    %v2612 = vrot.slane %v1150, %v2611
    %v2613 = vlaneseq
    %v2614 = vshrl.u32 %v2613, 7
    %v2615 = vsub.s32 0, %v2614
    %v2616 = vrot.slane %v1152, %v2615
    %v2617 = vlaneseq
    %v2618 = vshrl.u32 %v2617, 7
    %v2619 = vsub.s32 0, %v2618
    %v2620 = vrot.slane %v1154, %v2619
    %v2621 = vlaneseq
    %v2622 = vshrl.u32 %v2621, 7
    %v2623 = vsub.s32 0, %v2622
    %v2624 = vrot.slane %v1178, %v2623
    %v2625 = vlaneseq
    %v2626 = vshrl.u32 %v2625, 7
    %v2627 = vsub.s32 0, %v2626
    %v2628 = vrot.slane %v1192, %v2627
    %v2629 = vlaneseq
    %v2630 = vshrl.u32 %v2629, 7
    %v2631 = vsub.s32 0, %v2630
    %v2632 = vrot.slane %v1200, %v2631
    %v2633 = vlaneseq
    %v2634 = vshrl.u32 %v2633, 7
    %v2635 = vsub.s32 0, %v2634
    %v2636 = vrot.slane %v1202, %v2635
    %v2637 = vlaneseq
    %v2638 = vshrl.u32 %v2637, 7
    %v2639 = vsub.s32 0, %v2638
    %v2640 = vrot.slane %v1185, %v2639
    %v2641 = vlaneseq
    %v2642 = vshrl.u32 %v2641, 7
    %v2643 = vsub.s32 0, %v2642
    %v2644 = vrot.slane %v1199, %v2643
    %v2645 = vlaneseq
    %v2646 = vshrl.u32 %v2645, 7
    %v2647 = vsub.s32 0, %v2646
    %v2648 = vrot.slane %v1201, %v2647
    %v2649 = vlaneseq
    %v2650 = vshrl.u32 %v2649, 7
    %v2651 = vsub.s32 0, %v2650
    %v2652 = vrot.slane %v1203, %v2651
    %v2653 = vlaneseq
    %v2654 = vshrl.u32 %v2653, 7
    %v2655 = vsub.s32 0, %v2654
    %v2656 = vrot.slane %v1227, %v2655
    %v2657 = vlaneseq
    %v2658 = vshrl.u32 %v2657, 7
    %v2659 = vsub.s32 0, %v2658
    %v2660 = vrot.slane %v1241, %v2659
    %v2661 = vlaneseq
    %v2662 = vshrl.u32 %v2661, 7
    %v2663 = vsub.s32 0, %v2662
    %v2664 = vrot.slane %v1249, %v2663
    %v2665 = vlaneseq
    %v2666 = vshrl.u32 %v2665, 7
    %v2667 = vsub.s32 0, %v2666
    %v2668 = vrot.slane %v1251, %v2667
    %v2669 = vlaneseq
    %v2670 = vshrl.u32 %v2669, 7
    %v2671 = vsub.s32 0, %v2670
    %v2672 = vrot.slane %v1234, %v2671
    %v2673 = vlaneseq
    %v2674 = vshrl.u32 %v2673, 7
    %v2675 = vsub.s32 0, %v2674
    %v2676 = vrot.slane %v1248, %v2675
    %v2677 = vlaneseq
    %v2678 = vshrl.u32 %v2677, 7
    %v2679 = vsub.s32 0, %v2678
    %v2680 = vrot.slane %v1250, %v2679
    %v2681 = vlaneseq
    %v2682 = vshrl.u32 %v2681, 7
    %v2683 = vsub.s32 0, %v2682
    %v2684 = vrot.slane %v1252, %v2683
    %v2685 = vlaneseq
    %v2686 = vshrl.u32 %v2685, 7
    %v2687 = vsub.s32 0, %v2686
    %v2688 = vrot.slane %v1276, %v2687
    %v2689 = vlaneseq
    %v2690 = vshrl.u32 %v2689, 7
    %v2691 = vsub.s32 0, %v2690
    %v2692 = vrot.slane %v1290, %v2691
    %v2693 = vlaneseq
    %v2694 = vshrl.u32 %v2693, 7
    %v2695 = vsub.s32 0, %v2694
    %v2696 = vrot.slane %v1298, %v2695
    %v2697 = vlaneseq
    %v2698 = vshrl.u32 %v2697, 7
    %v2699 = vsub.s32 0, %v2698
    %v2700 = vrot.slane %v1300, %v2699
    %v2701 = vlaneseq
    %v2702 = vshrl.u32 %v2701, 7
    %v2703 = vsub.s32 0, %v2702
    %v2704 = vrot.slane %v1283, %v2703
    %v2705 = vlaneseq
    %v2706 = vshrl.u32 %v2705, 7
    %v2707 = vsub.s32 0, %v2706
    %v2708 = vrot.slane %v1297, %v2707
    %v2709 = vlaneseq
    %v2710 = vshrl.u32 %v2709, 7
    %v2711 = vsub.s32 0, %v2710
    %v2712 = vrot.slane %v1299, %v2711
    %v2713 = vlaneseq
    %v2714 = vshrl.u32 %v2713, 7
    %v2715 = vsub.s32 0, %v2714
    %v2716 = vrot.slane %v1301, %v2715
    %v2717 = vlaneseq
    %v2718 = vshrl.u32 %v2717, 7
    %v2719 = vsub.s32 0, %v2718
    %v2720 = vrot.slane %v1325, %v2719
    %v2721 = vlaneseq
    %v2722 = vshrl.u32 %v2721, 7
    %v2723 = vsub.s32 0, %v2722
    %v2724 = vrot.slane %v1339, %v2723
    %v2725 = vlaneseq
    %v2726 = vshrl.u32 %v2725, 7
    %v2727 = vsub.s32 0, %v2726
    %v2728 = vrot.slane %v1347, %v2727
    %v2729 = vlaneseq
    %v2730 = vshrl.u32 %v2729, 7
    %v2731 = vsub.s32 0, %v2730
    %v2732 = vrot.slane %v1349, %v2731
    %v2733 = vlaneseq
    %v2734 = vshrl.u32 %v2733, 7
    %v2735 = vsub.s32 0, %v2734
    %v2736 = vrot.slane %v1332, %v2735
    %v2737 = vlaneseq
    %v2738 = vshrl.u32 %v2737, 7
    %v2739 = vsub.s32 0, %v2738
    %v2740 = vrot.slane %v1346, %v2739
    %v2741 = vlaneseq
    %v2742 = vshrl.u32 %v2741, 7
    %v2743 = vsub.s32 0, %v2742
    %v2744 = vrot.slane %v1348, %v2743
    %v2745 = vlaneseq
    %v2746 = vshrl.u32 %v2745, 7
    %v2747 = vsub.s32 0, %v2746
    %v2748 = vrot.slane %v1350, %v2747
    %v2749 = vlaneseq
    %v2750 = vshrl.u32 %v2749, 7
    %v2751 = vsub.s32 0, %v2750
    %v2752 = vrot.slane %v1374, %v2751
    %v2753 = vlaneseq
    %v2754 = vshrl.u32 %v2753, 7
    %v2755 = vsub.s32 0, %v2754
    %v2756 = vrot.slane %v1388, %v2755
    %v2757 = vlaneseq
    %v2758 = vshrl.u32 %v2757, 7
    %v2759 = vsub.s32 0, %v2758
    %v2760 = vrot.slane %v1396, %v2759
    %v2761 = vlaneseq
    %v2762 = vshrl.u32 %v2761, 7
    %v2763 = vsub.s32 0, %v2762
    %v2764 = vrot.slane %v1398, %v2763
    %v2765 = vlaneseq
    %v2766 = vshrl.u32 %v2765, 7
    %v2767 = vsub.s32 0, %v2766
    %v2768 = vrot.slane %v1381, %v2767
    %v2769 = vlaneseq
    %v2770 = vshrl.u32 %v2769, 7
    %v2771 = vsub.s32 0, %v2770
    %v2772 = vrot.slane %v1395, %v2771
    %v2773 = vlaneseq
    %v2774 = vshrl.u32 %v2773, 7
    %v2775 = vsub.s32 0, %v2774
    %v2776 = vrot.slane %v1397, %v2775
    %v2777 = vlaneseq
    %v2778 = vshrl.u32 %v2777, 7
    %v2779 = vsub.s32 0, %v2778
    %v2780 = vrot.slane %v1399, %v2779
    %v2781 = vlaneseq
    %v2782 = vshrl.u32 %v2781, 7
    %v2783 = vsub.s32 0, %v2782
    %v2784 = vrot.slane %v1423, %v2783
    %v2785 = vlaneseq
    %v2786 = vshrl.u32 %v2785, 7
    %v2787 = vsub.s32 0, %v2786
    %v2788 = vrot.slane %v1437, %v2787
    %v2789 = vlaneseq
    %v2790 = vshrl.u32 %v2789, 7
    %v2791 = vsub.s32 0, %v2790
    %v2792 = vrot.slane %v1445, %v2791
    %v2793 = vlaneseq
    %v2794 = vshrl.u32 %v2793, 7
    %v2795 = vsub.s32 0, %v2794
    %v2796 = vrot.slane %v1447, %v2795
    %v2797 = vlaneseq
    %v2798 = vshrl.u32 %v2797, 7
    %v2799 = vsub.s32 0, %v2798
    %v2800 = vrot.slane %v1430, %v2799
    %v2801 = vlaneseq
    %v2802 = vshrl.u32 %v2801, 7
    %v2803 = vsub.s32 0, %v2802
    %v2804 = vrot.slane %v1444, %v2803
    %v2805 = vlaneseq
    %v2806 = vshrl.u32 %v2805, 7
    %v2807 = vsub.s32 0, %v2806
    %v2808 = vrot.slane %v1446, %v2807
    %v2809 = vlaneseq
    %v2810 = vshrl.u32 %v2809, 7
    %v2811 = vsub.s32 0, %v2810
    %v2812 = vrot.slane %v1448, %v2811
    %v2813 = vlaneseq
    %v2814 = vshrl.u32 %v2813, 7
    %v2815 = vsub.s32 0, %v2814
    %v2816 = vrot.slane %v1472, %v2815
    %v2817 = vlaneseq
    %v2818 = vshrl.u32 %v2817, 7
    %v2819 = vsub.s32 0, %v2818
    %v2820 = vrot.slane %v1486, %v2819
    %v2821 = vlaneseq
    %v2822 = vshrl.u32 %v2821, 7
    %v2823 = vsub.s32 0, %v2822
    %v2824 = vrot.slane %v1494, %v2823
    %v2825 = vlaneseq
    %v2826 = vshrl.u32 %v2825, 7
    %v2827 = vsub.s32 0, %v2826
    %v2828 = vrot.slane %v1496, %v2827
    %v2829 = vlaneseq
    %v2830 = vshrl.u32 %v2829, 7
    %v2831 = vsub.s32 0, %v2830
    %v2832 = vrot.slane %v1479, %v2831
    %v2833 = vlaneseq
    %v2834 = vshrl.u32 %v2833, 7
    %v2835 = vsub.s32 0, %v2834
    %v2836 = vrot.slane %v1493, %v2835
    %v2837 = vlaneseq
    %v2838 = vshrl.u32 %v2837, 7
    %v2839 = vsub.s32 0, %v2838
    %v2840 = vrot.slane %v1495, %v2839
    %v2841 = vlaneseq
    %v2842 = vshrl.u32 %v2841, 7
    %v2843 = vsub.s32 0, %v2842
    %v2844 = vrot.slane %v1497, %v2843
    %v2845 = vlaneseq
    %v2846 = vshrl.u32 %v2845, 7
    %v2847 = vsub.s32 0, %v2846
    %v2848 = vrot.slane %v1521, %v2847
    %v2849 = vlaneseq
    %v2850 = vshrl.u32 %v2849, 7
    %v2851 = vsub.s32 0, %v2850
    %v2852 = vrot.slane %v1535, %v2851
    %v2853 = vlaneseq
    %v2854 = vshrl.u32 %v2853, 7
    %v2855 = vsub.s32 0, %v2854
    %v2856 = vrot.slane %v1543, %v2855
    %v2857 = vlaneseq
    %v2858 = vshrl.u32 %v2857, 7
    %v2859 = vsub.s32 0, %v2858
    %v2860 = vrot.slane %v1545, %v2859
    %v2861 = vlaneseq
    %v2862 = vshrl.u32 %v2861, 7
    %v2863 = vsub.s32 0, %v2862
    %v2864 = vrot.slane %v1528, %v2863
    %v2865 = vlaneseq
    %v2866 = vshrl.u32 %v2865, 7
    %v2867 = vsub.s32 0, %v2866
    %v2868 = vrot.slane %v1542, %v2867
    %v2869 = vlaneseq
    %v2870 = vshrl.u32 %v2869, 7
    %v2871 = vsub.s32 0, %v2870
    %v2872 = vrot.slane %v1544, %v2871
    %v2873 = vlaneseq
    %v2874 = vshrl.u32 %v2873, 7
    %v2875 = vsub.s32 0, %v2874
    %v2876 = vrot.slane %v1546, %v2875
    %v2877 = vlaneseq
    %v2878 = vshrl.u32 %v2877, 7
    %v2879 = vsub.s32 0, %v2878
    %v2880 = vrot.slane %v1570, %v2879
    %v2881 = vlaneseq
    %v2882 = vshrl.u32 %v2881, 7
    %v2883 = vsub.s32 0, %v2882
    %v2884 = vrot.slane %v1584, %v2883
    %v2885 = vlaneseq
    %v2886 = vshrl.u32 %v2885, 7
    %v2887 = vsub.s32 0, %v2886
    %v2888 = vrot.slane %v1592, %v2887
    %v2889 = vlaneseq
    %v2890 = vshrl.u32 %v2889, 7
    %v2891 = vsub.s32 0, %v2890
    %v2892 = vrot.slane %v1594, %v2891
    %v2893 = vlaneseq
    %v2894 = vshrl.u32 %v2893, 7
    %v2895 = vsub.s32 0, %v2894
    %v2896 = vrot.slane %v1577, %v2895
    %v2897 = vlaneseq
    %v2898 = vshrl.u32 %v2897, 7
    %v2899 = vsub.s32 0, %v2898
    %v2900 = vrot.slane %v1591, %v2899
    %v2901 = vlaneseq
    %v2902 = vshrl.u32 %v2901, 7
    %v2903 = vsub.s32 0, %v2902
    %v2904 = vrot.slane %v1593, %v2903
    %v2905 = vlaneseq
    %v2906 = vshrl.u32 %v2905, 7
    %v2907 = vsub.s32 0, %v2906
    %v2908 = vrot.slane %v1595, %v2907
    %v2909 = vlaneseq
    %v2910 = vshrl.u32 %v2909, 7
    %v2911 = vsub.s32 0, %v2910
    %v2912 = vrot.slane %v1619, %v2911
    %v2913 = vlaneseq
    %v2914 = vshrl.u32 %v2913, 7
    %v2915 = vsub.s32 0, %v2914
    %v2916 = vrot.slane %v1633, %v2915
    %v2917 = vlaneseq
    %v2918 = vshrl.u32 %v2917, 7
    %v2919 = vsub.s32 0, %v2918
    %v2920 = vrot.slane %v1641, %v2919
    %v2921 = vlaneseq
    %v2922 = vshrl.u32 %v2921, 7
    %v2923 = vsub.s32 0, %v2922
    %v2924 = vrot.slane %v1643, %v2923
    %v2925 = vlaneseq
    %v2926 = vshrl.u32 %v2925, 7
    %v2927 = vsub.s32 0, %v2926
    %v2928 = vrot.slane %v1626, %v2927
    %v2929 = vlaneseq
    %v2930 = vshrl.u32 %v2929, 7
    %v2931 = vsub.s32 0, %v2930
    %v2932 = vrot.slane %v1640, %v2931
    %v2933 = vlaneseq
    %v2934 = vshrl.u32 %v2933, 7
    %v2935 = vsub.s32 0, %v2934
    %v2936 = vrot.slane %v1642, %v2935
    %v2937 = vlaneseq
    %v2938 = vshrl.u32 %v2937, 7
    %v2939 = vsub.s32 0, %v2938
    %v2940 = vrot.slane %v1644, %v2939
    %v2941 = vlaneseq
    %v2942 = vshrl.u32 %v2941, 7
    %v2943 = vsub.s32 0, %v2942
    %v2944 = vrot.slane %v1668, %v2943
    %v2945 = vlaneseq
    %v2946 = vshrl.u32 %v2945, 7
    %v2947 = vsub.s32 0, %v2946
    %v2948 = vrot.slane %v1682, %v2947
    %v2949 = vlaneseq
    %v2950 = vshrl.u32 %v2949, 7
    %v2951 = vsub.s32 0, %v2950
    %v2952 = vrot.slane %v1690, %v2951
    %v2953 = vlaneseq
    %v2954 = vshrl.u32 %v2953, 7
    %v2955 = vsub.s32 0, %v2954
    %v2956 = vrot.slane %v1692, %v2955
    %v2957 = vlaneseq
    %v2958 = vshrl.u32 %v2957, 7
    %v2959 = vsub.s32 0, %v2958
    %v2960 = vrot.slane %v1675, %v2959
    %v2961 = vlaneseq
    %v2962 = vshrl.u32 %v2961, 7
    %v2963 = vsub.s32 0, %v2962
    %v2964 = vrot.slane %v1689, %v2963
    %v2965 = vlaneseq
    %v2966 = vshrl.u32 %v2965, 7
    %v2967 = vsub.s32 0, %v2966
    %v2968 = vrot.slane %v1691, %v2967
    %v2969 = vlaneseq
    %v2970 = vshrl.u32 %v2969, 7
    %v2971 = vsub.s32 0, %v2970
    %v2972 = vrot.slane %v1693, %v2971
    %v2973 = vlaneseq
    %v2974 = vshrl.u32 %v2973, 7
    %v2975 = vsub.s32 0, %v2974
    %v2976 = vrot.slane %v1717, %v2975
    %v2977 = vlaneseq
    %v2978 = vshrl.u32 %v2977, 7
    %v2979 = vsub.s32 0, %v2978
    %v2980 = vrot.slane %v1731, %v2979
    %v2981 = vlaneseq
    %v2982 = vshrl.u32 %v2981, 7
    %v2983 = vsub.s32 0, %v2982
    %v2984 = vrot.slane %v1739, %v2983
    %v2985 = vlaneseq
    %v2986 = vshrl.u32 %v2985, 7
    %v2987 = vsub.s32 0, %v2986
    %v2988 = vrot.slane %v1741, %v2987
    %v2989 = vlaneseq
    %v2990 = vshrl.u32 %v2989, 7
    %v2991 = vsub.s32 0, %v2990
    %v2992 = vrot.slane %v1724, %v2991
    %v2993 = vlaneseq
    %v2994 = vshrl.u32 %v2993, 7
    %v2995 = vsub.s32 0, %v2994
    %v2996 = vrot.slane %v1738, %v2995
    %v2997 = vlaneseq
    %v2998 = vshrl.u32 %v2997, 7
    %v2999 = vsub.s32 0, %v2998
    %v3000 = vrot.slane %v1740, %v2999
    %v3001 = vlaneseq
    %v3002 = vshrl.u32 %v3001, 7
    %v3003 = vsub.s32 0, %v3002
    %v3004 = vrot.slane %v1742, %v3003
    %v3005 = vlaneseq
    %v3006 = vshrl.u32 %v3005, 7
    %v3007 = vsub.s32 0, %v3006
    %v3008 = vrot.slane %v1766, %v3007
    %v3009 = vlaneseq
    %v3010 = vshrl.u32 %v3009, 7
    %v3011 = vsub.s32 0, %v3010
    %v3012 = vrot.slane %v1780, %v3011
    %v3013 = vlaneseq
    %v3014 = vshrl.u32 %v3013, 7
    %v3015 = vsub.s32 0, %v3014
    %v3016 = vrot.slane %v1788, %v3015
    %v3017 = vlaneseq
    %v3018 = vshrl.u32 %v3017, 7
    %v3019 = vsub.s32 0, %v3018
    %v3020 = vrot.slane %v1790, %v3019
    %v3021 = vlaneseq
    %v3022 = vshrl.u32 %v3021, 7
    %v3023 = vsub.s32 0, %v3022
    %v3024 = vrot.slane %v1773, %v3023
    %v3025 = vlaneseq
    %v3026 = vshrl.u32 %v3025, 7
    %v3027 = vsub.s32 0, %v3026
    %v3028 = vrot.slane %v1787, %v3027
    %v3029 = vlaneseq
    %v3030 = vshrl.u32 %v3029, 7
    %v3031 = vsub.s32 0, %v3030
    %v3032 = vrot.slane %v1789, %v3031
    %v3033 = vlaneseq
    %v3034 = vshrl.u32 %v3033, 7
    %v3035 = vsub.s32 0, %v3034
    %v3036 = vrot.slane %v1791, %v3035
    %v3037 = vlaneseq
    %v3038 = vshrl.u32 %v3037, 7
    %v3039 = vsub.s32 0, %v3038
    %v3040 = vrot.slane %v1815, %v3039
    %v3041 = vlaneseq
    %v3042 = vshrl.u32 %v3041, 7
    %v3043 = vsub.s32 0, %v3042
    %v3044 = vrot.slane %v1829, %v3043
    %v3045 = vlaneseq
    %v3046 = vshrl.u32 %v3045, 7
    %v3047 = vsub.s32 0, %v3046
    %v3048 = vrot.slane %v1837, %v3047
    %v3049 = vlaneseq
    %v3050 = vshrl.u32 %v3049, 7
    %v3051 = vsub.s32 0, %v3050
    %v3052 = vrot.slane %v1839, %v3051
    %v3053 = vlaneseq
    %v3054 = vshrl.u32 %v3053, 7
    %v3055 = vsub.s32 0, %v3054
    %v3056 = vrot.slane %v1822, %v3055
    %v3057 = vlaneseq
    %v3058 = vshrl.u32 %v3057, 7
    %v3059 = vsub.s32 0, %v3058
    %v3060 = vrot.slane %v1836, %v3059
    %v3061 = vlaneseq
    %v3062 = vshrl.u32 %v3061, 7
    %v3063 = vsub.s32 0, %v3062
    %v3064 = vrot.slane %v1838, %v3063
    %v3065 = vlaneseq
    %v3066 = vshrl.u32 %v3065, 7
    %v3067 = vsub.s32 0, %v3066
    %v3068 = vrot.slane %v1840, %v3067
    %v3069 = vlaneseq
    %v3070 = vshrl.u32 %v3069, 7
    %v3071 = vsub.s32 0, %v3070
    %v3072 = vrot.slane %v1864, %v3071
    %v3073 = vlaneseq
    %v3074 = vshrl.u32 %v3073, 7
    %v3075 = vsub.s32 0, %v3074
    %v3076 = vrot.slane %v1878, %v3075
    %v3077 = vlaneseq
    %v3078 = vshrl.u32 %v3077, 7
    %v3079 = vsub.s32 0, %v3078
    %v3080 = vrot.slane %v1886, %v3079
    %v3081 = vlaneseq
    %v3082 = vshrl.u32 %v3081, 7
    %v3083 = vsub.s32 0, %v3082
    %v3084 = vrot.slane %v1888, %v3083
    %v3085 = vlaneseq
    %v3086 = vshrl.u32 %v3085, 7
    %v3087 = vsub.s32 0, %v3086
    %v3088 = vrot.slane %v1871, %v3087
    %v3089 = vlaneseq
    %v3090 = vshrl.u32 %v3089, 7
    %v3091 = vsub.s32 0, %v3090
    %v3092 = vrot.slane %v1885, %v3091
    %v3093 = vlaneseq
    %v3094 = vshrl.u32 %v3093, 7
    %v3095 = vsub.s32 0, %v3094
    %v3096 = vrot.slane %v1887, %v3095
    %v3097 = vlaneseq
    %v3098 = vshrl.u32 %v3097, 7
    %v3099 = vsub.s32 0, %v3098
    %v3100 = vrot.slane %v1889, %v3099
    %v3101 = vlaneseq
    %v3102 = vshrl.u32 %v3101, 7
    %v3103 = vsub.s32 0, %v3102
    %v3104 = vrot.slane %v1913, %v3103
    %v3105 = vlaneseq
    %v3106 = vshrl.u32 %v3105, 7
    %v3107 = vsub.s32 0, %v3106
    %v3108 = vrot.slane %v1927, %v3107
    %v3109 = vlaneseq
    %v3110 = vshrl.u32 %v3109, 7
    %v3111 = vsub.s32 0, %v3110
    %v3112 = vrot.slane %v1935, %v3111
    %v3113 = vlaneseq
    %v3114 = vshrl.u32 %v3113, 7
    %v3115 = vsub.s32 0, %v3114
    %v3116 = vrot.slane %v1937, %v3115
    %v3117 = vlaneseq
    %v3118 = vshrl.u32 %v3117, 7
    %v3119 = vsub.s32 0, %v3118
    %v3120 = vrot.slane %v1920, %v3119
    %v3121 = vlaneseq
    %v3122 = vshrl.u32 %v3121, 7
    %v3123 = vsub.s32 0, %v3122
    %v3124 = vrot.slane %v1934, %v3123
    %v3125 = vlaneseq
    %v3126 = vshrl.u32 %v3125, 7
    %v3127 = vsub.s32 0, %v3126
    %v3128 = vrot.slane %v1936, %v3127
    %v3129 = vlaneseq
    %v3130 = vshrl.u32 %v3129, 7
    %v3131 = vsub.s32 0, %v3130
    %v3132 = vrot.slane %v1938, %v3131
    %v3133 = vlaneseq
    %v3134 = vshrl.u32 %v3133, 7
    %v3135 = vsub.s32 0, %v3134
    %v3136 = vrot.slane %v1962, %v3135
    %v3137 = vlaneseq
    %v3138 = vshrl.u32 %v3137, 7
    %v3139 = vsub.s32 0, %v3138
    %v3140 = vrot.slane %v1976, %v3139
    %v3141 = vlaneseq
    %v3142 = vshrl.u32 %v3141, 7
    %v3143 = vsub.s32 0, %v3142
    %v3144 = vrot.slane %v1984, %v3143
    %v3145 = vlaneseq
    %v3146 = vshrl.u32 %v3145, 7
    %v3147 = vsub.s32 0, %v3146
    %v3148 = vrot.slane %v1986, %v3147
    %v3149 = vlaneseq
    %v3150 = vshrl.u32 %v3149, 7
    %v3151 = vsub.s32 0, %v3150
    %v3152 = vrot.slane %v1969, %v3151
    %v3153 = vlaneseq
    %v3154 = vshrl.u32 %v3153, 7
    %v3155 = vsub.s32 0, %v3154
    %v3156 = vrot.slane %v1983, %v3155
    %v3157 = vlaneseq
    %v3158 = vshrl.u32 %v3157, 7
    %v3159 = vsub.s32 0, %v3158
    %v3160 = vrot.slane %v1985, %v3159
    %v3161 = vlaneseq
    %v3162 = vshrl.u32 %v3161, 7
    %v3163 = vsub.s32 0, %v3162
    %v3164 = vrot.slane %v1987, %v3163
    %v3165 = vlaneseq
    %v3166 = vshrl.u32 %v3165, 7
    %v3167 = vsub.s32 0, %v3166
    %v3168 = vrot.slane %v2011, %v3167
    %v3169 = vlaneseq
    %v3170 = vshrl.u32 %v3169, 7
    %v3171 = vsub.s32 0, %v3170
    %v3172 = vrot.slane %v2025, %v3171
    %v3173 = vlaneseq
    %v3174 = vshrl.u32 %v3173, 7
    %v3175 = vsub.s32 0, %v3174
    %v3176 = vrot.slane %v2033, %v3175
    %v3177 = vlaneseq
    %v3178 = vshrl.u32 %v3177, 7
    %v3179 = vsub.s32 0, %v3178
    %v3180 = vrot.slane %v2035, %v3179
    %v3181 = vlaneseq
    %v3182 = vshrl.u32 %v3181, 7
    %v3183 = vsub.s32 0, %v3182
    %v3184 = vrot.slane %v2018, %v3183
    %v3185 = vlaneseq
    %v3186 = vshrl.u32 %v3185, 7
    %v3187 = vsub.s32 0, %v3186
    %v3188 = vrot.slane %v2032, %v3187
    %v3189 = vlaneseq
    %v3190 = vshrl.u32 %v3189, 7
    %v3191 = vsub.s32 0, %v3190
    %v3192 = vrot.slane %v2034, %v3191
    %v3193 = vlaneseq
    %v3194 = vshrl.u32 %v3193, 7
    %v3195 = vsub.s32 0, %v3194
    %v3196 = vrot.slane %v2036, %v3195
    %v3197 = vlaneseq
    %v3198 = vshrl.u32 %v3197, 7
    %v3199 = vsub.s32 0, %v3198
    %v3200 = vrot.slane %v2060, %v3199
    %v3201 = vlaneseq
    %v3202 = vshrl.u32 %v3201, 7
    %v3203 = vsub.s32 0, %v3202
    %v3204 = vrot.slane %v2074, %v3203
    %v3205 = vlaneseq
    %v3206 = vshrl.u32 %v3205, 7
    %v3207 = vsub.s32 0, %v3206
    %v3208 = vrot.slane %v2082, %v3207
    %v3209 = vlaneseq
    %v3210 = vshrl.u32 %v3209, 7
    %v3211 = vsub.s32 0, %v3210
    %v3212 = vrot.slane %v2084, %v3211
    %v3213 = vlaneseq
    %v3214 = vshrl.u32 %v3213, 7
    %v3215 = vsub.s32 0, %v3214
    %v3216 = vrot.slane %v2067, %v3215
    %v3217 = vlaneseq
    %v3218 = vshrl.u32 %v3217, 7
    %v3219 = vsub.s32 0, %v3218
    %v3220 = vrot.slane %v2081, %v3219
    %v3221 = vlaneseq
    %v3222 = vshrl.u32 %v3221, 7
    %v3223 = vsub.s32 0, %v3222
    %v3224 = vrot.slane %v2083, %v3223
    %v3225 = vlaneseq
    %v3226 = vshrl.u32 %v3225, 7
    %v3227 = vsub.s32 0, %v3226
    %v3228 = vrot.slane %v2085, %v3227
    %v3229 = vlaneseq
    %v3230 = vshrl.u32 %v3229, 7
    %v3231 = vsub.s32 0, %v3230
    %v3232 = vrot.slane %v2109, %v3231
    %v3233 = vlaneseq
    %v3234 = vshrl.u32 %v3233, 7
    %v3235 = vsub.s32 0, %v3234
    %v3236 = vrot.slane %v2123, %v3235
    %v3237 = vlaneseq
    %v3238 = vshrl.u32 %v3237, 7
    %v3239 = vsub.s32 0, %v3238
    %v3240 = vrot.slane %v2131, %v3239
    %v3241 = vlaneseq
    %v3242 = vshrl.u32 %v3241, 7
    %v3243 = vsub.s32 0, %v3242
    %v3244 = vrot.slane %v2133, %v3243
    %v3245 = vlaneseq
    %v3246 = vshrl.u32 %v3245, 7
    %v3247 = vsub.s32 0, %v3246
    %v3248 = vrot.slane %v2116, %v3247
    %v3249 = vlaneseq
    %v3250 = vshrl.u32 %v3249, 7
    %v3251 = vsub.s32 0, %v3250
    %v3252 = vrot.slane %v2130, %v3251
    %v3253 = vlaneseq
    %v3254 = vshrl.u32 %v3253, 7
    %v3255 = vsub.s32 0, %v3254
    %v3256 = vrot.slane %v2132, %v3255
    %v3257 = vlaneseq
    %v3258 = vshrl.u32 %v3257, 7
    %v3259 = vsub.s32 0, %v3258
    %v3260 = vrot.slane %v2134, %v3259
    %v3261 = vlaneseq
    %v3262 = vshrl.u32 %v3261, 7
    %v3263 = vsub.s32 0, %v3262
    %v3264 = vrot.slane %v2158, %v3263
    %v3265 = vlaneseq
    %v3266 = vshrl.u32 %v3265, 7
    %v3267 = vsub.s32 0, %v3266
    %v3268 = vrot.slane %v2172, %v3267
    %v3269 = vlaneseq
    %v3270 = vshrl.u32 %v3269, 7
    %v3271 = vsub.s32 0, %v3270
    %v3272 = vrot.slane %v2180, %v3271
    %v3273 = vlaneseq
    %v3274 = vshrl.u32 %v3273, 7
    %v3275 = vsub.s32 0, %v3274
    %v3276 = vrot.slane %v2182, %v3275
    %v3277 = vlaneseq
    %v3278 = vshrl.u32 %v3277, 7
    %v3279 = vsub.s32 0, %v3278
    %v3280 = vrot.slane %v2165, %v3279
    %v3281 = vlaneseq
    %v3282 = vshrl.u32 %v3281, 7
    %v3283 = vsub.s32 0, %v3282
    %v3284 = vrot.slane %v2179, %v3283
    %v3285 = vlaneseq
    %v3286 = vshrl.u32 %v3285, 7
    %v3287 = vsub.s32 0, %v3286
    %v3288 = vrot.slane %v2181, %v3287
    %v3289 = vlaneseq
    %v3290 = vshrl.u32 %v3289, 7
    %v3291 = vsub.s32 0, %v3290
    %v3292 = vrot.slane %v2183, %v3291
    %v3293 = vlaneseq
    %v3294 = vshrl.u32 %v3293, 7
    %v3295 = vsub.s32 0, %v3294
    %v3296 = vrot.slane %v2207, %v3295
    %v3297 = vlaneseq
    %v3298 = vshrl.u32 %v3297, 7
    %v3299 = vsub.s32 0, %v3298
    %v3300 = vrot.slane %v2221, %v3299
    %v3301 = vlaneseq
    %v3302 = vshrl.u32 %v3301, 7
    %v3303 = vsub.s32 0, %v3302
    %v3304 = vrot.slane %v2229, %v3303
    %v3305 = vlaneseq
    %v3306 = vshrl.u32 %v3305, 7
    %v3307 = vsub.s32 0, %v3306
    %v3308 = vrot.slane %v2231, %v3307
    %v3309 = vlaneseq
    %v3310 = vshrl.u32 %v3309, 7
    %v3311 = vsub.s32 0, %v3310
    %v3312 = vrot.slane %v2214, %v3311
    %v3313 = vlaneseq
    %v3314 = vshrl.u32 %v3313, 7
    %v3315 = vsub.s32 0, %v3314
    %v3316 = vrot.slane %v2228, %v3315
    %v3317 = vlaneseq
    %v3318 = vshrl.u32 %v3317, 7
    %v3319 = vsub.s32 0, %v3318
    %v3320 = vrot.slane %v2230, %v3319
    %v3321 = vlaneseq
    %v3322 = vshrl.u32 %v3321, 7
    %v3323 = vsub.s32 0, %v3322
    %v3324 = vrot.slane %v2232, %v3323
    %v3325 = vlaneseq
    %v3326 = vshrl.u32 %v3325, 7
    %v3327 = vsub.s32 0, %v3326
    %v3328 = vrot.slane %v2256, %v3327
    %v3329 = vlaneseq
    %v3330 = vshrl.u32 %v3329, 7
    %v3331 = vsub.s32 0, %v3330
    %v3332 = vrot.slane %v2270, %v3331
    %v3333 = vlaneseq
    %v3334 = vshrl.u32 %v3333, 7
    %v3335 = vsub.s32 0, %v3334
    %v3336 = vrot.slane %v2278, %v3335
    %v3337 = vlaneseq
    %v3338 = vshrl.u32 %v3337, 7
    %v3339 = vsub.s32 0, %v3338
    %v3340 = vrot.slane %v2280, %v3339
    %v3341 = vlaneseq
    %v3342 = vshrl.u32 %v3341, 7
    %v3343 = vsub.s32 0, %v3342
    %v3344 = vrot.slane %v2263, %v3343
    %v3345 = vlaneseq
    %v3346 = vshrl.u32 %v3345, 7
    %v3347 = vsub.s32 0, %v3346
    %v3348 = vrot.slane %v2277, %v3347
    %v3349 = vlaneseq
    %v3350 = vshrl.u32 %v3349, 7
    %v3351 = vsub.s32 0, %v3350
    %v3352 = vrot.slane %v2279, %v3351
    %v3353 = vlaneseq
    %v3354 = vshrl.u32 %v3353, 7
    %v3355 = vsub.s32 0, %v3354
    %v3356 = vrot.slane %v2281, %v3355
    %v3357 = vlaneseq
    %v3358 = vshrl.u32 %v3357, 7
    %v3359 = vsub.s32 0, %v3358
    %v3360 = vrot.slane %v2305, %v3359
    %v3361 = vlaneseq
    %v3362 = vshrl.u32 %v3361, 7
    %v3363 = vsub.s32 0, %v3362
    %v3364 = vrot.slane %v2319, %v3363
    %v3365 = vlaneseq
    %v3366 = vshrl.u32 %v3365, 7
    %v3367 = vsub.s32 0, %v3366
    %v3368 = vrot.slane %v2327, %v3367
    %v3369 = vlaneseq
    %v3370 = vshrl.u32 %v3369, 7
    %v3371 = vsub.s32 0, %v3370
    %v3372 = vrot.slane %v2329, %v3371
    %v3373 = vlaneseq
    %v3374 = vshrl.u32 %v3373, 7
    %v3375 = vsub.s32 0, %v3374
    %v3376 = vrot.slane %v2312, %v3375
    %v3377 = vlaneseq
    %v3378 = vshrl.u32 %v3377, 7
    %v3379 = vsub.s32 0, %v3378
    %v3380 = vrot.slane %v2326, %v3379
    %v3381 = vlaneseq
    %v3382 = vshrl.u32 %v3381, 7
    %v3383 = vsub.s32 0, %v3382
    %v3384 = vrot.slane %v2328, %v3383
    %v3385 = vlaneseq
    %v3386 = vshrl.u32 %v3385, 7
    %v3387 = vsub.s32 0, %v3386
    %v3388 = vrot.slane %v2330, %v3387
    %v3389 = vlaneseq
    %v3390 = vshrl.u32 %v3389, 7
    %v3391 = vsub.s32 0, %v3390
    %v3392 = vrot.slane %v2354, %v3391
    %v3393 = vlaneseq
    %v3394 = vshrl.u32 %v3393, 7
    %v3395 = vsub.s32 0, %v3394
    %v3396 = vrot.slane %v2368, %v3395
    %v3397 = vlaneseq
    %v3398 = vshrl.u32 %v3397, 7
    %v3399 = vsub.s32 0, %v3398
    %v3400 = vrot.slane %v2376, %v3399
    %v3401 = vlaneseq
    %v3402 = vshrl.u32 %v3401, 7
    %v3403 = vsub.s32 0, %v3402
    %v3404 = vrot.slane %v2378, %v3403
    %v3405 = vlaneseq
    %v3406 = vshrl.u32 %v3405, 7
    %v3407 = vsub.s32 0, %v3406
    %v3408 = vrot.slane %v2361, %v3407
    %v3409 = vlaneseq
    %v3410 = vshrl.u32 %v3409, 7
    %v3411 = vsub.s32 0, %v3410
    %v3412 = vrot.slane %v2375, %v3411
    %v3413 = vlaneseq
    %v3414 = vshrl.u32 %v3413, 7
    %v3415 = vsub.s32 0, %v3414
    %v3416 = vrot.slane %v2377, %v3415
    %v3417 = vlaneseq
    %v3418 = vshrl.u32 %v3417, 7
    %v3419 = vsub.s32 0, %v3418
    %v3420 = vrot.slane %v2379, %v3419
    %v3421 = vlaneseq
    %v3422 = vshrl.u32 %v3421, 7
    %v3423 = vsub.s32 0, %v3422
    %v3424 = vrot.slane %v2403, %v3423
    %v3425 = vlaneseq
    %v3426 = vshrl.u32 %v3425, 7
    %v3427 = vsub.s32 0, %v3426
    %v3428 = vrot.slane %v2417, %v3427
    %v3429 = vlaneseq
    %v3430 = vshrl.u32 %v3429, 7
    %v3431 = vsub.s32 0, %v3430
    %v3432 = vrot.slane %v2425, %v3431
    %v3433 = vlaneseq
    %v3434 = vshrl.u32 %v3433, 7
    %v3435 = vsub.s32 0, %v3434
    %v3436 = vrot.slane %v2427, %v3435
    %v3437 = vlaneseq
    %v3438 = vshrl.u32 %v3437, 7
    %v3439 = vsub.s32 0, %v3438
    %v3440 = vrot.slane %v2410, %v3439
    %v3441 = vlaneseq
    %v3442 = vshrl.u32 %v3441, 7
    %v3443 = vsub.s32 0, %v3442
    %v3444 = vrot.slane %v2424, %v3443
    %v3445 = vlaneseq
    %v3446 = vshrl.u32 %v3445, 7
    %v3447 = vsub.s32 0, %v3446
    %v3448 = vrot.slane %v2426, %v3447
    %v3449 = vlaneseq
    %v3450 = vshrl.u32 %v3449, 7
    %v3451 = vsub.s32 0, %v3450
    %v3452 = vrot.slane %v2428, %v3451
    %v3709 = vmul.f32 %v89, %v2432
    %v3710 = vmul.f32 %v90, %v2436
    %v3711 = vmul.f32 %v91, %v2440
    %v3712 = vmul.f32 %v92, %v2444
    %v3713 = vmul.f32 %v93, %v2448
    %v3714 = vmul.f32 %v94, %v2452
    %v3715 = vmul.f32 %v95, %v2456
    %v3716 = vmul.f32 %v96, %v2460
    %v3717 = vmul.f32 %v97, %v2464
    %v3718 = vmul.f32 %v98, %v2468
    %v3719 = vmul.f32 %v99, %v2472
    %v3720 = vmul.f32 %v100, %v2476
    %v3721 = vmul.f32 %v101, %v2480
    %v3722 = vmul.f32 %v102, %v2484
    %v3723 = vmul.f32 %v103, %v2488
    %v3724 = vmul.f32 %v104, %v2492
    %v3725 = vmul.f32 %v105, %v2496
    %v3726 = vmul.f32 %v106, %v2500
    %v3727 = vmul.f32 %v107, %v2504
    %v3728 = vmul.f32 %v108, %v2508
    %v3729 = vmul.f32 %v109, %v2512
    %v3730 = vmul.f32 %v110, %v2516
    %v3731 = vmul.f32 %v111, %v2520
    %v3732 = vmul.f32 %v112, %v2524
    %v3733 = vmul.f32 %v113, %v2528
    %v3734 = vmul.f32 %v114, %v2532
    %v3735 = vmul.f32 %v115, %v2536
    %v3736 = vmul.f32 %v116, %v2540
    %v3737 = vmul.f32 %v117, %v2544
    %v3738 = vmul.f32 %v118, %v2548
    %v3739 = vmul.f32 %v119, %v2552
    %v3740 = vmul.f32 %v120, %v2556
    %v3741 = vmul.f32 %v121, %v2560
    %v3742 = vmul.f32 %v122, %v2564
    %v3743 = vmul.f32 %v123, %v2568
    %v3744 = vmul.f32 %v124, %v2572
    %v3745 = vmul.f32 %v125, %v2576
    %v3746 = vmul.f32 %v126, %v2580
    %v3747 = vmul.f32 %v127, %v2584
    %v3748 = vmul.f32 %v128, %v2588
    %v3749 = vmul.f32 %v129, %v2592
    %v3750 = vmul.f32 %v130, %v2596
    %v3751 = vmul.f32 %v131, %v2600
    %v3752 = vmul.f32 %v132, %v2604
    %v3753 = vmul.f32 %v133, %v2608
    %v3754 = vmul.f32 %v134, %v2612
    %v3755 = vmul.f32 %v135, %v2616
    %v3756 = vmul.f32 %v136, %v2620
    %v3757 = vmul.f32 %v137, %v2624
    %v3758 = vmul.f32 %v138, %v2628
    %v3759 = vmul.f32 %v139, %v2632
    %v3760 = vmul.f32 %v140, %v2636
    %v3761 = vmul.f32 %v141, %v2640
    %v3762 = vmul.f32 %v142, %v2644
    %v3763 = vmul.f32 %v143, %v2648
    %v3764 = vmul.f32 %v144, %v2652
    %v3765 = vmul.f32 %v145, %v2656
    %v3766 = vmul.f32 %v146, %v2660
    %v3767 = vmul.f32 %v147, %v2664
    %v3768 = vmul.f32 %v148, %v2668
    %v3769 = vmul.f32 %v149, %v2672
    %v3770 = vmul.f32 %v150, %v2676
    %v3771 = vmul.f32 %v151, %v2680
    %v3772 = vmul.f32 %v152, %v2684
    %v3773 = vmul.f32 %v153, %v2688
    %v3774 = vmul.f32 %v154, %v2692
    %v3775 = vmul.f32 %v155, %v2696
    %v3776 = vmul.f32 %v156, %v2700
    %v3777 = vmul.f32 %v157, %v2704
    %v3778 = vmul.f32 %v158, %v2708
    %v3779 = vmul.f32 %v159, %v2712
    %v3780 = vmul.f32 %v160, %v2716
    %v3781 = vmul.f32 %v161, %v2720
    %v3782 = vmul.f32 %v162, %v2724
    %v3783 = vmul.f32 %v163, %v2728
    %v3784 = vmul.f32 %v164, %v2732
    %v3785 = vmul.f32 %v165, %v2736
    %v3786 = vmul.f32 %v166, %v2740
    %v3787 = vmul.f32 %v167, %v2744
    %v3788 = vmul.f32 %v168, %v2748
    %v3789 = vmul.f32 %v169, %v2752
    %v3790 = vmul.f32 %v170, %v2756
    %v3791 = vmul.f32 %v171, %v2760
    %v3792 = vmul.f32 %v172, %v2764
    %v3793 = vmul.f32 %v173, %v2768
    %v3794 = vmul.f32 %v174, %v2772
    %v3795 = vmul.f32 %v175, %v2776
    %v3796 = vmul.f32 %v176, %v2780
    %v3797 = vmul.f32 %v177, %v2784
    %v3798 = vmul.f32 %v178, %v2788
    %v3799 = vmul.f32 %v179, %v2792
    %v3800 = vmul.f32 %v180, %v2796
    %v3801 = vmul.f32 %v181, %v2800
    %v3802 = vmul.f32 %v182, %v2804
    %v3803 = vmul.f32 %v183, %v2808
    %v3804 = vmul.f32 %v184, %v2812
    %v3805 = vmul.f32 %v185, %v2816
    %v3806 = vmul.f32 %v186, %v2820
    %v3807 = vmul.f32 %v187, %v2824
    %v3808 = vmul.f32 %v188, %v2828
    %v3809 = vmul.f32 %v189, %v2832
    %v3810 = vmul.f32 %v190, %v2836
    %v3811 = vmul.f32 %v191, %v2840
    %v3812 = vmul.f32 %v192, %v2844
    %v3813 = vmul.f32 %v193, %v2848
    %v3814 = vmul.f32 %v194, %v2852
    %v3815 = vmul.f32 %v195, %v2856
    %v3816 = vmul.f32 %v196, %v2860
    %v3817 = vmul.f32 %v197, %v2864
    %v3818 = vmul.f32 %v198, %v2868
    %v3819 = vmul.f32 %v199, %v2872
    %v3820 = vmul.f32 %v200, %v2876
    %v3821 = vmul.f32 %v201, %v2880
    %v3822 = vmul.f32 %v202, %v2884
    %v3823 = vmul.f32 %v203, %v2888
    %v3824 = vmul.f32 %v204, %v2892
    %v3825 = vmul.f32 %v205, %v2896
    %v3826 = vmul.f32 %v206, %v2900
    %v3827 = vmul.f32 %v207, %v2904
    %v3828 = vmul.f32 %v208, %v2908
    %v3829 = vmul.f32 %v209, %v2912
    %v3830 = vmul.f32 %v210, %v2916
    %v3831 = vmul.f32 %v211, %v2920
    %v3832 = vmul.f32 %v212, %v2924
    %v3833 = vmul.f32 %v213, %v2928
    %v3834 = vmul.f32 %v214, %v2932
    %v3835 = vmul.f32 %v215, %v2936
    %v3836 = vmul.f32 %v216, %v2940
    %v3837 = vmul.f32 %v217, %v2944
    %v3838 = vmul.f32 %v218, %v2948
    %v3839 = vmul.f32 %v219, %v2952
    %v3840 = vmul.f32 %v220, %v2956
    %v3841 = vmul.f32 %v221, %v2960
    %v3842 = vmul.f32 %v222, %v2964
    %v3843 = vmul.f32 %v223, %v2968
    %v3844 = vmul.f32 %v224, %v2972
    %v3845 = vmul.f32 %v225, %v2976
    %v3846 = vmul.f32 %v226, %v2980
    %v3847 = vmul.f32 %v227, %v2984
    %v3848 = vmul.f32 %v228, %v2988
    %v3849 = vmul.f32 %v229, %v2992
    %v3850 = vmul.f32 %v230, %v2996
    %v3851 = vmul.f32 %v231, %v3000
    %v3852 = vmul.f32 %v232, %v3004
    %v3853 = vmul.f32 %v233, %v3008
    %v3854 = vmul.f32 %v234, %v3012
    %v3855 = vmul.f32 %v235, %v3016
    %v3856 = vmul.f32 %v236, %v3020
    %v3857 = vmul.f32 %v237, %v3024
    %v3858 = vmul.f32 %v238, %v3028
    %v3859 = vmul.f32 %v239, %v3032
    %v3860 = vmul.f32 %v240, %v3036
    %v3861 = vmul.f32 %v241, %v3040
    %v3862 = vmul.f32 %v242, %v3044
    %v3863 = vmul.f32 %v243, %v3048
    %v3864 = vmul.f32 %v244, %v3052
    %v3865 = vmul.f32 %v245, %v3056
    %v3866 = vmul.f32 %v246, %v3060
    %v3867 = vmul.f32 %v247, %v3064
    %v3868 = vmul.f32 %v248, %v3068
    %v3869 = vmul.f32 %v249, %v3072
    %v3870 = vmul.f32 %v250, %v3076
    %v3871 = vmul.f32 %v251, %v3080
    %v3872 = vmul.f32 %v252, %v3084
    %v3873 = vmul.f32 %v253, %v3088
    %v3874 = vmul.f32 %v254, %v3092
    %v3875 = vmul.f32 %v255, %v3096
    %v3876 = vmul.f32 %v256, %v3100
    %v3877 = vmul.f32 %v257, %v3104
    %v3878 = vmul.f32 %v258, %v3108
    %v3879 = vmul.f32 %v259, %v3112
    %v3880 = vmul.f32 %v260, %v3116
    %v3881 = vmul.f32 %v261, %v3120
    %v3882 = vmul.f32 %v262, %v3124
    %v3883 = vmul.f32 %v263, %v3128
    %v3884 = vmul.f32 %v264, %v3132
    %v3885 = vmul.f32 %v265, %v3136
    %v3886 = vmul.f32 %v266, %v3140
    %v3887 = vmul.f32 %v267, %v3144
    %v3888 = vmul.f32 %v268, %v3148
    %v3889 = vmul.f32 %v269, %v3152
    %v3890 = vmul.f32 %v270, %v3156
    %v3891 = vmul.f32 %v271, %v3160
    %v3892 = vmul.f32 %v272, %v3164
    %v3893 = vmul.f32 %v273, %v3168
    %v3894 = vmul.f32 %v274, %v3172
    %v3895 = vmul.f32 %v275, %v3176
    %v3896 = vmul.f32 %v276, %v3180
    %v3897 = vmul.f32 %v277, %v3184
    %v3898 = vmul.f32 %v278, %v3188
    %v3899 = vmul.f32 %v279, %v3192
    %v3900 = vmul.f32 %v280, %v3196
    %v3901 = vmul.f32 %v281, %v3200
    %v3902 = vmul.f32 %v282, %v3204
    %v3903 = vmul.f32 %v283, %v3208
    %v3904 = vmul.f32 %v284, %v3212
    %v3905 = vmul.f32 %v285, %v3216
    %v3906 = vmul.f32 %v286, %v3220
    %v3907 = vmul.f32 %v287, %v3224
    %v3908 = vmul.f32 %v288, %v3228
    %v3909 = vmul.f32 %v289, %v3232
    %v3910 = vmul.f32 %v290, %v3236
    %v3911 = vmul.f32 %v291, %v3240
    %v3912 = vmul.f32 %v292, %v3244
    %v3913 = vmul.f32 %v293, %v3248
    %v3914 = vmul.f32 %v294, %v3252
    %v3915 = vmul.f32 %v295, %v3256
    %v3916 = vmul.f32 %v296, %v3260
    %v3917 = vmul.f32 %v297, %v3264
    %v3918 = vmul.f32 %v298, %v3268
    %v3919 = vmul.f32 %v299, %v3272
    %v3920 = vmul.f32 %v300, %v3276
    %v3921 = vmul.f32 %v301, %v3280
    %v3922 = vmul.f32 %v302, %v3284
    %v3923 = vmul.f32 %v303, %v3288
    %v3924 = vmul.f32 %v304, %v3292
    %v3925 = vmul.f32 %v305, %v3296
    %v3926 = vmul.f32 %v306, %v3300
    %v3927 = vmul.f32 %v307, %v3304
    %v3928 = vmul.f32 %v308, %v3308
    %v3929 = vmul.f32 %v309, %v3312
    %v3930 = vmul.f32 %v310, %v3316
    %v3931 = vmul.f32 %v311, %v3320
    %v3932 = vmul.f32 %v312, %v3324
    %v3933 = vmul.f32 %v313, %v3328
    %v3934 = vmul.f32 %v314, %v3332
    %v3935 = vmul.f32 %v315, %v3336
    %v3936 = vmul.f32 %v316, %v3340
    %v3937 = vmul.f32 %v317, %v3344
    %v3938 = vmul.f32 %v318, %v3348
    %v3939 = vmul.f32 %v319, %v3352
    %v3940 = vmul.f32 %v320, %v3356
    %v3941 = vmul.f32 %v321, %v3360
    %v3942 = vmul.f32 %v322, %v3364
    %v3943 = vmul.f32 %v323, %v3368
    %v3944 = vmul.f32 %v324, %v3372
    %v3945 = vmul.f32 %v325, %v3376
    %v3946 = vmul.f32 %v326, %v3380
    %v3947 = vmul.f32 %v327, %v3384
    %v3948 = vmul.f32 %v328, %v3388
    %v3949 = vmul.f32 %v329, %v3392
    %v3950 = vmul.f32 %v330, %v3396
    %v3951 = vmul.f32 %v331, %v3400
    %v3952 = vmul.f32 %v332, %v3404
    %v3953 = vmul.f32 %v333, %v3408
    %v3954 = vmul.f32 %v334, %v3412
    %v3955 = vmul.f32 %v335, %v3416
    %v3956 = vmul.f32 %v336, %v3420
    %v3957 = vmul.f32 %v337, %v3424
    %v3958 = vmul.f32 %v338, %v3428
    %v3959 = vmul.f32 %v339, %v3432
    %v3960 = vmul.f32 %v340, %v3436
    %v3961 = vmul.f32 %v341, %v3440
    %v3962 = vmul.f32 %v342, %v3444
    %v3963 = vmul.f32 %v343, %v3448
    %v3964 = vmul.f32 %v344, %v3452
    %vm3965 = vcmask 519168
    %v3966 = vsel %vm3965, %v3709, 0.0
    %3967 = vadd.xlane.f32.xlu0 %v3966
    %v3968 = vpop.xlane.xlu0 %3967
    %v3969 = vsel %vm3965, %v3710, 0.0
    %3970 = vadd.xlane.f32.xlu0 %v3969
    %v3971 = vpop.xlane.xlu0 %3970
    %v3972 = vsel %vm3965, %v3711, 0.0
    %3973 = vadd.xlane.f32.xlu0 %v3972
    %v3974 = vpop.xlane.xlu0 %3973
    %v3975 = vsel %vm3965, %v3712, 0.0
    %3976 = vadd.xlane.f32.xlu0 %v3975
    %v3977 = vpop.xlane.xlu0 %3976
    %v3978 = vsel %vm3965, %v3713, 0.0
    %3979 = vadd.xlane.f32.xlu0 %v3978
    %v3980 = vpop.xlane.xlu0 %3979
    %v3981 = vsel %vm3965, %v3714, 0.0
    %3982 = vadd.xlane.f32.xlu0 %v3981
    %v3983 = vpop.xlane.xlu0 %3982
    %v3984 = vsel %vm3965, %v3715, 0.0
    %3985 = vadd.xlane.f32.xlu0 %v3984
    %v3986 = vpop.xlane.xlu0 %3985
    %v3987 = vsel %vm3965, %v3716, 0.0
    %3988 = vadd.xlane.f32.xlu0 %v3987
    %v3989 = vpop.xlane.xlu0 %3988
    %v3990 = vsel %vm3965, %v3717, 0.0
    %3991 = vadd.xlane.f32.xlu0 %v3990
    %v3992 = vpop.xlane.xlu0 %3991
    %v3993 = vsel %vm3965, %v3718, 0.0
    %3994 = vadd.xlane.f32.xlu0 %v3993
    %v3995 = vpop.xlane.xlu0 %3994
    %v3996 = vsel %vm3965, %v3719, 0.0
    %3997 = vadd.xlane.f32.xlu0 %v3996
    %v3998 = vpop.xlane.xlu0 %3997
    %v3999 = vsel %vm3965, %v3720, 0.0
    %4000 = vadd.xlane.f32.xlu0 %v3999
    %v4001 = vpop.xlane.xlu0 %4000
    %v4002 = vsel %vm3965, %v3721, 0.0
    %4003 = vadd.xlane.f32.xlu0 %v4002
    %v4004 = vpop.xlane.xlu0 %4003
    %v4005 = vsel %vm3965, %v3722, 0.0
    %4006 = vadd.xlane.f32.xlu0 %v4005
    %v4007 = vpop.xlane.xlu0 %4006
    %v4008 = vsel %vm3965, %v3723, 0.0
    %4009 = vadd.xlane.f32.xlu0 %v4008
    %v4010 = vpop.xlane.xlu0 %4009
    %v4011 = vsel %vm3965, %v3724, 0.0
    %4012 = vadd.xlane.f32.xlu0 %v4011
    %v4013 = vpop.xlane.xlu0 %4012
    %v4014 = vsel %vm3965, %v3725, 0.0
    %4015 = vadd.xlane.f32.xlu0 %v4014
    %v4016 = vpop.xlane.xlu0 %4015
    %v4017 = vsel %vm3965, %v3726, 0.0
    %4018 = vadd.xlane.f32.xlu0 %v4017
    %v4019 = vpop.xlane.xlu0 %4018
    %v4020 = vsel %vm3965, %v3727, 0.0
    %4021 = vadd.xlane.f32.xlu0 %v4020
    %v4022 = vpop.xlane.xlu0 %4021
    %v4023 = vsel %vm3965, %v3728, 0.0
    %4024 = vadd.xlane.f32.xlu0 %v4023
    %v4025 = vpop.xlane.xlu0 %4024
    %v4026 = vsel %vm3965, %v3729, 0.0
    %4027 = vadd.xlane.f32.xlu0 %v4026
    %v4028 = vpop.xlane.xlu0 %4027
    %v4029 = vsel %vm3965, %v3730, 0.0
    %4030 = vadd.xlane.f32.xlu0 %v4029
    %v4031 = vpop.xlane.xlu0 %4030
    %v4032 = vsel %vm3965, %v3731, 0.0
    %4033 = vadd.xlane.f32.xlu0 %v4032
    %v4034 = vpop.xlane.xlu0 %4033
    %v4035 = vsel %vm3965, %v3732, 0.0
    %4036 = vadd.xlane.f32.xlu0 %v4035
    %v4037 = vpop.xlane.xlu0 %4036
    %v4038 = vsel %vm3965, %v3733, 0.0
    %4039 = vadd.xlane.f32.xlu0 %v4038
    %v4040 = vpop.xlane.xlu0 %4039
    %v4041 = vsel %vm3965, %v3734, 0.0
    %4042 = vadd.xlane.f32.xlu0 %v4041
    %v4043 = vpop.xlane.xlu0 %4042
    %v4044 = vsel %vm3965, %v3735, 0.0
    %4045 = vadd.xlane.f32.xlu0 %v4044
    %v4046 = vpop.xlane.xlu0 %4045
    %v4047 = vsel %vm3965, %v3736, 0.0
    %4048 = vadd.xlane.f32.xlu0 %v4047
    %v4049 = vpop.xlane.xlu0 %4048
    %v4050 = vsel %vm3965, %v3737, 0.0
    %4051 = vadd.xlane.f32.xlu0 %v4050
    %v4052 = vpop.xlane.xlu0 %4051
    %v4053 = vsel %vm3965, %v3738, 0.0
    %4054 = vadd.xlane.f32.xlu0 %v4053
    %v4055 = vpop.xlane.xlu0 %4054
    %v4056 = vsel %vm3965, %v3739, 0.0
    %4057 = vadd.xlane.f32.xlu0 %v4056
    %v4058 = vpop.xlane.xlu0 %4057
    %v4059 = vsel %vm3965, %v3740, 0.0
    %4060 = vadd.xlane.f32.xlu0 %v4059
    %v4061 = vpop.xlane.xlu0 %4060
    %v4062 = vsel %vm3965, %v3741, 0.0
    %4063 = vadd.xlane.f32.xlu0 %v4062
    %v4064 = vpop.xlane.xlu0 %4063
    %v4065 = vsel %vm3965, %v3742, 0.0
    %4066 = vadd.xlane.f32.xlu0 %v4065
    %v4067 = vpop.xlane.xlu0 %4066
    %v4068 = vsel %vm3965, %v3743, 0.0
    %4069 = vadd.xlane.f32.xlu0 %v4068
    %v4070 = vpop.xlane.xlu0 %4069
    %v4071 = vsel %vm3965, %v3744, 0.0
    %4072 = vadd.xlane.f32.xlu0 %v4071
    %v4073 = vpop.xlane.xlu0 %4072
    %v4074 = vsel %vm3965, %v3745, 0.0
    %4075 = vadd.xlane.f32.xlu0 %v4074
    %v4076 = vpop.xlane.xlu0 %4075
    %v4077 = vsel %vm3965, %v3746, 0.0
    %4078 = vadd.xlane.f32.xlu0 %v4077
    %v4079 = vpop.xlane.xlu0 %4078
    %v4080 = vsel %vm3965, %v3747, 0.0
    %4081 = vadd.xlane.f32.xlu0 %v4080
    %v4082 = vpop.xlane.xlu0 %4081
    %v4083 = vsel %vm3965, %v3748, 0.0
    %4084 = vadd.xlane.f32.xlu0 %v4083
    %v4085 = vpop.xlane.xlu0 %4084
    %v4086 = vsel %vm3965, %v3749, 0.0
    %4087 = vadd.xlane.f32.xlu0 %v4086
    %v4088 = vpop.xlane.xlu0 %4087
    %v4089 = vsel %vm3965, %v3750, 0.0
    %4090 = vadd.xlane.f32.xlu0 %v4089
    %v4091 = vpop.xlane.xlu0 %4090
    %v4092 = vsel %vm3965, %v3751, 0.0
    %4093 = vadd.xlane.f32.xlu0 %v4092
    %v4094 = vpop.xlane.xlu0 %4093
    %v4095 = vsel %vm3965, %v3752, 0.0
    %4096 = vadd.xlane.f32.xlu0 %v4095
    %v4097 = vpop.xlane.xlu0 %4096
    %v4098 = vsel %vm3965, %v3753, 0.0
    %4099 = vadd.xlane.f32.xlu0 %v4098
    %v4100 = vpop.xlane.xlu0 %4099
    %v4101 = vsel %vm3965, %v3754, 0.0
    %4102 = vadd.xlane.f32.xlu0 %v4101
    %v4103 = vpop.xlane.xlu0 %4102
    %v4104 = vsel %vm3965, %v3755, 0.0
    %4105 = vadd.xlane.f32.xlu0 %v4104
    %v4106 = vpop.xlane.xlu0 %4105
    %v4107 = vsel %vm3965, %v3756, 0.0
    %4108 = vadd.xlane.f32.xlu0 %v4107
    %v4109 = vpop.xlane.xlu0 %4108
    %v4110 = vsel %vm3965, %v3757, 0.0
    %4111 = vadd.xlane.f32.xlu0 %v4110
    %v4112 = vpop.xlane.xlu0 %4111
    %v4113 = vsel %vm3965, %v3758, 0.0
    %4114 = vadd.xlane.f32.xlu0 %v4113
    %v4115 = vpop.xlane.xlu0 %4114
    %v4116 = vsel %vm3965, %v3759, 0.0
    %4117 = vadd.xlane.f32.xlu0 %v4116
    %v4118 = vpop.xlane.xlu0 %4117
    %v4119 = vsel %vm3965, %v3760, 0.0
    %4120 = vadd.xlane.f32.xlu0 %v4119
    %v4121 = vpop.xlane.xlu0 %4120
    %v4122 = vsel %vm3965, %v3761, 0.0
    %4123 = vadd.xlane.f32.xlu0 %v4122
    %v4124 = vpop.xlane.xlu0 %4123
    %v4125 = vsel %vm3965, %v3762, 0.0
    %4126 = vadd.xlane.f32.xlu0 %v4125
    %v4127 = vpop.xlane.xlu0 %4126
    %v4128 = vsel %vm3965, %v3763, 0.0
    %4129 = vadd.xlane.f32.xlu0 %v4128
    %v4130 = vpop.xlane.xlu0 %4129
    %v4131 = vsel %vm3965, %v3764, 0.0
    %4132 = vadd.xlane.f32.xlu0 %v4131
    %v4133 = vpop.xlane.xlu0 %4132
    %v4134 = vsel %vm3965, %v3765, 0.0
    %4135 = vadd.xlane.f32.xlu0 %v4134
    %v4136 = vpop.xlane.xlu0 %4135
    %v4137 = vsel %vm3965, %v3766, 0.0
    %4138 = vadd.xlane.f32.xlu0 %v4137
    %v4139 = vpop.xlane.xlu0 %4138
    %v4140 = vsel %vm3965, %v3767, 0.0
    %4141 = vadd.xlane.f32.xlu0 %v4140
    %v4142 = vpop.xlane.xlu0 %4141
    %v4143 = vsel %vm3965, %v3768, 0.0
    %4144 = vadd.xlane.f32.xlu0 %v4143
    %v4145 = vpop.xlane.xlu0 %4144
    %v4146 = vsel %vm3965, %v3769, 0.0
    %4147 = vadd.xlane.f32.xlu0 %v4146
    %v4148 = vpop.xlane.xlu0 %4147
    %v4149 = vsel %vm3965, %v3770, 0.0
    %4150 = vadd.xlane.f32.xlu0 %v4149
    %v4151 = vpop.xlane.xlu0 %4150
    %v4152 = vsel %vm3965, %v3771, 0.0
    %4153 = vadd.xlane.f32.xlu0 %v4152
    %v4154 = vpop.xlane.xlu0 %4153
    %v4155 = vsel %vm3965, %v3772, 0.0
    %4156 = vadd.xlane.f32.xlu0 %v4155
    %v4157 = vpop.xlane.xlu0 %4156
    %v4158 = vsel %vm3965, %v3773, 0.0
    %4159 = vadd.xlane.f32.xlu0 %v4158
    %v4160 = vpop.xlane.xlu0 %4159
    %v4161 = vsel %vm3965, %v3774, 0.0
    %4162 = vadd.xlane.f32.xlu0 %v4161
    %v4163 = vpop.xlane.xlu0 %4162
    %v4164 = vsel %vm3965, %v3775, 0.0
    %4165 = vadd.xlane.f32.xlu0 %v4164
    %v4166 = vpop.xlane.xlu0 %4165
    %v4167 = vsel %vm3965, %v3776, 0.0
    %4168 = vadd.xlane.f32.xlu0 %v4167
    %v4169 = vpop.xlane.xlu0 %4168
    %v4170 = vsel %vm3965, %v3777, 0.0
    %4171 = vadd.xlane.f32.xlu0 %v4170
    %v4172 = vpop.xlane.xlu0 %4171
    %v4173 = vsel %vm3965, %v3778, 0.0
    %4174 = vadd.xlane.f32.xlu0 %v4173
    %v4175 = vpop.xlane.xlu0 %4174
    %v4176 = vsel %vm3965, %v3779, 0.0
    %4177 = vadd.xlane.f32.xlu0 %v4176
    %v4178 = vpop.xlane.xlu0 %4177
    %v4179 = vsel %vm3965, %v3780, 0.0
    %4180 = vadd.xlane.f32.xlu0 %v4179
    %v4181 = vpop.xlane.xlu0 %4180
    %v4182 = vsel %vm3965, %v3781, 0.0
    %4183 = vadd.xlane.f32.xlu0 %v4182
    %v4184 = vpop.xlane.xlu0 %4183
    %v4185 = vsel %vm3965, %v3782, 0.0
    %4186 = vadd.xlane.f32.xlu0 %v4185
    %v4187 = vpop.xlane.xlu0 %4186
    %v4188 = vsel %vm3965, %v3783, 0.0
    %4189 = vadd.xlane.f32.xlu0 %v4188
    %v4190 = vpop.xlane.xlu0 %4189
    %v4191 = vsel %vm3965, %v3784, 0.0
    %4192 = vadd.xlane.f32.xlu0 %v4191
    %v4193 = vpop.xlane.xlu0 %4192
    %v4194 = vsel %vm3965, %v3785, 0.0
    %4195 = vadd.xlane.f32.xlu0 %v4194
    %v4196 = vpop.xlane.xlu0 %4195
    %v4197 = vsel %vm3965, %v3786, 0.0
    %4198 = vadd.xlane.f32.xlu0 %v4197
    %v4199 = vpop.xlane.xlu0 %4198
    %v4200 = vsel %vm3965, %v3787, 0.0
    %4201 = vadd.xlane.f32.xlu0 %v4200
    %v4202 = vpop.xlane.xlu0 %4201
    %v4203 = vsel %vm3965, %v3788, 0.0
    %4204 = vadd.xlane.f32.xlu0 %v4203
    %v4205 = vpop.xlane.xlu0 %4204
    %v4206 = vsel %vm3965, %v3789, 0.0
    %4207 = vadd.xlane.f32.xlu0 %v4206
    %v4208 = vpop.xlane.xlu0 %4207
    %v4209 = vsel %vm3965, %v3790, 0.0
    %4210 = vadd.xlane.f32.xlu0 %v4209
    %v4211 = vpop.xlane.xlu0 %4210
    %v4212 = vsel %vm3965, %v3791, 0.0
    %4213 = vadd.xlane.f32.xlu0 %v4212
    %v4214 = vpop.xlane.xlu0 %4213
    %v4215 = vsel %vm3965, %v3792, 0.0
    %4216 = vadd.xlane.f32.xlu0 %v4215
    %v4217 = vpop.xlane.xlu0 %4216
    %v4218 = vsel %vm3965, %v3793, 0.0
    %4219 = vadd.xlane.f32.xlu0 %v4218
    %v4220 = vpop.xlane.xlu0 %4219
    %v4221 = vsel %vm3965, %v3794, 0.0
    %4222 = vadd.xlane.f32.xlu0 %v4221
    %v4223 = vpop.xlane.xlu0 %4222
    %v4224 = vsel %vm3965, %v3795, 0.0
    %4225 = vadd.xlane.f32.xlu0 %v4224
    %v4226 = vpop.xlane.xlu0 %4225
    %v4227 = vsel %vm3965, %v3796, 0.0
    %4228 = vadd.xlane.f32.xlu0 %v4227
    %v4229 = vpop.xlane.xlu0 %4228
    %v4230 = vsel %vm3965, %v3797, 0.0
    %4231 = vadd.xlane.f32.xlu0 %v4230
    %v4232 = vpop.xlane.xlu0 %4231
    %v4233 = vsel %vm3965, %v3798, 0.0
    %4234 = vadd.xlane.f32.xlu0 %v4233
    %v4235 = vpop.xlane.xlu0 %4234
    %v4236 = vsel %vm3965, %v3799, 0.0
    %4237 = vadd.xlane.f32.xlu0 %v4236
    %v4238 = vpop.xlane.xlu0 %4237
    %v4239 = vsel %vm3965, %v3800, 0.0
    %4240 = vadd.xlane.f32.xlu0 %v4239
    %v4241 = vpop.xlane.xlu0 %4240
    %v4242 = vsel %vm3965, %v3801, 0.0
    %4243 = vadd.xlane.f32.xlu0 %v4242
    %v4244 = vpop.xlane.xlu0 %4243
    %v4245 = vsel %vm3965, %v3802, 0.0
    %4246 = vadd.xlane.f32.xlu0 %v4245
    %v4247 = vpop.xlane.xlu0 %4246
    %v4248 = vsel %vm3965, %v3803, 0.0
    %4249 = vadd.xlane.f32.xlu0 %v4248
    %v4250 = vpop.xlane.xlu0 %4249
    %v4251 = vsel %vm3965, %v3804, 0.0
    %4252 = vadd.xlane.f32.xlu0 %v4251
    %v4253 = vpop.xlane.xlu0 %4252
    %v4254 = vsel %vm3965, %v3805, 0.0
    %4255 = vadd.xlane.f32.xlu0 %v4254
    %v4256 = vpop.xlane.xlu0 %4255
    %v4257 = vsel %vm3965, %v3806, 0.0
    %4258 = vadd.xlane.f32.xlu0 %v4257
    %v4259 = vpop.xlane.xlu0 %4258
    %v4260 = vsel %vm3965, %v3807, 0.0
    %4261 = vadd.xlane.f32.xlu0 %v4260
    %v4262 = vpop.xlane.xlu0 %4261
    %v4263 = vsel %vm3965, %v3808, 0.0
    %4264 = vadd.xlane.f32.xlu0 %v4263
    %v4265 = vpop.xlane.xlu0 %4264
    %v4266 = vsel %vm3965, %v3809, 0.0
    %4267 = vadd.xlane.f32.xlu0 %v4266
    %v4268 = vpop.xlane.xlu0 %4267
    %v4269 = vsel %vm3965, %v3810, 0.0
    %4270 = vadd.xlane.f32.xlu0 %v4269
    %v4271 = vpop.xlane.xlu0 %4270
    %v4272 = vsel %vm3965, %v3811, 0.0
    %4273 = vadd.xlane.f32.xlu0 %v4272
    %v4274 = vpop.xlane.xlu0 %4273
    %v4275 = vsel %vm3965, %v3812, 0.0
    %4276 = vadd.xlane.f32.xlu0 %v4275
    %v4277 = vpop.xlane.xlu0 %4276
    %v4278 = vsel %vm3965, %v3813, 0.0
    %4279 = vadd.xlane.f32.xlu0 %v4278
    %v4280 = vpop.xlane.xlu0 %4279
    %v4281 = vsel %vm3965, %v3814, 0.0
    %4282 = vadd.xlane.f32.xlu0 %v4281
    %v4283 = vpop.xlane.xlu0 %4282
    %v4284 = vsel %vm3965, %v3815, 0.0
    %4285 = vadd.xlane.f32.xlu0 %v4284
    %v4286 = vpop.xlane.xlu0 %4285
    %v4287 = vsel %vm3965, %v3816, 0.0
    %4288 = vadd.xlane.f32.xlu0 %v4287
    %v4289 = vpop.xlane.xlu0 %4288
    %v4290 = vsel %vm3965, %v3817, 0.0
    %4291 = vadd.xlane.f32.xlu0 %v4290
    %v4292 = vpop.xlane.xlu0 %4291
    %v4293 = vsel %vm3965, %v3818, 0.0
    %4294 = vadd.xlane.f32.xlu0 %v4293
    %v4295 = vpop.xlane.xlu0 %4294
    %v4296 = vsel %vm3965, %v3819, 0.0
    %4297 = vadd.xlane.f32.xlu0 %v4296
    %v4298 = vpop.xlane.xlu0 %4297
    %v4299 = vsel %vm3965, %v3820, 0.0
    %4300 = vadd.xlane.f32.xlu0 %v4299
    %v4301 = vpop.xlane.xlu0 %4300
    %v4302 = vsel %vm3965, %v3821, 0.0
    %4303 = vadd.xlane.f32.xlu0 %v4302
    %v4304 = vpop.xlane.xlu0 %4303
    %v4305 = vsel %vm3965, %v3822, 0.0
    %4306 = vadd.xlane.f32.xlu0 %v4305
    %v4307 = vpop.xlane.xlu0 %4306
    %v4308 = vsel %vm3965, %v3823, 0.0
    %4309 = vadd.xlane.f32.xlu0 %v4308
    %v4310 = vpop.xlane.xlu0 %4309
    %v4311 = vsel %vm3965, %v3824, 0.0
    %4312 = vadd.xlane.f32.xlu0 %v4311
    %v4313 = vpop.xlane.xlu0 %4312
    %v4314 = vsel %vm3965, %v3825, 0.0
    %4315 = vadd.xlane.f32.xlu0 %v4314
    %v4316 = vpop.xlane.xlu0 %4315
    %v4317 = vsel %vm3965, %v3826, 0.0
    %4318 = vadd.xlane.f32.xlu0 %v4317
    %v4319 = vpop.xlane.xlu0 %4318
    %v4320 = vsel %vm3965, %v3827, 0.0
    %4321 = vadd.xlane.f32.xlu0 %v4320
    %v4322 = vpop.xlane.xlu0 %4321
    %v4323 = vsel %vm3965, %v3828, 0.0
    %4324 = vadd.xlane.f32.xlu0 %v4323
    %v4325 = vpop.xlane.xlu0 %4324
    %v4326 = vsel %vm3965, %v3829, 0.0
    %4327 = vadd.xlane.f32.xlu0 %v4326
    %v4328 = vpop.xlane.xlu0 %4327
    %v4329 = vsel %vm3965, %v3830, 0.0
    %4330 = vadd.xlane.f32.xlu0 %v4329
    %v4331 = vpop.xlane.xlu0 %4330
    %v4332 = vsel %vm3965, %v3831, 0.0
    %4333 = vadd.xlane.f32.xlu0 %v4332
    %v4334 = vpop.xlane.xlu0 %4333
    %v4335 = vsel %vm3965, %v3832, 0.0
    %4336 = vadd.xlane.f32.xlu0 %v4335
    %v4337 = vpop.xlane.xlu0 %4336
    %v4338 = vsel %vm3965, %v3833, 0.0
    %4339 = vadd.xlane.f32.xlu0 %v4338
    %v4340 = vpop.xlane.xlu0 %4339
    %v4341 = vsel %vm3965, %v3834, 0.0
    %4342 = vadd.xlane.f32.xlu0 %v4341
    %v4343 = vpop.xlane.xlu0 %4342
    %v4344 = vsel %vm3965, %v3835, 0.0
    %4345 = vadd.xlane.f32.xlu0 %v4344
    %v4346 = vpop.xlane.xlu0 %4345
    %v4347 = vsel %vm3965, %v3836, 0.0
    %4348 = vadd.xlane.f32.xlu0 %v4347
    %v4349 = vpop.xlane.xlu0 %4348
    %v4350 = vsel %vm3965, %v3837, 0.0
    %4351 = vadd.xlane.f32.xlu0 %v4350
    %v4352 = vpop.xlane.xlu0 %4351
    %v4353 = vsel %vm3965, %v3838, 0.0
    %4354 = vadd.xlane.f32.xlu0 %v4353
    %v4355 = vpop.xlane.xlu0 %4354
    %v4356 = vsel %vm3965, %v3839, 0.0
    %4357 = vadd.xlane.f32.xlu0 %v4356
    %v4358 = vpop.xlane.xlu0 %4357
    %v4359 = vsel %vm3965, %v3840, 0.0
    %4360 = vadd.xlane.f32.xlu0 %v4359
    %v4361 = vpop.xlane.xlu0 %4360
    %v4362 = vsel %vm3965, %v3841, 0.0
    %4363 = vadd.xlane.f32.xlu0 %v4362
    %v4364 = vpop.xlane.xlu0 %4363
    %v4365 = vsel %vm3965, %v3842, 0.0
    %4366 = vadd.xlane.f32.xlu0 %v4365
    %v4367 = vpop.xlane.xlu0 %4366
    %v4368 = vsel %vm3965, %v3843, 0.0
    %4369 = vadd.xlane.f32.xlu0 %v4368
    %v4370 = vpop.xlane.xlu0 %4369
    %v4371 = vsel %vm3965, %v3844, 0.0
    %4372 = vadd.xlane.f32.xlu0 %v4371
    %v4373 = vpop.xlane.xlu0 %4372
    %v4374 = vsel %vm3965, %v3845, 0.0
    %4375 = vadd.xlane.f32.xlu0 %v4374
    %v4376 = vpop.xlane.xlu0 %4375
    %v4377 = vsel %vm3965, %v3846, 0.0
    %4378 = vadd.xlane.f32.xlu0 %v4377
    %v4379 = vpop.xlane.xlu0 %4378
    %v4380 = vsel %vm3965, %v3847, 0.0
    %4381 = vadd.xlane.f32.xlu0 %v4380
    %v4382 = vpop.xlane.xlu0 %4381
    %v4383 = vsel %vm3965, %v3848, 0.0
    %4384 = vadd.xlane.f32.xlu0 %v4383
    %v4385 = vpop.xlane.xlu0 %4384
    %v4386 = vsel %vm3965, %v3849, 0.0
    %4387 = vadd.xlane.f32.xlu0 %v4386
    %v4388 = vpop.xlane.xlu0 %4387
    %v4389 = vsel %vm3965, %v3850, 0.0
    %4390 = vadd.xlane.f32.xlu0 %v4389
    %v4391 = vpop.xlane.xlu0 %4390
    %v4392 = vsel %vm3965, %v3851, 0.0
    %4393 = vadd.xlane.f32.xlu0 %v4392
    %v4394 = vpop.xlane.xlu0 %4393
    %v4395 = vsel %vm3965, %v3852, 0.0
    %4396 = vadd.xlane.f32.xlu0 %v4395
    %v4397 = vpop.xlane.xlu0 %4396
    %v4398 = vsel %vm3965, %v3853, 0.0
    %4399 = vadd.xlane.f32.xlu0 %v4398
    %v4400 = vpop.xlane.xlu0 %4399
    %v4401 = vsel %vm3965, %v3854, 0.0
    %4402 = vadd.xlane.f32.xlu0 %v4401
    %v4403 = vpop.xlane.xlu0 %4402
    %v4404 = vsel %vm3965, %v3855, 0.0
    %4405 = vadd.xlane.f32.xlu0 %v4404
    %v4406 = vpop.xlane.xlu0 %4405
    %v4407 = vsel %vm3965, %v3856, 0.0
    %4408 = vadd.xlane.f32.xlu0 %v4407
    %v4409 = vpop.xlane.xlu0 %4408
    %v4410 = vsel %vm3965, %v3857, 0.0
    %4411 = vadd.xlane.f32.xlu0 %v4410
    %v4412 = vpop.xlane.xlu0 %4411
    %v4413 = vsel %vm3965, %v3858, 0.0
    %4414 = vadd.xlane.f32.xlu0 %v4413
    %v4415 = vpop.xlane.xlu0 %4414
    %v4416 = vsel %vm3965, %v3859, 0.0
    %4417 = vadd.xlane.f32.xlu0 %v4416
    %v4418 = vpop.xlane.xlu0 %4417
    %v4419 = vsel %vm3965, %v3860, 0.0
    %4420 = vadd.xlane.f32.xlu0 %v4419
    %v4421 = vpop.xlane.xlu0 %4420
    %v4422 = vsel %vm3965, %v3861, 0.0
    %4423 = vadd.xlane.f32.xlu0 %v4422
    %v4424 = vpop.xlane.xlu0 %4423
    %v4425 = vsel %vm3965, %v3862, 0.0
    %4426 = vadd.xlane.f32.xlu0 %v4425
    %v4427 = vpop.xlane.xlu0 %4426
    %v4428 = vsel %vm3965, %v3863, 0.0
    %4429 = vadd.xlane.f32.xlu0 %v4428
    %v4430 = vpop.xlane.xlu0 %4429
    %v4431 = vsel %vm3965, %v3864, 0.0
    %4432 = vadd.xlane.f32.xlu0 %v4431
    %v4433 = vpop.xlane.xlu0 %4432
    %v4434 = vsel %vm3965, %v3865, 0.0
    %4435 = vadd.xlane.f32.xlu0 %v4434
    %v4436 = vpop.xlane.xlu0 %4435
    %v4437 = vsel %vm3965, %v3866, 0.0
    %4438 = vadd.xlane.f32.xlu0 %v4437
    %v4439 = vpop.xlane.xlu0 %4438
    %v4440 = vsel %vm3965, %v3867, 0.0
    %4441 = vadd.xlane.f32.xlu0 %v4440
    %v4442 = vpop.xlane.xlu0 %4441
    %v4443 = vsel %vm3965, %v3868, 0.0
    %4444 = vadd.xlane.f32.xlu0 %v4443
    %v4445 = vpop.xlane.xlu0 %4444
    %v4446 = vsel %vm3965, %v3869, 0.0
    %4447 = vadd.xlane.f32.xlu0 %v4446
    %v4448 = vpop.xlane.xlu0 %4447
    %v4449 = vsel %vm3965, %v3870, 0.0
    %4450 = vadd.xlane.f32.xlu0 %v4449
    %v4451 = vpop.xlane.xlu0 %4450
    %v4452 = vsel %vm3965, %v3871, 0.0
    %4453 = vadd.xlane.f32.xlu0 %v4452
    %v4454 = vpop.xlane.xlu0 %4453
    %v4455 = vsel %vm3965, %v3872, 0.0
    %4456 = vadd.xlane.f32.xlu0 %v4455
    %v4457 = vpop.xlane.xlu0 %4456
    %v4458 = vsel %vm3965, %v3873, 0.0
    %4459 = vadd.xlane.f32.xlu0 %v4458
    %v4460 = vpop.xlane.xlu0 %4459
    %v4461 = vsel %vm3965, %v3874, 0.0
    %4462 = vadd.xlane.f32.xlu0 %v4461
    %v4463 = vpop.xlane.xlu0 %4462
    %v4464 = vsel %vm3965, %v3875, 0.0
    %4465 = vadd.xlane.f32.xlu0 %v4464
    %v4466 = vpop.xlane.xlu0 %4465
    %v4467 = vsel %vm3965, %v3876, 0.0
    %4468 = vadd.xlane.f32.xlu0 %v4467
    %v4469 = vpop.xlane.xlu0 %4468
    %v4470 = vsel %vm3965, %v3877, 0.0
    %4471 = vadd.xlane.f32.xlu0 %v4470
    %v4472 = vpop.xlane.xlu0 %4471
    %v4473 = vsel %vm3965, %v3878, 0.0
    %4474 = vadd.xlane.f32.xlu0 %v4473
    %v4475 = vpop.xlane.xlu0 %4474
    %v4476 = vsel %vm3965, %v3879, 0.0
    %4477 = vadd.xlane.f32.xlu0 %v4476
    %v4478 = vpop.xlane.xlu0 %4477
    %v4479 = vsel %vm3965, %v3880, 0.0
    %4480 = vadd.xlane.f32.xlu0 %v4479
    %v4481 = vpop.xlane.xlu0 %4480
    %v4482 = vsel %vm3965, %v3881, 0.0
    %4483 = vadd.xlane.f32.xlu0 %v4482
    %v4484 = vpop.xlane.xlu0 %4483
    %v4485 = vsel %vm3965, %v3882, 0.0
    %4486 = vadd.xlane.f32.xlu0 %v4485
    %v4487 = vpop.xlane.xlu0 %4486
    %v4488 = vsel %vm3965, %v3883, 0.0
    %4489 = vadd.xlane.f32.xlu0 %v4488
    %v4490 = vpop.xlane.xlu0 %4489
    %v4491 = vsel %vm3965, %v3884, 0.0
    %4492 = vadd.xlane.f32.xlu0 %v4491
    %v4493 = vpop.xlane.xlu0 %4492
    %v4494 = vsel %vm3965, %v3885, 0.0
    %4495 = vadd.xlane.f32.xlu0 %v4494
    %v4496 = vpop.xlane.xlu0 %4495
    %v4497 = vsel %vm3965, %v3886, 0.0
    %4498 = vadd.xlane.f32.xlu0 %v4497
    %v4499 = vpop.xlane.xlu0 %4498
    %v4500 = vsel %vm3965, %v3887, 0.0
    %4501 = vadd.xlane.f32.xlu0 %v4500
    %v4502 = vpop.xlane.xlu0 %4501
    %v4503 = vsel %vm3965, %v3888, 0.0
    %4504 = vadd.xlane.f32.xlu0 %v4503
    %v4505 = vpop.xlane.xlu0 %4504
    %v4506 = vsel %vm3965, %v3889, 0.0
    %4507 = vadd.xlane.f32.xlu0 %v4506
    %v4508 = vpop.xlane.xlu0 %4507
    %v4509 = vsel %vm3965, %v3890, 0.0
    %4510 = vadd.xlane.f32.xlu0 %v4509
    %v4511 = vpop.xlane.xlu0 %4510
    %v4512 = vsel %vm3965, %v3891, 0.0
    %4513 = vadd.xlane.f32.xlu0 %v4512
    %v4514 = vpop.xlane.xlu0 %4513
    %v4515 = vsel %vm3965, %v3892, 0.0
    %4516 = vadd.xlane.f32.xlu0 %v4515
    %v4517 = vpop.xlane.xlu0 %4516
    %v4518 = vsel %vm3965, %v3893, 0.0
    %4519 = vadd.xlane.f32.xlu0 %v4518
    %v4520 = vpop.xlane.xlu0 %4519
    %v4521 = vsel %vm3965, %v3894, 0.0
    %4522 = vadd.xlane.f32.xlu0 %v4521
    %v4523 = vpop.xlane.xlu0 %4522
    %v4524 = vsel %vm3965, %v3895, 0.0
    %4525 = vadd.xlane.f32.xlu0 %v4524
    %v4526 = vpop.xlane.xlu0 %4525
    %v4527 = vsel %vm3965, %v3896, 0.0
    %4528 = vadd.xlane.f32.xlu0 %v4527
    %v4529 = vpop.xlane.xlu0 %4528
    %v4530 = vsel %vm3965, %v3897, 0.0
    %4531 = vadd.xlane.f32.xlu0 %v4530
    %v4532 = vpop.xlane.xlu0 %4531
    %v4533 = vsel %vm3965, %v3898, 0.0
    %4534 = vadd.xlane.f32.xlu0 %v4533
    %v4535 = vpop.xlane.xlu0 %4534
    %v4536 = vsel %vm3965, %v3899, 0.0
    %4537 = vadd.xlane.f32.xlu0 %v4536
    %v4538 = vpop.xlane.xlu0 %4537
    %v4539 = vsel %vm3965, %v3900, 0.0
    %4540 = vadd.xlane.f32.xlu0 %v4539
    %v4541 = vpop.xlane.xlu0 %4540
    %v4542 = vsel %vm3965, %v3901, 0.0
    %4543 = vadd.xlane.f32.xlu0 %v4542
    %v4544 = vpop.xlane.xlu0 %4543
    %v4545 = vsel %vm3965, %v3902, 0.0
    %4546 = vadd.xlane.f32.xlu0 %v4545
    %v4547 = vpop.xlane.xlu0 %4546
    %v4548 = vsel %vm3965, %v3903, 0.0
    %4549 = vadd.xlane.f32.xlu0 %v4548
    %v4550 = vpop.xlane.xlu0 %4549
    %v4551 = vsel %vm3965, %v3904, 0.0
    %4552 = vadd.xlane.f32.xlu0 %v4551
    %v4553 = vpop.xlane.xlu0 %4552
    %v4554 = vsel %vm3965, %v3905, 0.0
    %4555 = vadd.xlane.f32.xlu0 %v4554
    %v4556 = vpop.xlane.xlu0 %4555
    %v4557 = vsel %vm3965, %v3906, 0.0
    %4558 = vadd.xlane.f32.xlu0 %v4557
    %v4559 = vpop.xlane.xlu0 %4558
    %v4560 = vsel %vm3965, %v3907, 0.0
    %4561 = vadd.xlane.f32.xlu0 %v4560
    %v4562 = vpop.xlane.xlu0 %4561
    %v4563 = vsel %vm3965, %v3908, 0.0
    %4564 = vadd.xlane.f32.xlu0 %v4563
    %v4565 = vpop.xlane.xlu0 %4564
    %v4566 = vsel %vm3965, %v3909, 0.0
    %4567 = vadd.xlane.f32.xlu0 %v4566
    %v4568 = vpop.xlane.xlu0 %4567
    %v4569 = vsel %vm3965, %v3910, 0.0
    %4570 = vadd.xlane.f32.xlu0 %v4569
    %v4571 = vpop.xlane.xlu0 %4570
    %v4572 = vsel %vm3965, %v3911, 0.0
    %4573 = vadd.xlane.f32.xlu0 %v4572
    %v4574 = vpop.xlane.xlu0 %4573
    %v4575 = vsel %vm3965, %v3912, 0.0
    %4576 = vadd.xlane.f32.xlu0 %v4575
    %v4577 = vpop.xlane.xlu0 %4576
    %v4578 = vsel %vm3965, %v3913, 0.0
    %4579 = vadd.xlane.f32.xlu0 %v4578
    %v4580 = vpop.xlane.xlu0 %4579
    %v4581 = vsel %vm3965, %v3914, 0.0
    %4582 = vadd.xlane.f32.xlu0 %v4581
    %v4583 = vpop.xlane.xlu0 %4582
    %v4584 = vsel %vm3965, %v3915, 0.0
    %4585 = vadd.xlane.f32.xlu0 %v4584
    %v4586 = vpop.xlane.xlu0 %4585
    %v4587 = vsel %vm3965, %v3916, 0.0
    %4588 = vadd.xlane.f32.xlu0 %v4587
    %v4589 = vpop.xlane.xlu0 %4588
    %v4590 = vsel %vm3965, %v3917, 0.0
    %4591 = vadd.xlane.f32.xlu0 %v4590
    %v4592 = vpop.xlane.xlu0 %4591
    %v4593 = vsel %vm3965, %v3918, 0.0
    %4594 = vadd.xlane.f32.xlu0 %v4593
    %v4595 = vpop.xlane.xlu0 %4594
    %v4596 = vsel %vm3965, %v3919, 0.0
    %4597 = vadd.xlane.f32.xlu0 %v4596
    %v4598 = vpop.xlane.xlu0 %4597
    %v4599 = vsel %vm3965, %v3920, 0.0
    %4600 = vadd.xlane.f32.xlu0 %v4599
    %v4601 = vpop.xlane.xlu0 %4600
    %v4602 = vsel %vm3965, %v3921, 0.0
    %4603 = vadd.xlane.f32.xlu0 %v4602
    %v4604 = vpop.xlane.xlu0 %4603
    %v4605 = vsel %vm3965, %v3922, 0.0
    %4606 = vadd.xlane.f32.xlu0 %v4605
    %v4607 = vpop.xlane.xlu0 %4606
    %v4608 = vsel %vm3965, %v3923, 0.0
    %4609 = vadd.xlane.f32.xlu0 %v4608
    %v4610 = vpop.xlane.xlu0 %4609
    %v4611 = vsel %vm3965, %v3924, 0.0
    %4612 = vadd.xlane.f32.xlu0 %v4611
    %v4613 = vpop.xlane.xlu0 %4612
    %v4614 = vsel %vm3965, %v3925, 0.0
    %4615 = vadd.xlane.f32.xlu0 %v4614
    %v4616 = vpop.xlane.xlu0 %4615
    %v4617 = vsel %vm3965, %v3926, 0.0
    %4618 = vadd.xlane.f32.xlu0 %v4617
    %v4619 = vpop.xlane.xlu0 %4618
    %v4620 = vsel %vm3965, %v3927, 0.0
    %4621 = vadd.xlane.f32.xlu0 %v4620
    %v4622 = vpop.xlane.xlu0 %4621
    %v4623 = vsel %vm3965, %v3928, 0.0
    %4624 = vadd.xlane.f32.xlu0 %v4623
    %v4625 = vpop.xlane.xlu0 %4624
    %v4626 = vsel %vm3965, %v3929, 0.0
    %4627 = vadd.xlane.f32.xlu0 %v4626
    %v4628 = vpop.xlane.xlu0 %4627
    %v4629 = vsel %vm3965, %v3930, 0.0
    %4630 = vadd.xlane.f32.xlu0 %v4629
    %v4631 = vpop.xlane.xlu0 %4630
    %v4632 = vsel %vm3965, %v3931, 0.0
    %4633 = vadd.xlane.f32.xlu0 %v4632
    %v4634 = vpop.xlane.xlu0 %4633
    %v4635 = vsel %vm3965, %v3932, 0.0
    %4636 = vadd.xlane.f32.xlu0 %v4635
    %v4637 = vpop.xlane.xlu0 %4636
    %v4638 = vsel %vm3965, %v3933, 0.0
    %4639 = vadd.xlane.f32.xlu0 %v4638
    %v4640 = vpop.xlane.xlu0 %4639
    %v4641 = vsel %vm3965, %v3934, 0.0
    %4642 = vadd.xlane.f32.xlu0 %v4641
    %v4643 = vpop.xlane.xlu0 %4642
    %v4644 = vsel %vm3965, %v3935, 0.0
    %4645 = vadd.xlane.f32.xlu0 %v4644
    %v4646 = vpop.xlane.xlu0 %4645
    %v4647 = vsel %vm3965, %v3936, 0.0
    %4648 = vadd.xlane.f32.xlu0 %v4647
    %v4649 = vpop.xlane.xlu0 %4648
    %v4650 = vsel %vm3965, %v3937, 0.0
    %4651 = vadd.xlane.f32.xlu0 %v4650
    %v4652 = vpop.xlane.xlu0 %4651
    %v4653 = vsel %vm3965, %v3938, 0.0
    %4654 = vadd.xlane.f32.xlu0 %v4653
    %v4655 = vpop.xlane.xlu0 %4654
    %v4656 = vsel %vm3965, %v3939, 0.0
    %4657 = vadd.xlane.f32.xlu0 %v4656
    %v4658 = vpop.xlane.xlu0 %4657
    %v4659 = vsel %vm3965, %v3940, 0.0
    %4660 = vadd.xlane.f32.xlu0 %v4659
    %v4661 = vpop.xlane.xlu0 %4660
    %v4662 = vsel %vm3965, %v3941, 0.0
    %4663 = vadd.xlane.f32.xlu0 %v4662
    %v4664 = vpop.xlane.xlu0 %4663
    %v4665 = vsel %vm3965, %v3942, 0.0
    %4666 = vadd.xlane.f32.xlu0 %v4665
    %v4667 = vpop.xlane.xlu0 %4666
    %v4668 = vsel %vm3965, %v3943, 0.0
    %4669 = vadd.xlane.f32.xlu0 %v4668
    %v4670 = vpop.xlane.xlu0 %4669
    %v4671 = vsel %vm3965, %v3944, 0.0
    %4672 = vadd.xlane.f32.xlu0 %v4671
    %v4673 = vpop.xlane.xlu0 %4672
    %v4674 = vsel %vm3965, %v3945, 0.0
    %4675 = vadd.xlane.f32.xlu0 %v4674
    %v4676 = vpop.xlane.xlu0 %4675
    %v4677 = vsel %vm3965, %v3946, 0.0
    %4678 = vadd.xlane.f32.xlu0 %v4677
    %v4679 = vpop.xlane.xlu0 %4678
    %v4680 = vsel %vm3965, %v3947, 0.0
    %4681 = vadd.xlane.f32.xlu0 %v4680
    %v4682 = vpop.xlane.xlu0 %4681
    %v4683 = vsel %vm3965, %v3948, 0.0
    %4684 = vadd.xlane.f32.xlu0 %v4683
    %v4685 = vpop.xlane.xlu0 %4684
    %v4686 = vsel %vm3965, %v3949, 0.0
    %4687 = vadd.xlane.f32.xlu0 %v4686
    %v4688 = vpop.xlane.xlu0 %4687
    %v4689 = vsel %vm3965, %v3950, 0.0
    %4690 = vadd.xlane.f32.xlu0 %v4689
    %v4691 = vpop.xlane.xlu0 %4690
    %v4692 = vsel %vm3965, %v3951, 0.0
    %4693 = vadd.xlane.f32.xlu0 %v4692
    %v4694 = vpop.xlane.xlu0 %4693
    %v4695 = vsel %vm3965, %v3952, 0.0
    %4696 = vadd.xlane.f32.xlu0 %v4695
    %v4697 = vpop.xlane.xlu0 %4696
    %v4698 = vsel %vm3965, %v3953, 0.0
    %4699 = vadd.xlane.f32.xlu0 %v4698
    %v4700 = vpop.xlane.xlu0 %4699
    %v4701 = vsel %vm3965, %v3954, 0.0
    %4702 = vadd.xlane.f32.xlu0 %v4701
    %v4703 = vpop.xlane.xlu0 %4702
    %v4704 = vsel %vm3965, %v3955, 0.0
    %4705 = vadd.xlane.f32.xlu0 %v4704
    %v4706 = vpop.xlane.xlu0 %4705
    %v4707 = vsel %vm3965, %v3956, 0.0
    %4708 = vadd.xlane.f32.xlu0 %v4707
    %v4709 = vpop.xlane.xlu0 %4708
    %v4710 = vsel %vm3965, %v3957, 0.0
    %4711 = vadd.xlane.f32.xlu0 %v4710
    %v4712 = vpop.xlane.xlu0 %4711
    %v4713 = vsel %vm3965, %v3958, 0.0
    %4714 = vadd.xlane.f32.xlu0 %v4713
    %v4715 = vpop.xlane.xlu0 %4714
    %v4716 = vsel %vm3965, %v3959, 0.0
    %4717 = vadd.xlane.f32.xlu0 %v4716
    %v4718 = vpop.xlane.xlu0 %4717
    %v4719 = vsel %vm3965, %v3960, 0.0
    %4720 = vadd.xlane.f32.xlu0 %v4719
    %v4721 = vpop.xlane.xlu0 %4720
    %v4722 = vsel %vm3965, %v3961, 0.0
    %4723 = vadd.xlane.f32.xlu0 %v4722
    %v4724 = vpop.xlane.xlu0 %4723
    %v4725 = vsel %vm3965, %v3962, 0.0
    %4726 = vadd.xlane.f32.xlu0 %v4725
    %v4727 = vpop.xlane.xlu0 %4726
    %v4728 = vsel %vm3965, %v3963, 0.0
    %4729 = vadd.xlane.f32.xlu0 %v4728
    %v4730 = vpop.xlane.xlu0 %4729
    %v4731 = vsel %vm3965, %v3964, 0.0
    %4732 = vadd.xlane.f32.xlu0 %v4731
    %v4733 = vpop.xlane.xlu0 %4732
    %4734 = vset.pattern.permute.xlu0 64
    %4735 = vperm.xlu0 %4734, %v510
    %v4736 = vpop.permute.xlu0 %4735
    %4737 = vset.pattern.permute.xlu0 64
    %4738 = vperm.xlu0 %4737, %v515
    %v4739 = vpop.permute.xlu0 %4738
    %4740 = vset.pattern.permute.xlu0 64
    %4741 = vperm.xlu0 %4740, %v520
    %v4742 = vpop.permute.xlu0 %4741
    %4743 = vset.pattern.permute.xlu0 64
    %4744 = vperm.xlu0 %4743, %v525
    %v4745 = vpop.permute.xlu0 %4744
    %4746 = vset.pattern.permute.xlu0 64
    %4747 = vperm.xlu0 %4746, %v530
    %v4748 = vpop.permute.xlu0 %4747
    %4749 = vset.pattern.permute.xlu0 64
    %4750 = vperm.xlu0 %4749, %v535
    %v4751 = vpop.permute.xlu0 %4750
    %4752 = vset.pattern.permute.xlu0 64
    %4753 = vperm.xlu0 %4752, %v540
    %v4754 = vpop.permute.xlu0 %4753
    %4755 = vset.pattern.permute.xlu0 64
    %4756 = vperm.xlu0 %4755, %v545
    %v4757 = vpop.permute.xlu0 %4756
    %4758 = vset.pattern.permute.xlu0 64
    %4759 = vperm.xlu0 %4758, %v550
    %v4760 = vpop.permute.xlu0 %4759
    %4761 = vset.pattern.permute.xlu0 64
    %4762 = vperm.xlu0 %4761, %v555
    %v4763 = vpop.permute.xlu0 %4762
    %4764 = vset.pattern.permute.xlu0 64
    %4765 = vperm.xlu0 %4764, %v560
    %v4766 = vpop.permute.xlu0 %4765
    %4767 = vset.pattern.permute.xlu0 64
    %4768 = vperm.xlu0 %4767, %v565
    %v4769 = vpop.permute.xlu0 %4768
    %4770 = vset.pattern.permute.xlu0 64
    %4771 = vperm.xlu0 %4770, %v570
    %v4772 = vpop.permute.xlu0 %4771
    %4773 = vset.pattern.permute.xlu0 64
    %4774 = vperm.xlu0 %4773, %v575
    %v4775 = vpop.permute.xlu0 %4774
    %4776 = vset.pattern.permute.xlu0 64
    %4777 = vperm.xlu0 %4776, %v580
    %v4778 = vpop.permute.xlu0 %4777
    %4779 = vset.pattern.permute.xlu0 64
    %4780 = vperm.xlu0 %4779, %v585
    %v4781 = vpop.permute.xlu0 %4780
    %4782 = vset.pattern.permute.xlu0 64
    %4783 = vperm.xlu0 %4782, %v590
    %v4784 = vpop.permute.xlu0 %4783
    %4785 = vset.pattern.permute.xlu0 64
    %4786 = vperm.xlu0 %4785, %v595
    %v4787 = vpop.permute.xlu0 %4786
    %4788 = vset.pattern.permute.xlu0 64
    %4789 = vperm.xlu0 %4788, %v600
    %v4790 = vpop.permute.xlu0 %4789
    %4791 = vset.pattern.permute.xlu0 64
    %4792 = vperm.xlu0 %4791, %v605
    %v4793 = vpop.permute.xlu0 %4792
    %4794 = vset.pattern.permute.xlu0 64
    %4795 = vperm.xlu0 %4794, %v610
    %v4796 = vpop.permute.xlu0 %4795
    %4797 = vset.pattern.permute.xlu0 64
    %4798 = vperm.xlu0 %4797, %v615
    %v4799 = vpop.permute.xlu0 %4798
    %4800 = vset.pattern.permute.xlu0 64
    %4801 = vperm.xlu0 %4800, %v620
    %v4802 = vpop.permute.xlu0 %4801
    %4803 = vset.pattern.permute.xlu0 64
    %4804 = vperm.xlu0 %4803, %v625
    %v4805 = vpop.permute.xlu0 %4804
    %4806 = vset.pattern.permute.xlu0 64
    %4807 = vperm.xlu0 %4806, %v630
    %v4808 = vpop.permute.xlu0 %4807
    %4809 = vset.pattern.permute.xlu0 64
    %4810 = vperm.xlu0 %4809, %v635
    %v4811 = vpop.permute.xlu0 %4810
    %4812 = vset.pattern.permute.xlu0 64
    %4813 = vperm.xlu0 %4812, %v640
    %v4814 = vpop.permute.xlu0 %4813
    %4815 = vset.pattern.permute.xlu0 64
    %4816 = vperm.xlu0 %4815, %v645
    %v4817 = vpop.permute.xlu0 %4816
    %4818 = vset.pattern.permute.xlu0 64
    %4819 = vperm.xlu0 %4818, %v650
    %v4820 = vpop.permute.xlu0 %4819
    %4821 = vset.pattern.permute.xlu0 64
    %4822 = vperm.xlu0 %4821, %v655
    %v4823 = vpop.permute.xlu0 %4822
    %4824 = vset.pattern.permute.xlu0 64
    %4825 = vperm.xlu0 %4824, %v660
    %v4826 = vpop.permute.xlu0 %4825
    %4827 = vset.pattern.permute.xlu0 64
    %4828 = vperm.xlu0 %4827, %v665
    %v4829 = vpop.permute.xlu0 %4828
    %v4830 = vlaneseq
    %v4831 = vshrl.u32 %v4830, 7
    %v4832 = vsub.s32 0, %v4831
    %v4833 = vrot.slane %v4736, %v4832
    %v4834 = vlaneseq
    %v4835 = vshrl.u32 %v4834, 7
    %v4836 = vsub.s32 1, %v4835
    %v4837 = vrot.slane %v4736, %v4836
    %v4838 = vlaneseq
    %v4839 = vshrl.u32 %v4838, 7
    %v4840 = vsub.s32 2, %v4839
    %v4841 = vrot.slane %v4736, %v4840
    %v4842 = vlaneseq
    %v4843 = vshrl.u32 %v4842, 7
    %v4844 = vsub.s32 3, %v4843
    %v4845 = vrot.slane %v4736, %v4844
    %v4846 = vlaneseq
    %v4847 = vshrl.u32 %v4846, 7
    %v4848 = vsub.s32 4, %v4847
    %v4849 = vrot.slane %v4736, %v4848
    %v4850 = vlaneseq
    %v4851 = vshrl.u32 %v4850, 7
    %v4852 = vsub.s32 5, %v4851
    %v4853 = vrot.slane %v4736, %v4852
    %v4854 = vlaneseq
    %v4855 = vshrl.u32 %v4854, 7
    %v4856 = vsub.s32 6, %v4855
    %v4857 = vrot.slane %v4736, %v4856
    %v4858 = vlaneseq
    %v4859 = vshrl.u32 %v4858, 7
    %v4860 = vsub.s32 7, %v4859
    %v4861 = vrot.slane %v4736, %v4860
    %v4862 = vlaneseq
    %v4863 = vshrl.u32 %v4862, 7
    %v4864 = vsub.s32 0, %v4863
    %v4865 = vrot.slane %v4739, %v4864
    %v4866 = vlaneseq
    %v4867 = vshrl.u32 %v4866, 7
    %v4868 = vsub.s32 1, %v4867
    %v4869 = vrot.slane %v4739, %v4868
    %v4870 = vlaneseq
    %v4871 = vshrl.u32 %v4870, 7
    %v4872 = vsub.s32 2, %v4871
    %v4873 = vrot.slane %v4739, %v4872
    %v4874 = vlaneseq
    %v4875 = vshrl.u32 %v4874, 7
    %v4876 = vsub.s32 3, %v4875
    %v4877 = vrot.slane %v4739, %v4876
    %v4878 = vlaneseq
    %v4879 = vshrl.u32 %v4878, 7
    %v4880 = vsub.s32 4, %v4879
    %v4881 = vrot.slane %v4739, %v4880
    %v4882 = vlaneseq
    %v4883 = vshrl.u32 %v4882, 7
    %v4884 = vsub.s32 5, %v4883
    %v4885 = vrot.slane %v4739, %v4884
    %v4886 = vlaneseq
    %v4887 = vshrl.u32 %v4886, 7
    %v4888 = vsub.s32 6, %v4887
    %v4889 = vrot.slane %v4739, %v4888
    %v4890 = vlaneseq
    %v4891 = vshrl.u32 %v4890, 7
    %v4892 = vsub.s32 7, %v4891
    %v4893 = vrot.slane %v4739, %v4892
    %v4894 = vlaneseq
    %v4895 = vshrl.u32 %v4894, 7
    %v4896 = vsub.s32 0, %v4895
    %v4897 = vrot.slane %v4742, %v4896
    %v4898 = vlaneseq
    %v4899 = vshrl.u32 %v4898, 7
    %v4900 = vsub.s32 1, %v4899
    %v4901 = vrot.slane %v4742, %v4900
    %v4902 = vlaneseq
    %v4903 = vshrl.u32 %v4902, 7
    %v4904 = vsub.s32 2, %v4903
    %v4905 = vrot.slane %v4742, %v4904
    %v4906 = vlaneseq
    %v4907 = vshrl.u32 %v4906, 7
    %v4908 = vsub.s32 3, %v4907
    %v4909 = vrot.slane %v4742, %v4908
    %v4910 = vlaneseq
    %v4911 = vshrl.u32 %v4910, 7
    %v4912 = vsub.s32 4, %v4911
    %v4913 = vrot.slane %v4742, %v4912
    %v4914 = vlaneseq
    %v4915 = vshrl.u32 %v4914, 7
    %v4916 = vsub.s32 5, %v4915
    %v4917 = vrot.slane %v4742, %v4916
    %v4918 = vlaneseq
    %v4919 = vshrl.u32 %v4918, 7
    %v4920 = vsub.s32 6, %v4919
    %v4921 = vrot.slane %v4742, %v4920
    %v4922 = vlaneseq
    %v4923 = vshrl.u32 %v4922, 7
    %v4924 = vsub.s32 7, %v4923
    %v4925 = vrot.slane %v4742, %v4924
    %v4926 = vlaneseq
    %v4927 = vshrl.u32 %v4926, 7
    %v4928 = vsub.s32 0, %v4927
    %v4929 = vrot.slane %v4745, %v4928
    %v4930 = vlaneseq
    %v4931 = vshrl.u32 %v4930, 7
    %v4932 = vsub.s32 1, %v4931
    %v4933 = vrot.slane %v4745, %v4932
    %v4934 = vlaneseq
    %v4935 = vshrl.u32 %v4934, 7
    %v4936 = vsub.s32 2, %v4935
    %v4937 = vrot.slane %v4745, %v4936
    %v4938 = vlaneseq
    %v4939 = vshrl.u32 %v4938, 7
    %v4940 = vsub.s32 3, %v4939
    %v4941 = vrot.slane %v4745, %v4940
    %v4942 = vlaneseq
    %v4943 = vshrl.u32 %v4942, 7
    %v4944 = vsub.s32 4, %v4943
    %v4945 = vrot.slane %v4745, %v4944
    %v4946 = vlaneseq
    %v4947 = vshrl.u32 %v4946, 7
    %v4948 = vsub.s32 5, %v4947
    %v4949 = vrot.slane %v4745, %v4948
    %v4950 = vlaneseq
    %v4951 = vshrl.u32 %v4950, 7
    %v4952 = vsub.s32 6, %v4951
    %v4953 = vrot.slane %v4745, %v4952
    %v4954 = vlaneseq
    %v4955 = vshrl.u32 %v4954, 7
    %v4956 = vsub.s32 7, %v4955
    %v4957 = vrot.slane %v4745, %v4956
    %v4958 = vlaneseq
    %v4959 = vshrl.u32 %v4958, 7
    %v4960 = vsub.s32 0, %v4959
    %v4961 = vrot.slane %v4748, %v4960
    %v4962 = vlaneseq
    %v4963 = vshrl.u32 %v4962, 7
    %v4964 = vsub.s32 1, %v4963
    %v4965 = vrot.slane %v4748, %v4964
    %v4966 = vlaneseq
    %v4967 = vshrl.u32 %v4966, 7
    %v4968 = vsub.s32 2, %v4967
    %v4969 = vrot.slane %v4748, %v4968
    %v4970 = vlaneseq
    %v4971 = vshrl.u32 %v4970, 7
    %v4972 = vsub.s32 3, %v4971
    %v4973 = vrot.slane %v4748, %v4972
    %v4974 = vlaneseq
    %v4975 = vshrl.u32 %v4974, 7
    %v4976 = vsub.s32 4, %v4975
    %v4977 = vrot.slane %v4748, %v4976
    %v4978 = vlaneseq
    %v4979 = vshrl.u32 %v4978, 7
    %v4980 = vsub.s32 5, %v4979
    %v4981 = vrot.slane %v4748, %v4980
    %v4982 = vlaneseq
    %v4983 = vshrl.u32 %v4982, 7
    %v4984 = vsub.s32 6, %v4983
    %v4985 = vrot.slane %v4748, %v4984
    %v4986 = vlaneseq
    %v4987 = vshrl.u32 %v4986, 7
    %v4988 = vsub.s32 7, %v4987
    %v4989 = vrot.slane %v4748, %v4988
    %v4990 = vlaneseq
    %v4991 = vshrl.u32 %v4990, 7
    %v4992 = vsub.s32 0, %v4991
    %v4993 = vrot.slane %v4751, %v4992
    %v4994 = vlaneseq
    %v4995 = vshrl.u32 %v4994, 7
    %v4996 = vsub.s32 1, %v4995
    %v4997 = vrot.slane %v4751, %v4996
    %v4998 = vlaneseq
    %v4999 = vshrl.u32 %v4998, 7
    %v5000 = vsub.s32 2, %v4999
    %v5001 = vrot.slane %v4751, %v5000
    %v5002 = vlaneseq
    %v5003 = vshrl.u32 %v5002, 7
    %v5004 = vsub.s32 3, %v5003
    %v5005 = vrot.slane %v4751, %v5004
    %v5006 = vlaneseq
    %v5007 = vshrl.u32 %v5006, 7
    %v5008 = vsub.s32 4, %v5007
    %v5009 = vrot.slane %v4751, %v5008
    %v5010 = vlaneseq
    %v5011 = vshrl.u32 %v5010, 7
    %v5012 = vsub.s32 5, %v5011
    %v5013 = vrot.slane %v4751, %v5012
    %v5014 = vlaneseq
    %v5015 = vshrl.u32 %v5014, 7
    %v5016 = vsub.s32 6, %v5015
    %v5017 = vrot.slane %v4751, %v5016
    %v5018 = vlaneseq
    %v5019 = vshrl.u32 %v5018, 7
    %v5020 = vsub.s32 7, %v5019
    %v5021 = vrot.slane %v4751, %v5020
    %v5022 = vlaneseq
    %v5023 = vshrl.u32 %v5022, 7
    %v5024 = vsub.s32 0, %v5023
    %v5025 = vrot.slane %v4754, %v5024
    %v5026 = vlaneseq
    %v5027 = vshrl.u32 %v5026, 7
    %v5028 = vsub.s32 1, %v5027
    %v5029 = vrot.slane %v4754, %v5028
    %v5030 = vlaneseq
    %v5031 = vshrl.u32 %v5030, 7
    %v5032 = vsub.s32 2, %v5031
    %v5033 = vrot.slane %v4754, %v5032
    %v5034 = vlaneseq
    %v5035 = vshrl.u32 %v5034, 7
    %v5036 = vsub.s32 3, %v5035
    %v5037 = vrot.slane %v4754, %v5036
    %v5038 = vlaneseq
    %v5039 = vshrl.u32 %v5038, 7
    %v5040 = vsub.s32 4, %v5039
    %v5041 = vrot.slane %v4754, %v5040
    %v5042 = vlaneseq
    %v5043 = vshrl.u32 %v5042, 7
    %v5044 = vsub.s32 5, %v5043
    %v5045 = vrot.slane %v4754, %v5044
    %v5046 = vlaneseq
    %v5047 = vshrl.u32 %v5046, 7
    %v5048 = vsub.s32 6, %v5047
    %v5049 = vrot.slane %v4754, %v5048
    %v5050 = vlaneseq
    %v5051 = vshrl.u32 %v5050, 7
    %v5052 = vsub.s32 7, %v5051
    %v5053 = vrot.slane %v4754, %v5052
    %v5054 = vlaneseq
    %v5055 = vshrl.u32 %v5054, 7
    %v5056 = vsub.s32 0, %v5055
    %v5057 = vrot.slane %v4757, %v5056
    %v5058 = vlaneseq
    %v5059 = vshrl.u32 %v5058, 7
    %v5060 = vsub.s32 1, %v5059
    %v5061 = vrot.slane %v4757, %v5060
    %v5062 = vlaneseq
    %v5063 = vshrl.u32 %v5062, 7
    %v5064 = vsub.s32 2, %v5063
    %v5065 = vrot.slane %v4757, %v5064
    %v5066 = vlaneseq
    %v5067 = vshrl.u32 %v5066, 7
    %v5068 = vsub.s32 3, %v5067
    %v5069 = vrot.slane %v4757, %v5068
    %v5070 = vlaneseq
    %v5071 = vshrl.u32 %v5070, 7
    %v5072 = vsub.s32 4, %v5071
    %v5073 = vrot.slane %v4757, %v5072
    %v5074 = vlaneseq
    %v5075 = vshrl.u32 %v5074, 7
    %v5076 = vsub.s32 5, %v5075
    %v5077 = vrot.slane %v4757, %v5076
    %v5078 = vlaneseq
    %v5079 = vshrl.u32 %v5078, 7
    %v5080 = vsub.s32 6, %v5079
    %v5081 = vrot.slane %v4757, %v5080
    %v5082 = vlaneseq
    %v5083 = vshrl.u32 %v5082, 7
    %v5084 = vsub.s32 7, %v5083
    %v5085 = vrot.slane %v4757, %v5084
    %v5086 = vlaneseq
    %v5087 = vshrl.u32 %v5086, 7
    %v5088 = vsub.s32 0, %v5087
    %v5089 = vrot.slane %v4760, %v5088
    %v5090 = vlaneseq
    %v5091 = vshrl.u32 %v5090, 7
    %v5092 = vsub.s32 1, %v5091
    %v5093 = vrot.slane %v4760, %v5092
    %v5094 = vlaneseq
    %v5095 = vshrl.u32 %v5094, 7
    %v5096 = vsub.s32 2, %v5095
    %v5097 = vrot.slane %v4760, %v5096
    %v5098 = vlaneseq
    %v5099 = vshrl.u32 %v5098, 7
    %v5100 = vsub.s32 3, %v5099
    %v5101 = vrot.slane %v4760, %v5100
    %v5102 = vlaneseq
    %v5103 = vshrl.u32 %v5102, 7
    %v5104 = vsub.s32 4, %v5103
    %v5105 = vrot.slane %v4760, %v5104
    %v5106 = vlaneseq
    %v5107 = vshrl.u32 %v5106, 7
    %v5108 = vsub.s32 5, %v5107
    %v5109 = vrot.slane %v4760, %v5108
    %v5110 = vlaneseq
    %v5111 = vshrl.u32 %v5110, 7
    %v5112 = vsub.s32 6, %v5111
    %v5113 = vrot.slane %v4760, %v5112
    %v5114 = vlaneseq
    %v5115 = vshrl.u32 %v5114, 7
    %v5116 = vsub.s32 7, %v5115
    %v5117 = vrot.slane %v4760, %v5116
    %v5118 = vlaneseq
    %v5119 = vshrl.u32 %v5118, 7
    %v5120 = vsub.s32 0, %v5119
    %v5121 = vrot.slane %v4763, %v5120
    %v5122 = vlaneseq
    %v5123 = vshrl.u32 %v5122, 7
    %v5124 = vsub.s32 1, %v5123
    %v5125 = vrot.slane %v4763, %v5124
    %v5126 = vlaneseq
    %v5127 = vshrl.u32 %v5126, 7
    %v5128 = vsub.s32 2, %v5127
    %v5129 = vrot.slane %v4763, %v5128
    %v5130 = vlaneseq
    %v5131 = vshrl.u32 %v5130, 7
    %v5132 = vsub.s32 3, %v5131
    %v5133 = vrot.slane %v4763, %v5132
    %v5134 = vlaneseq
    %v5135 = vshrl.u32 %v5134, 7
    %v5136 = vsub.s32 4, %v5135
    %v5137 = vrot.slane %v4763, %v5136
    %v5138 = vlaneseq
    %v5139 = vshrl.u32 %v5138, 7
    %v5140 = vsub.s32 5, %v5139
    %v5141 = vrot.slane %v4763, %v5140
    %v5142 = vlaneseq
    %v5143 = vshrl.u32 %v5142, 7
    %v5144 = vsub.s32 6, %v5143
    %v5145 = vrot.slane %v4763, %v5144
    %v5146 = vlaneseq
    %v5147 = vshrl.u32 %v5146, 7
    %v5148 = vsub.s32 7, %v5147
    %v5149 = vrot.slane %v4763, %v5148
    %v5150 = vlaneseq
    %v5151 = vshrl.u32 %v5150, 7
    %v5152 = vsub.s32 0, %v5151
    %v5153 = vrot.slane %v4766, %v5152
    %v5154 = vlaneseq
    %v5155 = vshrl.u32 %v5154, 7
    %v5156 = vsub.s32 1, %v5155
    %v5157 = vrot.slane %v4766, %v5156
    %v5158 = vlaneseq
    %v5159 = vshrl.u32 %v5158, 7
    %v5160 = vsub.s32 2, %v5159
    %v5161 = vrot.slane %v4766, %v5160
    %v5162 = vlaneseq
    %v5163 = vshrl.u32 %v5162, 7
    %v5164 = vsub.s32 3, %v5163
    %v5165 = vrot.slane %v4766, %v5164
    %v5166 = vlaneseq
    %v5167 = vshrl.u32 %v5166, 7
    %v5168 = vsub.s32 4, %v5167
    %v5169 = vrot.slane %v4766, %v5168
    %v5170 = vlaneseq
    %v5171 = vshrl.u32 %v5170, 7
    %v5172 = vsub.s32 5, %v5171
    %v5173 = vrot.slane %v4766, %v5172
    %v5174 = vlaneseq
    %v5175 = vshrl.u32 %v5174, 7
    %v5176 = vsub.s32 6, %v5175
    %v5177 = vrot.slane %v4766, %v5176
    %v5178 = vlaneseq
    %v5179 = vshrl.u32 %v5178, 7
    %v5180 = vsub.s32 7, %v5179
    %v5181 = vrot.slane %v4766, %v5180
    %v5182 = vlaneseq
    %v5183 = vshrl.u32 %v5182, 7
    %v5184 = vsub.s32 0, %v5183
    %v5185 = vrot.slane %v4769, %v5184
    %v5186 = vlaneseq
    %v5187 = vshrl.u32 %v5186, 7
    %v5188 = vsub.s32 1, %v5187
    %v5189 = vrot.slane %v4769, %v5188
    %v5190 = vlaneseq
    %v5191 = vshrl.u32 %v5190, 7
    %v5192 = vsub.s32 2, %v5191
    %v5193 = vrot.slane %v4769, %v5192
    %v5194 = vlaneseq
    %v5195 = vshrl.u32 %v5194, 7
    %v5196 = vsub.s32 3, %v5195
    %v5197 = vrot.slane %v4769, %v5196
    %v5198 = vlaneseq
    %v5199 = vshrl.u32 %v5198, 7
    %v5200 = vsub.s32 4, %v5199
    %v5201 = vrot.slane %v4769, %v5200
    %v5202 = vlaneseq
    %v5203 = vshrl.u32 %v5202, 7
    %v5204 = vsub.s32 5, %v5203
    %v5205 = vrot.slane %v4769, %v5204
    %v5206 = vlaneseq
    %v5207 = vshrl.u32 %v5206, 7
    %v5208 = vsub.s32 6, %v5207
    %v5209 = vrot.slane %v4769, %v5208
    %v5210 = vlaneseq
    %v5211 = vshrl.u32 %v5210, 7
    %v5212 = vsub.s32 7, %v5211
    %v5213 = vrot.slane %v4769, %v5212
    %v5214 = vlaneseq
    %v5215 = vshrl.u32 %v5214, 7
    %v5216 = vsub.s32 0, %v5215
    %v5217 = vrot.slane %v4772, %v5216
    %v5218 = vlaneseq
    %v5219 = vshrl.u32 %v5218, 7
    %v5220 = vsub.s32 1, %v5219
    %v5221 = vrot.slane %v4772, %v5220
    %v5222 = vlaneseq
    %v5223 = vshrl.u32 %v5222, 7
    %v5224 = vsub.s32 2, %v5223
    %v5225 = vrot.slane %v4772, %v5224
    %v5226 = vlaneseq
    %v5227 = vshrl.u32 %v5226, 7
    %v5228 = vsub.s32 3, %v5227
    %v5229 = vrot.slane %v4772, %v5228
    %v5230 = vlaneseq
    %v5231 = vshrl.u32 %v5230, 7
    %v5232 = vsub.s32 4, %v5231
    %v5233 = vrot.slane %v4772, %v5232
    %v5234 = vlaneseq
    %v5235 = vshrl.u32 %v5234, 7
    %v5236 = vsub.s32 5, %v5235
    %v5237 = vrot.slane %v4772, %v5236
    %v5238 = vlaneseq
    %v5239 = vshrl.u32 %v5238, 7
    %v5240 = vsub.s32 6, %v5239
    %v5241 = vrot.slane %v4772, %v5240
    %v5242 = vlaneseq
    %v5243 = vshrl.u32 %v5242, 7
    %v5244 = vsub.s32 7, %v5243
    %v5245 = vrot.slane %v4772, %v5244
    %v5246 = vlaneseq
    %v5247 = vshrl.u32 %v5246, 7
    %v5248 = vsub.s32 0, %v5247
    %v5249 = vrot.slane %v4775, %v5248
    %v5250 = vlaneseq
    %v5251 = vshrl.u32 %v5250, 7
    %v5252 = vsub.s32 1, %v5251
    %v5253 = vrot.slane %v4775, %v5252
    %v5254 = vlaneseq
    %v5255 = vshrl.u32 %v5254, 7
    %v5256 = vsub.s32 2, %v5255
    %v5257 = vrot.slane %v4775, %v5256
    %v5258 = vlaneseq
    %v5259 = vshrl.u32 %v5258, 7
    %v5260 = vsub.s32 3, %v5259
    %v5261 = vrot.slane %v4775, %v5260
    %v5262 = vlaneseq
    %v5263 = vshrl.u32 %v5262, 7
    %v5264 = vsub.s32 4, %v5263
    %v5265 = vrot.slane %v4775, %v5264
    %v5266 = vlaneseq
    %v5267 = vshrl.u32 %v5266, 7
    %v5268 = vsub.s32 5, %v5267
    %v5269 = vrot.slane %v4775, %v5268
    %v5270 = vlaneseq
    %v5271 = vshrl.u32 %v5270, 7
    %v5272 = vsub.s32 6, %v5271
    %v5273 = vrot.slane %v4775, %v5272
    %v5274 = vlaneseq
    %v5275 = vshrl.u32 %v5274, 7
    %v5276 = vsub.s32 7, %v5275
    %v5277 = vrot.slane %v4775, %v5276
    %v5278 = vlaneseq
    %v5279 = vshrl.u32 %v5278, 7
    %v5280 = vsub.s32 0, %v5279
    %v5281 = vrot.slane %v4778, %v5280
    %v5282 = vlaneseq
    %v5283 = vshrl.u32 %v5282, 7
    %v5284 = vsub.s32 1, %v5283
    %v5285 = vrot.slane %v4778, %v5284
    %v5286 = vlaneseq
    %v5287 = vshrl.u32 %v5286, 7
    %v5288 = vsub.s32 2, %v5287
    %v5289 = vrot.slane %v4778, %v5288
    %v5290 = vlaneseq
    %v5291 = vshrl.u32 %v5290, 7
    %v5292 = vsub.s32 3, %v5291
    %v5293 = vrot.slane %v4778, %v5292
    %v5294 = vlaneseq
    %v5295 = vshrl.u32 %v5294, 7
    %v5296 = vsub.s32 4, %v5295
    %v5297 = vrot.slane %v4778, %v5296
    %v5298 = vlaneseq
    %v5299 = vshrl.u32 %v5298, 7
    %v5300 = vsub.s32 5, %v5299
    %v5301 = vrot.slane %v4778, %v5300
    %v5302 = vlaneseq
    %v5303 = vshrl.u32 %v5302, 7
    %v5304 = vsub.s32 6, %v5303
    %v5305 = vrot.slane %v4778, %v5304
    %v5306 = vlaneseq
    %v5307 = vshrl.u32 %v5306, 7
    %v5308 = vsub.s32 7, %v5307
    %v5309 = vrot.slane %v4778, %v5308
    %v5310 = vlaneseq
    %v5311 = vshrl.u32 %v5310, 7
    %v5312 = vsub.s32 0, %v5311
    %v5313 = vrot.slane %v4781, %v5312
    %v5314 = vlaneseq
    %v5315 = vshrl.u32 %v5314, 7
    %v5316 = vsub.s32 1, %v5315
    %v5317 = vrot.slane %v4781, %v5316
    %v5318 = vlaneseq
    %v5319 = vshrl.u32 %v5318, 7
    %v5320 = vsub.s32 2, %v5319
    %v5321 = vrot.slane %v4781, %v5320
    %v5322 = vlaneseq
    %v5323 = vshrl.u32 %v5322, 7
    %v5324 = vsub.s32 3, %v5323
    %v5325 = vrot.slane %v4781, %v5324
    %v5326 = vlaneseq
    %v5327 = vshrl.u32 %v5326, 7
    %v5328 = vsub.s32 4, %v5327
    %v5329 = vrot.slane %v4781, %v5328
    %v5330 = vlaneseq
    %v5331 = vshrl.u32 %v5330, 7
    %v5332 = vsub.s32 5, %v5331
    %v5333 = vrot.slane %v4781, %v5332
    %v5334 = vlaneseq
    %v5335 = vshrl.u32 %v5334, 7
    %v5336 = vsub.s32 6, %v5335
    %v5337 = vrot.slane %v4781, %v5336
    %v5338 = vlaneseq
    %v5339 = vshrl.u32 %v5338, 7
    %v5340 = vsub.s32 7, %v5339
    %v5341 = vrot.slane %v4781, %v5340
    %v5342 = vlaneseq
    %v5343 = vshrl.u32 %v5342, 7
    %v5344 = vsub.s32 0, %v5343
    %v5345 = vrot.slane %v4784, %v5344
    %v5346 = vlaneseq
    %v5347 = vshrl.u32 %v5346, 7
    %v5348 = vsub.s32 1, %v5347
    %v5349 = vrot.slane %v4784, %v5348
    %v5350 = vlaneseq
    %v5351 = vshrl.u32 %v5350, 7
    %v5352 = vsub.s32 2, %v5351
    %v5353 = vrot.slane %v4784, %v5352
    %v5354 = vlaneseq
    %v5355 = vshrl.u32 %v5354, 7
    %v5356 = vsub.s32 3, %v5355
    %v5357 = vrot.slane %v4784, %v5356
    %v5358 = vlaneseq
    %v5359 = vshrl.u32 %v5358, 7
    %v5360 = vsub.s32 4, %v5359
    %v5361 = vrot.slane %v4784, %v5360
    %v5362 = vlaneseq
    %v5363 = vshrl.u32 %v5362, 7
    %v5364 = vsub.s32 5, %v5363
    %v5365 = vrot.slane %v4784, %v5364
    %v5366 = vlaneseq
    %v5367 = vshrl.u32 %v5366, 7
    %v5368 = vsub.s32 6, %v5367
    %v5369 = vrot.slane %v4784, %v5368
    %v5370 = vlaneseq
    %v5371 = vshrl.u32 %v5370, 7
    %v5372 = vsub.s32 7, %v5371
    %v5373 = vrot.slane %v4784, %v5372
    %v5374 = vlaneseq
    %v5375 = vshrl.u32 %v5374, 7
    %v5376 = vsub.s32 0, %v5375
    %v5377 = vrot.slane %v4787, %v5376
    %v5378 = vlaneseq
    %v5379 = vshrl.u32 %v5378, 7
    %v5380 = vsub.s32 1, %v5379
    %v5381 = vrot.slane %v4787, %v5380
    %v5382 = vlaneseq
    %v5383 = vshrl.u32 %v5382, 7
    %v5384 = vsub.s32 2, %v5383
    %v5385 = vrot.slane %v4787, %v5384
    %v5386 = vlaneseq
    %v5387 = vshrl.u32 %v5386, 7
    %v5388 = vsub.s32 3, %v5387
    %v5389 = vrot.slane %v4787, %v5388
    %v5390 = vlaneseq
    %v5391 = vshrl.u32 %v5390, 7
    %v5392 = vsub.s32 4, %v5391
    %v5393 = vrot.slane %v4787, %v5392
    %v5394 = vlaneseq
    %v5395 = vshrl.u32 %v5394, 7
    %v5396 = vsub.s32 5, %v5395
    %v5397 = vrot.slane %v4787, %v5396
    %v5398 = vlaneseq
    %v5399 = vshrl.u32 %v5398, 7
    %v5400 = vsub.s32 6, %v5399
    %v5401 = vrot.slane %v4787, %v5400
    %v5402 = vlaneseq
    %v5403 = vshrl.u32 %v5402, 7
    %v5404 = vsub.s32 7, %v5403
    %v5405 = vrot.slane %v4787, %v5404
    %v5406 = vlaneseq
    %v5407 = vshrl.u32 %v5406, 7
    %v5408 = vsub.s32 0, %v5407
    %v5409 = vrot.slane %v4790, %v5408
    %v5410 = vlaneseq
    %v5411 = vshrl.u32 %v5410, 7
    %v5412 = vsub.s32 1, %v5411
    %v5413 = vrot.slane %v4790, %v5412
    %v5414 = vlaneseq
    %v5415 = vshrl.u32 %v5414, 7
    %v5416 = vsub.s32 2, %v5415
    %v5417 = vrot.slane %v4790, %v5416
    %v5418 = vlaneseq
    %v5419 = vshrl.u32 %v5418, 7
    %v5420 = vsub.s32 3, %v5419
    %v5421 = vrot.slane %v4790, %v5420
    %v5422 = vlaneseq
    %v5423 = vshrl.u32 %v5422, 7
    %v5424 = vsub.s32 4, %v5423
    %v5425 = vrot.slane %v4790, %v5424
    %v5426 = vlaneseq
    %v5427 = vshrl.u32 %v5426, 7
    %v5428 = vsub.s32 5, %v5427
    %v5429 = vrot.slane %v4790, %v5428
    %v5430 = vlaneseq
    %v5431 = vshrl.u32 %v5430, 7
    %v5432 = vsub.s32 6, %v5431
    %v5433 = vrot.slane %v4790, %v5432
    %v5434 = vlaneseq
    %v5435 = vshrl.u32 %v5434, 7
    %v5436 = vsub.s32 7, %v5435
    %v5437 = vrot.slane %v4790, %v5436
    %v5438 = vlaneseq
    %v5439 = vshrl.u32 %v5438, 7
    %v5440 = vsub.s32 0, %v5439
    %v5441 = vrot.slane %v4793, %v5440
    %v5442 = vlaneseq
    %v5443 = vshrl.u32 %v5442, 7
    %v5444 = vsub.s32 1, %v5443
    %v5445 = vrot.slane %v4793, %v5444
    %v5446 = vlaneseq
    %v5447 = vshrl.u32 %v5446, 7
    %v5448 = vsub.s32 2, %v5447
    %v5449 = vrot.slane %v4793, %v5448
    %v5450 = vlaneseq
    %v5451 = vshrl.u32 %v5450, 7
    %v5452 = vsub.s32 3, %v5451
    %v5453 = vrot.slane %v4793, %v5452
    %v5454 = vlaneseq
    %v5455 = vshrl.u32 %v5454, 7
    %v5456 = vsub.s32 4, %v5455
    %v5457 = vrot.slane %v4793, %v5456
    %v5458 = vlaneseq
    %v5459 = vshrl.u32 %v5458, 7
    %v5460 = vsub.s32 5, %v5459
    %v5461 = vrot.slane %v4793, %v5460
    %v5462 = vlaneseq
    %v5463 = vshrl.u32 %v5462, 7
    %v5464 = vsub.s32 6, %v5463
    %v5465 = vrot.slane %v4793, %v5464
    %v5466 = vlaneseq
    %v5467 = vshrl.u32 %v5466, 7
    %v5468 = vsub.s32 7, %v5467
    %v5469 = vrot.slane %v4793, %v5468
    %v5470 = vlaneseq
    %v5471 = vshrl.u32 %v5470, 7
    %v5472 = vsub.s32 0, %v5471
    %v5473 = vrot.slane %v4796, %v5472
    %v5474 = vlaneseq
    %v5475 = vshrl.u32 %v5474, 7
    %v5476 = vsub.s32 1, %v5475
    %v5477 = vrot.slane %v4796, %v5476
    %v5478 = vlaneseq
    %v5479 = vshrl.u32 %v5478, 7
    %v5480 = vsub.s32 2, %v5479
    %v5481 = vrot.slane %v4796, %v5480
    %v5482 = vlaneseq
    %v5483 = vshrl.u32 %v5482, 7
    %v5484 = vsub.s32 3, %v5483
    %v5485 = vrot.slane %v4796, %v5484
    %v5486 = vlaneseq
    %v5487 = vshrl.u32 %v5486, 7
    %v5488 = vsub.s32 4, %v5487
    %v5489 = vrot.slane %v4796, %v5488
    %v5490 = vlaneseq
    %v5491 = vshrl.u32 %v5490, 7
    %v5492 = vsub.s32 5, %v5491
    %v5493 = vrot.slane %v4796, %v5492
    %v5494 = vlaneseq
    %v5495 = vshrl.u32 %v5494, 7
    %v5496 = vsub.s32 6, %v5495
    %v5497 = vrot.slane %v4796, %v5496
    %v5498 = vlaneseq
    %v5499 = vshrl.u32 %v5498, 7
    %v5500 = vsub.s32 7, %v5499
    %v5501 = vrot.slane %v4796, %v5500
    %v5502 = vlaneseq
    %v5503 = vshrl.u32 %v5502, 7
    %v5504 = vsub.s32 0, %v5503
    %v5505 = vrot.slane %v4799, %v5504
    %v5506 = vlaneseq
    %v5507 = vshrl.u32 %v5506, 7
    %v5508 = vsub.s32 1, %v5507
    %v5509 = vrot.slane %v4799, %v5508
    %v5510 = vlaneseq
    %v5511 = vshrl.u32 %v5510, 7
    %v5512 = vsub.s32 2, %v5511
    %v5513 = vrot.slane %v4799, %v5512
    %v5514 = vlaneseq
    %v5515 = vshrl.u32 %v5514, 7
    %v5516 = vsub.s32 3, %v5515
    %v5517 = vrot.slane %v4799, %v5516
    %v5518 = vlaneseq
    %v5519 = vshrl.u32 %v5518, 7
    %v5520 = vsub.s32 4, %v5519
    %v5521 = vrot.slane %v4799, %v5520
    %v5522 = vlaneseq
    %v5523 = vshrl.u32 %v5522, 7
    %v5524 = vsub.s32 5, %v5523
    %v5525 = vrot.slane %v4799, %v5524
    %v5526 = vlaneseq
    %v5527 = vshrl.u32 %v5526, 7
    %v5528 = vsub.s32 6, %v5527
    %v5529 = vrot.slane %v4799, %v5528
    %v5530 = vlaneseq
    %v5531 = vshrl.u32 %v5530, 7
    %v5532 = vsub.s32 7, %v5531
    %v5533 = vrot.slane %v4799, %v5532
    %v5534 = vlaneseq
    %v5535 = vshrl.u32 %v5534, 7
    %v5536 = vsub.s32 0, %v5535
    %v5537 = vrot.slane %v4802, %v5536
    %v5538 = vlaneseq
    %v5539 = vshrl.u32 %v5538, 7
    %v5540 = vsub.s32 1, %v5539
    %v5541 = vrot.slane %v4802, %v5540
    %v5542 = vlaneseq
    %v5543 = vshrl.u32 %v5542, 7
    %v5544 = vsub.s32 2, %v5543
    %v5545 = vrot.slane %v4802, %v5544
    %v5546 = vlaneseq
    %v5547 = vshrl.u32 %v5546, 7
    %v5548 = vsub.s32 3, %v5547
    %v5549 = vrot.slane %v4802, %v5548
    %v5550 = vlaneseq
    %v5551 = vshrl.u32 %v5550, 7
    %v5552 = vsub.s32 4, %v5551
    %v5553 = vrot.slane %v4802, %v5552
    %v5554 = vlaneseq
    %v5555 = vshrl.u32 %v5554, 7
    %v5556 = vsub.s32 5, %v5555
    %v5557 = vrot.slane %v4802, %v5556
    %v5558 = vlaneseq
    %v5559 = vshrl.u32 %v5558, 7
    %v5560 = vsub.s32 6, %v5559
    %v5561 = vrot.slane %v4802, %v5560
    %v5562 = vlaneseq
    %v5563 = vshrl.u32 %v5562, 7
    %v5564 = vsub.s32 7, %v5563
    %v5565 = vrot.slane %v4802, %v5564
    %v5566 = vlaneseq
    %v5567 = vshrl.u32 %v5566, 7
    %v5568 = vsub.s32 0, %v5567
    %v5569 = vrot.slane %v4805, %v5568
    %v5570 = vlaneseq
    %v5571 = vshrl.u32 %v5570, 7
    %v5572 = vsub.s32 1, %v5571
    %v5573 = vrot.slane %v4805, %v5572
    %v5574 = vlaneseq
    %v5575 = vshrl.u32 %v5574, 7
    %v5576 = vsub.s32 2, %v5575
    %v5577 = vrot.slane %v4805, %v5576
    %v5578 = vlaneseq
    %v5579 = vshrl.u32 %v5578, 7
    %v5580 = vsub.s32 3, %v5579
    %v5581 = vrot.slane %v4805, %v5580
    %v5582 = vlaneseq
    %v5583 = vshrl.u32 %v5582, 7
    %v5584 = vsub.s32 4, %v5583
    %v5585 = vrot.slane %v4805, %v5584
    %v5586 = vlaneseq
    %v5587 = vshrl.u32 %v5586, 7
    %v5588 = vsub.s32 5, %v5587
    %v5589 = vrot.slane %v4805, %v5588
    %v5590 = vlaneseq
    %v5591 = vshrl.u32 %v5590, 7
    %v5592 = vsub.s32 6, %v5591
    %v5593 = vrot.slane %v4805, %v5592
    %v5594 = vlaneseq
    %v5595 = vshrl.u32 %v5594, 7
    %v5596 = vsub.s32 7, %v5595
    %v5597 = vrot.slane %v4805, %v5596
    %v5598 = vlaneseq
    %v5599 = vshrl.u32 %v5598, 7
    %v5600 = vsub.s32 0, %v5599
    %v5601 = vrot.slane %v4808, %v5600
    %v5602 = vlaneseq
    %v5603 = vshrl.u32 %v5602, 7
    %v5604 = vsub.s32 1, %v5603
    %v5605 = vrot.slane %v4808, %v5604
    %v5606 = vlaneseq
    %v5607 = vshrl.u32 %v5606, 7
    %v5608 = vsub.s32 2, %v5607
    %v5609 = vrot.slane %v4808, %v5608
    %v5610 = vlaneseq
    %v5611 = vshrl.u32 %v5610, 7
    %v5612 = vsub.s32 3, %v5611
    %v5613 = vrot.slane %v4808, %v5612
    %v5614 = vlaneseq
    %v5615 = vshrl.u32 %v5614, 7
    %v5616 = vsub.s32 4, %v5615
    %v5617 = vrot.slane %v4808, %v5616
    %v5618 = vlaneseq
    %v5619 = vshrl.u32 %v5618, 7
    %v5620 = vsub.s32 5, %v5619
    %v5621 = vrot.slane %v4808, %v5620
    %v5622 = vlaneseq
    %v5623 = vshrl.u32 %v5622, 7
    %v5624 = vsub.s32 6, %v5623
    %v5625 = vrot.slane %v4808, %v5624
    %v5626 = vlaneseq
    %v5627 = vshrl.u32 %v5626, 7
    %v5628 = vsub.s32 7, %v5627
    %v5629 = vrot.slane %v4808, %v5628
    %v5630 = vlaneseq
    %v5631 = vshrl.u32 %v5630, 7
    %v5632 = vsub.s32 0, %v5631
    %v5633 = vrot.slane %v4811, %v5632
    %v5634 = vlaneseq
    %v5635 = vshrl.u32 %v5634, 7
    %v5636 = vsub.s32 1, %v5635
    %v5637 = vrot.slane %v4811, %v5636
    %v5638 = vlaneseq
    %v5639 = vshrl.u32 %v5638, 7
    %v5640 = vsub.s32 2, %v5639
    %v5641 = vrot.slane %v4811, %v5640
    %v5642 = vlaneseq
    %v5643 = vshrl.u32 %v5642, 7
    %v5644 = vsub.s32 3, %v5643
    %v5645 = vrot.slane %v4811, %v5644
    %v5646 = vlaneseq
    %v5647 = vshrl.u32 %v5646, 7
    %v5648 = vsub.s32 4, %v5647
    %v5649 = vrot.slane %v4811, %v5648
    %v5650 = vlaneseq
    %v5651 = vshrl.u32 %v5650, 7
    %v5652 = vsub.s32 5, %v5651
    %v5653 = vrot.slane %v4811, %v5652
    %v5654 = vlaneseq
    %v5655 = vshrl.u32 %v5654, 7
    %v5656 = vsub.s32 6, %v5655
    %v5657 = vrot.slane %v4811, %v5656
    %v5658 = vlaneseq
    %v5659 = vshrl.u32 %v5658, 7
    %v5660 = vsub.s32 7, %v5659
    %v5661 = vrot.slane %v4811, %v5660
    %v5662 = vlaneseq
    %v5663 = vshrl.u32 %v5662, 7
    %v5664 = vsub.s32 0, %v5663
    %v5665 = vrot.slane %v4814, %v5664
    %v5666 = vlaneseq
    %v5667 = vshrl.u32 %v5666, 7
    %v5668 = vsub.s32 1, %v5667
    %v5669 = vrot.slane %v4814, %v5668
    %v5670 = vlaneseq
    %v5671 = vshrl.u32 %v5670, 7
    %v5672 = vsub.s32 2, %v5671
    %v5673 = vrot.slane %v4814, %v5672
    %v5674 = vlaneseq
    %v5675 = vshrl.u32 %v5674, 7
    %v5676 = vsub.s32 3, %v5675
    %v5677 = vrot.slane %v4814, %v5676
    %v5678 = vlaneseq
    %v5679 = vshrl.u32 %v5678, 7
    %v5680 = vsub.s32 4, %v5679
    %v5681 = vrot.slane %v4814, %v5680
    %v5682 = vlaneseq
    %v5683 = vshrl.u32 %v5682, 7
    %v5684 = vsub.s32 5, %v5683
    %v5685 = vrot.slane %v4814, %v5684
    %v5686 = vlaneseq
    %v5687 = vshrl.u32 %v5686, 7
    %v5688 = vsub.s32 6, %v5687
    %v5689 = vrot.slane %v4814, %v5688
    %v5690 = vlaneseq
    %v5691 = vshrl.u32 %v5690, 7
    %v5692 = vsub.s32 7, %v5691
    %v5693 = vrot.slane %v4814, %v5692
    %v5694 = vlaneseq
    %v5695 = vshrl.u32 %v5694, 7
    %v5696 = vsub.s32 0, %v5695
    %v5697 = vrot.slane %v4817, %v5696
    %v5698 = vlaneseq
    %v5699 = vshrl.u32 %v5698, 7
    %v5700 = vsub.s32 1, %v5699
    %v5701 = vrot.slane %v4817, %v5700
    %v5702 = vlaneseq
    %v5703 = vshrl.u32 %v5702, 7
    %v5704 = vsub.s32 2, %v5703
    %v5705 = vrot.slane %v4817, %v5704
    %v5706 = vlaneseq
    %v5707 = vshrl.u32 %v5706, 7
    %v5708 = vsub.s32 3, %v5707
    %v5709 = vrot.slane %v4817, %v5708
    %v5710 = vlaneseq
    %v5711 = vshrl.u32 %v5710, 7
    %v5712 = vsub.s32 4, %v5711
    %v5713 = vrot.slane %v4817, %v5712
    %v5714 = vlaneseq
    %v5715 = vshrl.u32 %v5714, 7
    %v5716 = vsub.s32 5, %v5715
    %v5717 = vrot.slane %v4817, %v5716
    %v5718 = vlaneseq
    %v5719 = vshrl.u32 %v5718, 7
    %v5720 = vsub.s32 6, %v5719
    %v5721 = vrot.slane %v4817, %v5720
    %v5722 = vlaneseq
    %v5723 = vshrl.u32 %v5722, 7
    %v5724 = vsub.s32 7, %v5723
    %v5725 = vrot.slane %v4817, %v5724
    %v5726 = vlaneseq
    %v5727 = vshrl.u32 %v5726, 7
    %v5728 = vsub.s32 0, %v5727
    %v5729 = vrot.slane %v4820, %v5728
    %v5730 = vlaneseq
    %v5731 = vshrl.u32 %v5730, 7
    %v5732 = vsub.s32 1, %v5731
    %v5733 = vrot.slane %v4820, %v5732
    %v5734 = vlaneseq
    %v5735 = vshrl.u32 %v5734, 7
    %v5736 = vsub.s32 2, %v5735
    %v5737 = vrot.slane %v4820, %v5736
    %v5738 = vlaneseq
    %v5739 = vshrl.u32 %v5738, 7
    %v5740 = vsub.s32 3, %v5739
    %v5741 = vrot.slane %v4820, %v5740
    %v5742 = vlaneseq
    %v5743 = vshrl.u32 %v5742, 7
    %v5744 = vsub.s32 4, %v5743
    %v5745 = vrot.slane %v4820, %v5744
    %v5746 = vlaneseq
    %v5747 = vshrl.u32 %v5746, 7
    %v5748 = vsub.s32 5, %v5747
    %v5749 = vrot.slane %v4820, %v5748
    %v5750 = vlaneseq
    %v5751 = vshrl.u32 %v5750, 7
    %v5752 = vsub.s32 6, %v5751
    %v5753 = vrot.slane %v4820, %v5752
    %v5754 = vlaneseq
    %v5755 = vshrl.u32 %v5754, 7
    %v5756 = vsub.s32 7, %v5755
    %v5757 = vrot.slane %v4820, %v5756
    %v5758 = vlaneseq
    %v5759 = vshrl.u32 %v5758, 7
    %v5760 = vsub.s32 0, %v5759
    %v5761 = vrot.slane %v4823, %v5760
    %v5762 = vlaneseq
    %v5763 = vshrl.u32 %v5762, 7
    %v5764 = vsub.s32 1, %v5763
    %v5765 = vrot.slane %v4823, %v5764
    %v5766 = vlaneseq
    %v5767 = vshrl.u32 %v5766, 7
    %v5768 = vsub.s32 2, %v5767
    %v5769 = vrot.slane %v4823, %v5768
    %v5770 = vlaneseq
    %v5771 = vshrl.u32 %v5770, 7
    %v5772 = vsub.s32 3, %v5771
    %v5773 = vrot.slane %v4823, %v5772
    %v5774 = vlaneseq
    %v5775 = vshrl.u32 %v5774, 7
    %v5776 = vsub.s32 4, %v5775
    %v5777 = vrot.slane %v4823, %v5776
    %v5778 = vlaneseq
    %v5779 = vshrl.u32 %v5778, 7
    %v5780 = vsub.s32 5, %v5779
    %v5781 = vrot.slane %v4823, %v5780
    %v5782 = vlaneseq
    %v5783 = vshrl.u32 %v5782, 7
    %v5784 = vsub.s32 6, %v5783
    %v5785 = vrot.slane %v4823, %v5784
    %v5786 = vlaneseq
    %v5787 = vshrl.u32 %v5786, 7
    %v5788 = vsub.s32 7, %v5787
    %v5789 = vrot.slane %v4823, %v5788
    %v5790 = vlaneseq
    %v5791 = vshrl.u32 %v5790, 7
    %v5792 = vsub.s32 0, %v5791
    %v5793 = vrot.slane %v4826, %v5792
    %v5794 = vlaneseq
    %v5795 = vshrl.u32 %v5794, 7
    %v5796 = vsub.s32 1, %v5795
    %v5797 = vrot.slane %v4826, %v5796
    %v5798 = vlaneseq
    %v5799 = vshrl.u32 %v5798, 7
    %v5800 = vsub.s32 2, %v5799
    %v5801 = vrot.slane %v4826, %v5800
    %v5802 = vlaneseq
    %v5803 = vshrl.u32 %v5802, 7
    %v5804 = vsub.s32 3, %v5803
    %v5805 = vrot.slane %v4826, %v5804
    %v5806 = vlaneseq
    %v5807 = vshrl.u32 %v5806, 7
    %v5808 = vsub.s32 4, %v5807
    %v5809 = vrot.slane %v4826, %v5808
    %v5810 = vlaneseq
    %v5811 = vshrl.u32 %v5810, 7
    %v5812 = vsub.s32 5, %v5811
    %v5813 = vrot.slane %v4826, %v5812
    %v5814 = vlaneseq
    %v5815 = vshrl.u32 %v5814, 7
    %v5816 = vsub.s32 6, %v5815
    %v5817 = vrot.slane %v4826, %v5816
    %v5818 = vlaneseq
    %v5819 = vshrl.u32 %v5818, 7
    %v5820 = vsub.s32 7, %v5819
    %v5821 = vrot.slane %v4826, %v5820
    %v5822 = vlaneseq
    %v5823 = vshrl.u32 %v5822, 7
    %v5824 = vsub.s32 0, %v5823
    %v5825 = vrot.slane %v4829, %v5824
    %v5826 = vlaneseq
    %v5827 = vshrl.u32 %v5826, 7
    %v5828 = vsub.s32 1, %v5827
    %v5829 = vrot.slane %v4829, %v5828
    %v5830 = vlaneseq
    %v5831 = vshrl.u32 %v5830, 7
    %v5832 = vsub.s32 2, %v5831
    %v5833 = vrot.slane %v4829, %v5832
    %v5834 = vlaneseq
    %v5835 = vshrl.u32 %v5834, 7
    %v5836 = vsub.s32 3, %v5835
    %v5837 = vrot.slane %v4829, %v5836
    %v5838 = vlaneseq
    %v5839 = vshrl.u32 %v5838, 7
    %v5840 = vsub.s32 4, %v5839
    %v5841 = vrot.slane %v4829, %v5840
    %v5842 = vlaneseq
    %v5843 = vshrl.u32 %v5842, 7
    %v5844 = vsub.s32 5, %v5843
    %v5845 = vrot.slane %v4829, %v5844
    %v5846 = vlaneseq
    %v5847 = vshrl.u32 %v5846, 7
    %v5848 = vsub.s32 6, %v5847
    %v5849 = vrot.slane %v4829, %v5848
    %v5850 = vlaneseq
    %v5851 = vshrl.u32 %v5850, 7
    %v5852 = vsub.s32 7, %v5851
    %v5853 = vrot.slane %v4829, %v5852
    %v6110 = vadd.f32 %v3968, %v4833
    %v6111 = vadd.f32 %v3971, %v4837
    %v6112 = vadd.f32 %v3974, %v4841
    %v6113 = vadd.f32 %v3977, %v4845
    %v6114 = vadd.f32 %v3980, %v4849
    %v6115 = vadd.f32 %v3983, %v4853
    %v6116 = vadd.f32 %v3986, %v4857
    %v6117 = vadd.f32 %v3989, %v4861
    %v6118 = vadd.f32 %v3992, %v4865
    %v6119 = vadd.f32 %v3995, %v4869
    %v6120 = vadd.f32 %v3998, %v4873
    %v6121 = vadd.f32 %v4001, %v4877
    %v6122 = vadd.f32 %v4004, %v4881
    %v6123 = vadd.f32 %v4007, %v4885
    %v6124 = vadd.f32 %v4010, %v4889
    %v6125 = vadd.f32 %v4013, %v4893
    %v6126 = vadd.f32 %v4016, %v4897
    %v6127 = vadd.f32 %v4019, %v4901
    %v6128 = vadd.f32 %v4022, %v4905
    %v6129 = vadd.f32 %v4025, %v4909
    %v6130 = vadd.f32 %v4028, %v4913
    %v6131 = vadd.f32 %v4031, %v4917
    %v6132 = vadd.f32 %v4034, %v4921
    %v6133 = vadd.f32 %v4037, %v4925
    %v6134 = vadd.f32 %v4040, %v4929
    %v6135 = vadd.f32 %v4043, %v4933
    %v6136 = vadd.f32 %v4046, %v4937
    %v6137 = vadd.f32 %v4049, %v4941
    %v6138 = vadd.f32 %v4052, %v4945
    %v6139 = vadd.f32 %v4055, %v4949
    %v6140 = vadd.f32 %v4058, %v4953
    %v6141 = vadd.f32 %v4061, %v4957
    %v6142 = vadd.f32 %v4064, %v4961
    %v6143 = vadd.f32 %v4067, %v4965
    %v6144 = vadd.f32 %v4070, %v4969
    %v6145 = vadd.f32 %v4073, %v4973
    %v6146 = vadd.f32 %v4076, %v4977
    %v6147 = vadd.f32 %v4079, %v4981
    %v6148 = vadd.f32 %v4082, %v4985
    %v6149 = vadd.f32 %v4085, %v4989
    %v6150 = vadd.f32 %v4088, %v4993
    %v6151 = vadd.f32 %v4091, %v4997
    %v6152 = vadd.f32 %v4094, %v5001
    %v6153 = vadd.f32 %v4097, %v5005
    %v6154 = vadd.f32 %v4100, %v5009
    %v6155 = vadd.f32 %v4103, %v5013
    %v6156 = vadd.f32 %v4106, %v5017
    %v6157 = vadd.f32 %v4109, %v5021
    %v6158 = vadd.f32 %v4112, %v5025
    %v6159 = vadd.f32 %v4115, %v5029
    %v6160 = vadd.f32 %v4118, %v5033
    %v6161 = vadd.f32 %v4121, %v5037
    %v6162 = vadd.f32 %v4124, %v5041
    %v6163 = vadd.f32 %v4127, %v5045
    %v6164 = vadd.f32 %v4130, %v5049
    %v6165 = vadd.f32 %v4133, %v5053
    %v6166 = vadd.f32 %v4136, %v5057
    %v6167 = vadd.f32 %v4139, %v5061
    %v6168 = vadd.f32 %v4142, %v5065
    %v6169 = vadd.f32 %v4145, %v5069
    %v6170 = vadd.f32 %v4148, %v5073
    %v6171 = vadd.f32 %v4151, %v5077
    %v6172 = vadd.f32 %v4154, %v5081
    %v6173 = vadd.f32 %v4157, %v5085
    %v6174 = vadd.f32 %v4160, %v5089
    %v6175 = vadd.f32 %v4163, %v5093
    %v6176 = vadd.f32 %v4166, %v5097
    %v6177 = vadd.f32 %v4169, %v5101
    %v6178 = vadd.f32 %v4172, %v5105
    %v6179 = vadd.f32 %v4175, %v5109
    %v6180 = vadd.f32 %v4178, %v5113
    %v6181 = vadd.f32 %v4181, %v5117
    %v6182 = vadd.f32 %v4184, %v5121
    %v6183 = vadd.f32 %v4187, %v5125
    %v6184 = vadd.f32 %v4190, %v5129
    %v6185 = vadd.f32 %v4193, %v5133
    %v6186 = vadd.f32 %v4196, %v5137
    %v6187 = vadd.f32 %v4199, %v5141
    %v6188 = vadd.f32 %v4202, %v5145
    %v6189 = vadd.f32 %v4205, %v5149
    %v6190 = vadd.f32 %v4208, %v5153
    %v6191 = vadd.f32 %v4211, %v5157
    %v6192 = vadd.f32 %v4214, %v5161
    %v6193 = vadd.f32 %v4217, %v5165
    %v6194 = vadd.f32 %v4220, %v5169
    %v6195 = vadd.f32 %v4223, %v5173
    %v6196 = vadd.f32 %v4226, %v5177
    %v6197 = vadd.f32 %v4229, %v5181
    %v6198 = vadd.f32 %v4232, %v5185
    %v6199 = vadd.f32 %v4235, %v5189
    %v6200 = vadd.f32 %v4238, %v5193
    %v6201 = vadd.f32 %v4241, %v5197
    %v6202 = vadd.f32 %v4244, %v5201
    %v6203 = vadd.f32 %v4247, %v5205
    %v6204 = vadd.f32 %v4250, %v5209
    %v6205 = vadd.f32 %v4253, %v5213
    %v6206 = vadd.f32 %v4256, %v5217
    %v6207 = vadd.f32 %v4259, %v5221
    %v6208 = vadd.f32 %v4262, %v5225
    %v6209 = vadd.f32 %v4265, %v5229
    %v6210 = vadd.f32 %v4268, %v5233
    %v6211 = vadd.f32 %v4271, %v5237
    %v6212 = vadd.f32 %v4274, %v5241
    %v6213 = vadd.f32 %v4277, %v5245
    %v6214 = vadd.f32 %v4280, %v5249
    %v6215 = vadd.f32 %v4283, %v5253
    %v6216 = vadd.f32 %v4286, %v5257
    %v6217 = vadd.f32 %v4289, %v5261
    %v6218 = vadd.f32 %v4292, %v5265
    %v6219 = vadd.f32 %v4295, %v5269
    %v6220 = vadd.f32 %v4298, %v5273
    %v6221 = vadd.f32 %v4301, %v5277
    %v6222 = vadd.f32 %v4304, %v5281
    %v6223 = vadd.f32 %v4307, %v5285
    %v6224 = vadd.f32 %v4310, %v5289
    %v6225 = vadd.f32 %v4313, %v5293
    %v6226 = vadd.f32 %v4316, %v5297
    %v6227 = vadd.f32 %v4319, %v5301
    %v6228 = vadd.f32 %v4322, %v5305
    %v6229 = vadd.f32 %v4325, %v5309
    %v6230 = vadd.f32 %v4328, %v5313
    %v6231 = vadd.f32 %v4331, %v5317
    %v6232 = vadd.f32 %v4334, %v5321
    %v6233 = vadd.f32 %v4337, %v5325
    %v6234 = vadd.f32 %v4340, %v5329
    %v6235 = vadd.f32 %v4343, %v5333
    %v6236 = vadd.f32 %v4346, %v5337
    %v6237 = vadd.f32 %v4349, %v5341
    %v6238 = vadd.f32 %v4352, %v5345
    %v6239 = vadd.f32 %v4355, %v5349
    %v6240 = vadd.f32 %v4358, %v5353
    %v6241 = vadd.f32 %v4361, %v5357
    %v6242 = vadd.f32 %v4364, %v5361
    %v6243 = vadd.f32 %v4367, %v5365
    %v6244 = vadd.f32 %v4370, %v5369
    %v6245 = vadd.f32 %v4373, %v5373
    %v6246 = vadd.f32 %v4376, %v5377
    %v6247 = vadd.f32 %v4379, %v5381
    %v6248 = vadd.f32 %v4382, %v5385
    %v6249 = vadd.f32 %v4385, %v5389
    %v6250 = vadd.f32 %v4388, %v5393
    %v6251 = vadd.f32 %v4391, %v5397
    %v6252 = vadd.f32 %v4394, %v5401
    %v6253 = vadd.f32 %v4397, %v5405
    %v6254 = vadd.f32 %v4400, %v5409
    %v6255 = vadd.f32 %v4403, %v5413
    %v6256 = vadd.f32 %v4406, %v5417
    %v6257 = vadd.f32 %v4409, %v5421
    %v6258 = vadd.f32 %v4412, %v5425
    %v6259 = vadd.f32 %v4415, %v5429
    %v6260 = vadd.f32 %v4418, %v5433
    %v6261 = vadd.f32 %v4421, %v5437
    %v6262 = vadd.f32 %v4424, %v5441
    %v6263 = vadd.f32 %v4427, %v5445
    %v6264 = vadd.f32 %v4430, %v5449
    %v6265 = vadd.f32 %v4433, %v5453
    %v6266 = vadd.f32 %v4436, %v5457
    %v6267 = vadd.f32 %v4439, %v5461
    %v6268 = vadd.f32 %v4442, %v5465
    %v6269 = vadd.f32 %v4445, %v5469
    %v6270 = vadd.f32 %v4448, %v5473
    %v6271 = vadd.f32 %v4451, %v5477
    %v6272 = vadd.f32 %v4454, %v5481
    %v6273 = vadd.f32 %v4457, %v5485
    %v6274 = vadd.f32 %v4460, %v5489
    %v6275 = vadd.f32 %v4463, %v5493
    %v6276 = vadd.f32 %v4466, %v5497
    %v6277 = vadd.f32 %v4469, %v5501
    %v6278 = vadd.f32 %v4472, %v5505
    %v6279 = vadd.f32 %v4475, %v5509
    %v6280 = vadd.f32 %v4478, %v5513
    %v6281 = vadd.f32 %v4481, %v5517
    %v6282 = vadd.f32 %v4484, %v5521
    %v6283 = vadd.f32 %v4487, %v5525
    %v6284 = vadd.f32 %v4490, %v5529
    %v6285 = vadd.f32 %v4493, %v5533
    %v6286 = vadd.f32 %v4496, %v5537
    %v6287 = vadd.f32 %v4499, %v5541
    %v6288 = vadd.f32 %v4502, %v5545
    %v6289 = vadd.f32 %v4505, %v5549
    %v6290 = vadd.f32 %v4508, %v5553
    %v6291 = vadd.f32 %v4511, %v5557
    %v6292 = vadd.f32 %v4514, %v5561
    %v6293 = vadd.f32 %v4517, %v5565
    %v6294 = vadd.f32 %v4520, %v5569
    %v6295 = vadd.f32 %v4523, %v5573
    %v6296 = vadd.f32 %v4526, %v5577
    %v6297 = vadd.f32 %v4529, %v5581
    %v6298 = vadd.f32 %v4532, %v5585
    %v6299 = vadd.f32 %v4535, %v5589
    %v6300 = vadd.f32 %v4538, %v5593
    %v6301 = vadd.f32 %v4541, %v5597
    %v6302 = vadd.f32 %v4544, %v5601
    %v6303 = vadd.f32 %v4547, %v5605
    %v6304 = vadd.f32 %v4550, %v5609
    %v6305 = vadd.f32 %v4553, %v5613
    %v6306 = vadd.f32 %v4556, %v5617
    %v6307 = vadd.f32 %v4559, %v5621
    %v6308 = vadd.f32 %v4562, %v5625
    %v6309 = vadd.f32 %v4565, %v5629
    %v6310 = vadd.f32 %v4568, %v5633
    %v6311 = vadd.f32 %v4571, %v5637
    %v6312 = vadd.f32 %v4574, %v5641
    %v6313 = vadd.f32 %v4577, %v5645
    %v6314 = vadd.f32 %v4580, %v5649
    %v6315 = vadd.f32 %v4583, %v5653
    %v6316 = vadd.f32 %v4586, %v5657
    %v6317 = vadd.f32 %v4589, %v5661
    %v6318 = vadd.f32 %v4592, %v5665
    %v6319 = vadd.f32 %v4595, %v5669
    %v6320 = vadd.f32 %v4598, %v5673
    %v6321 = vadd.f32 %v4601, %v5677
    %v6322 = vadd.f32 %v4604, %v5681
    %v6323 = vadd.f32 %v4607, %v5685
    %v6324 = vadd.f32 %v4610, %v5689
    %v6325 = vadd.f32 %v4613, %v5693
    %v6326 = vadd.f32 %v4616, %v5697
    %v6327 = vadd.f32 %v4619, %v5701
    %v6328 = vadd.f32 %v4622, %v5705
    %v6329 = vadd.f32 %v4625, %v5709
    %v6330 = vadd.f32 %v4628, %v5713
    %v6331 = vadd.f32 %v4631, %v5717
    %v6332 = vadd.f32 %v4634, %v5721
    %v6333 = vadd.f32 %v4637, %v5725
    %v6334 = vadd.f32 %v4640, %v5729
    %v6335 = vadd.f32 %v4643, %v5733
    %v6336 = vadd.f32 %v4646, %v5737
    %v6337 = vadd.f32 %v4649, %v5741
    %v6338 = vadd.f32 %v4652, %v5745
    %v6339 = vadd.f32 %v4655, %v5749
    %v6340 = vadd.f32 %v4658, %v5753
    %v6341 = vadd.f32 %v4661, %v5757
    %v6342 = vadd.f32 %v4664, %v5761
    %v6343 = vadd.f32 %v4667, %v5765
    %v6344 = vadd.f32 %v4670, %v5769
    %v6345 = vadd.f32 %v4673, %v5773
    %v6346 = vadd.f32 %v4676, %v5777
    %v6347 = vadd.f32 %v4679, %v5781
    %v6348 = vadd.f32 %v4682, %v5785
    %v6349 = vadd.f32 %v4685, %v5789
    %v6350 = vadd.f32 %v4688, %v5793
    %v6351 = vadd.f32 %v4691, %v5797
    %v6352 = vadd.f32 %v4694, %v5801
    %v6353 = vadd.f32 %v4697, %v5805
    %v6354 = vadd.f32 %v4700, %v5809
    %v6355 = vadd.f32 %v4703, %v5813
    %v6356 = vadd.f32 %v4706, %v5817
    %v6357 = vadd.f32 %v4709, %v5821
    %v6358 = vadd.f32 %v4712, %v5825
    %v6359 = vadd.f32 %v4715, %v5829
    %v6360 = vadd.f32 %v4718, %v5833
    %v6361 = vadd.f32 %v4721, %v5837
    %v6362 = vadd.f32 %v4724, %v5841
    %v6363 = vadd.f32 %v4727, %v5845
    %v6364 = vadd.f32 %v4730, %v5849
    %v6365 = vadd.f32 %v4733, %v5853
    %v6366 = vsub.f32 0.0, %v6110
    %v6367 = vsub.f32 0.0, %v6111
    %v6368 = vsub.f32 0.0, %v6112
    %v6369 = vsub.f32 0.0, %v6113
    %v6370 = vsub.f32 0.0, %v6114
    %v6371 = vsub.f32 0.0, %v6115
    %v6372 = vsub.f32 0.0, %v6116
    %v6373 = vsub.f32 0.0, %v6117
    %v6374 = vsub.f32 0.0, %v6118
    %v6375 = vsub.f32 0.0, %v6119
    %v6376 = vsub.f32 0.0, %v6120
    %v6377 = vsub.f32 0.0, %v6121
    %v6378 = vsub.f32 0.0, %v6122
    %v6379 = vsub.f32 0.0, %v6123
    %v6380 = vsub.f32 0.0, %v6124
    %v6381 = vsub.f32 0.0, %v6125
    %v6382 = vsub.f32 0.0, %v6126
    %v6383 = vsub.f32 0.0, %v6127
    %v6384 = vsub.f32 0.0, %v6128
    %v6385 = vsub.f32 0.0, %v6129
    %v6386 = vsub.f32 0.0, %v6130
    %v6387 = vsub.f32 0.0, %v6131
    %v6388 = vsub.f32 0.0, %v6132
    %v6389 = vsub.f32 0.0, %v6133
    %v6390 = vsub.f32 0.0, %v6134
    %v6391 = vsub.f32 0.0, %v6135
    %v6392 = vsub.f32 0.0, %v6136
    %v6393 = vsub.f32 0.0, %v6137
    %v6394 = vsub.f32 0.0, %v6138
    %v6395 = vsub.f32 0.0, %v6139
    %v6396 = vsub.f32 0.0, %v6140
    %v6397 = vsub.f32 0.0, %v6141
    %v6398 = vsub.f32 0.0, %v6142
    %v6399 = vsub.f32 0.0, %v6143
    %v6400 = vsub.f32 0.0, %v6144
    %v6401 = vsub.f32 0.0, %v6145
    %v6402 = vsub.f32 0.0, %v6146
    %v6403 = vsub.f32 0.0, %v6147
    %v6404 = vsub.f32 0.0, %v6148
    %v6405 = vsub.f32 0.0, %v6149
    %v6406 = vsub.f32 0.0, %v6150
    %v6407 = vsub.f32 0.0, %v6151
    %v6408 = vsub.f32 0.0, %v6152
    %v6409 = vsub.f32 0.0, %v6153
    %v6410 = vsub.f32 0.0, %v6154
    %v6411 = vsub.f32 0.0, %v6155
    %v6412 = vsub.f32 0.0, %v6156
    %v6413 = vsub.f32 0.0, %v6157
    %v6414 = vsub.f32 0.0, %v6158
    %v6415 = vsub.f32 0.0, %v6159
    %v6416 = vsub.f32 0.0, %v6160
    %v6417 = vsub.f32 0.0, %v6161
    %v6418 = vsub.f32 0.0, %v6162
    %v6419 = vsub.f32 0.0, %v6163
    %v6420 = vsub.f32 0.0, %v6164
    %v6421 = vsub.f32 0.0, %v6165
    %v6422 = vsub.f32 0.0, %v6166
    %v6423 = vsub.f32 0.0, %v6167
    %v6424 = vsub.f32 0.0, %v6168
    %v6425 = vsub.f32 0.0, %v6169
    %v6426 = vsub.f32 0.0, %v6170
    %v6427 = vsub.f32 0.0, %v6171
    %v6428 = vsub.f32 0.0, %v6172
    %v6429 = vsub.f32 0.0, %v6173
    %v6430 = vsub.f32 0.0, %v6174
    %v6431 = vsub.f32 0.0, %v6175
    %v6432 = vsub.f32 0.0, %v6176
    %v6433 = vsub.f32 0.0, %v6177
    %v6434 = vsub.f32 0.0, %v6178
    %v6435 = vsub.f32 0.0, %v6179
    %v6436 = vsub.f32 0.0, %v6180
    %v6437 = vsub.f32 0.0, %v6181
    %v6438 = vsub.f32 0.0, %v6182
    %v6439 = vsub.f32 0.0, %v6183
    %v6440 = vsub.f32 0.0, %v6184
    %v6441 = vsub.f32 0.0, %v6185
    %v6442 = vsub.f32 0.0, %v6186
    %v6443 = vsub.f32 0.0, %v6187
    %v6444 = vsub.f32 0.0, %v6188
    %v6445 = vsub.f32 0.0, %v6189
    %v6446 = vsub.f32 0.0, %v6190
    %v6447 = vsub.f32 0.0, %v6191
    %v6448 = vsub.f32 0.0, %v6192
    %v6449 = vsub.f32 0.0, %v6193
    %v6450 = vsub.f32 0.0, %v6194
    %v6451 = vsub.f32 0.0, %v6195
    %v6452 = vsub.f32 0.0, %v6196
    %v6453 = vsub.f32 0.0, %v6197
    %v6454 = vsub.f32 0.0, %v6198
    %v6455 = vsub.f32 0.0, %v6199
    %v6456 = vsub.f32 0.0, %v6200
    %v6457 = vsub.f32 0.0, %v6201
    %v6458 = vsub.f32 0.0, %v6202
    %v6459 = vsub.f32 0.0, %v6203
    %v6460 = vsub.f32 0.0, %v6204
    %v6461 = vsub.f32 0.0, %v6205
    %v6462 = vsub.f32 0.0, %v6206
    %v6463 = vsub.f32 0.0, %v6207
    %v6464 = vsub.f32 0.0, %v6208
    %v6465 = vsub.f32 0.0, %v6209
    %v6466 = vsub.f32 0.0, %v6210
    %v6467 = vsub.f32 0.0, %v6211
    %v6468 = vsub.f32 0.0, %v6212
    %v6469 = vsub.f32 0.0, %v6213
    %v6470 = vsub.f32 0.0, %v6214
    %v6471 = vsub.f32 0.0, %v6215
    %v6472 = vsub.f32 0.0, %v6216
    %v6473 = vsub.f32 0.0, %v6217
    %v6474 = vsub.f32 0.0, %v6218
    %v6475 = vsub.f32 0.0, %v6219
    %v6476 = vsub.f32 0.0, %v6220
    %v6477 = vsub.f32 0.0, %v6221
    %v6478 = vsub.f32 0.0, %v6222
    %v6479 = vsub.f32 0.0, %v6223
    %v6480 = vsub.f32 0.0, %v6224
    %v6481 = vsub.f32 0.0, %v6225
    %v6482 = vsub.f32 0.0, %v6226
    %v6483 = vsub.f32 0.0, %v6227
    %v6484 = vsub.f32 0.0, %v6228
    %v6485 = vsub.f32 0.0, %v6229
    %v6486 = vsub.f32 0.0, %v6230
    %v6487 = vsub.f32 0.0, %v6231
    %v6488 = vsub.f32 0.0, %v6232
    %v6489 = vsub.f32 0.0, %v6233
    %v6490 = vsub.f32 0.0, %v6234
    %v6491 = vsub.f32 0.0, %v6235
    %v6492 = vsub.f32 0.0, %v6236
    %v6493 = vsub.f32 0.0, %v6237
    %v6494 = vsub.f32 0.0, %v6238
    %v6495 = vsub.f32 0.0, %v6239
    %v6496 = vsub.f32 0.0, %v6240
    %v6497 = vsub.f32 0.0, %v6241
    %v6498 = vsub.f32 0.0, %v6242
    %v6499 = vsub.f32 0.0, %v6243
    %v6500 = vsub.f32 0.0, %v6244
    %v6501 = vsub.f32 0.0, %v6245
    %v6502 = vsub.f32 0.0, %v6246
    %v6503 = vsub.f32 0.0, %v6247
    %v6504 = vsub.f32 0.0, %v6248
    %v6505 = vsub.f32 0.0, %v6249
    %v6506 = vsub.f32 0.0, %v6250
    %v6507 = vsub.f32 0.0, %v6251
    %v6508 = vsub.f32 0.0, %v6252
    %v6509 = vsub.f32 0.0, %v6253
    %v6510 = vsub.f32 0.0, %v6254
    %v6511 = vsub.f32 0.0, %v6255
    %v6512 = vsub.f32 0.0, %v6256
    %v6513 = vsub.f32 0.0, %v6257
    %v6514 = vsub.f32 0.0, %v6258
    %v6515 = vsub.f32 0.0, %v6259
    %v6516 = vsub.f32 0.0, %v6260
    %v6517 = vsub.f32 0.0, %v6261
    %v6518 = vsub.f32 0.0, %v6262
    %v6519 = vsub.f32 0.0, %v6263
    %v6520 = vsub.f32 0.0, %v6264
    %v6521 = vsub.f32 0.0, %v6265
    %v6522 = vsub.f32 0.0, %v6266
    %v6523 = vsub.f32 0.0, %v6267
    %v6524 = vsub.f32 0.0, %v6268
    %v6525 = vsub.f32 0.0, %v6269
    %v6526 = vsub.f32 0.0, %v6270
    %v6527 = vsub.f32 0.0, %v6271
    %v6528 = vsub.f32 0.0, %v6272
    %v6529 = vsub.f32 0.0, %v6273
    %v6530 = vsub.f32 0.0, %v6274
    %v6531 = vsub.f32 0.0, %v6275
    %v6532 = vsub.f32 0.0, %v6276
    %v6533 = vsub.f32 0.0, %v6277
    %v6534 = vsub.f32 0.0, %v6278
    %v6535 = vsub.f32 0.0, %v6279
    %v6536 = vsub.f32 0.0, %v6280
    %v6537 = vsub.f32 0.0, %v6281
    %v6538 = vsub.f32 0.0, %v6282
    %v6539 = vsub.f32 0.0, %v6283
    %v6540 = vsub.f32 0.0, %v6284
    %v6541 = vsub.f32 0.0, %v6285
    %v6542 = vsub.f32 0.0, %v6286
    %v6543 = vsub.f32 0.0, %v6287
    %v6544 = vsub.f32 0.0, %v6288
    %v6545 = vsub.f32 0.0, %v6289
    %v6546 = vsub.f32 0.0, %v6290
    %v6547 = vsub.f32 0.0, %v6291
    %v6548 = vsub.f32 0.0, %v6292
    %v6549 = vsub.f32 0.0, %v6293
    %v6550 = vsub.f32 0.0, %v6294
    %v6551 = vsub.f32 0.0, %v6295
    %v6552 = vsub.f32 0.0, %v6296
    %v6553 = vsub.f32 0.0, %v6297
    %v6554 = vsub.f32 0.0, %v6298
    %v6555 = vsub.f32 0.0, %v6299
    %v6556 = vsub.f32 0.0, %v6300
    %v6557 = vsub.f32 0.0, %v6301
    %v6558 = vsub.f32 0.0, %v6302
    %v6559 = vsub.f32 0.0, %v6303
    %v6560 = vsub.f32 0.0, %v6304
    %v6561 = vsub.f32 0.0, %v6305
    %v6562 = vsub.f32 0.0, %v6306
    %v6563 = vsub.f32 0.0, %v6307
    %v6564 = vsub.f32 0.0, %v6308
    %v6565 = vsub.f32 0.0, %v6309
    %v6566 = vsub.f32 0.0, %v6310
    %v6567 = vsub.f32 0.0, %v6311
    %v6568 = vsub.f32 0.0, %v6312
    %v6569 = vsub.f32 0.0, %v6313
    %v6570 = vsub.f32 0.0, %v6314
    %v6571 = vsub.f32 0.0, %v6315
    %v6572 = vsub.f32 0.0, %v6316
    %v6573 = vsub.f32 0.0, %v6317
    %v6574 = vsub.f32 0.0, %v6318
    %v6575 = vsub.f32 0.0, %v6319
    %v6576 = vsub.f32 0.0, %v6320
    %v6577 = vsub.f32 0.0, %v6321
    %v6578 = vsub.f32 0.0, %v6322
    %v6579 = vsub.f32 0.0, %v6323
    %v6580 = vsub.f32 0.0, %v6324
    %v6581 = vsub.f32 0.0, %v6325
    %v6582 = vsub.f32 0.0, %v6326
    %v6583 = vsub.f32 0.0, %v6327
    %v6584 = vsub.f32 0.0, %v6328
    %v6585 = vsub.f32 0.0, %v6329
    %v6586 = vsub.f32 0.0, %v6330
    %v6587 = vsub.f32 0.0, %v6331
    %v6588 = vsub.f32 0.0, %v6332
    %v6589 = vsub.f32 0.0, %v6333
    %v6590 = vsub.f32 0.0, %v6334
    %v6591 = vsub.f32 0.0, %v6335
    %v6592 = vsub.f32 0.0, %v6336
    %v6593 = vsub.f32 0.0, %v6337
    %v6594 = vsub.f32 0.0, %v6338
    %v6595 = vsub.f32 0.0, %v6339
    %v6596 = vsub.f32 0.0, %v6340
    %v6597 = vsub.f32 0.0, %v6341
    %v6598 = vsub.f32 0.0, %v6342
    %v6599 = vsub.f32 0.0, %v6343
    %v6600 = vsub.f32 0.0, %v6344
    %v6601 = vsub.f32 0.0, %v6345
    %v6602 = vsub.f32 0.0, %v6346
    %v6603 = vsub.f32 0.0, %v6347
    %v6604 = vsub.f32 0.0, %v6348
    %v6605 = vsub.f32 0.0, %v6349
    %v6606 = vsub.f32 0.0, %v6350
    %v6607 = vsub.f32 0.0, %v6351
    %v6608 = vsub.f32 0.0, %v6352
    %v6609 = vsub.f32 0.0, %v6353
    %v6610 = vsub.f32 0.0, %v6354
    %v6611 = vsub.f32 0.0, %v6355
    %v6612 = vsub.f32 0.0, %v6356
    %v6613 = vsub.f32 0.0, %v6357
    %v6614 = vsub.f32 0.0, %v6358
    %v6615 = vsub.f32 0.0, %v6359
    %v6616 = vsub.f32 0.0, %v6360
    %v6617 = vsub.f32 0.0, %v6361
    %v6618 = vsub.f32 0.0, %v6362
    %v6619 = vsub.f32 0.0, %v6363
    %v6620 = vsub.f32 0.0, %v6364
    %v6621 = vsub.f32 0.0, %v6365
    %6654 = vrot.lane.b32.xlu0 %v797, 64
    %v6655 = vpop.permute.xlu0 %6654
    %6656 = vrot.lane.b32.xlu0 %v798, 64
    %v6657 = vpop.permute.xlu0 %6656
    %6658 = vrot.lane.b32.xlu0 %v799, 64
    %v6659 = vpop.permute.xlu0 %6658
    %6660 = vrot.lane.b32.xlu0 %v800, 64
    %v6661 = vpop.permute.xlu0 %6660
    %6662 = vrot.lane.b32.xlu0 %v801, 64
    %v6663 = vpop.permute.xlu0 %6662
    %6664 = vrot.lane.b32.xlu0 %v802, 64
    %v6665 = vpop.permute.xlu0 %6664
    %6666 = vrot.lane.b32.xlu0 %v803, 64
    %v6667 = vpop.permute.xlu0 %6666
    %6668 = vrot.lane.b32.xlu0 %v804, 64
    %v6669 = vpop.permute.xlu0 %6668
    %6670 = vrot.lane.b32.xlu0 %v805, 64
    %v6671 = vpop.permute.xlu0 %6670
    %6672 = vrot.lane.b32.xlu0 %v806, 64
    %v6673 = vpop.permute.xlu0 %6672
    %6674 = vrot.lane.b32.xlu0 %v807, 64
    %v6675 = vpop.permute.xlu0 %6674
    %6676 = vrot.lane.b32.xlu0 %v808, 64
    %v6677 = vpop.permute.xlu0 %6676
    %6678 = vrot.lane.b32.xlu0 %v809, 64
    %v6679 = vpop.permute.xlu0 %6678
    %6680 = vrot.lane.b32.xlu0 %v810, 64
    %v6681 = vpop.permute.xlu0 %6680
    %6682 = vrot.lane.b32.xlu0 %v811, 64
    %v6683 = vpop.permute.xlu0 %6682
    %6684 = vrot.lane.b32.xlu0 %v812, 64
    %v6685 = vpop.permute.xlu0 %6684
    %6686 = vrot.lane.b32.xlu0 %v813, 64
    %v6687 = vpop.permute.xlu0 %6686
    %6688 = vrot.lane.b32.xlu0 %v814, 64
    %v6689 = vpop.permute.xlu0 %6688
    %6690 = vrot.lane.b32.xlu0 %v815, 64
    %v6691 = vpop.permute.xlu0 %6690
    %6692 = vrot.lane.b32.xlu0 %v816, 64
    %v6693 = vpop.permute.xlu0 %6692
    %6694 = vrot.lane.b32.xlu0 %v817, 64
    %v6695 = vpop.permute.xlu0 %6694
    %6696 = vrot.lane.b32.xlu0 %v818, 64
    %v6697 = vpop.permute.xlu0 %6696
    %6698 = vrot.lane.b32.xlu0 %v819, 64
    %v6699 = vpop.permute.xlu0 %6698
    %6700 = vrot.lane.b32.xlu0 %v820, 64
    %v6701 = vpop.permute.xlu0 %6700
    %6702 = vrot.lane.b32.xlu0 %v821, 64
    %v6703 = vpop.permute.xlu0 %6702
    %6704 = vrot.lane.b32.xlu0 %v822, 64
    %v6705 = vpop.permute.xlu0 %6704
    %6706 = vrot.lane.b32.xlu0 %v823, 64
    %v6707 = vpop.permute.xlu0 %6706
    %6708 = vrot.lane.b32.xlu0 %v824, 64
    %v6709 = vpop.permute.xlu0 %6708
    %6710 = vrot.lane.b32.xlu0 %v825, 64
    %v6711 = vpop.permute.xlu0 %6710
    %6712 = vrot.lane.b32.xlu0 %v826, 64
    %v6713 = vpop.permute.xlu0 %6712
    %6714 = vrot.lane.b32.xlu0 %v827, 64
    %v6715 = vpop.permute.xlu0 %6714
    %6716 = vrot.lane.b32.xlu0 %v828, 64
    %v6717 = vpop.permute.xlu0 %6716
    %7006 = vset.pattern.permute.xlu0 0
    %7007 = vperm.xlu0 %7006, %v6366
    %v7008 = vpop.permute.xlu0 %7007
    %7009 = vset.pattern.permute.xlu0 0
    %7010 = vperm.xlu0 %7009, %v6367
    %v7011 = vpop.permute.xlu0 %7010
    %7012 = vset.pattern.permute.xlu0 0
    %7013 = vperm.xlu0 %7012, %v6368
    %v7014 = vpop.permute.xlu0 %7013
    %7015 = vset.pattern.permute.xlu0 0
    %7016 = vperm.xlu0 %7015, %v6369
    %v7017 = vpop.permute.xlu0 %7016
    %7018 = vset.pattern.permute.xlu0 0
    %7019 = vperm.xlu0 %7018, %v6370
    %v7020 = vpop.permute.xlu0 %7019
    %7021 = vset.pattern.permute.xlu0 0
    %7022 = vperm.xlu0 %7021, %v6371
    %v7023 = vpop.permute.xlu0 %7022
    %7024 = vset.pattern.permute.xlu0 0
    %7025 = vperm.xlu0 %7024, %v6372
    %v7026 = vpop.permute.xlu0 %7025
    %7027 = vset.pattern.permute.xlu0 0
    %7028 = vperm.xlu0 %7027, %v6373
    %v7029 = vpop.permute.xlu0 %7028
    %7030 = vset.pattern.permute.xlu0 0
    %7031 = vperm.xlu0 %7030, %v6374
    %v7032 = vpop.permute.xlu0 %7031
    %7033 = vset.pattern.permute.xlu0 0
    %7034 = vperm.xlu0 %7033, %v6375
    %v7035 = vpop.permute.xlu0 %7034
    %7036 = vset.pattern.permute.xlu0 0
    %7037 = vperm.xlu0 %7036, %v6376
    %v7038 = vpop.permute.xlu0 %7037
    %7039 = vset.pattern.permute.xlu0 0
    %7040 = vperm.xlu0 %7039, %v6377
    %v7041 = vpop.permute.xlu0 %7040
    %7042 = vset.pattern.permute.xlu0 0
    %7043 = vperm.xlu0 %7042, %v6378
    %v7044 = vpop.permute.xlu0 %7043
    %7045 = vset.pattern.permute.xlu0 0
    %7046 = vperm.xlu0 %7045, %v6379
    %v7047 = vpop.permute.xlu0 %7046
    %7048 = vset.pattern.permute.xlu0 0
    %7049 = vperm.xlu0 %7048, %v6380
    %v7050 = vpop.permute.xlu0 %7049
    %7051 = vset.pattern.permute.xlu0 0
    %7052 = vperm.xlu0 %7051, %v6381
    %v7053 = vpop.permute.xlu0 %7052
    %7054 = vset.pattern.permute.xlu0 0
    %7055 = vperm.xlu0 %7054, %v6382
    %v7056 = vpop.permute.xlu0 %7055
    %7057 = vset.pattern.permute.xlu0 0
    %7058 = vperm.xlu0 %7057, %v6383
    %v7059 = vpop.permute.xlu0 %7058
    %7060 = vset.pattern.permute.xlu0 0
    %7061 = vperm.xlu0 %7060, %v6384
    %v7062 = vpop.permute.xlu0 %7061
    %7063 = vset.pattern.permute.xlu0 0
    %7064 = vperm.xlu0 %7063, %v6385
    %v7065 = vpop.permute.xlu0 %7064
    %7066 = vset.pattern.permute.xlu0 0
    %7067 = vperm.xlu0 %7066, %v6386
    %v7068 = vpop.permute.xlu0 %7067
    %7069 = vset.pattern.permute.xlu0 0
    %7070 = vperm.xlu0 %7069, %v6387
    %v7071 = vpop.permute.xlu0 %7070
    %7072 = vset.pattern.permute.xlu0 0
    %7073 = vperm.xlu0 %7072, %v6388
    %v7074 = vpop.permute.xlu0 %7073
    %7075 = vset.pattern.permute.xlu0 0
    %7076 = vperm.xlu0 %7075, %v6389
    %v7077 = vpop.permute.xlu0 %7076
    %7078 = vset.pattern.permute.xlu0 0
    %7079 = vperm.xlu0 %7078, %v6390
    %v7080 = vpop.permute.xlu0 %7079
    %7081 = vset.pattern.permute.xlu0 0
    %7082 = vperm.xlu0 %7081, %v6391
    %v7083 = vpop.permute.xlu0 %7082
    %7084 = vset.pattern.permute.xlu0 0
    %7085 = vperm.xlu0 %7084, %v6392
    %v7086 = vpop.permute.xlu0 %7085
    %7087 = vset.pattern.permute.xlu0 0
    %7088 = vperm.xlu0 %7087, %v6393
    %v7089 = vpop.permute.xlu0 %7088
    %7090 = vset.pattern.permute.xlu0 0
    %7091 = vperm.xlu0 %7090, %v6394
    %v7092 = vpop.permute.xlu0 %7091
    %7093 = vset.pattern.permute.xlu0 0
    %7094 = vperm.xlu0 %7093, %v6395
    %v7095 = vpop.permute.xlu0 %7094
    %7096 = vset.pattern.permute.xlu0 0
    %7097 = vperm.xlu0 %7096, %v6396
    %v7098 = vpop.permute.xlu0 %7097
    %7099 = vset.pattern.permute.xlu0 0
    %7100 = vperm.xlu0 %7099, %v6397
    %v7101 = vpop.permute.xlu0 %7100
    %7102 = vset.pattern.permute.xlu0 0
    %7103 = vperm.xlu0 %7102, %v6398
    %v7104 = vpop.permute.xlu0 %7103
    %7105 = vset.pattern.permute.xlu0 0
    %7106 = vperm.xlu0 %7105, %v6399
    %v7107 = vpop.permute.xlu0 %7106
    %7108 = vset.pattern.permute.xlu0 0
    %7109 = vperm.xlu0 %7108, %v6400
    %v7110 = vpop.permute.xlu0 %7109
    %7111 = vset.pattern.permute.xlu0 0
    %7112 = vperm.xlu0 %7111, %v6401
    %v7113 = vpop.permute.xlu0 %7112
    %7114 = vset.pattern.permute.xlu0 0
    %7115 = vperm.xlu0 %7114, %v6402
    %v7116 = vpop.permute.xlu0 %7115
    %7117 = vset.pattern.permute.xlu0 0
    %7118 = vperm.xlu0 %7117, %v6403
    %v7119 = vpop.permute.xlu0 %7118
    %7120 = vset.pattern.permute.xlu0 0
    %7121 = vperm.xlu0 %7120, %v6404
    %v7122 = vpop.permute.xlu0 %7121
    %7123 = vset.pattern.permute.xlu0 0
    %7124 = vperm.xlu0 %7123, %v6405
    %v7125 = vpop.permute.xlu0 %7124
    %7126 = vset.pattern.permute.xlu0 0
    %7127 = vperm.xlu0 %7126, %v6406
    %v7128 = vpop.permute.xlu0 %7127
    %7129 = vset.pattern.permute.xlu0 0
    %7130 = vperm.xlu0 %7129, %v6407
    %v7131 = vpop.permute.xlu0 %7130
    %7132 = vset.pattern.permute.xlu0 0
    %7133 = vperm.xlu0 %7132, %v6408
    %v7134 = vpop.permute.xlu0 %7133
    %7135 = vset.pattern.permute.xlu0 0
    %7136 = vperm.xlu0 %7135, %v6409
    %v7137 = vpop.permute.xlu0 %7136
    %7138 = vset.pattern.permute.xlu0 0
    %7139 = vperm.xlu0 %7138, %v6410
    %v7140 = vpop.permute.xlu0 %7139
    %7141 = vset.pattern.permute.xlu0 0
    %7142 = vperm.xlu0 %7141, %v6411
    %v7143 = vpop.permute.xlu0 %7142
    %7144 = vset.pattern.permute.xlu0 0
    %7145 = vperm.xlu0 %7144, %v6412
    %v7146 = vpop.permute.xlu0 %7145
    %7147 = vset.pattern.permute.xlu0 0
    %7148 = vperm.xlu0 %7147, %v6413
    %v7149 = vpop.permute.xlu0 %7148
    %7150 = vset.pattern.permute.xlu0 0
    %7151 = vperm.xlu0 %7150, %v6414
    %v7152 = vpop.permute.xlu0 %7151
    %7153 = vset.pattern.permute.xlu0 0
    %7154 = vperm.xlu0 %7153, %v6415
    %v7155 = vpop.permute.xlu0 %7154
    %7156 = vset.pattern.permute.xlu0 0
    %7157 = vperm.xlu0 %7156, %v6416
    %v7158 = vpop.permute.xlu0 %7157
    %7159 = vset.pattern.permute.xlu0 0
    %7160 = vperm.xlu0 %7159, %v6417
    %v7161 = vpop.permute.xlu0 %7160
    %7162 = vset.pattern.permute.xlu0 0
    %7163 = vperm.xlu0 %7162, %v6418
    %v7164 = vpop.permute.xlu0 %7163
    %7165 = vset.pattern.permute.xlu0 0
    %7166 = vperm.xlu0 %7165, %v6419
    %v7167 = vpop.permute.xlu0 %7166
    %7168 = vset.pattern.permute.xlu0 0
    %7169 = vperm.xlu0 %7168, %v6420
    %v7170 = vpop.permute.xlu0 %7169
    %7171 = vset.pattern.permute.xlu0 0
    %7172 = vperm.xlu0 %7171, %v6421
    %v7173 = vpop.permute.xlu0 %7172
    %7174 = vset.pattern.permute.xlu0 0
    %7175 = vperm.xlu0 %7174, %v6422
    %v7176 = vpop.permute.xlu0 %7175
    %7177 = vset.pattern.permute.xlu0 0
    %7178 = vperm.xlu0 %7177, %v6423
    %v7179 = vpop.permute.xlu0 %7178
    %7180 = vset.pattern.permute.xlu0 0
    %7181 = vperm.xlu0 %7180, %v6424
    %v7182 = vpop.permute.xlu0 %7181
    %7183 = vset.pattern.permute.xlu0 0
    %7184 = vperm.xlu0 %7183, %v6425
    %v7185 = vpop.permute.xlu0 %7184
    %7186 = vset.pattern.permute.xlu0 0
    %7187 = vperm.xlu0 %7186, %v6426
    %v7188 = vpop.permute.xlu0 %7187
    %7189 = vset.pattern.permute.xlu0 0
    %7190 = vperm.xlu0 %7189, %v6427
    %v7191 = vpop.permute.xlu0 %7190
    %7192 = vset.pattern.permute.xlu0 0
    %7193 = vperm.xlu0 %7192, %v6428
    %v7194 = vpop.permute.xlu0 %7193
    %7195 = vset.pattern.permute.xlu0 0
    %7196 = vperm.xlu0 %7195, %v6429
    %v7197 = vpop.permute.xlu0 %7196
    %7198 = vset.pattern.permute.xlu0 0
    %7199 = vperm.xlu0 %7198, %v6430
    %v7200 = vpop.permute.xlu0 %7199
    %7201 = vset.pattern.permute.xlu0 0
    %7202 = vperm.xlu0 %7201, %v6431
    %v7203 = vpop.permute.xlu0 %7202
    %7204 = vset.pattern.permute.xlu0 0
    %7205 = vperm.xlu0 %7204, %v6432
    %v7206 = vpop.permute.xlu0 %7205
    %7207 = vset.pattern.permute.xlu0 0
    %7208 = vperm.xlu0 %7207, %v6433
    %v7209 = vpop.permute.xlu0 %7208
    %7210 = vset.pattern.permute.xlu0 0
    %7211 = vperm.xlu0 %7210, %v6434
    %v7212 = vpop.permute.xlu0 %7211
    %7213 = vset.pattern.permute.xlu0 0
    %7214 = vperm.xlu0 %7213, %v6435
    %v7215 = vpop.permute.xlu0 %7214
    %7216 = vset.pattern.permute.xlu0 0
    %7217 = vperm.xlu0 %7216, %v6436
    %v7218 = vpop.permute.xlu0 %7217
    %7219 = vset.pattern.permute.xlu0 0
    %7220 = vperm.xlu0 %7219, %v6437
    %v7221 = vpop.permute.xlu0 %7220
    %7222 = vset.pattern.permute.xlu0 0
    %7223 = vperm.xlu0 %7222, %v6438
    %v7224 = vpop.permute.xlu0 %7223
    %7225 = vset.pattern.permute.xlu0 0
    %7226 = vperm.xlu0 %7225, %v6439
    %v7227 = vpop.permute.xlu0 %7226
    %7228 = vset.pattern.permute.xlu0 0
    %7229 = vperm.xlu0 %7228, %v6440
    %v7230 = vpop.permute.xlu0 %7229
    %7231 = vset.pattern.permute.xlu0 0
    %7232 = vperm.xlu0 %7231, %v6441
    %v7233 = vpop.permute.xlu0 %7232
    %7234 = vset.pattern.permute.xlu0 0
    %7235 = vperm.xlu0 %7234, %v6442
    %v7236 = vpop.permute.xlu0 %7235
    %7237 = vset.pattern.permute.xlu0 0
    %7238 = vperm.xlu0 %7237, %v6443
    %v7239 = vpop.permute.xlu0 %7238
    %7240 = vset.pattern.permute.xlu0 0
    %7241 = vperm.xlu0 %7240, %v6444
    %v7242 = vpop.permute.xlu0 %7241
    %7243 = vset.pattern.permute.xlu0 0
    %7244 = vperm.xlu0 %7243, %v6445
    %v7245 = vpop.permute.xlu0 %7244
    %7246 = vset.pattern.permute.xlu0 0
    %7247 = vperm.xlu0 %7246, %v6446
    %v7248 = vpop.permute.xlu0 %7247
    %7249 = vset.pattern.permute.xlu0 0
    %7250 = vperm.xlu0 %7249, %v6447
    %v7251 = vpop.permute.xlu0 %7250
    %7252 = vset.pattern.permute.xlu0 0
    %7253 = vperm.xlu0 %7252, %v6448
    %v7254 = vpop.permute.xlu0 %7253
    %7255 = vset.pattern.permute.xlu0 0
    %7256 = vperm.xlu0 %7255, %v6449
    %v7257 = vpop.permute.xlu0 %7256
    %7258 = vset.pattern.permute.xlu0 0
    %7259 = vperm.xlu0 %7258, %v6450
    %v7260 = vpop.permute.xlu0 %7259
    %7261 = vset.pattern.permute.xlu0 0
    %7262 = vperm.xlu0 %7261, %v6451
    %v7263 = vpop.permute.xlu0 %7262
    %7264 = vset.pattern.permute.xlu0 0
    %7265 = vperm.xlu0 %7264, %v6452
    %v7266 = vpop.permute.xlu0 %7265
    %7267 = vset.pattern.permute.xlu0 0
    %7268 = vperm.xlu0 %7267, %v6453
    %v7269 = vpop.permute.xlu0 %7268
    %7270 = vset.pattern.permute.xlu0 0
    %7271 = vperm.xlu0 %7270, %v6454
    %v7272 = vpop.permute.xlu0 %7271
    %7273 = vset.pattern.permute.xlu0 0
    %7274 = vperm.xlu0 %7273, %v6455
    %v7275 = vpop.permute.xlu0 %7274
    %7276 = vset.pattern.permute.xlu0 0
    %7277 = vperm.xlu0 %7276, %v6456
    %v7278 = vpop.permute.xlu0 %7277
    %7279 = vset.pattern.permute.xlu0 0
    %7280 = vperm.xlu0 %7279, %v6457
    %v7281 = vpop.permute.xlu0 %7280
    %7282 = vset.pattern.permute.xlu0 0
    %7283 = vperm.xlu0 %7282, %v6458
    %v7284 = vpop.permute.xlu0 %7283
    %7285 = vset.pattern.permute.xlu0 0
    %7286 = vperm.xlu0 %7285, %v6459
    %v7287 = vpop.permute.xlu0 %7286
    %7288 = vset.pattern.permute.xlu0 0
    %7289 = vperm.xlu0 %7288, %v6460
    %v7290 = vpop.permute.xlu0 %7289
    %7291 = vset.pattern.permute.xlu0 0
    %7292 = vperm.xlu0 %7291, %v6461
    %v7293 = vpop.permute.xlu0 %7292
    %7294 = vset.pattern.permute.xlu0 0
    %7295 = vperm.xlu0 %7294, %v6462
    %v7296 = vpop.permute.xlu0 %7295
    %7297 = vset.pattern.permute.xlu0 0
    %7298 = vperm.xlu0 %7297, %v6463
    %v7299 = vpop.permute.xlu0 %7298
    %7300 = vset.pattern.permute.xlu0 0
    %7301 = vperm.xlu0 %7300, %v6464
    %v7302 = vpop.permute.xlu0 %7301
    %7303 = vset.pattern.permute.xlu0 0
    %7304 = vperm.xlu0 %7303, %v6465
    %v7305 = vpop.permute.xlu0 %7304
    %7306 = vset.pattern.permute.xlu0 0
    %7307 = vperm.xlu0 %7306, %v6466
    %v7308 = vpop.permute.xlu0 %7307
    %7309 = vset.pattern.permute.xlu0 0
    %7310 = vperm.xlu0 %7309, %v6467
    %v7311 = vpop.permute.xlu0 %7310
    %7312 = vset.pattern.permute.xlu0 0
    %7313 = vperm.xlu0 %7312, %v6468
    %v7314 = vpop.permute.xlu0 %7313
    %7315 = vset.pattern.permute.xlu0 0
    %7316 = vperm.xlu0 %7315, %v6469
    %v7317 = vpop.permute.xlu0 %7316
    %7318 = vset.pattern.permute.xlu0 0
    %7319 = vperm.xlu0 %7318, %v6470
    %v7320 = vpop.permute.xlu0 %7319
    %7321 = vset.pattern.permute.xlu0 0
    %7322 = vperm.xlu0 %7321, %v6471
    %v7323 = vpop.permute.xlu0 %7322
    %7324 = vset.pattern.permute.xlu0 0
    %7325 = vperm.xlu0 %7324, %v6472
    %v7326 = vpop.permute.xlu0 %7325
    %7327 = vset.pattern.permute.xlu0 0
    %7328 = vperm.xlu0 %7327, %v6473
    %v7329 = vpop.permute.xlu0 %7328
    %7330 = vset.pattern.permute.xlu0 0
    %7331 = vperm.xlu0 %7330, %v6474
    %v7332 = vpop.permute.xlu0 %7331
    %7333 = vset.pattern.permute.xlu0 0
    %7334 = vperm.xlu0 %7333, %v6475
    %v7335 = vpop.permute.xlu0 %7334
    %7336 = vset.pattern.permute.xlu0 0
    %7337 = vperm.xlu0 %7336, %v6476
    %v7338 = vpop.permute.xlu0 %7337
    %7339 = vset.pattern.permute.xlu0 0
    %7340 = vperm.xlu0 %7339, %v6477
    %v7341 = vpop.permute.xlu0 %7340
    %7342 = vset.pattern.permute.xlu0 0
    %7343 = vperm.xlu0 %7342, %v6478
    %v7344 = vpop.permute.xlu0 %7343
    %7345 = vset.pattern.permute.xlu0 0
    %7346 = vperm.xlu0 %7345, %v6479
    %v7347 = vpop.permute.xlu0 %7346
    %7348 = vset.pattern.permute.xlu0 0
    %7349 = vperm.xlu0 %7348, %v6480
    %v7350 = vpop.permute.xlu0 %7349
    %7351 = vset.pattern.permute.xlu0 0
    %7352 = vperm.xlu0 %7351, %v6481
    %v7353 = vpop.permute.xlu0 %7352
    %7354 = vset.pattern.permute.xlu0 0
    %7355 = vperm.xlu0 %7354, %v6482
    %v7356 = vpop.permute.xlu0 %7355
    %7357 = vset.pattern.permute.xlu0 0
    %7358 = vperm.xlu0 %7357, %v6483
    %v7359 = vpop.permute.xlu0 %7358
    %7360 = vset.pattern.permute.xlu0 0
    %7361 = vperm.xlu0 %7360, %v6484
    %v7362 = vpop.permute.xlu0 %7361
    %7363 = vset.pattern.permute.xlu0 0
    %7364 = vperm.xlu0 %7363, %v6485
    %v7365 = vpop.permute.xlu0 %7364
    %7366 = vset.pattern.permute.xlu0 0
    %7367 = vperm.xlu0 %7366, %v6486
    %v7368 = vpop.permute.xlu0 %7367
    %7369 = vset.pattern.permute.xlu0 0
    %7370 = vperm.xlu0 %7369, %v6487
    %v7371 = vpop.permute.xlu0 %7370
    %7372 = vset.pattern.permute.xlu0 0
    %7373 = vperm.xlu0 %7372, %v6488
    %v7374 = vpop.permute.xlu0 %7373
    %7375 = vset.pattern.permute.xlu0 0
    %7376 = vperm.xlu0 %7375, %v6489
    %v7377 = vpop.permute.xlu0 %7376
    %7378 = vset.pattern.permute.xlu0 0
    %7379 = vperm.xlu0 %7378, %v6490
    %v7380 = vpop.permute.xlu0 %7379
    %7381 = vset.pattern.permute.xlu0 0
    %7382 = vperm.xlu0 %7381, %v6491
    %v7383 = vpop.permute.xlu0 %7382
    %7384 = vset.pattern.permute.xlu0 0
    %7385 = vperm.xlu0 %7384, %v6492
    %v7386 = vpop.permute.xlu0 %7385
    %7387 = vset.pattern.permute.xlu0 0
    %7388 = vperm.xlu0 %7387, %v6493
    %v7389 = vpop.permute.xlu0 %7388
    %7390 = vset.pattern.permute.xlu0 0
    %7391 = vperm.xlu0 %7390, %v6494
    %v7392 = vpop.permute.xlu0 %7391
    %7393 = vset.pattern.permute.xlu0 0
    %7394 = vperm.xlu0 %7393, %v6495
    %v7395 = vpop.permute.xlu0 %7394
    %7396 = vset.pattern.permute.xlu0 0
    %7397 = vperm.xlu0 %7396, %v6496
    %v7398 = vpop.permute.xlu0 %7397
    %7399 = vset.pattern.permute.xlu0 0
    %7400 = vperm.xlu0 %7399, %v6497
    %v7401 = vpop.permute.xlu0 %7400
    %7402 = vset.pattern.permute.xlu0 0
    %7403 = vperm.xlu0 %7402, %v6498
    %v7404 = vpop.permute.xlu0 %7403
    %7405 = vset.pattern.permute.xlu0 0
    %7406 = vperm.xlu0 %7405, %v6499
    %v7407 = vpop.permute.xlu0 %7406
    %7408 = vset.pattern.permute.xlu0 0
    %7409 = vperm.xlu0 %7408, %v6500
    %v7410 = vpop.permute.xlu0 %7409
    %7411 = vset.pattern.permute.xlu0 0
    %7412 = vperm.xlu0 %7411, %v6501
    %v7413 = vpop.permute.xlu0 %7412
    %7414 = vset.pattern.permute.xlu0 0
    %7415 = vperm.xlu0 %7414, %v6502
    %v7416 = vpop.permute.xlu0 %7415
    %7417 = vset.pattern.permute.xlu0 0
    %7418 = vperm.xlu0 %7417, %v6503
    %v7419 = vpop.permute.xlu0 %7418
    %7420 = vset.pattern.permute.xlu0 0
    %7421 = vperm.xlu0 %7420, %v6504
    %v7422 = vpop.permute.xlu0 %7421
    %7423 = vset.pattern.permute.xlu0 0
    %7424 = vperm.xlu0 %7423, %v6505
    %v7425 = vpop.permute.xlu0 %7424
    %7426 = vset.pattern.permute.xlu0 0
    %7427 = vperm.xlu0 %7426, %v6506
    %v7428 = vpop.permute.xlu0 %7427
    %7429 = vset.pattern.permute.xlu0 0
    %7430 = vperm.xlu0 %7429, %v6507
    %v7431 = vpop.permute.xlu0 %7430
    %7432 = vset.pattern.permute.xlu0 0
    %7433 = vperm.xlu0 %7432, %v6508
    %v7434 = vpop.permute.xlu0 %7433
    %7435 = vset.pattern.permute.xlu0 0
    %7436 = vperm.xlu0 %7435, %v6509
    %v7437 = vpop.permute.xlu0 %7436
    %7438 = vset.pattern.permute.xlu0 0
    %7439 = vperm.xlu0 %7438, %v6510
    %v7440 = vpop.permute.xlu0 %7439
    %7441 = vset.pattern.permute.xlu0 0
    %7442 = vperm.xlu0 %7441, %v6511
    %v7443 = vpop.permute.xlu0 %7442
    %7444 = vset.pattern.permute.xlu0 0
    %7445 = vperm.xlu0 %7444, %v6512
    %v7446 = vpop.permute.xlu0 %7445
    %7447 = vset.pattern.permute.xlu0 0
    %7448 = vperm.xlu0 %7447, %v6513
    %v7449 = vpop.permute.xlu0 %7448
    %7450 = vset.pattern.permute.xlu0 0
    %7451 = vperm.xlu0 %7450, %v6514
    %v7452 = vpop.permute.xlu0 %7451
    %7453 = vset.pattern.permute.xlu0 0
    %7454 = vperm.xlu0 %7453, %v6515
    %v7455 = vpop.permute.xlu0 %7454
    %7456 = vset.pattern.permute.xlu0 0
    %7457 = vperm.xlu0 %7456, %v6516
    %v7458 = vpop.permute.xlu0 %7457
    %7459 = vset.pattern.permute.xlu0 0
    %7460 = vperm.xlu0 %7459, %v6517
    %v7461 = vpop.permute.xlu0 %7460
    %7462 = vset.pattern.permute.xlu0 0
    %7463 = vperm.xlu0 %7462, %v6518
    %v7464 = vpop.permute.xlu0 %7463
    %7465 = vset.pattern.permute.xlu0 0
    %7466 = vperm.xlu0 %7465, %v6519
    %v7467 = vpop.permute.xlu0 %7466
    %7468 = vset.pattern.permute.xlu0 0
    %7469 = vperm.xlu0 %7468, %v6520
    %v7470 = vpop.permute.xlu0 %7469
    %7471 = vset.pattern.permute.xlu0 0
    %7472 = vperm.xlu0 %7471, %v6521
    %v7473 = vpop.permute.xlu0 %7472
    %7474 = vset.pattern.permute.xlu0 0
    %7475 = vperm.xlu0 %7474, %v6522
    %v7476 = vpop.permute.xlu0 %7475
    %7477 = vset.pattern.permute.xlu0 0
    %7478 = vperm.xlu0 %7477, %v6523
    %v7479 = vpop.permute.xlu0 %7478
    %7480 = vset.pattern.permute.xlu0 0
    %7481 = vperm.xlu0 %7480, %v6524
    %v7482 = vpop.permute.xlu0 %7481
    %7483 = vset.pattern.permute.xlu0 0
    %7484 = vperm.xlu0 %7483, %v6525
    %v7485 = vpop.permute.xlu0 %7484
    %7486 = vset.pattern.permute.xlu0 0
    %7487 = vperm.xlu0 %7486, %v6526
    %v7488 = vpop.permute.xlu0 %7487
    %7489 = vset.pattern.permute.xlu0 0
    %7490 = vperm.xlu0 %7489, %v6527
    %v7491 = vpop.permute.xlu0 %7490
    %7492 = vset.pattern.permute.xlu0 0
    %7493 = vperm.xlu0 %7492, %v6528
    %v7494 = vpop.permute.xlu0 %7493
    %7495 = vset.pattern.permute.xlu0 0
    %7496 = vperm.xlu0 %7495, %v6529
    %v7497 = vpop.permute.xlu0 %7496
    %7498 = vset.pattern.permute.xlu0 0
    %7499 = vperm.xlu0 %7498, %v6530
    %v7500 = vpop.permute.xlu0 %7499
    %7501 = vset.pattern.permute.xlu0 0
    %7502 = vperm.xlu0 %7501, %v6531
    %v7503 = vpop.permute.xlu0 %7502
    %7504 = vset.pattern.permute.xlu0 0
    %7505 = vperm.xlu0 %7504, %v6532
    %v7506 = vpop.permute.xlu0 %7505
    %7507 = vset.pattern.permute.xlu0 0
    %7508 = vperm.xlu0 %7507, %v6533
    %v7509 = vpop.permute.xlu0 %7508
    %7510 = vset.pattern.permute.xlu0 0
    %7511 = vperm.xlu0 %7510, %v6534
    %v7512 = vpop.permute.xlu0 %7511
    %7513 = vset.pattern.permute.xlu0 0
    %7514 = vperm.xlu0 %7513, %v6535
    %v7515 = vpop.permute.xlu0 %7514
    %7516 = vset.pattern.permute.xlu0 0
    %7517 = vperm.xlu0 %7516, %v6536
    %v7518 = vpop.permute.xlu0 %7517
    %7519 = vset.pattern.permute.xlu0 0
    %7520 = vperm.xlu0 %7519, %v6537
    %v7521 = vpop.permute.xlu0 %7520
    %7522 = vset.pattern.permute.xlu0 0
    %7523 = vperm.xlu0 %7522, %v6538
    %v7524 = vpop.permute.xlu0 %7523
    %7525 = vset.pattern.permute.xlu0 0
    %7526 = vperm.xlu0 %7525, %v6539
    %v7527 = vpop.permute.xlu0 %7526
    %7528 = vset.pattern.permute.xlu0 0
    %7529 = vperm.xlu0 %7528, %v6540
    %v7530 = vpop.permute.xlu0 %7529
    %7531 = vset.pattern.permute.xlu0 0
    %7532 = vperm.xlu0 %7531, %v6541
    %v7533 = vpop.permute.xlu0 %7532
    %7534 = vset.pattern.permute.xlu0 0
    %7535 = vperm.xlu0 %7534, %v6542
    %v7536 = vpop.permute.xlu0 %7535
    %7537 = vset.pattern.permute.xlu0 0
    %7538 = vperm.xlu0 %7537, %v6543
    %v7539 = vpop.permute.xlu0 %7538
    %7540 = vset.pattern.permute.xlu0 0
    %7541 = vperm.xlu0 %7540, %v6544
    %v7542 = vpop.permute.xlu0 %7541
    %7543 = vset.pattern.permute.xlu0 0
    %7544 = vperm.xlu0 %7543, %v6545
    %v7545 = vpop.permute.xlu0 %7544
    %7546 = vset.pattern.permute.xlu0 0
    %7547 = vperm.xlu0 %7546, %v6546
    %v7548 = vpop.permute.xlu0 %7547
    %7549 = vset.pattern.permute.xlu0 0
    %7550 = vperm.xlu0 %7549, %v6547
    %v7551 = vpop.permute.xlu0 %7550
    %7552 = vset.pattern.permute.xlu0 0
    %7553 = vperm.xlu0 %7552, %v6548
    %v7554 = vpop.permute.xlu0 %7553
    %7555 = vset.pattern.permute.xlu0 0
    %7556 = vperm.xlu0 %7555, %v6549
    %v7557 = vpop.permute.xlu0 %7556
    %7558 = vset.pattern.permute.xlu0 0
    %7559 = vperm.xlu0 %7558, %v6550
    %v7560 = vpop.permute.xlu0 %7559
    %7561 = vset.pattern.permute.xlu0 0
    %7562 = vperm.xlu0 %7561, %v6551
    %v7563 = vpop.permute.xlu0 %7562
    %7564 = vset.pattern.permute.xlu0 0
    %7565 = vperm.xlu0 %7564, %v6552
    %v7566 = vpop.permute.xlu0 %7565
    %7567 = vset.pattern.permute.xlu0 0
    %7568 = vperm.xlu0 %7567, %v6553
    %v7569 = vpop.permute.xlu0 %7568
    %7570 = vset.pattern.permute.xlu0 0
    %7571 = vperm.xlu0 %7570, %v6554
    %v7572 = vpop.permute.xlu0 %7571
    %7573 = vset.pattern.permute.xlu0 0
    %7574 = vperm.xlu0 %7573, %v6555
    %v7575 = vpop.permute.xlu0 %7574
    %7576 = vset.pattern.permute.xlu0 0
    %7577 = vperm.xlu0 %7576, %v6556
    %v7578 = vpop.permute.xlu0 %7577
    %7579 = vset.pattern.permute.xlu0 0
    %7580 = vperm.xlu0 %7579, %v6557
    %v7581 = vpop.permute.xlu0 %7580
    %7582 = vset.pattern.permute.xlu0 0
    %7583 = vperm.xlu0 %7582, %v6558
    %v7584 = vpop.permute.xlu0 %7583
    %7585 = vset.pattern.permute.xlu0 0
    %7586 = vperm.xlu0 %7585, %v6559
    %v7587 = vpop.permute.xlu0 %7586
    %7588 = vset.pattern.permute.xlu0 0
    %7589 = vperm.xlu0 %7588, %v6560
    %v7590 = vpop.permute.xlu0 %7589
    %7591 = vset.pattern.permute.xlu0 0
    %7592 = vperm.xlu0 %7591, %v6561
    %v7593 = vpop.permute.xlu0 %7592
    %7594 = vset.pattern.permute.xlu0 0
    %7595 = vperm.xlu0 %7594, %v6562
    %v7596 = vpop.permute.xlu0 %7595
    %7597 = vset.pattern.permute.xlu0 0
    %7598 = vperm.xlu0 %7597, %v6563
    %v7599 = vpop.permute.xlu0 %7598
    %7600 = vset.pattern.permute.xlu0 0
    %7601 = vperm.xlu0 %7600, %v6564
    %v7602 = vpop.permute.xlu0 %7601
    %7603 = vset.pattern.permute.xlu0 0
    %7604 = vperm.xlu0 %7603, %v6565
    %v7605 = vpop.permute.xlu0 %7604
    %7606 = vset.pattern.permute.xlu0 0
    %7607 = vperm.xlu0 %7606, %v6566
    %v7608 = vpop.permute.xlu0 %7607
    %7609 = vset.pattern.permute.xlu0 0
    %7610 = vperm.xlu0 %7609, %v6567
    %v7611 = vpop.permute.xlu0 %7610
    %7612 = vset.pattern.permute.xlu0 0
    %7613 = vperm.xlu0 %7612, %v6568
    %v7614 = vpop.permute.xlu0 %7613
    %7615 = vset.pattern.permute.xlu0 0
    %7616 = vperm.xlu0 %7615, %v6569
    %v7617 = vpop.permute.xlu0 %7616
    %7618 = vset.pattern.permute.xlu0 0
    %7619 = vperm.xlu0 %7618, %v6570
    %v7620 = vpop.permute.xlu0 %7619
    %7621 = vset.pattern.permute.xlu0 0
    %7622 = vperm.xlu0 %7621, %v6571
    %v7623 = vpop.permute.xlu0 %7622
    %7624 = vset.pattern.permute.xlu0 0
    %7625 = vperm.xlu0 %7624, %v6572
    %v7626 = vpop.permute.xlu0 %7625
    %7627 = vset.pattern.permute.xlu0 0
    %7628 = vperm.xlu0 %7627, %v6573
    %v7629 = vpop.permute.xlu0 %7628
    %7630 = vset.pattern.permute.xlu0 0
    %7631 = vperm.xlu0 %7630, %v6574
    %v7632 = vpop.permute.xlu0 %7631
    %7633 = vset.pattern.permute.xlu0 0
    %7634 = vperm.xlu0 %7633, %v6575
    %v7635 = vpop.permute.xlu0 %7634
    %7636 = vset.pattern.permute.xlu0 0
    %7637 = vperm.xlu0 %7636, %v6576
    %v7638 = vpop.permute.xlu0 %7637
    %7639 = vset.pattern.permute.xlu0 0
    %7640 = vperm.xlu0 %7639, %v6577
    %v7641 = vpop.permute.xlu0 %7640
    %7642 = vset.pattern.permute.xlu0 0
    %7643 = vperm.xlu0 %7642, %v6578
    %v7644 = vpop.permute.xlu0 %7643
    %7645 = vset.pattern.permute.xlu0 0
    %7646 = vperm.xlu0 %7645, %v6579
    %v7647 = vpop.permute.xlu0 %7646
    %7648 = vset.pattern.permute.xlu0 0
    %7649 = vperm.xlu0 %7648, %v6580
    %v7650 = vpop.permute.xlu0 %7649
    %7651 = vset.pattern.permute.xlu0 0
    %7652 = vperm.xlu0 %7651, %v6581
    %v7653 = vpop.permute.xlu0 %7652
    %7654 = vset.pattern.permute.xlu0 0
    %7655 = vperm.xlu0 %7654, %v6582
    %v7656 = vpop.permute.xlu0 %7655
    %7657 = vset.pattern.permute.xlu0 0
    %7658 = vperm.xlu0 %7657, %v6583
    %v7659 = vpop.permute.xlu0 %7658
    %7660 = vset.pattern.permute.xlu0 0
    %7661 = vperm.xlu0 %7660, %v6584
    %v7662 = vpop.permute.xlu0 %7661
    %7663 = vset.pattern.permute.xlu0 0
    %7664 = vperm.xlu0 %7663, %v6585
    %v7665 = vpop.permute.xlu0 %7664
    %7666 = vset.pattern.permute.xlu0 0
    %7667 = vperm.xlu0 %7666, %v6586
    %v7668 = vpop.permute.xlu0 %7667
    %7669 = vset.pattern.permute.xlu0 0
    %7670 = vperm.xlu0 %7669, %v6587
    %v7671 = vpop.permute.xlu0 %7670
    %7672 = vset.pattern.permute.xlu0 0
    %7673 = vperm.xlu0 %7672, %v6588
    %v7674 = vpop.permute.xlu0 %7673
    %7675 = vset.pattern.permute.xlu0 0
    %7676 = vperm.xlu0 %7675, %v6589
    %v7677 = vpop.permute.xlu0 %7676
    %7678 = vset.pattern.permute.xlu0 0
    %7679 = vperm.xlu0 %7678, %v6590
    %v7680 = vpop.permute.xlu0 %7679
    %7681 = vset.pattern.permute.xlu0 0
    %7682 = vperm.xlu0 %7681, %v6591
    %v7683 = vpop.permute.xlu0 %7682
    %7684 = vset.pattern.permute.xlu0 0
    %7685 = vperm.xlu0 %7684, %v6592
    %v7686 = vpop.permute.xlu0 %7685
    %7687 = vset.pattern.permute.xlu0 0
    %7688 = vperm.xlu0 %7687, %v6593
    %v7689 = vpop.permute.xlu0 %7688
    %7690 = vset.pattern.permute.xlu0 0
    %7691 = vperm.xlu0 %7690, %v6594
    %v7692 = vpop.permute.xlu0 %7691
    %7693 = vset.pattern.permute.xlu0 0
    %7694 = vperm.xlu0 %7693, %v6595
    %v7695 = vpop.permute.xlu0 %7694
    %7696 = vset.pattern.permute.xlu0 0
    %7697 = vperm.xlu0 %7696, %v6596
    %v7698 = vpop.permute.xlu0 %7697
    %7699 = vset.pattern.permute.xlu0 0
    %7700 = vperm.xlu0 %7699, %v6597
    %v7701 = vpop.permute.xlu0 %7700
    %7702 = vset.pattern.permute.xlu0 0
    %7703 = vperm.xlu0 %7702, %v6598
    %v7704 = vpop.permute.xlu0 %7703
    %7705 = vset.pattern.permute.xlu0 0
    %7706 = vperm.xlu0 %7705, %v6599
    %v7707 = vpop.permute.xlu0 %7706
    %7708 = vset.pattern.permute.xlu0 0
    %7709 = vperm.xlu0 %7708, %v6600
    %v7710 = vpop.permute.xlu0 %7709
    %7711 = vset.pattern.permute.xlu0 0
    %7712 = vperm.xlu0 %7711, %v6601
    %v7713 = vpop.permute.xlu0 %7712
    %7714 = vset.pattern.permute.xlu0 0
    %7715 = vperm.xlu0 %7714, %v6602
    %v7716 = vpop.permute.xlu0 %7715
    %7717 = vset.pattern.permute.xlu0 0
    %7718 = vperm.xlu0 %7717, %v6603
    %v7719 = vpop.permute.xlu0 %7718
    %7720 = vset.pattern.permute.xlu0 0
    %7721 = vperm.xlu0 %7720, %v6604
    %v7722 = vpop.permute.xlu0 %7721
    %7723 = vset.pattern.permute.xlu0 0
    %7724 = vperm.xlu0 %7723, %v6605
    %v7725 = vpop.permute.xlu0 %7724
    %7726 = vset.pattern.permute.xlu0 0
    %7727 = vperm.xlu0 %7726, %v6606
    %v7728 = vpop.permute.xlu0 %7727
    %7729 = vset.pattern.permute.xlu0 0
    %7730 = vperm.xlu0 %7729, %v6607
    %v7731 = vpop.permute.xlu0 %7730
    %7732 = vset.pattern.permute.xlu0 0
    %7733 = vperm.xlu0 %7732, %v6608
    %v7734 = vpop.permute.xlu0 %7733
    %7735 = vset.pattern.permute.xlu0 0
    %7736 = vperm.xlu0 %7735, %v6609
    %v7737 = vpop.permute.xlu0 %7736
    %7738 = vset.pattern.permute.xlu0 0
    %7739 = vperm.xlu0 %7738, %v6610
    %v7740 = vpop.permute.xlu0 %7739
    %7741 = vset.pattern.permute.xlu0 0
    %7742 = vperm.xlu0 %7741, %v6611
    %v7743 = vpop.permute.xlu0 %7742
    %7744 = vset.pattern.permute.xlu0 0
    %7745 = vperm.xlu0 %7744, %v6612
    %v7746 = vpop.permute.xlu0 %7745
    %7747 = vset.pattern.permute.xlu0 0
    %7748 = vperm.xlu0 %7747, %v6613
    %v7749 = vpop.permute.xlu0 %7748
    %7750 = vset.pattern.permute.xlu0 0
    %7751 = vperm.xlu0 %7750, %v6614
    %v7752 = vpop.permute.xlu0 %7751
    %7753 = vset.pattern.permute.xlu0 0
    %7754 = vperm.xlu0 %7753, %v6615
    %v7755 = vpop.permute.xlu0 %7754
    %7756 = vset.pattern.permute.xlu0 0
    %7757 = vperm.xlu0 %7756, %v6616
    %v7758 = vpop.permute.xlu0 %7757
    %7759 = vset.pattern.permute.xlu0 0
    %7760 = vperm.xlu0 %7759, %v6617
    %v7761 = vpop.permute.xlu0 %7760
    %7762 = vset.pattern.permute.xlu0 0
    %7763 = vperm.xlu0 %7762, %v6618
    %v7764 = vpop.permute.xlu0 %7763
    %7765 = vset.pattern.permute.xlu0 0
    %7766 = vperm.xlu0 %7765, %v6619
    %v7767 = vpop.permute.xlu0 %7766
    %7768 = vset.pattern.permute.xlu0 0
    %7769 = vperm.xlu0 %7768, %v6620
    %v7770 = vpop.permute.xlu0 %7769
    %7771 = vset.pattern.permute.xlu0 0
    %7772 = vperm.xlu0 %7771, %v6621
    %v7773 = vpop.permute.xlu0 %7772
    %v7774 = vlaneseq
    %v7775 = vand.u32 %v7774, 127
    %v7776 = vadd.s32 %v7775, 4294967295
    %v7777 = vlaneseq
    %v7778 = vshrl.u32 %v7777, 7
    %v7779 = vsub.s32 %v7776, %v7778
    %v7780 = vrot.slane %v7008, %v7779
    %v7781 = vlaneseq
    %v7782 = vshrl.u32 %v7781, 7
    %v7783 = vsub.s32 %v7776, %v7782
    %v7784 = vrot.slane %v7011, %v7783
    %v7785 = vlaneseq
    %v7786 = vshrl.u32 %v7785, 7
    %v7787 = vsub.s32 %v7776, %v7786
    %v7788 = vrot.slane %v7014, %v7787
    %v7789 = vlaneseq
    %v7790 = vshrl.u32 %v7789, 7
    %v7791 = vsub.s32 %v7776, %v7790
    %v7792 = vrot.slane %v7017, %v7791
    %v7793 = vlaneseq
    %v7794 = vshrl.u32 %v7793, 7
    %v7795 = vsub.s32 %v7776, %v7794
    %v7796 = vrot.slane %v7020, %v7795
    %v7797 = vlaneseq
    %v7798 = vshrl.u32 %v7797, 7
    %v7799 = vsub.s32 %v7776, %v7798
    %v7800 = vrot.slane %v7023, %v7799
    %v7801 = vlaneseq
    %v7802 = vshrl.u32 %v7801, 7
    %v7803 = vsub.s32 %v7776, %v7802
    %v7804 = vrot.slane %v7026, %v7803
    %v7805 = vlaneseq
    %v7806 = vshrl.u32 %v7805, 7
    %v7807 = vsub.s32 %v7776, %v7806
    %v7808 = vrot.slane %v7029, %v7807
    %v7809 = vlaneseq
    %v7810 = vshrl.u32 %v7809, 7
    %v7811 = vsub.s32 %v7776, %v7810
    %v7812 = vrot.slane %v7032, %v7811
    %v7813 = vlaneseq
    %v7814 = vshrl.u32 %v7813, 7
    %v7815 = vsub.s32 %v7776, %v7814
    %v7816 = vrot.slane %v7035, %v7815
    %v7817 = vlaneseq
    %v7818 = vshrl.u32 %v7817, 7
    %v7819 = vsub.s32 %v7776, %v7818
    %v7820 = vrot.slane %v7038, %v7819
    %v7821 = vlaneseq
    %v7822 = vshrl.u32 %v7821, 7
    %v7823 = vsub.s32 %v7776, %v7822
    %v7824 = vrot.slane %v7041, %v7823
    %v7825 = vlaneseq
    %v7826 = vshrl.u32 %v7825, 7
    %v7827 = vsub.s32 %v7776, %v7826
    %v7828 = vrot.slane %v7044, %v7827
    %v7829 = vlaneseq
    %v7830 = vshrl.u32 %v7829, 7
    %v7831 = vsub.s32 %v7776, %v7830
    %v7832 = vrot.slane %v7047, %v7831
    %v7833 = vlaneseq
    %v7834 = vshrl.u32 %v7833, 7
    %v7835 = vsub.s32 %v7776, %v7834
    %v7836 = vrot.slane %v7050, %v7835
    %v7837 = vlaneseq
    %v7838 = vshrl.u32 %v7837, 7
    %v7839 = vsub.s32 %v7776, %v7838
    %v7840 = vrot.slane %v7053, %v7839
    %v7841 = vlaneseq
    %v7842 = vshrl.u32 %v7841, 7
    %v7843 = vsub.s32 %v7776, %v7842
    %v7844 = vrot.slane %v7056, %v7843
    %v7845 = vlaneseq
    %v7846 = vshrl.u32 %v7845, 7
    %v7847 = vsub.s32 %v7776, %v7846
    %v7848 = vrot.slane %v7059, %v7847
    %v7849 = vlaneseq
    %v7850 = vshrl.u32 %v7849, 7
    %v7851 = vsub.s32 %v7776, %v7850
    %v7852 = vrot.slane %v7062, %v7851
    %v7853 = vlaneseq
    %v7854 = vshrl.u32 %v7853, 7
    %v7855 = vsub.s32 %v7776, %v7854
    %v7856 = vrot.slane %v7065, %v7855
    %v7857 = vlaneseq
    %v7858 = vshrl.u32 %v7857, 7
    %v7859 = vsub.s32 %v7776, %v7858
    %v7860 = vrot.slane %v7068, %v7859
    %v7861 = vlaneseq
    %v7862 = vshrl.u32 %v7861, 7
    %v7863 = vsub.s32 %v7776, %v7862
    %v7864 = vrot.slane %v7071, %v7863
    %v7865 = vlaneseq
    %v7866 = vshrl.u32 %v7865, 7
    %v7867 = vsub.s32 %v7776, %v7866
    %v7868 = vrot.slane %v7074, %v7867
    %v7869 = vlaneseq
    %v7870 = vshrl.u32 %v7869, 7
    %v7871 = vsub.s32 %v7776, %v7870
    %v7872 = vrot.slane %v7077, %v7871
    %v7873 = vlaneseq
    %v7874 = vshrl.u32 %v7873, 7
    %v7875 = vsub.s32 %v7776, %v7874
    %v7876 = vrot.slane %v7080, %v7875
    %v7877 = vlaneseq
    %v7878 = vshrl.u32 %v7877, 7
    %v7879 = vsub.s32 %v7776, %v7878
    %v7880 = vrot.slane %v7083, %v7879
    %v7881 = vlaneseq
    %v7882 = vshrl.u32 %v7881, 7
    %v7883 = vsub.s32 %v7776, %v7882
    %v7884 = vrot.slane %v7086, %v7883
    %v7885 = vlaneseq
    %v7886 = vshrl.u32 %v7885, 7
    %v7887 = vsub.s32 %v7776, %v7886
    %v7888 = vrot.slane %v7089, %v7887
    %v7889 = vlaneseq
    %v7890 = vshrl.u32 %v7889, 7
    %v7891 = vsub.s32 %v7776, %v7890
    %v7892 = vrot.slane %v7092, %v7891
    %v7893 = vlaneseq
    %v7894 = vshrl.u32 %v7893, 7
    %v7895 = vsub.s32 %v7776, %v7894
    %v7896 = vrot.slane %v7095, %v7895
    %v7897 = vlaneseq
    %v7898 = vshrl.u32 %v7897, 7
    %v7899 = vsub.s32 %v7776, %v7898
    %v7900 = vrot.slane %v7098, %v7899
    %v7901 = vlaneseq
    %v7902 = vshrl.u32 %v7901, 7
    %v7903 = vsub.s32 %v7776, %v7902
    %v7904 = vrot.slane %v7101, %v7903
    %v7905 = vlaneseq
    %v7906 = vshrl.u32 %v7905, 7
    %v7907 = vsub.s32 %v7776, %v7906
    %v7908 = vrot.slane %v7104, %v7907
    %v7909 = vlaneseq
    %v7910 = vshrl.u32 %v7909, 7
    %v7911 = vsub.s32 %v7776, %v7910
    %v7912 = vrot.slane %v7107, %v7911
    %v7913 = vlaneseq
    %v7914 = vshrl.u32 %v7913, 7
    %v7915 = vsub.s32 %v7776, %v7914
    %v7916 = vrot.slane %v7110, %v7915
    %v7917 = vlaneseq
    %v7918 = vshrl.u32 %v7917, 7
    %v7919 = vsub.s32 %v7776, %v7918
    %v7920 = vrot.slane %v7113, %v7919
    %v7921 = vlaneseq
    %v7922 = vshrl.u32 %v7921, 7
    %v7923 = vsub.s32 %v7776, %v7922
    %v7924 = vrot.slane %v7116, %v7923
    %v7925 = vlaneseq
    %v7926 = vshrl.u32 %v7925, 7
    %v7927 = vsub.s32 %v7776, %v7926
    %v7928 = vrot.slane %v7119, %v7927
    %v7929 = vlaneseq
    %v7930 = vshrl.u32 %v7929, 7
    %v7931 = vsub.s32 %v7776, %v7930
    %v7932 = vrot.slane %v7122, %v7931
    %v7933 = vlaneseq
    %v7934 = vshrl.u32 %v7933, 7
    %v7935 = vsub.s32 %v7776, %v7934
    %v7936 = vrot.slane %v7125, %v7935
    %v7937 = vlaneseq
    %v7938 = vshrl.u32 %v7937, 7
    %v7939 = vsub.s32 %v7776, %v7938
    %v7940 = vrot.slane %v7128, %v7939
    %v7941 = vlaneseq
    %v7942 = vshrl.u32 %v7941, 7
    %v7943 = vsub.s32 %v7776, %v7942
    %v7944 = vrot.slane %v7131, %v7943
    %v7945 = vlaneseq
    %v7946 = vshrl.u32 %v7945, 7
    %v7947 = vsub.s32 %v7776, %v7946
    %v7948 = vrot.slane %v7134, %v7947
    %v7949 = vlaneseq
    %v7950 = vshrl.u32 %v7949, 7
    %v7951 = vsub.s32 %v7776, %v7950
    %v7952 = vrot.slane %v7137, %v7951
    %v7953 = vlaneseq
    %v7954 = vshrl.u32 %v7953, 7
    %v7955 = vsub.s32 %v7776, %v7954
    %v7956 = vrot.slane %v7140, %v7955
    %v7957 = vlaneseq
    %v7958 = vshrl.u32 %v7957, 7
    %v7959 = vsub.s32 %v7776, %v7958
    %v7960 = vrot.slane %v7143, %v7959
    %v7961 = vlaneseq
    %v7962 = vshrl.u32 %v7961, 7
    %v7963 = vsub.s32 %v7776, %v7962
    %v7964 = vrot.slane %v7146, %v7963
    %v7965 = vlaneseq
    %v7966 = vshrl.u32 %v7965, 7
    %v7967 = vsub.s32 %v7776, %v7966
    %v7968 = vrot.slane %v7149, %v7967
    %v7969 = vlaneseq
    %v7970 = vshrl.u32 %v7969, 7
    %v7971 = vsub.s32 %v7776, %v7970
    %v7972 = vrot.slane %v7152, %v7971
    %v7973 = vlaneseq
    %v7974 = vshrl.u32 %v7973, 7
    %v7975 = vsub.s32 %v7776, %v7974
    %v7976 = vrot.slane %v7155, %v7975
    %v7977 = vlaneseq
    %v7978 = vshrl.u32 %v7977, 7
    %v7979 = vsub.s32 %v7776, %v7978
    %v7980 = vrot.slane %v7158, %v7979
    %v7981 = vlaneseq
    %v7982 = vshrl.u32 %v7981, 7
    %v7983 = vsub.s32 %v7776, %v7982
    %v7984 = vrot.slane %v7161, %v7983
    %v7985 = vlaneseq
    %v7986 = vshrl.u32 %v7985, 7
    %v7987 = vsub.s32 %v7776, %v7986
    %v7988 = vrot.slane %v7164, %v7987
    %v7989 = vlaneseq
    %v7990 = vshrl.u32 %v7989, 7
    %v7991 = vsub.s32 %v7776, %v7990
    %v7992 = vrot.slane %v7167, %v7991
    %v7993 = vlaneseq
    %v7994 = vshrl.u32 %v7993, 7
    %v7995 = vsub.s32 %v7776, %v7994
    %v7996 = vrot.slane %v7170, %v7995
    %v7997 = vlaneseq
    %v7998 = vshrl.u32 %v7997, 7
    %v7999 = vsub.s32 %v7776, %v7998
    %v8000 = vrot.slane %v7173, %v7999
    %v8001 = vlaneseq
    %v8002 = vshrl.u32 %v8001, 7
    %v8003 = vsub.s32 %v7776, %v8002
    %v8004 = vrot.slane %v7176, %v8003
    %v8005 = vlaneseq
    %v8006 = vshrl.u32 %v8005, 7
    %v8007 = vsub.s32 %v7776, %v8006
    %v8008 = vrot.slane %v7179, %v8007
    %v8009 = vlaneseq
    %v8010 = vshrl.u32 %v8009, 7
    %v8011 = vsub.s32 %v7776, %v8010
    %v8012 = vrot.slane %v7182, %v8011
    %v8013 = vlaneseq
    %v8014 = vshrl.u32 %v8013, 7
    %v8015 = vsub.s32 %v7776, %v8014
    %v8016 = vrot.slane %v7185, %v8015
    %v8017 = vlaneseq
    %v8018 = vshrl.u32 %v8017, 7
    %v8019 = vsub.s32 %v7776, %v8018
    %v8020 = vrot.slane %v7188, %v8019
    %v8021 = vlaneseq
    %v8022 = vshrl.u32 %v8021, 7
    %v8023 = vsub.s32 %v7776, %v8022
    %v8024 = vrot.slane %v7191, %v8023
    %v8025 = vlaneseq
    %v8026 = vshrl.u32 %v8025, 7
    %v8027 = vsub.s32 %v7776, %v8026
    %v8028 = vrot.slane %v7194, %v8027
    %v8029 = vlaneseq
    %v8030 = vshrl.u32 %v8029, 7
    %v8031 = vsub.s32 %v7776, %v8030
    %v8032 = vrot.slane %v7197, %v8031
    %v8033 = vlaneseq
    %v8034 = vshrl.u32 %v8033, 7
    %v8035 = vsub.s32 %v7776, %v8034
    %v8036 = vrot.slane %v7200, %v8035
    %v8037 = vlaneseq
    %v8038 = vshrl.u32 %v8037, 7
    %v8039 = vsub.s32 %v7776, %v8038
    %v8040 = vrot.slane %v7203, %v8039
    %v8041 = vlaneseq
    %v8042 = vshrl.u32 %v8041, 7
    %v8043 = vsub.s32 %v7776, %v8042
    %v8044 = vrot.slane %v7206, %v8043
    %v8045 = vlaneseq
    %v8046 = vshrl.u32 %v8045, 7
    %v8047 = vsub.s32 %v7776, %v8046
    %v8048 = vrot.slane %v7209, %v8047
    %v8049 = vlaneseq
    %v8050 = vshrl.u32 %v8049, 7
    %v8051 = vsub.s32 %v7776, %v8050
    %v8052 = vrot.slane %v7212, %v8051
    %v8053 = vlaneseq
    %v8054 = vshrl.u32 %v8053, 7
    %v8055 = vsub.s32 %v7776, %v8054
    %v8056 = vrot.slane %v7215, %v8055
    %v8057 = vlaneseq
    %v8058 = vshrl.u32 %v8057, 7
    %v8059 = vsub.s32 %v7776, %v8058
    %v8060 = vrot.slane %v7218, %v8059
    %v8061 = vlaneseq
    %v8062 = vshrl.u32 %v8061, 7
    %v8063 = vsub.s32 %v7776, %v8062
    %v8064 = vrot.slane %v7221, %v8063
    %v8065 = vlaneseq
    %v8066 = vshrl.u32 %v8065, 7
    %v8067 = vsub.s32 %v7776, %v8066
    %v8068 = vrot.slane %v7224, %v8067
    %v8069 = vlaneseq
    %v8070 = vshrl.u32 %v8069, 7
    %v8071 = vsub.s32 %v7776, %v8070
    %v8072 = vrot.slane %v7227, %v8071
    %v8073 = vlaneseq
    %v8074 = vshrl.u32 %v8073, 7
    %v8075 = vsub.s32 %v7776, %v8074
    %v8076 = vrot.slane %v7230, %v8075
    %v8077 = vlaneseq
    %v8078 = vshrl.u32 %v8077, 7
    %v8079 = vsub.s32 %v7776, %v8078
    %v8080 = vrot.slane %v7233, %v8079
    %v8081 = vlaneseq
    %v8082 = vshrl.u32 %v8081, 7
    %v8083 = vsub.s32 %v7776, %v8082
    %v8084 = vrot.slane %v7236, %v8083
    %v8085 = vlaneseq
    %v8086 = vshrl.u32 %v8085, 7
    %v8087 = vsub.s32 %v7776, %v8086
    %v8088 = vrot.slane %v7239, %v8087
    %v8089 = vlaneseq
    %v8090 = vshrl.u32 %v8089, 7
    %v8091 = vsub.s32 %v7776, %v8090
    %v8092 = vrot.slane %v7242, %v8091
    %v8093 = vlaneseq
    %v8094 = vshrl.u32 %v8093, 7
    %v8095 = vsub.s32 %v7776, %v8094
    %v8096 = vrot.slane %v7245, %v8095
    %v8097 = vlaneseq
    %v8098 = vshrl.u32 %v8097, 7
    %v8099 = vsub.s32 %v7776, %v8098
    %v8100 = vrot.slane %v7248, %v8099
    %v8101 = vlaneseq
    %v8102 = vshrl.u32 %v8101, 7
    %v8103 = vsub.s32 %v7776, %v8102
    %v8104 = vrot.slane %v7251, %v8103
    %v8105 = vlaneseq
    %v8106 = vshrl.u32 %v8105, 7
    %v8107 = vsub.s32 %v7776, %v8106
    %v8108 = vrot.slane %v7254, %v8107
    %v8109 = vlaneseq
    %v8110 = vshrl.u32 %v8109, 7
    %v8111 = vsub.s32 %v7776, %v8110
    %v8112 = vrot.slane %v7257, %v8111
    %v8113 = vlaneseq
    %v8114 = vshrl.u32 %v8113, 7
    %v8115 = vsub.s32 %v7776, %v8114
    %v8116 = vrot.slane %v7260, %v8115
    %v8117 = vlaneseq
    %v8118 = vshrl.u32 %v8117, 7
    %v8119 = vsub.s32 %v7776, %v8118
    %v8120 = vrot.slane %v7263, %v8119
    %v8121 = vlaneseq
    %v8122 = vshrl.u32 %v8121, 7
    %v8123 = vsub.s32 %v7776, %v8122
    %v8124 = vrot.slane %v7266, %v8123
    %v8125 = vlaneseq
    %v8126 = vshrl.u32 %v8125, 7
    %v8127 = vsub.s32 %v7776, %v8126
    %v8128 = vrot.slane %v7269, %v8127
    %v8129 = vlaneseq
    %v8130 = vshrl.u32 %v8129, 7
    %v8131 = vsub.s32 %v7776, %v8130
    %v8132 = vrot.slane %v7272, %v8131
    %v8133 = vlaneseq
    %v8134 = vshrl.u32 %v8133, 7
    %v8135 = vsub.s32 %v7776, %v8134
    %v8136 = vrot.slane %v7275, %v8135
    %v8137 = vlaneseq
    %v8138 = vshrl.u32 %v8137, 7
    %v8139 = vsub.s32 %v7776, %v8138
    %v8140 = vrot.slane %v7278, %v8139
    %v8141 = vlaneseq
    %v8142 = vshrl.u32 %v8141, 7
    %v8143 = vsub.s32 %v7776, %v8142
    %v8144 = vrot.slane %v7281, %v8143
    %v8145 = vlaneseq
    %v8146 = vshrl.u32 %v8145, 7
    %v8147 = vsub.s32 %v7776, %v8146
    %v8148 = vrot.slane %v7284, %v8147
    %v8149 = vlaneseq
    %v8150 = vshrl.u32 %v8149, 7
    %v8151 = vsub.s32 %v7776, %v8150
    %v8152 = vrot.slane %v7287, %v8151
    %v8153 = vlaneseq
    %v8154 = vshrl.u32 %v8153, 7
    %v8155 = vsub.s32 %v7776, %v8154
    %v8156 = vrot.slane %v7290, %v8155
    %v8157 = vlaneseq
    %v8158 = vshrl.u32 %v8157, 7
    %v8159 = vsub.s32 %v7776, %v8158
    %v8160 = vrot.slane %v7293, %v8159
    %v8161 = vlaneseq
    %v8162 = vshrl.u32 %v8161, 7
    %v8163 = vsub.s32 %v7776, %v8162
    %v8164 = vrot.slane %v7296, %v8163
    %v8165 = vlaneseq
    %v8166 = vshrl.u32 %v8165, 7
    %v8167 = vsub.s32 %v7776, %v8166
    %v8168 = vrot.slane %v7299, %v8167
    %v8169 = vlaneseq
    %v8170 = vshrl.u32 %v8169, 7
    %v8171 = vsub.s32 %v7776, %v8170
    %v8172 = vrot.slane %v7302, %v8171
    %v8173 = vlaneseq
    %v8174 = vshrl.u32 %v8173, 7
    %v8175 = vsub.s32 %v7776, %v8174
    %v8176 = vrot.slane %v7305, %v8175
    %v8177 = vlaneseq
    %v8178 = vshrl.u32 %v8177, 7
    %v8179 = vsub.s32 %v7776, %v8178
    %v8180 = vrot.slane %v7308, %v8179
    %v8181 = vlaneseq
    %v8182 = vshrl.u32 %v8181, 7
    %v8183 = vsub.s32 %v7776, %v8182
    %v8184 = vrot.slane %v7311, %v8183
    %v8185 = vlaneseq
    %v8186 = vshrl.u32 %v8185, 7
    %v8187 = vsub.s32 %v7776, %v8186
    %v8188 = vrot.slane %v7314, %v8187
    %v8189 = vlaneseq
    %v8190 = vshrl.u32 %v8189, 7
    %v8191 = vsub.s32 %v7776, %v8190
    %v8192 = vrot.slane %v7317, %v8191
    %v8193 = vlaneseq
    %v8194 = vshrl.u32 %v8193, 7
    %v8195 = vsub.s32 %v7776, %v8194
    %v8196 = vrot.slane %v7320, %v8195
    %v8197 = vlaneseq
    %v8198 = vshrl.u32 %v8197, 7
    %v8199 = vsub.s32 %v7776, %v8198
    %v8200 = vrot.slane %v7323, %v8199
    %v8201 = vlaneseq
    %v8202 = vshrl.u32 %v8201, 7
    %v8203 = vsub.s32 %v7776, %v8202
    %v8204 = vrot.slane %v7326, %v8203
    %v8205 = vlaneseq
    %v8206 = vshrl.u32 %v8205, 7
    %v8207 = vsub.s32 %v7776, %v8206
    %v8208 = vrot.slane %v7329, %v8207
    %v8209 = vlaneseq
    %v8210 = vshrl.u32 %v8209, 7
    %v8211 = vsub.s32 %v7776, %v8210
    %v8212 = vrot.slane %v7332, %v8211
    %v8213 = vlaneseq
    %v8214 = vshrl.u32 %v8213, 7
    %v8215 = vsub.s32 %v7776, %v8214
    %v8216 = vrot.slane %v7335, %v8215
    %v8217 = vlaneseq
    %v8218 = vshrl.u32 %v8217, 7
    %v8219 = vsub.s32 %v7776, %v8218
    %v8220 = vrot.slane %v7338, %v8219
    %v8221 = vlaneseq
    %v8222 = vshrl.u32 %v8221, 7
    %v8223 = vsub.s32 %v7776, %v8222
    %v8224 = vrot.slane %v7341, %v8223
    %v8225 = vlaneseq
    %v8226 = vshrl.u32 %v8225, 7
    %v8227 = vsub.s32 %v7776, %v8226
    %v8228 = vrot.slane %v7344, %v8227
    %v8229 = vlaneseq
    %v8230 = vshrl.u32 %v8229, 7
    %v8231 = vsub.s32 %v7776, %v8230
    %v8232 = vrot.slane %v7347, %v8231
    %v8233 = vlaneseq
    %v8234 = vshrl.u32 %v8233, 7
    %v8235 = vsub.s32 %v7776, %v8234
    %v8236 = vrot.slane %v7350, %v8235
    %v8237 = vlaneseq
    %v8238 = vshrl.u32 %v8237, 7
    %v8239 = vsub.s32 %v7776, %v8238
    %v8240 = vrot.slane %v7353, %v8239
    %v8241 = vlaneseq
    %v8242 = vshrl.u32 %v8241, 7
    %v8243 = vsub.s32 %v7776, %v8242
    %v8244 = vrot.slane %v7356, %v8243
    %v8245 = vlaneseq
    %v8246 = vshrl.u32 %v8245, 7
    %v8247 = vsub.s32 %v7776, %v8246
    %v8248 = vrot.slane %v7359, %v8247
    %v8249 = vlaneseq
    %v8250 = vshrl.u32 %v8249, 7
    %v8251 = vsub.s32 %v7776, %v8250
    %v8252 = vrot.slane %v7362, %v8251
    %v8253 = vlaneseq
    %v8254 = vshrl.u32 %v8253, 7
    %v8255 = vsub.s32 %v7776, %v8254
    %v8256 = vrot.slane %v7365, %v8255
    %v8257 = vlaneseq
    %v8258 = vshrl.u32 %v8257, 7
    %v8259 = vsub.s32 %v7776, %v8258
    %v8260 = vrot.slane %v7368, %v8259
    %v8261 = vlaneseq
    %v8262 = vshrl.u32 %v8261, 7
    %v8263 = vsub.s32 %v7776, %v8262
    %v8264 = vrot.slane %v7371, %v8263
    %v8265 = vlaneseq
    %v8266 = vshrl.u32 %v8265, 7
    %v8267 = vsub.s32 %v7776, %v8266
    %v8268 = vrot.slane %v7374, %v8267
    %v8269 = vlaneseq
    %v8270 = vshrl.u32 %v8269, 7
    %v8271 = vsub.s32 %v7776, %v8270
    %v8272 = vrot.slane %v7377, %v8271
    %v8273 = vlaneseq
    %v8274 = vshrl.u32 %v8273, 7
    %v8275 = vsub.s32 %v7776, %v8274
    %v8276 = vrot.slane %v7380, %v8275
    %v8277 = vlaneseq
    %v8278 = vshrl.u32 %v8277, 7
    %v8279 = vsub.s32 %v7776, %v8278
    %v8280 = vrot.slane %v7383, %v8279
    %v8281 = vlaneseq
    %v8282 = vshrl.u32 %v8281, 7
    %v8283 = vsub.s32 %v7776, %v8282
    %v8284 = vrot.slane %v7386, %v8283
    %v8285 = vlaneseq
    %v8286 = vshrl.u32 %v8285, 7
    %v8287 = vsub.s32 %v7776, %v8286
    %v8288 = vrot.slane %v7389, %v8287
    %v8289 = vlaneseq
    %v8290 = vshrl.u32 %v8289, 7
    %v8291 = vsub.s32 %v7776, %v8290
    %v8292 = vrot.slane %v7392, %v8291
    %v8293 = vlaneseq
    %v8294 = vshrl.u32 %v8293, 7
    %v8295 = vsub.s32 %v7776, %v8294
    %v8296 = vrot.slane %v7395, %v8295
    %v8297 = vlaneseq
    %v8298 = vshrl.u32 %v8297, 7
    %v8299 = vsub.s32 %v7776, %v8298
    %v8300 = vrot.slane %v7398, %v8299
    %v8301 = vlaneseq
    %v8302 = vshrl.u32 %v8301, 7
    %v8303 = vsub.s32 %v7776, %v8302
    %v8304 = vrot.slane %v7401, %v8303
    %v8305 = vlaneseq
    %v8306 = vshrl.u32 %v8305, 7
    %v8307 = vsub.s32 %v7776, %v8306
    %v8308 = vrot.slane %v7404, %v8307
    %v8309 = vlaneseq
    %v8310 = vshrl.u32 %v8309, 7
    %v8311 = vsub.s32 %v7776, %v8310
    %v8312 = vrot.slane %v7407, %v8311
    %v8313 = vlaneseq
    %v8314 = vshrl.u32 %v8313, 7
    %v8315 = vsub.s32 %v7776, %v8314
    %v8316 = vrot.slane %v7410, %v8315
    %v8317 = vlaneseq
    %v8318 = vshrl.u32 %v8317, 7
    %v8319 = vsub.s32 %v7776, %v8318
    %v8320 = vrot.slane %v7413, %v8319
    %v8321 = vlaneseq
    %v8322 = vshrl.u32 %v8321, 7
    %v8323 = vsub.s32 %v7776, %v8322
    %v8324 = vrot.slane %v7416, %v8323
    %v8325 = vlaneseq
    %v8326 = vshrl.u32 %v8325, 7
    %v8327 = vsub.s32 %v7776, %v8326
    %v8328 = vrot.slane %v7419, %v8327
    %v8329 = vlaneseq
    %v8330 = vshrl.u32 %v8329, 7
    %v8331 = vsub.s32 %v7776, %v8330
    %v8332 = vrot.slane %v7422, %v8331
    %v8333 = vlaneseq
    %v8334 = vshrl.u32 %v8333, 7
    %v8335 = vsub.s32 %v7776, %v8334
    %v8336 = vrot.slane %v7425, %v8335
    %v8337 = vlaneseq
    %v8338 = vshrl.u32 %v8337, 7
    %v8339 = vsub.s32 %v7776, %v8338
    %v8340 = vrot.slane %v7428, %v8339
    %v8341 = vlaneseq
    %v8342 = vshrl.u32 %v8341, 7
    %v8343 = vsub.s32 %v7776, %v8342
    %v8344 = vrot.slane %v7431, %v8343
    %v8345 = vlaneseq
    %v8346 = vshrl.u32 %v8345, 7
    %v8347 = vsub.s32 %v7776, %v8346
    %v8348 = vrot.slane %v7434, %v8347
    %v8349 = vlaneseq
    %v8350 = vshrl.u32 %v8349, 7
    %v8351 = vsub.s32 %v7776, %v8350
    %v8352 = vrot.slane %v7437, %v8351
    %v8353 = vlaneseq
    %v8354 = vshrl.u32 %v8353, 7
    %v8355 = vsub.s32 %v7776, %v8354
    %v8356 = vrot.slane %v7440, %v8355
    %v8357 = vlaneseq
    %v8358 = vshrl.u32 %v8357, 7
    %v8359 = vsub.s32 %v7776, %v8358
    %v8360 = vrot.slane %v7443, %v8359
    %v8361 = vlaneseq
    %v8362 = vshrl.u32 %v8361, 7
    %v8363 = vsub.s32 %v7776, %v8362
    %v8364 = vrot.slane %v7446, %v8363
    %v8365 = vlaneseq
    %v8366 = vshrl.u32 %v8365, 7
    %v8367 = vsub.s32 %v7776, %v8366
    %v8368 = vrot.slane %v7449, %v8367
    %v8369 = vlaneseq
    %v8370 = vshrl.u32 %v8369, 7
    %v8371 = vsub.s32 %v7776, %v8370
    %v8372 = vrot.slane %v7452, %v8371
    %v8373 = vlaneseq
    %v8374 = vshrl.u32 %v8373, 7
    %v8375 = vsub.s32 %v7776, %v8374
    %v8376 = vrot.slane %v7455, %v8375
    %v8377 = vlaneseq
    %v8378 = vshrl.u32 %v8377, 7
    %v8379 = vsub.s32 %v7776, %v8378
    %v8380 = vrot.slane %v7458, %v8379
    %v8381 = vlaneseq
    %v8382 = vshrl.u32 %v8381, 7
    %v8383 = vsub.s32 %v7776, %v8382
    %v8384 = vrot.slane %v7461, %v8383
    %v8385 = vlaneseq
    %v8386 = vshrl.u32 %v8385, 7
    %v8387 = vsub.s32 %v7776, %v8386
    %v8388 = vrot.slane %v7464, %v8387
    %v8389 = vlaneseq
    %v8390 = vshrl.u32 %v8389, 7
    %v8391 = vsub.s32 %v7776, %v8390
    %v8392 = vrot.slane %v7467, %v8391
    %v8393 = vlaneseq
    %v8394 = vshrl.u32 %v8393, 7
    %v8395 = vsub.s32 %v7776, %v8394
    %v8396 = vrot.slane %v7470, %v8395
    %v8397 = vlaneseq
    %v8398 = vshrl.u32 %v8397, 7
    %v8399 = vsub.s32 %v7776, %v8398
    %v8400 = vrot.slane %v7473, %v8399
    %v8401 = vlaneseq
    %v8402 = vshrl.u32 %v8401, 7
    %v8403 = vsub.s32 %v7776, %v8402
    %v8404 = vrot.slane %v7476, %v8403
    %v8405 = vlaneseq
    %v8406 = vshrl.u32 %v8405, 7
    %v8407 = vsub.s32 %v7776, %v8406
    %v8408 = vrot.slane %v7479, %v8407
    %v8409 = vlaneseq
    %v8410 = vshrl.u32 %v8409, 7
    %v8411 = vsub.s32 %v7776, %v8410
    %v8412 = vrot.slane %v7482, %v8411
    %v8413 = vlaneseq
    %v8414 = vshrl.u32 %v8413, 7
    %v8415 = vsub.s32 %v7776, %v8414
    %v8416 = vrot.slane %v7485, %v8415
    %v8417 = vlaneseq
    %v8418 = vshrl.u32 %v8417, 7
    %v8419 = vsub.s32 %v7776, %v8418
    %v8420 = vrot.slane %v7488, %v8419
    %v8421 = vlaneseq
    %v8422 = vshrl.u32 %v8421, 7
    %v8423 = vsub.s32 %v7776, %v8422
    %v8424 = vrot.slane %v7491, %v8423
    %v8425 = vlaneseq
    %v8426 = vshrl.u32 %v8425, 7
    %v8427 = vsub.s32 %v7776, %v8426
    %v8428 = vrot.slane %v7494, %v8427
    %v8429 = vlaneseq
    %v8430 = vshrl.u32 %v8429, 7
    %v8431 = vsub.s32 %v7776, %v8430
    %v8432 = vrot.slane %v7497, %v8431
    %v8433 = vlaneseq
    %v8434 = vshrl.u32 %v8433, 7
    %v8435 = vsub.s32 %v7776, %v8434
    %v8436 = vrot.slane %v7500, %v8435
    %v8437 = vlaneseq
    %v8438 = vshrl.u32 %v8437, 7
    %v8439 = vsub.s32 %v7776, %v8438
    %v8440 = vrot.slane %v7503, %v8439
    %v8441 = vlaneseq
    %v8442 = vshrl.u32 %v8441, 7
    %v8443 = vsub.s32 %v7776, %v8442
    %v8444 = vrot.slane %v7506, %v8443
    %v8445 = vlaneseq
    %v8446 = vshrl.u32 %v8445, 7
    %v8447 = vsub.s32 %v7776, %v8446
    %v8448 = vrot.slane %v7509, %v8447
    %v8449 = vlaneseq
    %v8450 = vshrl.u32 %v8449, 7
    %v8451 = vsub.s32 %v7776, %v8450
    %v8452 = vrot.slane %v7512, %v8451
    %v8453 = vlaneseq
    %v8454 = vshrl.u32 %v8453, 7
    %v8455 = vsub.s32 %v7776, %v8454
    %v8456 = vrot.slane %v7515, %v8455
    %v8457 = vlaneseq
    %v8458 = vshrl.u32 %v8457, 7
    %v8459 = vsub.s32 %v7776, %v8458
    %v8460 = vrot.slane %v7518, %v8459
    %v8461 = vlaneseq
    %v8462 = vshrl.u32 %v8461, 7
    %v8463 = vsub.s32 %v7776, %v8462
    %v8464 = vrot.slane %v7521, %v8463
    %v8465 = vlaneseq
    %v8466 = vshrl.u32 %v8465, 7
    %v8467 = vsub.s32 %v7776, %v8466
    %v8468 = vrot.slane %v7524, %v8467
    %v8469 = vlaneseq
    %v8470 = vshrl.u32 %v8469, 7
    %v8471 = vsub.s32 %v7776, %v8470
    %v8472 = vrot.slane %v7527, %v8471
    %v8473 = vlaneseq
    %v8474 = vshrl.u32 %v8473, 7
    %v8475 = vsub.s32 %v7776, %v8474
    %v8476 = vrot.slane %v7530, %v8475
    %v8477 = vlaneseq
    %v8478 = vshrl.u32 %v8477, 7
    %v8479 = vsub.s32 %v7776, %v8478
    %v8480 = vrot.slane %v7533, %v8479
    %v8481 = vlaneseq
    %v8482 = vshrl.u32 %v8481, 7
    %v8483 = vsub.s32 %v7776, %v8482
    %v8484 = vrot.slane %v7536, %v8483
    %v8485 = vlaneseq
    %v8486 = vshrl.u32 %v8485, 7
    %v8487 = vsub.s32 %v7776, %v8486
    %v8488 = vrot.slane %v7539, %v8487
    %v8489 = vlaneseq
    %v8490 = vshrl.u32 %v8489, 7
    %v8491 = vsub.s32 %v7776, %v8490
    %v8492 = vrot.slane %v7542, %v8491
    %v8493 = vlaneseq
    %v8494 = vshrl.u32 %v8493, 7
    %v8495 = vsub.s32 %v7776, %v8494
    %v8496 = vrot.slane %v7545, %v8495
    %v8497 = vlaneseq
    %v8498 = vshrl.u32 %v8497, 7
    %v8499 = vsub.s32 %v7776, %v8498
    %v8500 = vrot.slane %v7548, %v8499
    %v8501 = vlaneseq
    %v8502 = vshrl.u32 %v8501, 7
    %v8503 = vsub.s32 %v7776, %v8502
    %v8504 = vrot.slane %v7551, %v8503
    %v8505 = vlaneseq
    %v8506 = vshrl.u32 %v8505, 7
    %v8507 = vsub.s32 %v7776, %v8506
    %v8508 = vrot.slane %v7554, %v8507
    %v8509 = vlaneseq
    %v8510 = vshrl.u32 %v8509, 7
    %v8511 = vsub.s32 %v7776, %v8510
    %v8512 = vrot.slane %v7557, %v8511
    %v8513 = vlaneseq
    %v8514 = vshrl.u32 %v8513, 7
    %v8515 = vsub.s32 %v7776, %v8514
    %v8516 = vrot.slane %v7560, %v8515
    %v8517 = vlaneseq
    %v8518 = vshrl.u32 %v8517, 7
    %v8519 = vsub.s32 %v7776, %v8518
    %v8520 = vrot.slane %v7563, %v8519
    %v8521 = vlaneseq
    %v8522 = vshrl.u32 %v8521, 7
    %v8523 = vsub.s32 %v7776, %v8522
    %v8524 = vrot.slane %v7566, %v8523
    %v8525 = vlaneseq
    %v8526 = vshrl.u32 %v8525, 7
    %v8527 = vsub.s32 %v7776, %v8526
    %v8528 = vrot.slane %v7569, %v8527
    %v8529 = vlaneseq
    %v8530 = vshrl.u32 %v8529, 7
    %v8531 = vsub.s32 %v7776, %v8530
    %v8532 = vrot.slane %v7572, %v8531
    %v8533 = vlaneseq
    %v8534 = vshrl.u32 %v8533, 7
    %v8535 = vsub.s32 %v7776, %v8534
    %v8536 = vrot.slane %v7575, %v8535
    %v8537 = vlaneseq
    %v8538 = vshrl.u32 %v8537, 7
    %v8539 = vsub.s32 %v7776, %v8538
    %v8540 = vrot.slane %v7578, %v8539
    %v8541 = vlaneseq
    %v8542 = vshrl.u32 %v8541, 7
    %v8543 = vsub.s32 %v7776, %v8542
    %v8544 = vrot.slane %v7581, %v8543
    %v8545 = vlaneseq
    %v8546 = vshrl.u32 %v8545, 7
    %v8547 = vsub.s32 %v7776, %v8546
    %v8548 = vrot.slane %v7584, %v8547
    %v8549 = vlaneseq
    %v8550 = vshrl.u32 %v8549, 7
    %v8551 = vsub.s32 %v7776, %v8550
    %v8552 = vrot.slane %v7587, %v8551
    %v8553 = vlaneseq
    %v8554 = vshrl.u32 %v8553, 7
    %v8555 = vsub.s32 %v7776, %v8554
    %v8556 = vrot.slane %v7590, %v8555
    %v8557 = vlaneseq
    %v8558 = vshrl.u32 %v8557, 7
    %v8559 = vsub.s32 %v7776, %v8558
    %v8560 = vrot.slane %v7593, %v8559
    %v8561 = vlaneseq
    %v8562 = vshrl.u32 %v8561, 7
    %v8563 = vsub.s32 %v7776, %v8562
    %v8564 = vrot.slane %v7596, %v8563
    %v8565 = vlaneseq
    %v8566 = vshrl.u32 %v8565, 7
    %v8567 = vsub.s32 %v7776, %v8566
    %v8568 = vrot.slane %v7599, %v8567
    %v8569 = vlaneseq
    %v8570 = vshrl.u32 %v8569, 7
    %v8571 = vsub.s32 %v7776, %v8570
    %v8572 = vrot.slane %v7602, %v8571
    %v8573 = vlaneseq
    %v8574 = vshrl.u32 %v8573, 7
    %v8575 = vsub.s32 %v7776, %v8574
    %v8576 = vrot.slane %v7605, %v8575
    %v8577 = vlaneseq
    %v8578 = vshrl.u32 %v8577, 7
    %v8579 = vsub.s32 %v7776, %v8578
    %v8580 = vrot.slane %v7608, %v8579
    %v8581 = vlaneseq
    %v8582 = vshrl.u32 %v8581, 7
    %v8583 = vsub.s32 %v7776, %v8582
    %v8584 = vrot.slane %v7611, %v8583
    %v8585 = vlaneseq
    %v8586 = vshrl.u32 %v8585, 7
    %v8587 = vsub.s32 %v7776, %v8586
    %v8588 = vrot.slane %v7614, %v8587
    %v8589 = vlaneseq
    %v8590 = vshrl.u32 %v8589, 7
    %v8591 = vsub.s32 %v7776, %v8590
    %v8592 = vrot.slane %v7617, %v8591
    %v8593 = vlaneseq
    %v8594 = vshrl.u32 %v8593, 7
    %v8595 = vsub.s32 %v7776, %v8594
    %v8596 = vrot.slane %v7620, %v8595
    %v8597 = vlaneseq
    %v8598 = vshrl.u32 %v8597, 7
    %v8599 = vsub.s32 %v7776, %v8598
    %v8600 = vrot.slane %v7623, %v8599
    %v8601 = vlaneseq
    %v8602 = vshrl.u32 %v8601, 7
    %v8603 = vsub.s32 %v7776, %v8602
    %v8604 = vrot.slane %v7626, %v8603
    %v8605 = vlaneseq
    %v8606 = vshrl.u32 %v8605, 7
    %v8607 = vsub.s32 %v7776, %v8606
    %v8608 = vrot.slane %v7629, %v8607
    %v8609 = vlaneseq
    %v8610 = vshrl.u32 %v8609, 7
    %v8611 = vsub.s32 %v7776, %v8610
    %v8612 = vrot.slane %v7632, %v8611
    %v8613 = vlaneseq
    %v8614 = vshrl.u32 %v8613, 7
    %v8615 = vsub.s32 %v7776, %v8614
    %v8616 = vrot.slane %v7635, %v8615
    %v8617 = vlaneseq
    %v8618 = vshrl.u32 %v8617, 7
    %v8619 = vsub.s32 %v7776, %v8618
    %v8620 = vrot.slane %v7638, %v8619
    %v8621 = vlaneseq
    %v8622 = vshrl.u32 %v8621, 7
    %v8623 = vsub.s32 %v7776, %v8622
    %v8624 = vrot.slane %v7641, %v8623
    %v8625 = vlaneseq
    %v8626 = vshrl.u32 %v8625, 7
    %v8627 = vsub.s32 %v7776, %v8626
    %v8628 = vrot.slane %v7644, %v8627
    %v8629 = vlaneseq
    %v8630 = vshrl.u32 %v8629, 7
    %v8631 = vsub.s32 %v7776, %v8630
    %v8632 = vrot.slane %v7647, %v8631
    %v8633 = vlaneseq
    %v8634 = vshrl.u32 %v8633, 7
    %v8635 = vsub.s32 %v7776, %v8634
    %v8636 = vrot.slane %v7650, %v8635
    %v8637 = vlaneseq
    %v8638 = vshrl.u32 %v8637, 7
    %v8639 = vsub.s32 %v7776, %v8638
    %v8640 = vrot.slane %v7653, %v8639
    %v8641 = vlaneseq
    %v8642 = vshrl.u32 %v8641, 7
    %v8643 = vsub.s32 %v7776, %v8642
    %v8644 = vrot.slane %v7656, %v8643
    %v8645 = vlaneseq
    %v8646 = vshrl.u32 %v8645, 7
    %v8647 = vsub.s32 %v7776, %v8646
    %v8648 = vrot.slane %v7659, %v8647
    %v8649 = vlaneseq
    %v8650 = vshrl.u32 %v8649, 7
    %v8651 = vsub.s32 %v7776, %v8650
    %v8652 = vrot.slane %v7662, %v8651
    %v8653 = vlaneseq
    %v8654 = vshrl.u32 %v8653, 7
    %v8655 = vsub.s32 %v7776, %v8654
    %v8656 = vrot.slane %v7665, %v8655
    %v8657 = vlaneseq
    %v8658 = vshrl.u32 %v8657, 7
    %v8659 = vsub.s32 %v7776, %v8658
    %v8660 = vrot.slane %v7668, %v8659
    %v8661 = vlaneseq
    %v8662 = vshrl.u32 %v8661, 7
    %v8663 = vsub.s32 %v7776, %v8662
    %v8664 = vrot.slane %v7671, %v8663
    %v8665 = vlaneseq
    %v8666 = vshrl.u32 %v8665, 7
    %v8667 = vsub.s32 %v7776, %v8666
    %v8668 = vrot.slane %v7674, %v8667
    %v8669 = vlaneseq
    %v8670 = vshrl.u32 %v8669, 7
    %v8671 = vsub.s32 %v7776, %v8670
    %v8672 = vrot.slane %v7677, %v8671
    %v8673 = vlaneseq
    %v8674 = vshrl.u32 %v8673, 7
    %v8675 = vsub.s32 %v7776, %v8674
    %v8676 = vrot.slane %v7680, %v8675
    %v8677 = vlaneseq
    %v8678 = vshrl.u32 %v8677, 7
    %v8679 = vsub.s32 %v7776, %v8678
    %v8680 = vrot.slane %v7683, %v8679
    %v8681 = vlaneseq
    %v8682 = vshrl.u32 %v8681, 7
    %v8683 = vsub.s32 %v7776, %v8682
    %v8684 = vrot.slane %v7686, %v8683
    %v8685 = vlaneseq
    %v8686 = vshrl.u32 %v8685, 7
    %v8687 = vsub.s32 %v7776, %v8686
    %v8688 = vrot.slane %v7689, %v8687
    %v8689 = vlaneseq
    %v8690 = vshrl.u32 %v8689, 7
    %v8691 = vsub.s32 %v7776, %v8690
    %v8692 = vrot.slane %v7692, %v8691
    %v8693 = vlaneseq
    %v8694 = vshrl.u32 %v8693, 7
    %v8695 = vsub.s32 %v7776, %v8694
    %v8696 = vrot.slane %v7695, %v8695
    %v8697 = vlaneseq
    %v8698 = vshrl.u32 %v8697, 7
    %v8699 = vsub.s32 %v7776, %v8698
    %v8700 = vrot.slane %v7698, %v8699
    %v8701 = vlaneseq
    %v8702 = vshrl.u32 %v8701, 7
    %v8703 = vsub.s32 %v7776, %v8702
    %v8704 = vrot.slane %v7701, %v8703
    %v8705 = vlaneseq
    %v8706 = vshrl.u32 %v8705, 7
    %v8707 = vsub.s32 %v7776, %v8706
    %v8708 = vrot.slane %v7704, %v8707
    %v8709 = vlaneseq
    %v8710 = vshrl.u32 %v8709, 7
    %v8711 = vsub.s32 %v7776, %v8710
    %v8712 = vrot.slane %v7707, %v8711
    %v8713 = vlaneseq
    %v8714 = vshrl.u32 %v8713, 7
    %v8715 = vsub.s32 %v7776, %v8714
    %v8716 = vrot.slane %v7710, %v8715
    %v8717 = vlaneseq
    %v8718 = vshrl.u32 %v8717, 7
    %v8719 = vsub.s32 %v7776, %v8718
    %v8720 = vrot.slane %v7713, %v8719
    %v8721 = vlaneseq
    %v8722 = vshrl.u32 %v8721, 7
    %v8723 = vsub.s32 %v7776, %v8722
    %v8724 = vrot.slane %v7716, %v8723
    %v8725 = vlaneseq
    %v8726 = vshrl.u32 %v8725, 7
    %v8727 = vsub.s32 %v7776, %v8726
    %v8728 = vrot.slane %v7719, %v8727
    %v8729 = vlaneseq
    %v8730 = vshrl.u32 %v8729, 7
    %v8731 = vsub.s32 %v7776, %v8730
    %v8732 = vrot.slane %v7722, %v8731
    %v8733 = vlaneseq
    %v8734 = vshrl.u32 %v8733, 7
    %v8735 = vsub.s32 %v7776, %v8734
    %v8736 = vrot.slane %v7725, %v8735
    %v8737 = vlaneseq
    %v8738 = vshrl.u32 %v8737, 7
    %v8739 = vsub.s32 %v7776, %v8738
    %v8740 = vrot.slane %v7728, %v8739
    %v8741 = vlaneseq
    %v8742 = vshrl.u32 %v8741, 7
    %v8743 = vsub.s32 %v7776, %v8742
    %v8744 = vrot.slane %v7731, %v8743
    %v8745 = vlaneseq
    %v8746 = vshrl.u32 %v8745, 7
    %v8747 = vsub.s32 %v7776, %v8746
    %v8748 = vrot.slane %v7734, %v8747
    %v8749 = vlaneseq
    %v8750 = vshrl.u32 %v8749, 7
    %v8751 = vsub.s32 %v7776, %v8750
    %v8752 = vrot.slane %v7737, %v8751
    %v8753 = vlaneseq
    %v8754 = vshrl.u32 %v8753, 7
    %v8755 = vsub.s32 %v7776, %v8754
    %v8756 = vrot.slane %v7740, %v8755
    %v8757 = vlaneseq
    %v8758 = vshrl.u32 %v8757, 7
    %v8759 = vsub.s32 %v7776, %v8758
    %v8760 = vrot.slane %v7743, %v8759
    %v8761 = vlaneseq
    %v8762 = vshrl.u32 %v8761, 7
    %v8763 = vsub.s32 %v7776, %v8762
    %v8764 = vrot.slane %v7746, %v8763
    %v8765 = vlaneseq
    %v8766 = vshrl.u32 %v8765, 7
    %v8767 = vsub.s32 %v7776, %v8766
    %v8768 = vrot.slane %v7749, %v8767
    %v8769 = vlaneseq
    %v8770 = vshrl.u32 %v8769, 7
    %v8771 = vsub.s32 %v7776, %v8770
    %v8772 = vrot.slane %v7752, %v8771
    %v8773 = vlaneseq
    %v8774 = vshrl.u32 %v8773, 7
    %v8775 = vsub.s32 %v7776, %v8774
    %v8776 = vrot.slane %v7755, %v8775
    %v8777 = vlaneseq
    %v8778 = vshrl.u32 %v8777, 7
    %v8779 = vsub.s32 %v7776, %v8778
    %v8780 = vrot.slane %v7758, %v8779
    %v8781 = vlaneseq
    %v8782 = vshrl.u32 %v8781, 7
    %v8783 = vsub.s32 %v7776, %v8782
    %v8784 = vrot.slane %v7761, %v8783
    %v8785 = vlaneseq
    %v8786 = vshrl.u32 %v8785, 7
    %v8787 = vsub.s32 %v7776, %v8786
    %v8788 = vrot.slane %v7764, %v8787
    %v8789 = vlaneseq
    %v8790 = vshrl.u32 %v8789, 7
    %v8791 = vsub.s32 %v7776, %v8790
    %v8792 = vrot.slane %v7767, %v8791
    %v8793 = vlaneseq
    %v8794 = vshrl.u32 %v8793, 7
    %v8795 = vsub.s32 %v7776, %v8794
    %v8796 = vrot.slane %v7770, %v8795
    %v8797 = vlaneseq
    %v8798 = vshrl.u32 %v8797, 7
    %v8799 = vsub.s32 %v7776, %v8798
    %v8800 = vrot.slane %v7773, %v8799
    %vm8801 = vcmask 1041409
    %v8802 = vsel %vm8801, %v7784, %v7780
    %vm8803 = vcmask 1042434
    %v8804 = vsel %vm8803, %v7788, %v8802
    %vm8805 = vcmask 1043459
    %v8806 = vsel %vm8805, %v7792, %v8804
    %vm8807 = vcmask 1044484
    %v8808 = vsel %vm8807, %v7796, %v8806
    %vm8809 = vcmask 1045509
    %v8810 = vsel %vm8809, %v7800, %v8808
    %vm8811 = vcmask 1046534
    %v8812 = vsel %vm8811, %v7804, %v8810
    %vm8813 = vcmask 1047559
    %v8814 = vsel %vm8813, %v7808, %v8812
    %v8815 = vsel %vm8801, %v7816, %v7812
    %v8816 = vsel %vm8803, %v7820, %v8815
    %v8817 = vsel %vm8805, %v7824, %v8816
    %v8818 = vsel %vm8807, %v7828, %v8817
    %v8819 = vsel %vm8809, %v7832, %v8818
    %v8820 = vsel %vm8811, %v7836, %v8819
    %v8821 = vsel %vm8813, %v7840, %v8820
    %v8822 = vsel %vm8801, %v7848, %v7844
    %v8823 = vsel %vm8803, %v7852, %v8822
    %v8824 = vsel %vm8805, %v7856, %v8823
    %v8825 = vsel %vm8807, %v7860, %v8824
    %v8826 = vsel %vm8809, %v7864, %v8825
    %v8827 = vsel %vm8811, %v7868, %v8826
    %v8828 = vsel %vm8813, %v7872, %v8827
    %v8829 = vsel %vm8801, %v7880, %v7876
    %v8830 = vsel %vm8803, %v7884, %v8829
    %v8831 = vsel %vm8805, %v7888, %v8830
    %v8832 = vsel %vm8807, %v7892, %v8831
    %v8833 = vsel %vm8809, %v7896, %v8832
    %v8834 = vsel %vm8811, %v7900, %v8833
    %v8835 = vsel %vm8813, %v7904, %v8834
    %v8836 = vsel %vm8801, %v7912, %v7908
    %v8837 = vsel %vm8803, %v7916, %v8836
    %v8838 = vsel %vm8805, %v7920, %v8837
    %v8839 = vsel %vm8807, %v7924, %v8838
    %v8840 = vsel %vm8809, %v7928, %v8839
    %v8841 = vsel %vm8811, %v7932, %v8840
    %v8842 = vsel %vm8813, %v7936, %v8841
    %v8843 = vsel %vm8801, %v7944, %v7940
    %v8844 = vsel %vm8803, %v7948, %v8843
    %v8845 = vsel %vm8805, %v7952, %v8844
    %v8846 = vsel %vm8807, %v7956, %v8845
    %v8847 = vsel %vm8809, %v7960, %v8846
    %v8848 = vsel %vm8811, %v7964, %v8847
    %v8849 = vsel %vm8813, %v7968, %v8848
    %v8850 = vsel %vm8801, %v7976, %v7972
    %v8851 = vsel %vm8803, %v7980, %v8850
    %v8852 = vsel %vm8805, %v7984, %v8851
    %v8853 = vsel %vm8807, %v7988, %v8852
    %v8854 = vsel %vm8809, %v7992, %v8853
    %v8855 = vsel %vm8811, %v7996, %v8854
    %v8856 = vsel %vm8813, %v8000, %v8855
    %v8857 = vsel %vm8801, %v8008, %v8004
    %v8858 = vsel %vm8803, %v8012, %v8857
    %v8859 = vsel %vm8805, %v8016, %v8858
    %v8860 = vsel %vm8807, %v8020, %v8859
    %v8861 = vsel %vm8809, %v8024, %v8860
    %v8862 = vsel %vm8811, %v8028, %v8861
    %v8863 = vsel %vm8813, %v8032, %v8862
    %v8864 = vsel %vm8801, %v8040, %v8036
    %v8865 = vsel %vm8803, %v8044, %v8864
    %v8866 = vsel %vm8805, %v8048, %v8865
    %v8867 = vsel %vm8807, %v8052, %v8866
    %v8868 = vsel %vm8809, %v8056, %v8867
    %v8869 = vsel %vm8811, %v8060, %v8868
    %v8870 = vsel %vm8813, %v8064, %v8869
    %v8871 = vsel %vm8801, %v8072, %v8068
    %v8872 = vsel %vm8803, %v8076, %v8871
    %v8873 = vsel %vm8805, %v8080, %v8872
    %v8874 = vsel %vm8807, %v8084, %v8873
    %v8875 = vsel %vm8809, %v8088, %v8874
    %v8876 = vsel %vm8811, %v8092, %v8875
    %v8877 = vsel %vm8813, %v8096, %v8876
    %v8878 = vsel %vm8801, %v8104, %v8100
    %v8879 = vsel %vm8803, %v8108, %v8878
    %v8880 = vsel %vm8805, %v8112, %v8879
    %v8881 = vsel %vm8807, %v8116, %v8880
    %v8882 = vsel %vm8809, %v8120, %v8881
    %v8883 = vsel %vm8811, %v8124, %v8882
    %v8884 = vsel %vm8813, %v8128, %v8883
    %v8885 = vsel %vm8801, %v8136, %v8132
    %v8886 = vsel %vm8803, %v8140, %v8885
    %v8887 = vsel %vm8805, %v8144, %v8886
    %v8888 = vsel %vm8807, %v8148, %v8887
    %v8889 = vsel %vm8809, %v8152, %v8888
    %v8890 = vsel %vm8811, %v8156, %v8889
    %v8891 = vsel %vm8813, %v8160, %v8890
    %v8892 = vsel %vm8801, %v8168, %v8164
    %v8893 = vsel %vm8803, %v8172, %v8892
    %v8894 = vsel %vm8805, %v8176, %v8893
    %v8895 = vsel %vm8807, %v8180, %v8894
    %v8896 = vsel %vm8809, %v8184, %v8895
    %v8897 = vsel %vm8811, %v8188, %v8896
    %v8898 = vsel %vm8813, %v8192, %v8897
    %v8899 = vsel %vm8801, %v8200, %v8196
    %v8900 = vsel %vm8803, %v8204, %v8899
    %v8901 = vsel %vm8805, %v8208, %v8900
    %v8902 = vsel %vm8807, %v8212, %v8901
    %v8903 = vsel %vm8809, %v8216, %v8902
    %v8904 = vsel %vm8811, %v8220, %v8903
    %v8905 = vsel %vm8813, %v8224, %v8904
    %v8906 = vsel %vm8801, %v8232, %v8228
    %v8907 = vsel %vm8803, %v8236, %v8906
    %v8908 = vsel %vm8805, %v8240, %v8907
    %v8909 = vsel %vm8807, %v8244, %v8908
    %v8910 = vsel %vm8809, %v8248, %v8909
    %v8911 = vsel %vm8811, %v8252, %v8910
    %v8912 = vsel %vm8813, %v8256, %v8911
    %v8913 = vsel %vm8801, %v8264, %v8260
    %v8914 = vsel %vm8803, %v8268, %v8913
    %v8915 = vsel %vm8805, %v8272, %v8914
    %v8916 = vsel %vm8807, %v8276, %v8915
    %v8917 = vsel %vm8809, %v8280, %v8916
    %v8918 = vsel %vm8811, %v8284, %v8917
    %v8919 = vsel %vm8813, %v8288, %v8918
    %v8920 = vsel %vm8801, %v8296, %v8292
    %v8921 = vsel %vm8803, %v8300, %v8920
    %v8922 = vsel %vm8805, %v8304, %v8921
    %v8923 = vsel %vm8807, %v8308, %v8922
    %v8924 = vsel %vm8809, %v8312, %v8923
    %v8925 = vsel %vm8811, %v8316, %v8924
    %v8926 = vsel %vm8813, %v8320, %v8925
    %v8927 = vsel %vm8801, %v8328, %v8324
    %v8928 = vsel %vm8803, %v8332, %v8927
    %v8929 = vsel %vm8805, %v8336, %v8928
    %v8930 = vsel %vm8807, %v8340, %v8929
    %v8931 = vsel %vm8809, %v8344, %v8930
    %v8932 = vsel %vm8811, %v8348, %v8931
    %v8933 = vsel %vm8813, %v8352, %v8932
    %v8934 = vsel %vm8801, %v8360, %v8356
    %v8935 = vsel %vm8803, %v8364, %v8934
    %v8936 = vsel %vm8805, %v8368, %v8935
    %v8937 = vsel %vm8807, %v8372, %v8936
    %v8938 = vsel %vm8809, %v8376, %v8937
    %v8939 = vsel %vm8811, %v8380, %v8938
    %v8940 = vsel %vm8813, %v8384, %v8939
    %v8941 = vsel %vm8801, %v8392, %v8388
    %v8942 = vsel %vm8803, %v8396, %v8941
    %v8943 = vsel %vm8805, %v8400, %v8942
    %v8944 = vsel %vm8807, %v8404, %v8943
    %v8945 = vsel %vm8809, %v8408, %v8944
    %v8946 = vsel %vm8811, %v8412, %v8945
    %v8947 = vsel %vm8813, %v8416, %v8946
    %v8948 = vsel %vm8801, %v8424, %v8420
    %v8949 = vsel %vm8803, %v8428, %v8948
    %v8950 = vsel %vm8805, %v8432, %v8949
    %v8951 = vsel %vm8807, %v8436, %v8950
    %v8952 = vsel %vm8809, %v8440, %v8951
    %v8953 = vsel %vm8811, %v8444, %v8952
    %v8954 = vsel %vm8813, %v8448, %v8953
    %v8955 = vsel %vm8801, %v8456, %v8452
    %v8956 = vsel %vm8803, %v8460, %v8955
    %v8957 = vsel %vm8805, %v8464, %v8956
    %v8958 = vsel %vm8807, %v8468, %v8957
    %v8959 = vsel %vm8809, %v8472, %v8958
    %v8960 = vsel %vm8811, %v8476, %v8959
    %v8961 = vsel %vm8813, %v8480, %v8960
    %v8962 = vsel %vm8801, %v8488, %v8484
    %v8963 = vsel %vm8803, %v8492, %v8962
    %v8964 = vsel %vm8805, %v8496, %v8963
    %v8965 = vsel %vm8807, %v8500, %v8964
    %v8966 = vsel %vm8809, %v8504, %v8965
    %v8967 = vsel %vm8811, %v8508, %v8966
    %v8968 = vsel %vm8813, %v8512, %v8967
    %v8969 = vsel %vm8801, %v8520, %v8516
    %v8970 = vsel %vm8803, %v8524, %v8969
    %v8971 = vsel %vm8805, %v8528, %v8970
    %v8972 = vsel %vm8807, %v8532, %v8971
    %v8973 = vsel %vm8809, %v8536, %v8972
    %v8974 = vsel %vm8811, %v8540, %v8973
    %v8975 = vsel %vm8813, %v8544, %v8974
    %v8976 = vsel %vm8801, %v8552, %v8548
    %v8977 = vsel %vm8803, %v8556, %v8976
    %v8978 = vsel %vm8805, %v8560, %v8977
    %v8979 = vsel %vm8807, %v8564, %v8978
    %v8980 = vsel %vm8809, %v8568, %v8979
    %v8981 = vsel %vm8811, %v8572, %v8980
    %v8982 = vsel %vm8813, %v8576, %v8981
    %v8983 = vsel %vm8801, %v8584, %v8580
    %v8984 = vsel %vm8803, %v8588, %v8983
    %v8985 = vsel %vm8805, %v8592, %v8984
    %v8986 = vsel %vm8807, %v8596, %v8985
    %v8987 = vsel %vm8809, %v8600, %v8986
    %v8988 = vsel %vm8811, %v8604, %v8987
    %v8989 = vsel %vm8813, %v8608, %v8988
    %v8990 = vsel %vm8801, %v8616, %v8612
    %v8991 = vsel %vm8803, %v8620, %v8990
    %v8992 = vsel %vm8805, %v8624, %v8991
    %v8993 = vsel %vm8807, %v8628, %v8992
    %v8994 = vsel %vm8809, %v8632, %v8993
    %v8995 = vsel %vm8811, %v8636, %v8994
    %v8996 = vsel %vm8813, %v8640, %v8995
    %v8997 = vsel %vm8801, %v8648, %v8644
    %v8998 = vsel %vm8803, %v8652, %v8997
    %v8999 = vsel %vm8805, %v8656, %v8998
    %v9000 = vsel %vm8807, %v8660, %v8999
    %v9001 = vsel %vm8809, %v8664, %v9000
    %v9002 = vsel %vm8811, %v8668, %v9001
    %v9003 = vsel %vm8813, %v8672, %v9002
    %v9004 = vsel %vm8801, %v8680, %v8676
    %v9005 = vsel %vm8803, %v8684, %v9004
    %v9006 = vsel %vm8805, %v8688, %v9005
    %v9007 = vsel %vm8807, %v8692, %v9006
    %v9008 = vsel %vm8809, %v8696, %v9007
    %v9009 = vsel %vm8811, %v8700, %v9008
    %v9010 = vsel %vm8813, %v8704, %v9009
    %v9011 = vsel %vm8801, %v8712, %v8708
    %v9012 = vsel %vm8803, %v8716, %v9011
    %v9013 = vsel %vm8805, %v8720, %v9012
    %v9014 = vsel %vm8807, %v8724, %v9013
    %v9015 = vsel %vm8809, %v8728, %v9014
    %v9016 = vsel %vm8811, %v8732, %v9015
    %v9017 = vsel %vm8813, %v8736, %v9016
    %v9018 = vsel %vm8801, %v8744, %v8740
    %v9019 = vsel %vm8803, %v8748, %v9018
    %v9020 = vsel %vm8805, %v8752, %v9019
    %v9021 = vsel %vm8807, %v8756, %v9020
    %v9022 = vsel %vm8809, %v8760, %v9021
    %v9023 = vsel %vm8811, %v8764, %v9022
    %v9024 = vsel %vm8813, %v8768, %v9023
    %v9025 = vsel %vm8801, %v8776, %v8772
    %v9026 = vsel %vm8803, %v8780, %v9025
    %v9027 = vsel %vm8805, %v8784, %v9026
    %v9028 = vsel %vm8807, %v8788, %v9027
    %v9029 = vsel %vm8809, %v8792, %v9028
    %v9030 = vsel %vm8811, %v8796, %v9029
    %v9031 = vsel %vm8813, %v8800, %v9030
    %vm9064 = vcmask 7168
    %v9065 = vsel %vm9064, %v6655, %v8814
    %v9066 = vsel %vm9064, %v6657, %v8821
    %v9067 = vsel %vm9064, %v6659, %v8828
    %v9068 = vsel %vm9064, %v6661, %v8835
    %v9069 = vsel %vm9064, %v6663, %v8842
    %v9070 = vsel %vm9064, %v6665, %v8849
    %v9071 = vsel %vm9064, %v6667, %v8856
    %v9072 = vsel %vm9064, %v6669, %v8863
    %v9073 = vsel %vm9064, %v6671, %v8870
    %v9074 = vsel %vm9064, %v6673, %v8877
    %v9075 = vsel %vm9064, %v6675, %v8884
    %v9076 = vsel %vm9064, %v6677, %v8891
    %v9077 = vsel %vm9064, %v6679, %v8898
    %v9078 = vsel %vm9064, %v6681, %v8905
    %v9079 = vsel %vm9064, %v6683, %v8912
    %v9080 = vsel %vm9064, %v6685, %v8919
    %v9081 = vsel %vm9064, %v6687, %v8926
    %v9082 = vsel %vm9064, %v6689, %v8933
    %v9083 = vsel %vm9064, %v6691, %v8940
    %v9084 = vsel %vm9064, %v6693, %v8947
    %v9085 = vsel %vm9064, %v6695, %v8954
    %v9086 = vsel %vm9064, %v6697, %v8961
    %v9087 = vsel %vm9064, %v6699, %v8968
    %v9088 = vsel %vm9064, %v6701, %v8975
    %v9089 = vsel %vm9064, %v6703, %v8982
    %v9090 = vsel %vm9064, %v6705, %v8989
    %v9091 = vsel %vm9064, %v6707, %v8996
    %v9092 = vsel %vm9064, %v6709, %v9003
    %v9093 = vsel %vm9064, %v6711, %v9010
    %v9094 = vsel %vm9064, %v6713, %v9017
    %v9095 = vsel %vm9064, %v6715, %v9024
    %v9096 = vsel %vm9064, %v6717, %v9031
    %9097 = vxpose.xlu0.b32.start [1/16] %v9065, 128
    %9098 = vxpose.xlu0.b32.cont [2/16] %v9066, 128
    %9099 = vxpose.xlu0.b32.cont [3/16] %v9067, 128
    %9100 = vxpose.xlu0.b32.cont [4/16] %v9068, 128
    %9101 = vxpose.xlu0.b32.cont [5/16] %v9069, 128
    %9102 = vxpose.xlu0.b32.cont [6/16] %v9070, 128
    %9103 = vxpose.xlu0.b32.cont [7/16] %v9071, 128
    %9104 = vxpose.xlu0.b32.cont [8/16] %v9072, 128
    %9105 = vxpose.xlu0.b32.cont [9/16] %v9073, 128
    %9106 = vxpose.xlu0.b32.cont [10/16] %v9074, 128
    %9107 = vxpose.xlu0.b32.cont [11/16] %v9075, 128
    %9108 = vxpose.xlu0.b32.cont [12/16] %v9076, 128
    %9109 = vxpose.xlu0.b32.cont [13/16] %v9077, 128
    %9110 = vxpose.xlu0.b32.cont [14/16] %v9078, 128
    %9111 = vxpose.xlu0.b32.cont [15/16] %v9079, 128
    %9112 = vxpose.xlu0.b32.end [16/16] %v9080, 128
    %v9113 = vpop.trf.xlu0
    %v9114 = vpop.trf.xlu0
    %v9115 = vpop.trf.xlu0
    %v9116 = vpop.trf.xlu0
    %v9117 = vpop.trf.xlu0
    %v9118 = vpop.trf.xlu0
    %v9119 = vpop.trf.xlu0
    %v9120 = vpop.trf.xlu0
    %v9121 = vpop.trf.xlu0
    %v9122 = vpop.trf.xlu0
    %v9123 = vpop.trf.xlu0
    %v9124 = vpop.trf.xlu0
    %v9125 = vpop.trf.xlu0
    %v9126 = vpop.trf.xlu0
    %v9127 = vpop.trf.xlu0
    %v9128 = vpop.trf.xlu0
    %9129 = vxpose.xlu0.b32.start [1/16] %v9081, 128
    %9130 = vxpose.xlu0.b32.cont [2/16] %v9082, 128
    %9131 = vxpose.xlu0.b32.cont [3/16] %v9083, 128
    %9132 = vxpose.xlu0.b32.cont [4/16] %v9084, 128
    %9133 = vxpose.xlu0.b32.cont [5/16] %v9085, 128
    %9134 = vxpose.xlu0.b32.cont [6/16] %v9086, 128
    %9135 = vxpose.xlu0.b32.cont [7/16] %v9087, 128
    %9136 = vxpose.xlu0.b32.cont [8/16] %v9088, 128
    %9137 = vxpose.xlu0.b32.cont [9/16] %v9089, 128
    %9138 = vxpose.xlu0.b32.cont [10/16] %v9090, 128
    %9139 = vxpose.xlu0.b32.cont [11/16] %v9091, 128
    %9140 = vxpose.xlu0.b32.cont [12/16] %v9092, 128
    %9141 = vxpose.xlu0.b32.cont [13/16] %v9093, 128
    %9142 = vxpose.xlu0.b32.cont [14/16] %v9094, 128
    %9143 = vxpose.xlu0.b32.cont [15/16] %v9095, 128
    %9144 = vxpose.xlu0.b32.end [16/16] %v9096, 128
    %v9145 = vpop.trf.xlu0
    %v9146 = vpop.trf.xlu0
    %v9147 = vpop.trf.xlu0
    %v9148 = vpop.trf.xlu0
    %v9149 = vpop.trf.xlu0
    %v9150 = vpop.trf.xlu0
    %v9151 = vpop.trf.xlu0
    %v9152 = vpop.trf.xlu0
    %v9153 = vpop.trf.xlu0
    %v9154 = vpop.trf.xlu0
    %v9155 = vpop.trf.xlu0
    %v9156 = vpop.trf.xlu0
    %v9157 = vpop.trf.xlu0
    %v9158 = vpop.trf.xlu0
    %v9159 = vpop.trf.xlu0
    %v9160 = vpop.trf.xlu0
    %v9161 = vsub.f32 0.0, %v9113
    %v9162 = vsub.f32 0.0, %v9145
    %v9163 = vmax.f32 %v9161, 0.0
    %v9164 = vmax.f32 %v9162, 0.0
    %v9165 = vand.u32 2147483647, %v9113
    %v9166 = vand.u32 2147483647, %v9145
    %v9167 = vsub.f32 0.0, %v9165
    %v9168 = vsub.f32 0.0, %v9166
    %v9169 = vmul.f32 %v9167, 1.442695
    %v9170 = vpow.pop %v9169
    %v9171 = vmul.f32 %v9168, 1.442695
    %v9172 = vpow.pop %v9171
    %v9173 = vadd.f32 %v9170, 1.0
    %v9174 = vlog2.pop %v9173
    %v9175 = vmul.f32 %v9174, 0.6931472
    %v9176 = vmul.f32 -0.5, %v9170
    %v9177 = vadd.f32 %v9176, 1.0
    %v9178 = vmul.f32 %v9177, %v9170
    %v9179 = vand.u32 2147483647, %v9170
    %vm9180 = vcmp.lt.f32.partialorder %v9179, 0.0004427343
    %v9181 = vsel %vm9180, %v9178, %v9175
    %v9182 = vadd.f32 %v9172, 1.0
    %v9183 = vlog2.pop %v9182
    %v9184 = vmul.f32 %v9183, 0.6931472
    %v9185 = vmul.f32 -0.5, %v9172
    %v9186 = vadd.f32 %v9185, 1.0
    %v9187 = vmul.f32 %v9186, %v9172
    %v9188 = vand.u32 2147483647, %v9172
    %vm9189 = vcmp.lt.f32.partialorder %v9188, 0.0004427343
    %v9190 = vsel %vm9189, %v9187, %v9184
    %v9191 = vadd.f32 %v9163, %v9181
    %v9192 = vadd.f32 %v9164, %v9190
    %v9193 = vsub.f32 0.0, %v9191
    %v9194 = vsub.f32 0.0, %v9192
    %vm9195 = vcmask 1044480
    %v9196 = vsel %vm9195, %v9193, 0.0
    %v9197 = vrot.slane %v9196, 4
    %v9198 = vadd.f32 %v9196, %v9197
    %v9199 = vrot.slane %v9198, 2
    %v9200 = vadd.f32 %v9198, %v9199
    %v9201 = vrot.slane %v9200, 1
    %v9202 = vadd.f32 %v9200, %v9201
    %v9203 = vsel %vm9195, %v9194, 0.0
    %v9204 = vrot.slane %v9203, 4
    %v9205 = vadd.f32 %v9203, %v9204
    %v9206 = vrot.slane %v9205, 2
    %v9207 = vadd.f32 %v9205, %v9206
    %v9208 = vrot.slane %v9207, 1
    %v9209 = vadd.f32 %v9207, %v9208
    %v9212 = vcombine.low %v9202, %v9209
    %v9214 = vunpack.c.l.s4 1966171168
    %v9215 = vunpack.c.0.s8 %v9214
    %v9216 = vlaneseq
    %v9217 = vshrl.u32 %v9216, 7
    %v9218 = vsub.s32 %v9215, %v9217
    %v9219 = vrot.slane %v9212, %v9218
    %v9221 = vunpack.c.l.s4 1966171168
    %v9222 = vunpack.c.0.s8 %v9221
    %v9223 = vlaneseq
    %v9224 = vshrl.u32 %v9223, 7
    %v9225 = vsub.s32 %v9222, %v9224
    %v9226 = vrot.slane %v9219, %v9225
    %v9228 = vmul.f32 %v345, %v9226
    %v9229 = vsub.f32 0.0, %v9228
    %v9230 = vlaneseq
    %vm9231 = vcmp.ge.s32.totalorder %v9230, 0
    %vm9232 = vcmp.lt.s32.totalorder %v9230, 256
    %vm9233 = vmand %vm9231, %vm9232
    %9234 = vst.msk [vmem:[#allocation2] sm:$0x3] %vm9233, %v9229
    // Predicated region
    $region22: #{tpu_custom_call.1} parent=1 // pred_check
      _
    $region23: #{tpu_custom_call.1} parent=1 // pred_check_branch
      %9236 = sbr.rel (0) target = $region25
    $region24: #{tpu_custom_call.1} parent=1 // pred_region
      %s9238 = ssub.s32 32, 32
      %9239 = vsyncadd [#allocation3], %s9238
      %s9241 = sshll.u32 [#allocation2], 4
      %s9242 = int_to_ptr.vmem [resolvable:$true] %s9241
      %9244 = dma.vmem_to_hbm [thread:$0]  %s9242, 32, %s5, [#allocation3]
    $region25: #{tpu_custom_call.1} parent=1 // pred_fallthru
      _
    // Predicated region
    $region26: #{tpu_custom_call.1} parent=1 // pred_check
      _
    $region27: #{tpu_custom_call.1} parent=1 // pred_check_branch
      %9246 = sbr.rel (0) target = $region29
    $region28: #{tpu_custom_call.1} parent=1 // pred_region
      %9247 = dma.done [#allocation3], 32
    $region29: #{tpu_custom_call.1} parent=1 // pred_fallthru
      _
    %9248 = vsyncpa [#allocation3], 1

</llo_original>
